<compile_context>
chip_gen: v7x
topology: tpu7x:2x2x1
jax: 0.10.0
libtpu: 0.0.40
codegen_flags: <defaults>
</compile_context>

<pallas_src>
import jax
import jax.numpy as jnp
from jax.experimental import pallas as pl
from jax.experimental.pallas import tpu as pltpu

# ------------------------------- geometry ---------------------------------- #
H = W = 28            # spatial size required by fc1 = Linear(64*14*14, 100)
SP = 32               # row stride of the flattened padded planes (power of 2)
L1 = 968              # conv1 output rows computed (30 rows * 32 stride, +8 slack)
C1 = 32               # conv1 out channels
L2 = 896              # conv2 output rows (28 rows * 32 stride) = 7 * 128
C2 = 64               # conv2 out channels
LP = 864              # rows of the pooled-window-max array (>= last anchor 858)
NPOOL = 14 * 14       # 196 pooled positions
KFC = NPOOL * C2      # 12544 = fc1 input features
TK = 1792             # fc1 K tile (14*128); 12544 / 1792 = 7 grid steps

_VMEM_32M = 32 * 1024 * 1024


# ------------------- kernel 1: conv1 + conv2 + maxpool --------------------- #
def _encoder_conv_kernel(taps_ref, w1_ref, b1_ref, w2_ref, b2_ref, sel_ref,
                         out_ref, h1p_ref, h2s_ref):
    # ---- conv1: one K=9 matmul over all flat positions of the padded plane.
    h1 = jnp.dot(taps_ref[0], w1_ref[...], preferred_element_type=jnp.float32)
    h1 = jnp.maximum(h1 + b1_ref[...], 0.0)                        # (L1, 32)
    # Mask non-interior rows to exact zeros: they are conv2's zero padding.
    p = jax.lax.broadcasted_iota(jnp.int32, (L1, C1), 0)
    row = jnp.right_shift(p, 5)                                    # p // 32
    col = jnp.bitwise_and(p, 31)                                   # p % 32
    interior = (row >= 1) & (row <= H) & (col >= 1) & (col <= W)
    h1p_ref[...] = jnp.where(interior, h1, 0.0)                    # (L1, 32)

    # ---- conv2: fold the 9 taps into K -> ONE (896, 288) @ (288, 64) matmul.
    x2 = jnp.concatenate(
        [h1p_ref[pl.ds(dy * SP + dx, L2), :]
         for dy in range(3) for dx in range(3)], axis=-1)          # (L2, 288)
    h2 = jnp.dot(x2, w2_ref[...], preferred_element_type=jnp.float32)
    h2 = jnp.maximum(h2 + b2_ref[...], 0.0)                        # (L2, 64)

    # ---- fused 2x2/stride-2 maxpool: 4-tap max on the flat plane, then
    # compact the 196 selected anchors with a 0/1 selection matmul.
    h2s_ref[pl.ds(0, L2), :] = h2
    h2s_ref[pl.ds(L2, 8), :] = jnp.zeros((8, C2), jnp.float32)     # keep reads finite
    m = jnp.maximum(
        jnp.maximum(h2s_ref[pl.ds(0, LP), :], h2s_ref[pl.ds(1, LP), :]),
        jnp.maximum(h2s_ref[pl.ds(SP, LP), :], h2s_ref[pl.ds(SP + 1, LP), :]))
    out_ref[0] = jnp.dot(sel_ref[...], m, preferred_element_type=jnp.float32)


def encoder_conv_pool(taps, w1r, b1, w2r, b2, sel):
    """taps: (B, L1, 9) -> pooled features (B, 196, 64)."""
    B = taps.shape[0]
    return pl.pallas_call(
        _encoder_conv_kernel,
        out_shape=jax.ShapeDtypeStruct((B, NPOOL, C2), jnp.float32),
        grid=(B,),
        in_specs=[
            pl.BlockSpec((1, L1, 9), lambda i: (i, 0, 0)),
            pl.BlockSpec((9, C1), lambda i: (0, 0)),
            pl.BlockSpec((1, C1), lambda i: (0, 0)),
            pl.BlockSpec((9 * C1, C2), lambda i: (0, 0)),
            pl.BlockSpec((1, C2), lambda i: (0, 0)),
            pl.BlockSpec((NPOOL, LP), lambda i: (0, 0)),
        ],
        out_specs=pl.BlockSpec((1, NPOOL, C2), lambda i: (i, 0, 0)),
        scratch_shapes=[
            pltpu.VMEM((L1, C1), jnp.float32),        # padded conv1 plane
            pltpu.VMEM((L2 + 8, C2), jnp.float32),    # conv2 plane (+zero tail)
        ],
        compiler_params=pltpu.CompilerParams(
            dimension_semantics=("parallel",),
            vmem_limit_bytes=_VMEM_32M),
    )(taps, w1r, b1.reshape(1, C1), w2r, b2.reshape(1, C2), sel)


# ----------------- kernel 2: fc1 (K-tiled) + fc2 + decoder ------------------ #
def _fc_head_kernel(x_ref, w1_ref, b1_ref, w2_ref, b2_ref, w3_ref, b3_ref,
                    z_ref, pred_ref, acc_ref):
    k = pl.program_id(0)

    @pl.when(k == 0)
    def _init():
        acc_ref[...] = jnp.zeros_like(acc_ref)

    acc_ref[...] += jnp.dot(x_ref[...], w1_ref[...],
                            preferred_element_type=jnp.float32)

    @pl.when(k == pl.num_programs(0) - 1)
    def _finalize():
        h = jnp.maximum(acc_ref[...] + b1_ref[...], 0.0)           # fc1 + ReLU
        z = jnp.dot(h, w2_ref[...],
                    preferred_element_type=jnp.float32) + b2_ref[...]
        z_ref[...] = z                                             # fc2 -> latent
        pred_ref[...] = jnp.dot(jnp.maximum(z, 0.0), w3_ref[...],  # decoder
                                preferred_element_type=jnp.float32) + b3_ref[...]


def fc_head(feats, fc1_wt, fc1_b, fc2_wt, fc2_b, dec_wt, dec_b):
    """feats: (B, 12544) -> (z: (B, latent), pred: (B, 10))."""
    B, K = feats.shape
    latent = fc2_wt.shape[1]
    assert K % TK == 0, "fc1 K dim must tile evenly"
    nk = K // TK
    z, pred = pl.pallas_call(
        _fc_head_kernel,
        out_shape=(jax.ShapeDtypeStruct((B, latent), jnp.float32),
                   jax.ShapeDtypeStruct((B, 10), jnp.float32)),
        grid=(nk,),
        in_specs=[
            pl.BlockSpec((B, TK), lambda k: (0, k)),
            pl.BlockSpec((TK, 100), lambda k: (k, 0)),
            pl.BlockSpec((1, 100), lambda k: (0, 0)),
            pl.BlockSpec((100, latent), lambda k: (0, 0)),
            pl.BlockSpec((1, latent), lambda k: (0, 0)),
            pl.BlockSpec((latent, 10), lambda k: (0, 0)),
            pl.BlockSpec((1, 10), lambda k: (0, 0)),
        ],
        out_specs=(pl.BlockSpec((B, latent), lambda k: (0, 0)),
                   pl.BlockSpec((B, 10), lambda k: (0, 0))),
        scratch_shapes=[pltpu.VMEM((B, 100), jnp.float32)],
        compiler_params=pltpu.CompilerParams(
            dimension_semantics=("arbitrary",),
            vmem_limit_bytes=_VMEM_32M),
    )(feats, fc1_wt, fc1_b.reshape(1, 100), fc2_wt, fc2_b.reshape(1, latent),
      dec_wt, dec_b.reshape(1, 10))
    return z, pred


# ------------------------------ XLA-side glue ------------------------------ #
def _conv1_taps(x_nchw):
    """Build the 9 tap columns (B, L1, 9) of the doubly-padded, stride-32 input."""
    B = x_nchw.shape[0]
    x = x_nchw[:, 0]                                   # (B, 28, 28)
    xp = jnp.pad(x, ((0, 0), (2, 3), (2, 2)))          # (B, 33, 32)
    xf = xp.reshape(B, 33 * SP)                        # (B, 1056)
    return jnp.stack([xf[:, dy * SP + dx: dy * SP + dx + L1]
                      for dy in range(3) for dx in range(3)], axis=-1)


def _pool_select():
    """0/1 matrix picking the 196 pooling-window anchor rows out of LP rows."""
    r = jnp.arange(NPOOL)
    cols = 2 * SP * (r // 14) + 2 * (r % 14)
    return jnp.zeros((NPOOL, LP), jnp.float32).at[r, cols].set(1.0)


# ----------------------------- parameters (init) --------------------------- #
def make_params(key, latent_dim):
    """Deterministic synthetic params with the PyTorch module's shapes/layouts."""
    ks = jax.random.split(key, 9)

    def u(k, shape, fan_in):
        bound = 1.0 / jnp.sqrt(float(fan_in))
        return jax.random.uniform(k, shape, jnp.float32, -bound, bound)

    # PyTorch-shaped params
    conv1_w = u(ks[0], (32, 1, 3, 3), 1 * 9)            # OIHW
    conv1_b = u(ks[1], (32,), 1 * 9)
    conv2_w = u(ks[2], (64, 32, 3, 3), 32 * 9)
    conv2_b = u(ks[3], (64,), 32 * 9)
    fc1_w = u(ks[4], (100, KFC), KFC)
    fc1_b = u(ks[5], (100,), KFC)
    fc2_w = u(ks[6], (latent_dim, 100), 100)
    fc2_b = u(ks[7], (latent_dim,), 100)
    dec_w = jnp.eye(10, latent_dim, dtype=jnp.float32)   # nn.init.eye_ (id_init=True)
    dec_b = u(ks[8], (10,), latent_dim)

    return {
        # conv weights: OIHW -> HWIO -> (tap*cin, cout) rows in (dy, dx, ci) order
        "conv1_w": jnp.transpose(conv1_w, (2, 3, 1, 0)).reshape(9, C1),
        "conv1_b": conv1_b,
        "conv2_w": jnp.transpose(conv2_w, (2, 3, 1, 0)).reshape(9 * C1, C2),
        "conv2_b": conv2_b,
        # fc1: permute PyTorch's (c,h,w) flatten order to our (h,w,c) order
        "fc1_wt": jnp.transpose(
            fc1_w.reshape(100, C2, 14, 14), (0, 2, 3, 1)).reshape(100, -1).T,
        "fc1_b": fc1_b,
        "fc2_wt": fc2_w.T,
        "fc2_b": fc2_b,
        "dec_wt": dec_w.T,
        "dec_b": dec_b,
    }


# ------------------------------- full forward ------------------------------ #
@jax.jit
def mnist_model_forward(params, x_nchw):
    """Returns (pred, z) exactly like MNIST_Model.forward."""
    B = x_nchw.shape[0]
    taps = _conv1_taps(x_nchw)                          # (B, L1, 9), ~35 KB/img
    sel = _pool_select()                                # constant-folded by XLA
    pooled = encoder_conv_pool(taps, params["conv1_w"], params["conv1_b"],
                               params["conv2_w"], params["conv2_b"], sel)
    feats = pooled.reshape(B, KFC)                      # free (contiguous) reshape
    z, pred = fc_head(feats, params["fc1_wt"], params["fc1_b"],
                      params["fc2_wt"], params["fc2_b"],
                      params["dec_wt"], params["dec_b"])
    return pred, z


if __name__ == "__main__":
    latent_dim = 16
    batch = 2
    key = jax.random.PRNGKey(0)
    kx, kp = jax.random.split(key)
    # 28x28 single-channel input is required by fc1 = Linear(64*14*14, 100)
    x = jax.random.normal(kx, (batch, 1, 28, 28), jnp.float32)
    params = make_params(kp, latent_dim)

    pred, z = mnist_model_forward(params, x)
    jax.block_until_ready((pred, z))
    assert pred.shape == (batch, 10) and z.shape == (batch, latent_dim)
    assert pred.dtype == jnp.float32 and z.dtype == jnp.float32
    assert bool(jnp.isfinite(pred).all()) and bool(jnp.isfinite(z).all())
    print("KERNEL_OK")
</pallas_src>

<mosaic_0001>
module attributes {stable_mosaic.version = 11 : i64} {
  func.func @_encoder_conv_kernel(%arg0: i32, %arg1: memref<1x968x9xf32, #tpu.memory_space<vmem>>, %arg2: memref<9x32xf32, #tpu.memory_space<vmem>>, %arg3: memref<1x32xf32, #tpu.memory_space<vmem>>, %arg4: memref<288x64xf32, #tpu.memory_space<vmem>>, %arg5: memref<1x64xf32, #tpu.memory_space<vmem>>, %arg6: memref<196x864xf32, #tpu.memory_space<vmem>>, %arg7: memref<1x196x64xf32, #tpu.memory_space<vmem>>, %arg8: memref<968x32xf32, #tpu.memory_space<vmem>>, %arg9: memref<904x64xf32, #tpu.memory_space<vmem>>) attributes {dimension_semantics = [#tpu.dimension_semantics<parallel>], iteration_bounds = array<i64: 2>, scalar_prefetch = 0 : i64, scratch_operands = 2 : i64, tpu.core_type = #tpu.core_type<tc>, window_params = [{transform_indices = @transform_0, window_bounds = array<i64: 1, 968, 9>}, {pipeline_mode = #tpu.pipeline_mode<synchronous>, transform_indices = @transform_1, window_bounds = array<i64: 9, 32>}, {pipeline_mode = #tpu.pipeline_mode<synchronous>, transform_indices = @transform_2, window_bounds = array<i64: 1, 32>}, {pipeline_mode = #tpu.pipeline_mode<synchronous>, transform_indices = @transform_3, window_bounds = array<i64: 288, 64>}, {pipeline_mode = #tpu.pipeline_mode<synchronous>, transform_indices = @transform_4, window_bounds = array<i64: 1, 64>}, {pipeline_mode = #tpu.pipeline_mode<synchronous>, transform_indices = @transform_5, window_bounds = array<i64: 196, 864>}, {transform_indices = @transform_6, window_bounds = array<i64: 1, 196, 64>}]} {
    %c0 = arith.constant 0 : index
    %c0_0 = arith.constant 0 : index
    %c0_1 = arith.constant 0 : index
    %0 = vector.load %arg1[%c0, %c0_0, %c0_1] : memref<1x968x9xf32, #tpu.memory_space<vmem>>, vector<1x968x9xf32>
    %1 = vector.shape_cast %0 : vector<1x968x9xf32> to vector<968x9xf32>
    %c0_2 = arith.constant 0 : index
    %c0_3 = arith.constant 0 : index
    %2 = vector.load %arg2[%c0_2, %c0_3] : memref<9x32xf32, #tpu.memory_space<vmem>>, vector<9x32xf32>
    %cst = arith.constant dense<0.000000e+00> : vector<968x32xf32>
    %3 = tpu.matmul %1, %2, %cst {dimension_numbers = #tpu.dot_dimension_numbers<[1], [0], [0], [1], [0, 0, 1, 1], [], []>} : vector<968x9xf32>, vector<9x32xf32>, vector<968x32xf32> -> vector<968x32xf32>
    %c0_4 = arith.constant 0 : index
    %c0_5 = arith.constant 0 : index
    %4 = vector.load %arg3[%c0_4, %c0_5] : memref<1x32xf32, #tpu.memory_space<vmem>>, vector<1x32xf32>
    %5 = vector.broadcast %4 : vector<1x32xf32> to vector<968x32xf32>
    %6 = arith.addf %3, %5 : vector<968x32xf32>
    %cst_6 = arith.constant 0.000000e+00 : f32
    %7 = vector.broadcast %cst_6 : f32 to vector<968x32xf32>
    %8 = arith.maximumf %6, %7 : vector<968x32xf32>
    %9 = tpu.iota {dimensions = array<i32: 0>} : vector<968x32xi32>
    %c5_i32 = arith.constant 5 : i32
    %10 = vector.broadcast %c5_i32 : i32 to vector<968x32xi32>
    %11 = arith.shrsi %9, %10 : vector<968x32xi32>
    %c31_i32 = arith.constant 31 : i32
    %12 = vector.broadcast %c31_i32 : i32 to vector<968x32xi32>
    %13 = arith.andi %9, %12 : vector<968x32xi32>
    %c1_i32 = arith.constant 1 : i32
    %14 = vector.broadcast %c1_i32 : i32 to vector<968x32xi32>
    %15 = arith.cmpi sge, %11, %14 : vector<968x32xi32>
    %c28_i32 = arith.constant 28 : i32
    %16 = vector.broadcast %c28_i32 : i32 to vector<968x32xi32>
    %17 = arith.cmpi sle, %11, %16 : vector<968x32xi32>
    %18 = arith.andi %15, %17 : vector<968x32xi1>
    %c1_i32_7 = arith.constant 1 : i32
    %19 = vector.broadcast %c1_i32_7 : i32 to vector<968x32xi32>
    %20 = arith.cmpi sge, %13, %19 : vector<968x32xi32>
    %21 = arith.andi %18, %20 : vector<968x32xi1>
    %c28_i32_8 = arith.constant 28 : i32
    %22 = vector.broadcast %c28_i32_8 : i32 to vector<968x32xi32>
    %23 = arith.cmpi sle, %13, %22 : vector<968x32xi32>
    %24 = arith.andi %21, %23 : vector<968x32xi1>
    %cst_9 = arith.constant 0.000000e+00 : f32
    %25 = vector.broadcast %cst_9 : f32 to vector<968x32xf32>
    %26 = arith.select %24, %8, %25 : vector<968x32xi1>, vector<968x32xf32>
    %c0_10 = arith.constant 0 : index
    %c0_11 = arith.constant 0 : index
    %27 = vector.load %arg8[%c0_10, %c0_11] : memref<968x32xf32, #tpu.memory_space<vmem>>, vector<968x32xf32>
    tpu.vector_store %arg8[%c0_10, %c0_11], %26 {strides = array<i32>} : memref<968x32xf32, #tpu.memory_space<vmem>>, vector<968x32xf32>,
    %c0_12 = arith.constant 0 : index
    %c0_13 = arith.constant 0 : index
    %28 = vector.load %arg8[%c0_12, %c0_13] : memref<968x32xf32, #tpu.memory_space<vmem>>, vector<896x32xf32>
    %c1 = arith.constant 1 : index
    %c0_14 = arith.constant 0 : index
    %29 = vector.load %arg8[%c1, %c0_14] : memref<968x32xf32, #tpu.memory_space<vmem>>, vector<896x32xf32>
    %c2 = arith.constant 2 : index
    %c0_15 = arith.constant 0 : index
    %30 = vector.load %arg8[%c2, %c0_15] : memref<968x32xf32, #tpu.memory_space<vmem>>, vector<896x32xf32>
    %c32 = arith.constant 32 : index
    %c0_16 = arith.constant 0 : index
    %31 = vector.load %arg8[%c32, %c0_16] : memref<968x32xf32, #tpu.memory_space<vmem>>, vector<896x32xf32>
    %c33 = arith.constant 33 : index
    %c0_17 = arith.constant 0 : index
    %32 = vector.load %arg8[%c33, %c0_17] : memref<968x32xf32, #tpu.memory_space<vmem>>, vector<896x32xf32>
    %c34 = arith.constant 34 : index
    %c0_18 = arith.constant 0 : index
    %33 = vector.load %arg8[%c34, %c0_18] : memref<968x32xf32, #tpu.memory_space<vmem>>, vector<896x32xf32>
    %c64 = arith.constant 64 : index
    %c0_19 = arith.constant 0 : index
    %34 = vector.load %arg8[%c64, %c0_19] : memref<968x32xf32, #tpu.memory_space<vmem>>, vector<896x32xf32>
    %c65 = arith.constant 65 : index
    %c0_20 = arith.constant 0 : index
    %35 = vector.load %arg8[%c65, %c0_20] : memref<968x32xf32, #tpu.memory_space<vmem>>, vector<896x32xf32>
    %c66 = arith.constant 66 : index
    %c0_21 = arith.constant 0 : index
    %36 = vector.load %arg8[%c66, %c0_21] : memref<968x32xf32, #tpu.memory_space<vmem>>, vector<896x32xf32>
    %37 = tpu.concatenate %28, %29, %30, %31, %32, %33, %34, %35, %36 in 1 : vector<896x32xf32>, vector<896x32xf32>, vector<896x32xf32>, vector<896x32xf32>, vector<896x32xf32>, vector<896x32xf32>, vector<896x32xf32>, vector<896x32xf32>, vector<896x32xf32> -> vector<896x288xf32>
    %c0_22 = arith.constant 0 : index
    %c0_23 = arith.constant 0 : index
    %38 = vector.load %arg4[%c0_22, %c0_23] : memref<288x64xf32, #tpu.memory_space<vmem>>, vector<288x64xf32>
    %cst_24 = arith.constant dense<0.000000e+00> : vector<896x64xf32>
    %39 = tpu.matmul %37, %38, %cst_24 {dimension_numbers = #tpu.dot_dimension_numbers<[1], [0], [0], [1], [0, 0, 1, 1], [], []>} : vector<896x288xf32>, vector<288x64xf32>, vector<896x64xf32> -> vector<896x64xf32>
    %c0_25 = arith.constant 0 : index
    %c0_26 = arith.constant 0 : index
    %40 = vector.load %arg5[%c0_25, %c0_26] : memref<1x64xf32, #tpu.memory_space<vmem>>, vector<1x64xf32>
    %41 = vector.broadcast %40 : vector<1x64xf32> to vector<896x64xf32>
    %42 = arith.addf %39, %41 : vector<896x64xf32>
    %cst_27 = arith.constant 0.000000e+00 : f32
    %43 = vector.broadcast %cst_27 : f32 to vector<896x64xf32>
    %44 = arith.maximumf %42, %43 : vector<896x64xf32>
    %c0_28 = arith.constant 0 : index
    %c0_29 = arith.constant 0 : index
    %45 = vector.load %arg9[%c0_28, %c0_29] : memref<904x64xf32, #tpu.memory_space<vmem>>, vector<896x64xf32>
    tpu.vector_store %arg9[%c0_28, %c0_29], %44 {strides = array<i32>} : memref<904x64xf32, #tpu.memory_space<vmem>>, vector<896x64xf32>,
    %cst_30 = arith.constant 0.000000e+00 : f32
    %46 = vector.broadcast %cst_30 : f32 to vector<8x64xf32>
    %c896 = arith.constant 896 : index
    %c0_31 = arith.constant 0 : index
    %47 = vector.load %arg9[%c896, %c0_31] : memref<904x64xf32, #tpu.memory_space<vmem>>, vector<8x64xf32>
    tpu.vector_store %arg9[%c896, %c0_31], %46 {strides = array<i32>} : memref<904x64xf32, #tpu.memory_space<vmem>>, vector<8x64xf32>,
    %c0_32 = arith.constant 0 : index
    %c0_33 = arith.constant 0 : index
    %48 = vector.load %arg9[%c0_32, %c0_33] : memref<904x64xf32, #tpu.memory_space<vmem>>, vector<864x64xf32>
    %c1_34 = arith.constant 1 : index
    %c0_35 = arith.constant 0 : index
    %49 = vector.load %arg9[%c1_34, %c0_35] : memref<904x64xf32, #tpu.memory_space<vmem>>, vector<864x64xf32>
    %50 = arith.maximumf %48, %49 : vector<864x64xf32>
    %c32_36 = arith.constant 32 : index
    %c0_37 = arith.constant 0 : index
    %51 = vector.load %arg9[%c32_36, %c0_37] : memref<904x64xf32, #tpu.memory_space<vmem>>, vector<864x64xf32>
    %c33_38 = arith.constant 33 : index
    %c0_39 = arith.constant 0 : index
    %52 = vector.load %arg9[%c33_38, %c0_39] : memref<904x64xf32, #tpu.memory_space<vmem>>, vector<864x64xf32>
    %53 = arith.maximumf %51, %52 : vector<864x64xf32>
    %54 = arith.maximumf %50, %53 : vector<864x64xf32>
    %c0_40 = arith.constant 0 : index
    %c0_41 = arith.constant 0 : index
    %55 = vector.load %arg6[%c0_40, %c0_41] : memref<196x864xf32, #tpu.memory_space<vmem>>, vector<196x864xf32>
    %cst_42 = arith.constant dense<0.000000e+00> : vector<196x64xf32>
    %56 = tpu.matmul %55, %54, %cst_42 {dimension_numbers = #tpu.dot_dimension_numbers<[1], [0], [0], [1], [0, 0, 1, 1], [], []>} : vector<196x864xf32>, vector<864x64xf32>, vector<196x64xf32> -> vector<196x64xf32>
    %c0_43 = arith.constant 0 : index
    %c0_44 = arith.constant 0 : index
    %c0_45 = arith.constant 0 : index
    %57 = vector.load %arg7[%c0_43, %c0_44, %c0_45] : memref<1x196x64xf32, #tpu.memory_space<vmem>>, vector<1x196x64xf32>
    %58 = vector.shape_cast %57 : vector<1x196x64xf32> to vector<196x64xf32>
    %59 = vector.shape_cast %56 : vector<196x64xf32> to vector<1x196x64xf32>
    tpu.vector_store %arg7[%c0_43, %c0_44, %c0_45], %59 {strides = array<i32>} : memref<1x196x64xf32, #tpu.memory_space<vmem>>, vector<1x196x64xf32>,
    return
  }
  func.func @transform_0(%arg0: i32) -> (i32, i32, i32) {
    %c0_i32 = arith.constant 0 : i32
    %c0_i32_0 = arith.constant 0 : i32
    %c0_i32_1 = arith.constant 0 : i32
    return %arg0, %c0_i32, %c0_i32_0 : i32, i32, i32
  }
  func.func @transform_1(%arg0: i32) -> (i32, i32) {
    %c0_i32 = arith.constant 0 : i32
    %c0_i32_0 = arith.constant 0 : i32
    %c0_i32_1 = arith.constant 0 : i32
    return %c0_i32, %c0_i32_0 : i32, i32
  }
  func.func @transform_2(%arg0: i32) -> (i32, i32) {
    %c0_i32 = arith.constant 0 : i32
    %c0_i32_0 = arith.constant 0 : i32
    %c0_i32_1 = arith.constant 0 : i32
    return %c0_i32, %c0_i32_0 : i32, i32
  }
  func.func @transform_3(%arg0: i32) -> (i32, i32) {
    %c0_i32 = arith.constant 0 : i32
    %c0_i32_0 = arith.constant 0 : i32
    %c0_i32_1 = arith.constant 0 : i32
    return %c0_i32, %c0_i32_0 : i32, i32
  }
  func.func @transform_4(%arg0: i32) -> (i32, i32) {
    %c0_i32 = arith.constant 0 : i32
    %c0_i32_0 = arith.constant 0 : i32
    %c0_i32_1 = arith.constant 0 : i32
    return %c0_i32, %c0_i32_0 : i32, i32
  }
  func.func @transform_5(%arg0: i32) -> (i32, i32) {
    %c0_i32 = arith.constant 0 : i32
    %c0_i32_0 = arith.constant 0 : i32
    %c0_i32_1 = arith.constant 0 : i32
    return %c0_i32, %c0_i32_0 : i32, i32
  }
  func.func @transform_6(%arg0: i32) -> (i32, i32, i32) {
    %c0_i32 = arith.constant 0 : i32
    %c0_i32_0 = arith.constant 0 : i32
    %c0_i32_1 = arith.constant 0 : i32
    return %arg0, %c0_i32, %c0_i32_0 : i32, i32, i32
  }
}

module attributes {stable_mosaic.version = 11 : i64} {
  func.func @_fc_head_kernel(%arg0: i32, %arg1: memref<2x1792xf32, #tpu.memory_space<vmem>>, %arg2: memref<1792x100xf32, #tpu.memory_space<vmem>>, %arg3: memref<1x100xf32, #tpu.memory_space<vmem>>, %arg4: memref<100x16xf32, #tpu.memory_space<vmem>>, %arg5: memref<1x16xf32, #tpu.memory_space<vmem>>, %arg6: memref<16x10xf32, #tpu.memory_space<vmem>>, %arg7: memref<1x10xf32, #tpu.memory_space<vmem>>, %arg8: memref<2x16xf32, #tpu.memory_space<vmem>>, %arg9: memref<2x10xf32, #tpu.memory_space<vmem>>, %arg10: memref<2x100xf32, #tpu.memory_space<vmem>>) attributes {dimension_semantics = [#tpu.dimension_semantics<arbitrary>], iteration_bounds = array<i64: 7>, scalar_prefetch = 0 : i64, scratch_operands = 1 : i64, tpu.core_type = #tpu.core_type<tc>, window_params = [{transform_indices = @transform_0, window_bounds = array<i64: 2, 1792>}, {transform_indices = @transform_1, window_bounds = array<i64: 1792, 100>}, {pipeline_mode = #tpu.pipeline_mode<synchronous>, transform_indices = @transform_2, window_bounds = array<i64: 1, 100>}, {pipeline_mode = #tpu.pipeline_mode<synchronous>, transform_indices = @transform_3, window_bounds = array<i64: 100, 16>}, {pipeline_mode = #tpu.pipeline_mode<synchronous>, transform_indices = @transform_4, window_bounds = array<i64: 1, 16>}, {pipeline_mode = #tpu.pipeline_mode<synchronous>, transform_indices = @transform_5, window_bounds = array<i64: 16, 10>}, {pipeline_mode = #tpu.pipeline_mode<synchronous>, transform_indices = @transform_6, window_bounds = array<i64: 1, 10>}, {pipeline_mode = #tpu.pipeline_mode<synchronous>, transform_indices = @transform_7, window_bounds = array<i64: 2, 16>}, {pipeline_mode = #tpu.pipeline_mode<synchronous>, transform_indices = @transform_8, window_bounds = array<i64: 2, 10>}]} {
    %c0_i32 = arith.constant 0 : i32
    %0 = arith.cmpi eq, %arg0, %c0_i32 : i32
    %1 = arith.extui %0 : i1 to i32
    %c0_i32_0 = arith.constant 0 : i32
    %2 = arith.cmpi ne, %1, %c0_i32_0 : i32
    scf.if %2 {
      %cst_9 = arith.constant 0.000000e+00 : f32
      %12 = vector.broadcast %cst_9 : f32 to vector<2x100xf32>
      %c0_10 = arith.constant 0 : index
      %c0_11 = arith.constant 0 : index
      %13 = vector.load %arg10[%c0_10, %c0_11] : memref<2x100xf32, #tpu.memory_space<vmem>>, vector<2x100xf32>
      tpu.vector_store %arg10[%c0_10, %c0_11], %12 {strides = array<i32>} : memref<2x100xf32, #tpu.memory_space<vmem>>, vector<2x100xf32>,
    } else {
    }
    %c0 = arith.constant 0 : index
    %c0_1 = arith.constant 0 : index
    %3 = vector.load %arg10[%c0, %c0_1] : memref<2x100xf32, #tpu.memory_space<vmem>>, vector<2x100xf32>
    %c0_2 = arith.constant 0 : index
    %c0_3 = arith.constant 0 : index
    %4 = vector.load %arg1[%c0_2, %c0_3] : memref<2x1792xf32, #tpu.memory_space<vmem>>, vector<2x1792xf32>
    %c0_4 = arith.constant 0 : index
    %c0_5 = arith.constant 0 : index
    %5 = vector.load %arg2[%c0_4, %c0_5] : memref<1792x100xf32, #tpu.memory_space<vmem>>, vector<1792x100xf32>
    %cst = arith.constant dense<0.000000e+00> : vector<2x100xf32>
    %6 = tpu.matmul %4, %5, %cst {dimension_numbers = #tpu.dot_dimension_numbers<[1], [0], [0], [1], [0, 0, 1, 1], [], []>} : vector<2x1792xf32>, vector<1792x100xf32>, vector<2x100xf32> -> vector<2x100xf32>
    %7 = arith.addf %3, %6 : vector<2x100xf32>
    %c0_6 = arith.constant 0 : index
    %c0_7 = arith.constant 0 : index
    %8 = vector.load %arg10[%c0_6, %c0_7] : memref<2x100xf32, #tpu.memory_space<vmem>>, vector<2x100xf32>
    tpu.vector_store %arg10[%c0_6, %c0_7], %7 {strides = array<i32>} : memref<2x100xf32, #tpu.memory_space<vmem>>, vector<2x100xf32>,
    %c6_i32 = arith.constant 6 : i32
    %9 = arith.cmpi eq, %arg0, %c6_i32 : i32
    %10 = arith.extui %9 : i1 to i32
    %c0_i32_8 = arith.constant 0 : i32
    %11 = arith.cmpi ne, %10, %c0_i32_8 : i32
    scf.if %11 {
      %c0_9 = arith.constant 0 : index
      %c0_10 = arith.constant 0 : index
      %12 = vector.load %arg10[%c0_9, %c0_10] : memref<2x100xf32, #tpu.memory_space<vmem>>, vector<2x100xf32>
      %c0_11 = arith.constant 0 : index
      %c0_12 = arith.constant 0 : index
      %13 = vector.load %arg3[%c0_11, %c0_12] : memref<1x100xf32, #tpu.memory_space<vmem>>, vector<1x100xf32>
      %14 = vector.broadcast %13 : vector<1x100xf32> to vector<2x100xf32>
      %15 = arith.addf %12, %14 : vector<2x100xf32>
      %cst_13 = arith.constant 0.000000e+00 : f32
      %16 = vector.broadcast %cst_13 : f32 to vector<2x100xf32>
      %17 = arith.maximumf %15, %16 : vector<2x100xf32>
      %c0_14 = arith.constant 0 : index
      %c0_15 = arith.constant 0 : index
      %18 = vector.load %arg4[%c0_14, %c0_15] : memref<100x16xf32, #tpu.memory_space<vmem>>, vector<100x16xf32>
      %cst_16 = arith.constant dense<0.000000e+00> : vector<2x16xf32>
      %19 = tpu.matmul %17, %18, %cst_16 {dimension_numbers = #tpu.dot_dimension_numbers<[1], [0], [0], [1], [0, 0, 1, 1], [], []>} : vector<2x100xf32>, vector<100x16xf32>, vector<2x16xf32> -> vector<2x16xf32>
      %c0_17 = arith.constant 0 : index
      %c0_18 = arith.constant 0 : index
      %20 = vector.load %arg5[%c0_17, %c0_18] : memref<1x16xf32, #tpu.memory_space<vmem>>, vector<1x16xf32>
      %21 = vector.broadcast %20 : vector<1x16xf32> to vector<2x16xf32>
      %22 = arith.addf %19, %21 : vector<2x16xf32>
      %c0_19 = arith.constant 0 : index
      %c0_20 = arith.constant 0 : index
      %23 = vector.load %arg8[%c0_19, %c0_20] : memref<2x16xf32, #tpu.memory_space<vmem>>, vector<2x16xf32>
      tpu.vector_store %arg8[%c0_19, %c0_20], %22 {strides = array<i32>} : memref<2x16xf32, #tpu.memory_space<vmem>>, vector<2x16xf32>,
      %cst_21 = arith.constant 0.000000e+00 : f32
      %24 = vector.broadcast %cst_21 : f32 to vector<2x16xf32>
      %25 = arith.maximumf %22, %24 : vector<2x16xf32>
      %c0_22 = arith.constant 0 : index
      %c0_23 = arith.constant 0 : index
      %26 = vector.load %arg6[%c0_22, %c0_23] : memref<16x10xf32, #tpu.memory_space<vmem>>, vector<16x10xf32>
      %cst_24 = arith.constant dense<0.000000e+00> : vector<2x10xf32>
      %27 = tpu.matmul %25, %26, %cst_24 {dimension_numbers = #tpu.dot_dimension_numbers<[1], [0], [0], [1], [0, 0, 1, 1], [], []>} : vector<2x16xf32>, vector<16x10xf32>, vector<2x10xf32> -> vector<2x10xf32>
      %c0_25 = arith.constant 0 : index
      %c0_26 = arith.constant 0 : index
      %28 = vector.load %arg7[%c0_25, %c0_26] : memref<1x10xf32, #tpu.memory_space<vmem>>, vector<1x10xf32>
      %29 = vector.broadcast %28 : vector<1x10xf32> to vector<2x10xf32>
      %30 = arith.addf %27, %29 : vector<2x10xf32>
      %c0_27 = arith.constant 0 : index
      %c0_28 = arith.constant 0 : index
      %31 = vector.load %arg9[%c0_27, %c0_28] : memref<2x10xf32, #tpu.memory_space<vmem>>, vector<2x10xf32>
      tpu.vector_store %arg9[%c0_27, %c0_28], %30 {strides = array<i32>} : memref<2x10xf32, #tpu.memory_space<vmem>>, vector<2x10xf32>,
    } else {
    }
    return
  }
  func.func @transform_0(%arg0: i32) -> (i32, i32) {
    %c0_i32 = arith.constant 0 : i32
    %c0_i32_0 = arith.constant 0 : i32
    return %c0_i32, %arg0 : i32, i32
  }
  func.func @transform_1(%arg0: i32) -> (i32, i32) {
    %c0_i32 = arith.constant 0 : i32
    %c0_i32_0 = arith.constant 0 : i32
    return %arg0, %c0_i32 : i32, i32
  }
  func.func @transform_2(%arg0: i32) -> (i32, i32) {
    %c0_i32 = arith.constant 0 : i32
    %c0_i32_0 = arith.constant 0 : i32
    %c0_i32_1 = arith.constant 0 : i32
    return %c0_i32, %c0_i32_0 : i32, i32
  }
  func.func @transform_3(%arg0: i32) -> (i32, i32) {
    %c0_i32 = arith.constant 0 : i32
    %c0_i32_0 = arith.constant 0 : i32
    %c0_i32_1 = arith.constant 0 : i32
    return %c0_i32, %c0_i32_0 : i32, i32
  }
  func.func @transform_4(%arg0: i32) -> (i32, i32) {
    %c0_i32 = arith.constant 0 : i32
    %c0_i32_0 = arith.constant 0 : i32
    %c0_i32_1 = arith.constant 0 : i32
    return %c0_i32, %c0_i32_0 : i32, i32
  }
  func.func @transform_5(%arg0: i32) -> (i32, i32) {
    %c0_i32 = arith.constant 0 : i32
    %c0_i32_0 = arith.constant 0 : i32
    %c0_i32_1 = arith.constant 0 : i32
    return %c0_i32, %c0_i32_0 : i32, i32
  }
  func.func @transform_6(%arg0: i32) -> (i32, i32) {
    %c0_i32 = arith.constant 0 : i32
    %c0_i32_0 = arith.constant 0 : i32
    %c0_i32_1 = arith.constant 0 : i32
    return %c0_i32, %c0_i32_0 : i32, i32
  }
  func.func @transform_7(%arg0: i32) -> (i32, i32) {
    %c0_i32 = arith.constant 0 : i32
    %c0_i32_0 = arith.constant 0 : i32
    %c0_i32_1 = arith.constant 0 : i32
    return %c0_i32, %c0_i32_0 : i32, i32
  }
  func.func @transform_8(%arg0: i32) -> (i32, i32) {
    %c0_i32 = arith.constant 0 : i32
    %c0_i32_0 = arith.constant 0 : i32
    %c0_i32_1 = arith.constant 0 : i32
    return %c0_i32, %c0_i32_0 : i32, i32
  }
}

</mosaic_0001>

<llo_original>
// kernel: mnist_model_forward.3
$region0: #{mnist_model_forward.3}
  #allocation0 [shape = 'u32[]', space=smem, size = 0x4, offset = 0x4, fixed_abs, tag = 'smem constant byte address 0x4 - core index']
  #allocation1 [shape = 'u32[144,128]{1,0:T(1,128)}', space=vmem, size = 0x12000, scoped, tag = 'internal scratch']
  #allocation2 [shape = 'f32[2,100]{1,0:T(2,128)}', space=vmem, size = 0x400, scoped, tag = 'scratch operand']
  %s0 = inlined_call_operand.vmem [shape: f32[2,12544], index: 0, kind: input, shape index: {}]
  %s1 = inlined_call_operand.vmem [shape: f32[12544,100], index: 1, kind: input, shape index: {}]
  %s2 = inlined_call_operand.vmem [shape: f32[1,100], index: 2, kind: input, shape index: {}]
  %s3 = inlined_call_operand.vmem [shape: f32[100,16], index: 3, kind: input, shape index: {}]
  %s4 = inlined_call_operand.vmem [shape: f32[1,16], index: 4, kind: input, shape index: {}]
  %s5 = inlined_call_operand.vmem [shape: f32[16,10], index: 5, kind: input, shape index: {}]
  %s6 = inlined_call_operand.vmem [shape: f32[1,10], index: 6, kind: input, shape index: {}]
  %s7 = inlined_call_operand.hbm [shape: f32[2,16], index: 7, kind: output, shape index: {0}]
  %s8 = inlined_call_operand.hbm [shape: f32[2,10], index: 8, kind: output, shape index: {1}]
  %9 = xla_tuple %s7, %s8
  %s10 = sld [smem:[#allocation0]]
  $region77: #{mnist_model_forward.3} parent=0
    _
  %s12 = ssub.s32 1, %s10
  %s13 = scalar_select 0, %s12, %s10
  $region1: #{mnist_model_forward.3} parent=0
    #allocation3 [shape = 'u8[1024]{0}', space=vmem, size = 0x400, scoped, tag = 'output window, operand 0, single buffered']
    #allocation4 [shape = 's32[2]{0}', space=sflag, size = 0x8, scoped, tag = 'scoped memory for mnist_model_forward.3']
    #allocation5 [shape = 'u8[1024]{0}', space=vmem, size = 0x400, scoped, tag = 'output window, operand 1, single buffered']
    #allocation6 [shape = 's32[1]{0}', space=sflag, size = 0x4, scoped, tag = 'scoped memory for mnist_model_forward.3']
    %14 = vsyncpa [#allocation4], 0
    %15 = vsyncpa [#allocation6], 0
    loop: start=0, step=1, limit=9
    $region2: #{mnist_model_forward.3} parent=1 // loop_pre_header
      _
    $region3: #{mnist_model_forward.3} parent=1 // loop_header
      %s17 = sphi 0, %s21
      %p18 = scmp.ge.s32.totalorder %s17, 9
      %s27 = sphi 0, %s29
      %s30 = sphi 0, %s27
      %s31 = sphi 0, %s30
      %s47 = sphi 0, %s31
      %s53 = sphi 0, %s55
      %s56 = sphi 0, %s53
      %s57 = sphi 0, %s56
      %s73 = sphi 0, %s57
      %s77 = sphi 0, %s77
      %s79 = sphi 0, %s77
      %s80 = sphi 0, %s79
      %s94 = sphi 0, %s80
      %s98 = sphi 0, %s98
      %s100 = sphi 0, %s98
      %s101 = sphi 0, %s100
      %s115 = sphi 0, %s101
      %s119 = sphi 0, %s119
      %s121 = sphi 0, %s119
      %s122 = sphi 0, %s121
      %s136 = sphi 0, %s122
      %s140 = sphi 0, %s140
      %s142 = sphi 0, %s140
      %s143 = sphi 0, %s142
      %s157 = sphi 0, %s143
      %s161 = sphi 0, %s161
      %s163 = sphi 0, %s161
      %s164 = sphi 0, %s163
      %s178 = sphi 0, %s164
      %s182 = sphi 0, %s182
      %s184 = sphi 0, %s182
      %s185 = sphi 0, %s184
      %s199 = sphi 0, %s185
      %s203 = sphi 0, %s203
      %s205 = sphi 0, %s203
      %s206 = sphi 0, %s205
      %s220 = sphi 0, %s206
    $region4: #{mnist_model_forward.3} parent=1 // loop_header_branch
      %20 = sbr.rel (%p18) target = $region8
    $region5: #{mnist_model_forward.3} parent=1 // loop_body
      %s22 = ssub.s32 %s17, 1
      %s23 = ssub.s32 %s17, 2
      %s24 = sadd.s32 %s17, 1
      %s25 = ssub.s32 %s17, %s24
      %p26 = scmp.eq.s32.totalorder %s25, 0
      %s28 = sadd.s32 %s27, 1
      %s29 = scalar_select %p26, %s27, %s28
      %p32 = pneg %p26
      %p33 = scmp.eq.s32.totalorder %s17, 6
      %p34 = por %p32, %p33
      %p35 = scmp.ne.s32.totalorder %s27, %s30
      %p36 = scmp.eq.s32.totalorder %s17, 0
      %p37 = por %p35, %p36
      %p38 = scmp.ne.s32.totalorder %s27, %s30
      %p39 = scmp.eq.s32.totalorder %s22, 6
      %p40 = por %p38, %p39
      %p41 = scmp.ne.s32.totalorder %s30, %s31
      %p42 = scmp.eq.s32.totalorder %s22, 0
      %p43 = por %p41, %p42
      %p44 = scmp.ne.s32.totalorder %s30, %s31
      %p45 = scmp.eq.s32.totalorder %s23, 6
      %p46 = por %p44, %p45
      %p48 = scmp.ne.s32.totalorder %s31, %s47
      %p49 = scmp.eq.s32.totalorder %s23, 0
      %p50 = por %p48, %p49
      %s51 = ssub.s32 %s17, %s24
      %p52 = scmp.eq.s32.totalorder %s51, 0
      %s54 = sadd.s32 %s53, 1
      %s55 = scalar_select %p52, %s53, %s54
      %p58 = pneg %p52
      %p59 = scmp.eq.s32.totalorder %s17, 6
      %p60 = por %p58, %p59
      %p61 = scmp.ne.s32.totalorder %s53, %s56
      %p62 = scmp.eq.s32.totalorder %s17, 0
      %p63 = por %p61, %p62
      %p64 = scmp.ne.s32.totalorder %s53, %s56
      %p65 = scmp.eq.s32.totalorder %s22, 6
      %p66 = por %p64, %p65
      %p67 = scmp.ne.s32.totalorder %s56, %s57
      %p68 = scmp.eq.s32.totalorder %s22, 0
      %p69 = por %p67, %p68
      %p70 = scmp.ne.s32.totalorder %s56, %s57
      %p71 = scmp.eq.s32.totalorder %s23, 6
      %p72 = por %p70, %p71
      %p74 = scmp.ne.s32.totalorder %s57, %s73
      %p75 = scmp.eq.s32.totalorder %s23, 0
      %p76 = por %p74, %p75
      %s78 = sadd.s32 %s77, 1
      %p81 = scmp.eq.s32.totalorder %s17, 6
      %p82 = scmp.ne.s32.totalorder %s77, %s79
      %p83 = scmp.eq.s32.totalorder %s17, 0
      %p84 = por %p82, %p83
      %p85 = scmp.ne.s32.totalorder %s77, %s79
      %p86 = scmp.eq.s32.totalorder %s22, 6
      %p87 = por %p85, %p86
      %p88 = scmp.ne.s32.totalorder %s79, %s80
      %p89 = scmp.eq.s32.totalorder %s22, 0
      %p90 = por %p88, %p89
      %p91 = scmp.ne.s32.totalorder %s79, %s80
      %p92 = scmp.eq.s32.totalorder %s23, 6
      %p93 = por %p91, %p92
      %p95 = scmp.ne.s32.totalorder %s80, %s94
      %p96 = scmp.eq.s32.totalorder %s23, 0
      %p97 = por %p95, %p96
      %s99 = sadd.s32 %s98, 1
      %p102 = scmp.eq.s32.totalorder %s17, 6
      %p103 = scmp.ne.s32.totalorder %s98, %s100
      %p104 = scmp.eq.s32.totalorder %s17, 0
      %p105 = por %p103, %p104
      %p106 = scmp.ne.s32.totalorder %s98, %s100
      %p107 = scmp.eq.s32.totalorder %s22, 6
      %p108 = por %p106, %p107
      %p109 = scmp.ne.s32.totalorder %s100, %s101
      %p110 = scmp.eq.s32.totalorder %s22, 0
      %p111 = por %p109, %p110
      %p112 = scmp.ne.s32.totalorder %s100, %s101
      %p113 = scmp.eq.s32.totalorder %s23, 6
      %p114 = por %p112, %p113
      %p116 = scmp.ne.s32.totalorder %s101, %s115
      %p117 = scmp.eq.s32.totalorder %s23, 0
      %p118 = por %p116, %p117
      %s120 = sadd.s32 %s119, 1
      %p123 = scmp.eq.s32.totalorder %s17, 6
      %p124 = scmp.ne.s32.totalorder %s119, %s121
      %p125 = scmp.eq.s32.totalorder %s17, 0
      %p126 = por %p124, %p125
      %p127 = scmp.ne.s32.totalorder %s119, %s121
      %p128 = scmp.eq.s32.totalorder %s22, 6
      %p129 = por %p127, %p128
      %p130 = scmp.ne.s32.totalorder %s121, %s122
      %p131 = scmp.eq.s32.totalorder %s22, 0
      %p132 = por %p130, %p131
      %p133 = scmp.ne.s32.totalorder %s121, %s122
      %p134 = scmp.eq.s32.totalorder %s23, 6
      %p135 = por %p133, %p134
      %p137 = scmp.ne.s32.totalorder %s122, %s136
      %p138 = scmp.eq.s32.totalorder %s23, 0
      %p139 = por %p137, %p138
      %s141 = sadd.s32 %s140, 1
      %p144 = scmp.eq.s32.totalorder %s17, 6
      %p145 = scmp.ne.s32.totalorder %s140, %s142
      %p146 = scmp.eq.s32.totalorder %s17, 0
      %p147 = por %p145, %p146
      %p148 = scmp.ne.s32.totalorder %s140, %s142
      %p149 = scmp.eq.s32.totalorder %s22, 6
      %p150 = por %p148, %p149
      %p151 = scmp.ne.s32.totalorder %s142, %s143
      %p152 = scmp.eq.s32.totalorder %s22, 0
      %p153 = por %p151, %p152
      %p154 = scmp.ne.s32.totalorder %s142, %s143
      %p155 = scmp.eq.s32.totalorder %s23, 6
      %p156 = por %p154, %p155
      %p158 = scmp.ne.s32.totalorder %s143, %s157
      %p159 = scmp.eq.s32.totalorder %s23, 0
      %p160 = por %p158, %p159
      %s162 = sadd.s32 %s161, 1
      %p165 = scmp.eq.s32.totalorder %s17, 6
      %p166 = scmp.ne.s32.totalorder %s161, %s163
      %p167 = scmp.eq.s32.totalorder %s17, 0
      %p168 = por %p166, %p167
      %p169 = scmp.ne.s32.totalorder %s161, %s163
      %p170 = scmp.eq.s32.totalorder %s22, 6
      %p171 = por %p169, %p170
      %p172 = scmp.ne.s32.totalorder %s163, %s164
      %p173 = scmp.eq.s32.totalorder %s22, 0
      %p174 = por %p172, %p173
      %p175 = scmp.ne.s32.totalorder %s163, %s164
      %p176 = scmp.eq.s32.totalorder %s23, 6
      %p177 = por %p175, %p176
      %p179 = scmp.ne.s32.totalorder %s164, %s178
      %p180 = scmp.eq.s32.totalorder %s23, 0
      %p181 = por %p179, %p180
      %s183 = sadd.s32 %s182, 1
      %p186 = scmp.eq.s32.totalorder %s17, 6
      %p187 = scmp.ne.s32.totalorder %s182, %s184
      %p188 = scmp.eq.s32.totalorder %s17, 0
      %p189 = por %p187, %p188
      %p190 = scmp.ne.s32.totalorder %s182, %s184
      %p191 = scmp.eq.s32.totalorder %s22, 6
      %p192 = por %p190, %p191
      %p193 = scmp.ne.s32.totalorder %s184, %s185
      %p194 = scmp.eq.s32.totalorder %s22, 0
      %p195 = por %p193, %p194
      %p196 = scmp.ne.s32.totalorder %s184, %s185
      %p197 = scmp.eq.s32.totalorder %s23, 6
      %p198 = por %p196, %p197
      %p200 = scmp.ne.s32.totalorder %s185, %s199
      %p201 = scmp.eq.s32.totalorder %s23, 0
      %p202 = por %p200, %p201
      %s204 = sadd.s32 %s203, 1
      %p207 = scmp.eq.s32.totalorder %s17, 6
      %p208 = scmp.ne.s32.totalorder %s203, %s205
      %p209 = scmp.eq.s32.totalorder %s17, 0
      %p210 = por %p208, %p209
      %p211 = scmp.ne.s32.totalorder %s203, %s205
      %p212 = scmp.eq.s32.totalorder %s22, 6
      %p213 = por %p211, %p212
      %p214 = scmp.ne.s32.totalorder %s205, %s206
      %p215 = scmp.eq.s32.totalorder %s22, 0
      %p216 = por %p214, %p215
      %p217 = scmp.ne.s32.totalorder %s205, %s206
      %p218 = scmp.eq.s32.totalorder %s23, 6
      %p219 = por %p217, %p218
      %p221 = scmp.ne.s32.totalorder %s206, %s220
      %p222 = scmp.eq.s32.totalorder %s23, 0
      %p223 = por %p221, %p222
      %p224 = scmp.le.s32.totalorder 1, %s17
      %p225 = scmp.lt.s32.totalorder %s17, 8
      %p226 = pnand %p224, %p225
      %p227 = pneg %p226
      // Predicated region
      $region9: #{mnist_model_forward.3} parent=5 // pred_check
        _
      $region10: #{mnist_model_forward.3} parent=5 // pred_check_branch
        %229 = sbr.rel (%p226) target = $region12
      $region11: #{mnist_model_forward.3} parent=5 // pred_region
        %s230 = ssub.s32 %s17, 1
        // Predicated region
        $region13: #{mnist_model_forward.3} parent=11 // pred_check
          %p231 = pneg %p90
        $region14: #{mnist_model_forward.3} parent=11 // pred_check_branch
          %233 = sbr.rel (%p231) target = $region16
        $region15: #{mnist_model_forward.3} parent=11 // pred_region
          _
        $region16: #{mnist_model_forward.3} parent=11 // pred_fallthru
          _
        // Predicated region
        $region17: #{mnist_model_forward.3} parent=11 // pred_check
          %p234 = pneg %p111
        $region18: #{mnist_model_forward.3} parent=11 // pred_check_branch
          %236 = sbr.rel (%p234) target = $region20
        $region19: #{mnist_model_forward.3} parent=11 // pred_region
          _
        $region20: #{mnist_model_forward.3} parent=11 // pred_fallthru
          _
        // Predicated region
        $region21: #{mnist_model_forward.3} parent=11 // pred_check
          %p237 = pneg %p132
        $region22: #{mnist_model_forward.3} parent=11 // pred_check_branch
          %239 = sbr.rel (%p237) target = $region24
        $region23: #{mnist_model_forward.3} parent=11 // pred_region
          _
        $region24: #{mnist_model_forward.3} parent=11 // pred_fallthru
          _
        // Predicated region
        $region25: #{mnist_model_forward.3} parent=11 // pred_check
          %p240 = pneg %p153
        $region26: #{mnist_model_forward.3} parent=11 // pred_check_branch
          %242 = sbr.rel (%p240) target = $region28
        $region27: #{mnist_model_forward.3} parent=11 // pred_region
          _
        $region28: #{mnist_model_forward.3} parent=11 // pred_fallthru
          _
        // Predicated region
        $region29: #{mnist_model_forward.3} parent=11 // pred_check
          %p243 = pneg %p174
        $region30: #{mnist_model_forward.3} parent=11 // pred_check_branch
          %245 = sbr.rel (%p243) target = $region32
        $region31: #{mnist_model_forward.3} parent=11 // pred_region
          _
        $region32: #{mnist_model_forward.3} parent=11 // pred_fallthru
          _
      $region12: #{mnist_model_forward.3} parent=5 // pred_fallthru
        _
      %p246 = scmp.lt.s32.totalorder %s17, 7
      // Predicated region
      $region33: #{mnist_model_forward.3} parent=5 // pred_check
        %p247 = pneg %p246
      $region34: #{mnist_model_forward.3} parent=5 // pred_check_branch
        %249 = sbr.rel (%p247) target = $region36
      $region35: #{mnist_model_forward.3} parent=5 // pred_region
        // Predicated region
        $region37: #{mnist_model_forward.3} parent=35 // pred_check
          %p250 = pneg %p37
        $region38: #{mnist_model_forward.3} parent=35 // pred_check_branch
          %252 = sbr.rel (%p250) target = $region40
        $region39: #{mnist_model_forward.3} parent=35 // pred_region
          %s253 = smul.u32 14, %s17
          %p254 = scmp.lt.s32.totalorder %s253, 97
          %s255 = scalar_select %p254, %s253, 97
          %s256 = smul.addr %s255, 2
          %s257 = scalar_lea.vmem %s0, %s256
          %s258 = smul.u32 14, %s17
        $region40: #{mnist_model_forward.3} parent=35 // pred_fallthru
          _
        // Predicated region
        $region41: #{mnist_model_forward.3} parent=35 // pred_check
          %p259 = pneg %p63
        $region42: #{mnist_model_forward.3} parent=35 // pred_check_branch
          %261 = sbr.rel (%p259) target = $region44
        $region43: #{mnist_model_forward.3} parent=35 // pred_region
          %s262 = smul.u32 224, %s17
          %p263 = scmp.lt.s32.totalorder %s262, 1567
          %s264 = scalar_select %p263, %s262, 1567
          %s265 = smul.addr %s264, 8
          %s266 = scalar_lea.vmem %s1, %s265
          %s267 = smul.u32 224, %s17
        $region44: #{mnist_model_forward.3} parent=35 // pred_fallthru
          _
      $region36: #{mnist_model_forward.3} parent=5 // pred_fallthru
        _
      %p268 = scmp.le.s32.totalorder 1, %s17
      %p269 = scmp.lt.s32.totalorder %s17, 8
      %p270 = pnand %p268, %p269
      %p271 = pneg %p270
      // Predicated region
      $region45: #{mnist_model_forward.3} parent=5 // pred_check
        _
      $region46: #{mnist_model_forward.3} parent=5 // pred_check_branch
        %273 = sbr.rel (%p270) target = $region48
      $region47: #{mnist_model_forward.3} parent=5 // pred_region
        %s274 = ssub.s32 %s17, 1
        %s275 = smul.u32 14, %s22
        %p276 = scmp.lt.s32.totalorder %s275, 97
        %s277 = scalar_select %p276, %s275, 97
        %s278 = smul.addr %s277, 2
        %s279 = scalar_lea.vmem %s0, %s278
        %p280 = pneg %p43
        %p281 = pneg %p40
        %s282 = smul.u32 224, %s22
        %p283 = scmp.lt.s32.totalorder %s282, 1567
        %s284 = scalar_select %p283, %s282, 1567
        %s285 = smul.addr %s284, 8
        %s286 = scalar_lea.vmem %s1, %s285
        %p287 = pneg %p69
        %p288 = pneg %p66
        %p289 = pneg %p90
        %p290 = pneg %p87
        %p291 = pneg %p111
        %p292 = pneg %p108
        %p293 = pneg %p132
        %p294 = pneg %p129
        %p295 = pneg %p153
        %p296 = pneg %p150
        %p297 = pneg %p174
        %p298 = pneg %p171
        %p299 = pneg %p195
        %p300 = pneg %p192
        %p301 = pneg %p216
        %p302 = pneg %p213
        %s303 = smul.u32 14, %s22
        %p304 = scmp.lt.s32.totalorder %s303, 97
        %s305 = scalar_select %p304, %s303, 97
        %s306 = smul.addr %s305, 2
        %s307 = scalar_lea.vmem %s0, %s306
        %s308 = smul.u32 14, %s22
        %s309 = smul.u32 224, %s22
        %p310 = scmp.lt.s32.totalorder %s309, 1567
        %s311 = scalar_select %p310, %s309, 1567
        %s312 = smul.addr %s311, 8
        %s313 = scalar_lea.vmem %s1, %s312
        %s314 = smul.u32 224, %s22
        %p315 = scmp.eq.s32.totalorder %s22, 0
        // Predicated region
        $region49: #{mnist_model_forward.3} parent=47 // pred_check
          %p316 = pneg %p315
        $region50: #{mnist_model_forward.3} parent=47 // pred_check_branch
          %318 = sbr.rel (%p316) target = $region52
        $region51: #{mnist_model_forward.3} parent=47 // pred_region
          %vm319 = vcmask 812032
          %320 = vst.msk [vmem:[#allocation2] sm:$0x3] %vm319, 0.0
        $region52: #{mnist_model_forward.3} parent=47 // pred_fallthru
          _
        %v321 = vld [vmem:[#allocation2] sm:$0x3]
        %v322 = vld [vmem:[%s307] sm:$0xff]
        %v323 = vld [vmem:[%s307 + $0x8] sm:$0xff]
        %v324 = vld [vmem:[%s307 + $0x10] sm:$0xff]
        %v325 = vld [vmem:[%s307 + $0x18] sm:$0xf]
        %v326 = vld [vmem:[%s313] sm:$0xff]
        %v327 = vld [vmem:[%s313 + $0x8] sm:$0xff]
        %v328 = vld [vmem:[%s313 + $0x10] sm:$0xff]
        %v329 = vld [vmem:[%s313 + $0x18] sm:$0xff]
        %v330 = vld [vmem:[%s313 + $0x20] sm:$0xff]
        %v331 = vld [vmem:[%s313 + $0x28] sm:$0xff]
        %v332 = vld [vmem:[%s313 + $0x30] sm:$0xff]
        %v333 = vld [vmem:[%s313 + $0x38] sm:$0xff]
        %v334 = vld [vmem:[%s313 + $0x40] sm:$0xff]
        %v335 = vld [vmem:[%s313 + $0x48] sm:$0xff]
        %v336 = vld [vmem:[%s313 + $0x50] sm:$0xff]
        %v337 = vld [vmem:[%s313 + $0x58] sm:$0xff]
        %v338 = vld [vmem:[%s313 + $0x60] sm:$0xff]
        %v339 = vld [vmem:[%s313 + $0x68] sm:$0xff]
        %v340 = vld [vmem:[%s313 + $0x70] sm:$0xff]
        %v341 = vld [vmem:[%s313 + $0x78] sm:$0xff]
        %v342 = vld [vmem:[%s313 + $0x80] sm:$0xff]
        %v343 = vld [vmem:[%s313 + $0x88] sm:$0xff]
        %v344 = vld [vmem:[%s313 + $0x90] sm:$0xff]
        %v345 = vld [vmem:[%s313 + $0x98] sm:$0xff]
        %v346 = vld [vmem:[%s313 + $0xa0] sm:$0xff]
        %v347 = vld [vmem:[%s313 + $0xa8] sm:$0xff]
        %v348 = vld [vmem:[%s313 + $0xb0] sm:$0xff]
        %v349 = vld [vmem:[%s313 + $0xb8] sm:$0xff]
        %v350 = vld [vmem:[%s313 + $0xc0] sm:$0xff]
        %v351 = vld [vmem:[%s313 + $0xc8] sm:$0xff]
        %v352 = vld [vmem:[%s313 + $0xd0] sm:$0xff]
        %v353 = vld [vmem:[%s313 + $0xd8] sm:$0xff]
        %v354 = vld [vmem:[%s313 + $0xe0] sm:$0xff]
        %v355 = vld [vmem:[%s313 + $0xe8] sm:$0xff]
        %v356 = vld [vmem:[%s313 + $0xf0] sm:$0xff]
        %v357 = vld [vmem:[%s313 + $0xf8] sm:$0xff]
        %v358 = vld [vmem:[%s313 + $0x100] sm:$0xff]
        %v359 = vld [vmem:[%s313 + $0x108] sm:$0xff]
        %v360 = vld [vmem:[%s313 + $0x110] sm:$0xff]
        %v361 = vld [vmem:[%s313 + $0x118] sm:$0xff]
        %v362 = vld [vmem:[%s313 + $0x120] sm:$0xff]
        %v363 = vld [vmem:[%s313 + $0x128] sm:$0xff]
        %v364 = vld [vmem:[%s313 + $0x130] sm:$0xff]
        %v365 = vld [vmem:[%s313 + $0x138] sm:$0xff]
        %v366 = vld [vmem:[%s313 + $0x140] sm:$0xff]
        %v367 = vld [vmem:[%s313 + $0x148] sm:$0xff]
        %v368 = vld [vmem:[%s313 + $0x150] sm:$0xff]
        %v369 = vld [vmem:[%s313 + $0x158] sm:$0xff]
        %v370 = vld [vmem:[%s313 + $0x160] sm:$0xff]
        %v371 = vld [vmem:[%s313 + $0x168] sm:$0xff]
        %v372 = vld [vmem:[%s313 + $0x170] sm:$0xff]
        %v373 = vld [vmem:[%s313 + $0x178] sm:$0xff]
        %v374 = vld [vmem:[%s313 + $0x180] sm:$0xff]
        %v375 = vld [vmem:[%s313 + $0x188] sm:$0xff]
        %v376 = vld [vmem:[%s313 + $0x190] sm:$0xff]
        %v377 = vld [vmem:[%s313 + $0x198] sm:$0xff]
        %v378 = vld [vmem:[%s313 + $0x1a0] sm:$0xff]
        %v379 = vld [vmem:[%s313 + $0x1a8] sm:$0xff]
        %v380 = vld [vmem:[%s313 + $0x1b0] sm:$0xff]
        %v381 = vld [vmem:[%s313 + $0x1b8] sm:$0xff]
        %v382 = vld [vmem:[%s313 + $0x1c0] sm:$0xff]
        %v383 = vld [vmem:[%s313 + $0x1c8] sm:$0xff]
        %v384 = vld [vmem:[%s313 + $0x1d0] sm:$0xff]
        %v385 = vld [vmem:[%s313 + $0x1d8] sm:$0xff]
        %v386 = vld [vmem:[%s313 + $0x1e0] sm:$0xff]
        %v387 = vld [vmem:[%s313 + $0x1e8] sm:$0xff]
        %v388 = vld [vmem:[%s313 + $0x1f0] sm:$0xff]
        %v389 = vld [vmem:[%s313 + $0x1f8] sm:$0xff]
        %v390 = vld [vmem:[%s313 + $0x200] sm:$0xff]
        %v391 = vld [vmem:[%s313 + $0x208] sm:$0xff]
        %v392 = vld [vmem:[%s313 + $0x210] sm:$0xff]
        %v393 = vld [vmem:[%s313 + $0x218] sm:$0xff]
        %v394 = vld [vmem:[%s313 + $0x220] sm:$0xff]
        %v395 = vld [vmem:[%s313 + $0x228] sm:$0xff]
        %v396 = vld [vmem:[%s313 + $0x230] sm:$0xff]
        %v397 = vld [vmem:[%s313 + $0x238] sm:$0xff]
        %v398 = vld [vmem:[%s313 + $0x240] sm:$0xff]
        %v399 = vld [vmem:[%s313 + $0x248] sm:$0xff]
        %v400 = vld [vmem:[%s313 + $0x250] sm:$0xff]
        %v401 = vld [vmem:[%s313 + $0x258] sm:$0xff]
        %v402 = vld [vmem:[%s313 + $0x260] sm:$0xff]
        %v403 = vld [vmem:[%s313 + $0x268] sm:$0xff]
        %v404 = vld [vmem:[%s313 + $0x270] sm:$0xff]
        %v405 = vld [vmem:[%s313 + $0x278] sm:$0xff]
        %v406 = vld [vmem:[%s313 + $0x280] sm:$0xff]
        %v407 = vld [vmem:[%s313 + $0x288] sm:$0xff]
        %v408 = vld [vmem:[%s313 + $0x290] sm:$0xff]
        %v409 = vld [vmem:[%s313 + $0x298] sm:$0xff]
        %v410 = vld [vmem:[%s313 + $0x2a0] sm:$0xff]
        %v411 = vld [vmem:[%s313 + $0x2a8] sm:$0xff]
        %v412 = vld [vmem:[%s313 + $0x2b0] sm:$0xff]
        %v413 = vld [vmem:[%s313 + $0x2b8] sm:$0xff]
        %v414 = vld [vmem:[%s313 + $0x2c0] sm:$0xff]
        %v415 = vld [vmem:[%s313 + $0x2c8] sm:$0xff]
        %v416 = vld [vmem:[%s313 + $0x2d0] sm:$0xff]
        %v417 = vld [vmem:[%s313 + $0x2d8] sm:$0xff]
        %v418 = vld [vmem:[%s313 + $0x2e0] sm:$0xff]
        %v419 = vld [vmem:[%s313 + $0x2e8] sm:$0xff]
        %v420 = vld [vmem:[%s313 + $0x2f0] sm:$0xff]
        %v421 = vld [vmem:[%s313 + $0x2f8] sm:$0xff]
        %v422 = vld [vmem:[%s313 + $0x300] sm:$0xff]
        %v423 = vld [vmem:[%s313 + $0x308] sm:$0xff]
        %v424 = vld [vmem:[%s313 + $0x310] sm:$0xff]
        %v425 = vld [vmem:[%s313 + $0x318] sm:$0xff]
        %v426 = vld [vmem:[%s313 + $0x320] sm:$0xff]
        %v427 = vld [vmem:[%s313 + $0x328] sm:$0xff]
        %v428 = vld [vmem:[%s313 + $0x330] sm:$0xff]
        %v429 = vld [vmem:[%s313 + $0x338] sm:$0xff]
        %v430 = vld [vmem:[%s313 + $0x340] sm:$0xff]
        %v431 = vld [vmem:[%s313 + $0x348] sm:$0xff]
        %v432 = vld [vmem:[%s313 + $0x350] sm:$0xff]
        %v433 = vld [vmem:[%s313 + $0x358] sm:$0xff]
        %v434 = vld [vmem:[%s313 + $0x360] sm:$0xff]
        %v435 = vld [vmem:[%s313 + $0x368] sm:$0xff]
        %v436 = vld [vmem:[%s313 + $0x370] sm:$0xff]
        %v437 = vld [vmem:[%s313 + $0x378] sm:$0xff]
        %v438 = vld [vmem:[%s313 + $0x380] sm:$0xff]
        %v439 = vld [vmem:[%s313 + $0x388] sm:$0xff]
        %v440 = vld [vmem:[%s313 + $0x390] sm:$0xff]
        %v441 = vld [vmem:[%s313 + $0x398] sm:$0xff]
        %v442 = vld [vmem:[%s313 + $0x3a0] sm:$0xff]
        %v443 = vld [vmem:[%s313 + $0x3a8] sm:$0xff]
        %v444 = vld [vmem:[%s313 + $0x3b0] sm:$0xff]
        %v445 = vld [vmem:[%s313 + $0x3b8] sm:$0xff]
        %v446 = vld [vmem:[%s313 + $0x3c0] sm:$0xff]
        %v447 = vld [vmem:[%s313 + $0x3c8] sm:$0xff]
        %v448 = vld [vmem:[%s313 + $0x3d0] sm:$0xff]
        %v449 = vld [vmem:[%s313 + $0x3d8] sm:$0xff]
        %v450 = vld [vmem:[%s313 + $0x3e0] sm:$0xff]
        %v451 = vld [vmem:[%s313 + $0x3e8] sm:$0xff]
        %v452 = vld [vmem:[%s313 + $0x3f0] sm:$0xff]
        %v453 = vld [vmem:[%s313 + $0x3f8] sm:$0xff]
        %v454 = vld [vmem:[%s313 + $0x400] sm:$0xff]
        %v455 = vld [vmem:[%s313 + $0x408] sm:$0xff]
        %v456 = vld [vmem:[%s313 + $0x410] sm:$0xff]
        %v457 = vld [vmem:[%s313 + $0x418] sm:$0xff]
        %v458 = vld [vmem:[%s313 + $0x420] sm:$0xff]
        %v459 = vld [vmem:[%s313 + $0x428] sm:$0xff]
        %v460 = vld [vmem:[%s313 + $0x430] sm:$0xff]
        %v461 = vld [vmem:[%s313 + $0x438] sm:$0xff]
        %v462 = vld [vmem:[%s313 + $0x440] sm:$0xff]
        %v463 = vld [vmem:[%s313 + $0x448] sm:$0xff]
        %v464 = vld [vmem:[%s313 + $0x450] sm:$0xff]
        %v465 = vld [vmem:[%s313 + $0x458] sm:$0xff]
        %v466 = vld [vmem:[%s313 + $0x460] sm:$0xff]
        %v467 = vld [vmem:[%s313 + $0x468] sm:$0xff]
        %v468 = vld [vmem:[%s313 + $0x470] sm:$0xff]
        %v469 = vld [vmem:[%s313 + $0x478] sm:$0xff]
        %v470 = vld [vmem:[%s313 + $0x480] sm:$0xff]
        %v471 = vld [vmem:[%s313 + $0x488] sm:$0xff]
        %v472 = vld [vmem:[%s313 + $0x490] sm:$0xff]
        %v473 = vld [vmem:[%s313 + $0x498] sm:$0xff]
        %v474 = vld [vmem:[%s313 + $0x4a0] sm:$0xff]
        %v475 = vld [vmem:[%s313 + $0x4a8] sm:$0xff]
        %v476 = vld [vmem:[%s313 + $0x4b0] sm:$0xff]
        %v477 = vld [vmem:[%s313 + $0x4b8] sm:$0xff]
        %v478 = vld [vmem:[%s313 + $0x4c0] sm:$0xff]
        %v479 = vld [vmem:[%s313 + $0x4c8] sm:$0xff]
        %v480 = vld [vmem:[%s313 + $0x4d0] sm:$0xff]
        %v481 = vld [vmem:[%s313 + $0x4d8] sm:$0xff]
        %v482 = vld [vmem:[%s313 + $0x4e0] sm:$0xff]
        %v483 = vld [vmem:[%s313 + $0x4e8] sm:$0xff]
        %v484 = vld [vmem:[%s313 + $0x4f0] sm:$0xff]
        %v485 = vld [vmem:[%s313 + $0x4f8] sm:$0xff]
        %v486 = vld [vmem:[%s313 + $0x500] sm:$0xff]
        %v487 = vld [vmem:[%s313 + $0x508] sm:$0xff]
        %v488 = vld [vmem:[%s313 + $0x510] sm:$0xff]
        %v489 = vld [vmem:[%s313 + $0x518] sm:$0xff]
        %v490 = vld [vmem:[%s313 + $0x520] sm:$0xff]
        %v491 = vld [vmem:[%s313 + $0x528] sm:$0xff]
        %v492 = vld [vmem:[%s313 + $0x530] sm:$0xff]
        %v493 = vld [vmem:[%s313 + $0x538] sm:$0xff]
        %v494 = vld [vmem:[%s313 + $0x540] sm:$0xff]
        %v495 = vld [vmem:[%s313 + $0x548] sm:$0xff]
        %v496 = vld [vmem:[%s313 + $0x550] sm:$0xff]
        %v497 = vld [vmem:[%s313 + $0x558] sm:$0xff]
        %v498 = vld [vmem:[%s313 + $0x560] sm:$0xff]
        %v499 = vld [vmem:[%s313 + $0x568] sm:$0xff]
        %v500 = vld [vmem:[%s313 + $0x570] sm:$0xff]
        %v501 = vld [vmem:[%s313 + $0x578] sm:$0xff]
        %v502 = vld [vmem:[%s313 + $0x580] sm:$0xff]
        %v503 = vld [vmem:[%s313 + $0x588] sm:$0xff]
        %v504 = vld [vmem:[%s313 + $0x590] sm:$0xff]
        %v505 = vld [vmem:[%s313 + $0x598] sm:$0xff]
        %v506 = vld [vmem:[%s313 + $0x5a0] sm:$0xff]
        %v507 = vld [vmem:[%s313 + $0x5a8] sm:$0xff]
        %v508 = vld [vmem:[%s313 + $0x5b0] sm:$0xff]
        %v509 = vld [vmem:[%s313 + $0x5b8] sm:$0xff]
        %v510 = vld [vmem:[%s313 + $0x5c0] sm:$0xff]
        %v511 = vld [vmem:[%s313 + $0x5c8] sm:$0xff]
        %v512 = vld [vmem:[%s313 + $0x5d0] sm:$0xff]
        %v513 = vld [vmem:[%s313 + $0x5d8] sm:$0xff]
        %v514 = vld [vmem:[%s313 + $0x5e0] sm:$0xff]
        %v515 = vld [vmem:[%s313 + $0x5e8] sm:$0xff]
        %v516 = vld [vmem:[%s313 + $0x5f0] sm:$0xff]
        %v517 = vld [vmem:[%s313 + $0x5f8] sm:$0xff]
        %v518 = vld [vmem:[%s313 + $0x600] sm:$0xff]
        %v519 = vld [vmem:[%s313 + $0x608] sm:$0xff]
        %v520 = vld [vmem:[%s313 + $0x610] sm:$0xff]
        %v521 = vld [vmem:[%s313 + $0x618] sm:$0xff]
        %v522 = vld [vmem:[%s313 + $0x620] sm:$0xff]
        %v523 = vld [vmem:[%s313 + $0x628] sm:$0xff]
        %v524 = vld [vmem:[%s313 + $0x630] sm:$0xff]
        %v525 = vld [vmem:[%s313 + $0x638] sm:$0xff]
        %v526 = vld [vmem:[%s313 + $0x640] sm:$0xff]
        %v527 = vld [vmem:[%s313 + $0x648] sm:$0xff]
        %v528 = vld [vmem:[%s313 + $0x650] sm:$0xff]
        %v529 = vld [vmem:[%s313 + $0x658] sm:$0xff]
        %v530 = vld [vmem:[%s313 + $0x660] sm:$0xff]
        %v531 = vld [vmem:[%s313 + $0x668] sm:$0xff]
        %v532 = vld [vmem:[%s313 + $0x670] sm:$0xff]
        %v533 = vld [vmem:[%s313 + $0x678] sm:$0xff]
        %v534 = vld [vmem:[%s313 + $0x680] sm:$0xff]
        %v535 = vld [vmem:[%s313 + $0x688] sm:$0xff]
        %v536 = vld [vmem:[%s313 + $0x690] sm:$0xff]
        %v537 = vld [vmem:[%s313 + $0x698] sm:$0xff]
        %v538 = vld [vmem:[%s313 + $0x6a0] sm:$0xff]
        %v539 = vld [vmem:[%s313 + $0x6a8] sm:$0xff]
        %v540 = vld [vmem:[%s313 + $0x6b0] sm:$0xff]
        %v541 = vld [vmem:[%s313 + $0x6b8] sm:$0xff]
        %v542 = vld [vmem:[%s313 + $0x6c0] sm:$0xff]
        %v543 = vld [vmem:[%s313 + $0x6c8] sm:$0xff]
        %v544 = vld [vmem:[%s313 + $0x6d0] sm:$0xff]
        %v545 = vld [vmem:[%s313 + $0x6d8] sm:$0xff]
        %v546 = vld [vmem:[%s313 + $0x6e0] sm:$0xff]
        %v547 = vld [vmem:[%s313 + $0x6e8] sm:$0xff]
        %v548 = vld [vmem:[%s313 + $0x6f0] sm:$0xff]
        %v549 = vld [vmem:[%s313 + $0x6f8] sm:$0xff]
        %v554 = vcombine.high %v322, %v322
        %v556 = vunpack.c.l.s4 1983009808
        %v557 = vunpack.c.0.s8 %v556
        %v558 = vlaneseq
        %v559 = vshrl.u32 %v558, 7
        %v560 = vsub.s32 %v557, %v559
        %v561 = vrot.slane %v322, %v560
        %v563 = vunpack.c.l.s4 1983009808
        %v564 = vunpack.c.0.s8 %v563
        %v565 = vlaneseq
        %v566 = vshrl.u32 %v565, 7
        %v567 = vsub.s32 %v564, %v566
        %v568 = vrot.slane %v554, %v567
        %v569 = vcombine.high %v561, %v561
        %v570 = vcombine.high %v568, %v568
        %v571 = vcombine.high %v323, %v323
        %v573 = vunpack.c.l.s4 1983009808
        %v574 = vunpack.c.0.s8 %v573
        %v575 = vlaneseq
        %v576 = vshrl.u32 %v575, 7
        %v577 = vsub.s32 %v574, %v576
        %v578 = vrot.slane %v323, %v577
        %v580 = vunpack.c.l.s4 1983009808
        %v581 = vunpack.c.0.s8 %v580
        %v582 = vlaneseq
        %v583 = vshrl.u32 %v582, 7
        %v584 = vsub.s32 %v581, %v583
        %v585 = vrot.slane %v571, %v584
        %v586 = vcombine.high %v578, %v578
        %v587 = vcombine.high %v585, %v585
        %v588 = vcombine.high %v324, %v324
        %v590 = vunpack.c.l.s4 1983009808
        %v591 = vunpack.c.0.s8 %v590
        %v592 = vlaneseq
        %v593 = vshrl.u32 %v592, 7
        %v594 = vsub.s32 %v591, %v593
        %v595 = vrot.slane %v324, %v594
        %v597 = vunpack.c.l.s4 1983009808
        %v598 = vunpack.c.0.s8 %v597
        %v599 = vlaneseq
        %v600 = vshrl.u32 %v599, 7
        %v601 = vsub.s32 %v598, %v600
        %v602 = vrot.slane %v588, %v601
        %v603 = vcombine.high %v595, %v595
        %v604 = vcombine.high %v602, %v602
        %v606 = vunpack.c.l.s4 1983009808
        %v607 = vunpack.c.0.s8 %v606
        %v608 = vlaneseq
        %v609 = vshrl.u32 %v608, 7
        %v610 = vsub.s32 %v607, %v609
        %v611 = vrot.slane %v325, %v610
        %v612 = vcombine.high %v611, %v611
        %627 = vmatprep.subr.mxu0 0.0
        %628 = vmatpush1.msra.mxu0 %v326
        %629 = vmatprep.subr.mxu0 0.0
        %630 = vmatpush1.msra.mxu0 %v327
        %631 = vmatprep.subr.mxu0 0.0
        %632 = vmatpush1.msra.mxu0 %v328
        %633 = vmatprep.subr.mxu0 0.0
        %634 = vmatpush1.msra.mxu0 %v329
        %635 = vmatprep.subr.mxu0 0.0
        %636 = vmatpush1.msra.mxu0 %v330
        %637 = vmatprep.subr.mxu0 0.0
        %638 = vmatpush1.msra.mxu0 %v331
        %639 = vmatprep.subr.mxu0 0.0
        %640 = vmatpush1.msra.mxu0 %v332
        %641 = vmatprep.subr.mxu0 0.0
        %642 = vmatpush1.msra.mxu0 %v333
        %643 = vmatprep.subr.mxu0 0.0
        %644 = vmatpush1.msra.mxu0 %v334
        %645 = vmatprep.subr.mxu0 0.0
        %646 = vmatpush1.msra.mxu0 %v335
        %647 = vmatprep.subr.mxu0 0.0
        %648 = vmatpush1.msra.mxu0 %v336
        %649 = vmatprep.subr.mxu0 0.0
        %650 = vmatpush1.msra.mxu0 %v337
        %651 = vmatprep.subr.mxu0 0.0
        %652 = vmatpush1.msra.mxu0 %v338
        %653 = vmatprep.subr.mxu0 0.0
        %654 = vmatpush1.msra.mxu0 %v339
        %655 = vmatprep.subr.mxu0 0.0
        %656 = vmatpush1.msra.mxu0 %v340
        %657 = vmatprep.subr.mxu0 0.0
        %658 = vmatpush1.msra.mxu0 %v341
        %659 = vmatprep.subr.mxu0 0.0
        %660 = vmatpush1.msra.mxu0 %v342
        %661 = vmatprep.subr.mxu0 0.0
        %662 = vmatpush1.msra.mxu0 %v343
        %663 = vmatprep.subr.mxu0 0.0
        %664 = vmatpush1.msra.mxu0 %v344
        %665 = vmatprep.subr.mxu0 0.0
        %666 = vmatpush1.msra.mxu0 %v345
        %667 = vmatprep.subr.mxu0 0.0
        %668 = vmatpush1.msra.mxu0 %v346
        %669 = vmatprep.subr.mxu0 0.0
        %670 = vmatpush1.msra.mxu0 %v347
        %671 = vmatprep.subr.mxu0 0.0
        %672 = vmatpush1.msra.mxu0 %v348
        %673 = vmatprep.subr.mxu0 0.0
        %674 = vmatpush1.msra.mxu0 %v349
        %675 = vmatprep.subr.mxu0 0.0
        %676 = vmatpush1.msra.mxu0 %v350
        %677 = vmatprep.subr.mxu0 0.0
        %678 = vmatpush1.msra.mxu0 %v351
        %679 = vmatprep.subr.mxu0 0.0
        %680 = vmatpush1.msra.mxu0 %v352
        %681 = vmatprep.subr.mxu0 0.0
        %682 = vmatpush1.msra.mxu0 %v353
        %683 = vmatprep.subr.mxu0 0.0
        %684 = vmatpush1.msra.mxu0 %v354
        %685 = vmatprep.subr.mxu0 0.0
        %686 = vmatpush1.msra.mxu0 %v355
        %687 = vmatprep.subr.mxu0 0.0
        %688 = vmatpush1.msra.mxu0 %v356
        %689 = vmatprep.subr.mxu0 0.0
        %690 = vmatpush1.msra.mxu0 %v357
        %691 = vmatprep.mubr.f32.mxu0 %v569
        %692 = vmatmul.mubr.f32.gmra.mrb[0].mxu0 %v561
        %v693 = vpop.f32.mrb[0].mxu0
        %v694 = vadd.f32 0.0, %v693
        %v695 = vpop.f32.mrb[0].mxu0
        %696 = vdwg.mxu0
        %697 = vmatprep.subr.mxu0 0.0
        %698 = vmatpush1.msra.mxu0 %v358
        %699 = vmatprep.subr.mxu0 0.0
        %700 = vmatpush1.msra.mxu0 %v359
        %701 = vmatprep.subr.mxu0 0.0
        %702 = vmatpush1.msra.mxu0 %v360
        %703 = vmatprep.subr.mxu0 0.0
        %704 = vmatpush1.msra.mxu0 %v361
        %705 = vmatprep.subr.mxu0 0.0
        %706 = vmatpush1.msra.mxu0 %v362
        %707 = vmatprep.subr.mxu0 0.0
        %708 = vmatpush1.msra.mxu0 %v363
        %709 = vmatprep.subr.mxu0 0.0
        %710 = vmatpush1.msra.mxu0 %v364
        %711 = vmatprep.subr.mxu0 0.0
        %712 = vmatpush1.msra.mxu0 %v365
        %713 = vmatprep.subr.mxu0 0.0
        %714 = vmatpush1.msra.mxu0 %v366
        %715 = vmatprep.subr.mxu0 0.0
        %716 = vmatpush1.msra.mxu0 %v367
        %717 = vmatprep.subr.mxu0 0.0
        %718 = vmatpush1.msra.mxu0 %v368
        %719 = vmatprep.subr.mxu0 0.0
        %720 = vmatpush1.msra.mxu0 %v369
        %721 = vmatprep.subr.mxu0 0.0
        %722 = vmatpush1.msra.mxu0 %v370
        %723 = vmatprep.subr.mxu0 0.0
        %724 = vmatpush1.msra.mxu0 %v371
        %725 = vmatprep.subr.mxu0 0.0
        %726 = vmatpush1.msra.mxu0 %v372
        %727 = vmatprep.subr.mxu0 0.0
        %728 = vmatpush1.msra.mxu0 %v373
        %729 = vmatprep.subr.mxu0 0.0
        %730 = vmatpush1.msra.mxu0 %v374
        %731 = vmatprep.subr.mxu0 0.0
        %732 = vmatpush1.msra.mxu0 %v375
        %733 = vmatprep.subr.mxu0 0.0
        %734 = vmatpush1.msra.mxu0 %v376
        %735 = vmatprep.subr.mxu0 0.0
        %736 = vmatpush1.msra.mxu0 %v377
        %737 = vmatprep.subr.mxu0 0.0
        %738 = vmatpush1.msra.mxu0 %v378
        %739 = vmatprep.subr.mxu0 0.0
        %740 = vmatpush1.msra.mxu0 %v379
        %741 = vmatprep.subr.mxu0 0.0
        %742 = vmatpush1.msra.mxu0 %v380
        %743 = vmatprep.subr.mxu0 0.0
        %744 = vmatpush1.msra.mxu0 %v381
        %745 = vmatprep.subr.mxu0 0.0
        %746 = vmatpush1.msra.mxu0 %v382
        %747 = vmatprep.subr.mxu0 0.0
        %748 = vmatpush1.msra.mxu0 %v383
        %749 = vmatprep.subr.mxu0 0.0
        %750 = vmatpush1.msra.mxu0 %v384
        %751 = vmatprep.subr.mxu0 0.0
        %752 = vmatpush1.msra.mxu0 %v385
        %753 = vmatprep.subr.mxu0 0.0
        %754 = vmatpush1.msra.mxu0 %v386
        %755 = vmatprep.subr.mxu0 0.0
        %756 = vmatpush1.msra.mxu0 %v387
        %757 = vmatprep.subr.mxu0 0.0
        %758 = vmatpush1.msra.mxu0 %v388
        %759 = vmatprep.subr.mxu0 0.0
        %760 = vmatpush1.msra.mxu0 %v389
        %761 = vmatprep.mubr.f32.mxu0 %v570
        %762 = vmatmul.mubr.f32.gmra.mrb[0].mxu0 %v568
        %v763 = vpop.f32.mrb[0].mxu0
        %v764 = vadd.f32 %v694, %v763
        %v765 = vpop.f32.mrb[0].mxu0
        %766 = vdwg.mxu0
        %767 = vmatprep.subr.mxu0 0.0
        %768 = vmatpush1.msra.mxu0 %v390
        %769 = vmatprep.subr.mxu0 0.0
        %770 = vmatpush1.msra.mxu0 %v391
        %771 = vmatprep.subr.mxu0 0.0
        %772 = vmatpush1.msra.mxu0 %v392
        %773 = vmatprep.subr.mxu0 0.0
        %774 = vmatpush1.msra.mxu0 %v393
        %775 = vmatprep.subr.mxu0 0.0
        %776 = vmatpush1.msra.mxu0 %v394
        %777 = vmatprep.subr.mxu0 0.0
        %778 = vmatpush1.msra.mxu0 %v395
        %779 = vmatprep.subr.mxu0 0.0
        %780 = vmatpush1.msra.mxu0 %v396
        %781 = vmatprep.subr.mxu0 0.0
        %782 = vmatpush1.msra.mxu0 %v397
        %783 = vmatprep.subr.mxu0 0.0
        %784 = vmatpush1.msra.mxu0 %v398
        %785 = vmatprep.subr.mxu0 0.0
        %786 = vmatpush1.msra.mxu0 %v399
        %787 = vmatprep.subr.mxu0 0.0
        %788 = vmatpush1.msra.mxu0 %v400
        %789 = vmatprep.subr.mxu0 0.0
        %790 = vmatpush1.msra.mxu0 %v401
        %791 = vmatprep.subr.mxu0 0.0
        %792 = vmatpush1.msra.mxu0 %v402
        %793 = vmatprep.subr.mxu0 0.0
        %794 = vmatpush1.msra.mxu0 %v403
        %795 = vmatprep.subr.mxu0 0.0
        %796 = vmatpush1.msra.mxu0 %v404
        %797 = vmatprep.subr.mxu0 0.0
        %798 = vmatpush1.msra.mxu0 %v405
        %799 = vmatprep.subr.mxu0 0.0
        %800 = vmatpush1.msra.mxu0 %v406
        %801 = vmatprep.subr.mxu0 0.0
        %802 = vmatpush1.msra.mxu0 %v407
        %803 = vmatprep.subr.mxu0 0.0
        %804 = vmatpush1.msra.mxu0 %v408
        %805 = vmatprep.subr.mxu0 0.0
        %806 = vmatpush1.msra.mxu0 %v409
        %807 = vmatprep.subr.mxu0 0.0
        %808 = vmatpush1.msra.mxu0 %v410
        %809 = vmatprep.subr.mxu0 0.0
        %810 = vmatpush1.msra.mxu0 %v411
        %811 = vmatprep.subr.mxu0 0.0
        %812 = vmatpush1.msra.mxu0 %v412
        %813 = vmatprep.subr.mxu0 0.0
        %814 = vmatpush1.msra.mxu0 %v413
        %815 = vmatprep.subr.mxu0 0.0
        %816 = vmatpush1.msra.mxu0 %v414
        %817 = vmatprep.subr.mxu0 0.0
        %818 = vmatpush1.msra.mxu0 %v415
        %819 = vmatprep.subr.mxu0 0.0
        %820 = vmatpush1.msra.mxu0 %v416
        %821 = vmatprep.subr.mxu0 0.0
        %822 = vmatpush1.msra.mxu0 %v417
        %823 = vmatprep.subr.mxu0 0.0
        %824 = vmatpush1.msra.mxu0 %v418
        %825 = vmatprep.subr.mxu0 0.0
        %826 = vmatpush1.msra.mxu0 %v419
        %827 = vmatprep.subr.mxu0 0.0
        %828 = vmatpush1.msra.mxu0 %v420
        %829 = vmatprep.subr.mxu0 0.0
        %830 = vmatpush1.msra.mxu0 %v421
        %831 = vmatprep.mubr.f32.mxu0 %v586
        %832 = vmatmul.mubr.f32.gmra.mrb[0].mxu0 %v578
        %v833 = vpop.f32.mrb[0].mxu0
        %v834 = vadd.f32 %v764, %v833
        %v835 = vpop.f32.mrb[0].mxu0
        %836 = vdwg.mxu0
        %837 = vmatprep.subr.mxu0 0.0
        %838 = vmatpush1.msra.mxu0 %v422
        %839 = vmatprep.subr.mxu0 0.0
        %840 = vmatpush1.msra.mxu0 %v423
        %841 = vmatprep.subr.mxu0 0.0
        %842 = vmatpush1.msra.mxu0 %v424
        %843 = vmatprep.subr.mxu0 0.0
        %844 = vmatpush1.msra.mxu0 %v425
        %845 = vmatprep.subr.mxu0 0.0
        %846 = vmatpush1.msra.mxu0 %v426
        %847 = vmatprep.subr.mxu0 0.0
        %848 = vmatpush1.msra.mxu0 %v427
        %849 = vmatprep.subr.mxu0 0.0
        %850 = vmatpush1.msra.mxu0 %v428
        %851 = vmatprep.subr.mxu0 0.0
        %852 = vmatpush1.msra.mxu0 %v429
        %853 = vmatprep.subr.mxu0 0.0
        %854 = vmatpush1.msra.mxu0 %v430
        %855 = vmatprep.subr.mxu0 0.0
        %856 = vmatpush1.msra.mxu0 %v431
        %857 = vmatprep.subr.mxu0 0.0
        %858 = vmatpush1.msra.mxu0 %v432
        %859 = vmatprep.subr.mxu0 0.0
        %860 = vmatpush1.msra.mxu0 %v433
        %861 = vmatprep.subr.mxu0 0.0
        %862 = vmatpush1.msra.mxu0 %v434
        %863 = vmatprep.subr.mxu0 0.0
        %864 = vmatpush1.msra.mxu0 %v435
        %865 = vmatprep.subr.mxu0 0.0
        %866 = vmatpush1.msra.mxu0 %v436
        %867 = vmatprep.subr.mxu0 0.0
        %868 = vmatpush1.msra.mxu0 %v437
        %869 = vmatprep.subr.mxu0 0.0
        %870 = vmatpush1.msra.mxu0 %v438
        %871 = vmatprep.subr.mxu0 0.0
        %872 = vmatpush1.msra.mxu0 %v439
        %873 = vmatprep.subr.mxu0 0.0
        %874 = vmatpush1.msra.mxu0 %v440
        %875 = vmatprep.subr.mxu0 0.0
        %876 = vmatpush1.msra.mxu0 %v441
        %877 = vmatprep.subr.mxu0 0.0
        %878 = vmatpush1.msra.mxu0 %v442
        %879 = vmatprep.subr.mxu0 0.0
        %880 = vmatpush1.msra.mxu0 %v443
        %881 = vmatprep.subr.mxu0 0.0
        %882 = vmatpush1.msra.mxu0 %v444
        %883 = vmatprep.subr.mxu0 0.0
        %884 = vmatpush1.msra.mxu0 %v445
        %885 = vmatprep.subr.mxu0 0.0
        %886 = vmatpush1.msra.mxu0 %v446
        %887 = vmatprep.subr.mxu0 0.0
        %888 = vmatpush1.msra.mxu0 %v447
        %889 = vmatprep.subr.mxu0 0.0
        %890 = vmatpush1.msra.mxu0 %v448
        %891 = vmatprep.subr.mxu0 0.0
        %892 = vmatpush1.msra.mxu0 %v449
        %893 = vmatprep.subr.mxu0 0.0
        %894 = vmatpush1.msra.mxu0 %v450
        %895 = vmatprep.subr.mxu0 0.0
        %896 = vmatpush1.msra.mxu0 %v451
        %897 = vmatprep.subr.mxu0 0.0
        %898 = vmatpush1.msra.mxu0 %v452
        %899 = vmatprep.subr.mxu0 0.0
        %900 = vmatpush1.msra.mxu0 %v453
        %901 = vmatprep.mubr.f32.mxu0 %v587
        %902 = vmatmul.mubr.f32.gmra.mrb[0].mxu0 %v585
        %v903 = vpop.f32.mrb[0].mxu0
        %v904 = vadd.f32 %v834, %v903
        %v905 = vpop.f32.mrb[0].mxu0
        %906 = vdwg.mxu0
        %907 = vmatprep.subr.mxu0 0.0
        %908 = vmatpush1.msra.mxu0 %v454
        %909 = vmatprep.subr.mxu0 0.0
        %910 = vmatpush1.msra.mxu0 %v455
        %911 = vmatprep.subr.mxu0 0.0
        %912 = vmatpush1.msra.mxu0 %v456
        %913 = vmatprep.subr.mxu0 0.0
        %914 = vmatpush1.msra.mxu0 %v457
        %915 = vmatprep.subr.mxu0 0.0
        %916 = vmatpush1.msra.mxu0 %v458
        %917 = vmatprep.subr.mxu0 0.0
        %918 = vmatpush1.msra.mxu0 %v459
        %919 = vmatprep.subr.mxu0 0.0
        %920 = vmatpush1.msra.mxu0 %v460
        %921 = vmatprep.subr.mxu0 0.0
        %922 = vmatpush1.msra.mxu0 %v461
        %923 = vmatprep.subr.mxu0 0.0
        %924 = vmatpush1.msra.mxu0 %v462
        %925 = vmatprep.subr.mxu0 0.0
        %926 = vmatpush1.msra.mxu0 %v463
        %927 = vmatprep.subr.mxu0 0.0
        %928 = vmatpush1.msra.mxu0 %v464
        %929 = vmatprep.subr.mxu0 0.0
        %930 = vmatpush1.msra.mxu0 %v465
        %931 = vmatprep.subr.mxu0 0.0
        %932 = vmatpush1.msra.mxu0 %v466
        %933 = vmatprep.subr.mxu0 0.0
        %934 = vmatpush1.msra.mxu0 %v467
        %935 = vmatprep.subr.mxu0 0.0
        %936 = vmatpush1.msra.mxu0 %v468
        %937 = vmatprep.subr.mxu0 0.0
        %938 = vmatpush1.msra.mxu0 %v469
        %939 = vmatprep.subr.mxu0 0.0
        %940 = vmatpush1.msra.mxu0 %v470
        %941 = vmatprep.subr.mxu0 0.0
        %942 = vmatpush1.msra.mxu0 %v471
        %943 = vmatprep.subr.mxu0 0.0
        %944 = vmatpush1.msra.mxu0 %v472
        %945 = vmatprep.subr.mxu0 0.0
        %946 = vmatpush1.msra.mxu0 %v473
        %947 = vmatprep.subr.mxu0 0.0
        %948 = vmatpush1.msra.mxu0 %v474
        %949 = vmatprep.subr.mxu0 0.0
        %950 = vmatpush1.msra.mxu0 %v475
        %951 = vmatprep.subr.mxu0 0.0
        %952 = vmatpush1.msra.mxu0 %v476
        %953 = vmatprep.subr.mxu0 0.0
        %954 = vmatpush1.msra.mxu0 %v477
        %955 = vmatprep.subr.mxu0 0.0
        %956 = vmatpush1.msra.mxu0 %v478
        %957 = vmatprep.subr.mxu0 0.0
        %958 = vmatpush1.msra.mxu0 %v479
        %959 = vmatprep.subr.mxu0 0.0
        %960 = vmatpush1.msra.mxu0 %v480
        %961 = vmatprep.subr.mxu0 0.0
        %962 = vmatpush1.msra.mxu0 %v481
        %963 = vmatprep.subr.mxu0 0.0
        %964 = vmatpush1.msra.mxu0 %v482
        %965 = vmatprep.subr.mxu0 0.0
        %966 = vmatpush1.msra.mxu0 %v483
        %967 = vmatprep.subr.mxu0 0.0
        %968 = vmatpush1.msra.mxu0 %v484
        %969 = vmatprep.subr.mxu0 0.0
        %970 = vmatpush1.msra.mxu0 %v485
        %971 = vmatprep.mubr.f32.mxu0 %v603
        %972 = vmatmul.mubr.f32.gmra.mrb[0].mxu0 %v595
        %v973 = vpop.f32.mrb[0].mxu0
        %v974 = vadd.f32 %v904, %v973
        %v975 = vpop.f32.mrb[0].mxu0
        %976 = vdwg.mxu0
        %977 = vmatprep.subr.mxu0 0.0
        %978 = vmatpush1.msra.mxu0 %v486
        %979 = vmatprep.subr.mxu0 0.0
        %980 = vmatpush1.msra.mxu0 %v487
        %981 = vmatprep.subr.mxu0 0.0
        %982 = vmatpush1.msra.mxu0 %v488
        %983 = vmatprep.subr.mxu0 0.0
        %984 = vmatpush1.msra.mxu0 %v489
        %985 = vmatprep.subr.mxu0 0.0
        %986 = vmatpush1.msra.mxu0 %v490
        %987 = vmatprep.subr.mxu0 0.0
        %988 = vmatpush1.msra.mxu0 %v491
        %989 = vmatprep.subr.mxu0 0.0
        %990 = vmatpush1.msra.mxu0 %v492
        %991 = vmatprep.subr.mxu0 0.0
        %992 = vmatpush1.msra.mxu0 %v493
        %993 = vmatprep.subr.mxu0 0.0
        %994 = vmatpush1.msra.mxu0 %v494
        %995 = vmatprep.subr.mxu0 0.0
        %996 = vmatpush1.msra.mxu0 %v495
        %997 = vmatprep.subr.mxu0 0.0
        %998 = vmatpush1.msra.mxu0 %v496
        %999 = vmatprep.subr.mxu0 0.0
        %1000 = vmatpush1.msra.mxu0 %v497
        %1001 = vmatprep.subr.mxu0 0.0
        %1002 = vmatpush1.msra.mxu0 %v498
        %1003 = vmatprep.subr.mxu0 0.0
        %1004 = vmatpush1.msra.mxu0 %v499
        %1005 = vmatprep.subr.mxu0 0.0
        %1006 = vmatpush1.msra.mxu0 %v500
        %1007 = vmatprep.subr.mxu0 0.0
        %1008 = vmatpush1.msra.mxu0 %v501
        %1009 = vmatprep.subr.mxu0 0.0
        %1010 = vmatpush1.msra.mxu0 %v502
        %1011 = vmatprep.subr.mxu0 0.0
        %1012 = vmatpush1.msra.mxu0 %v503
        %1013 = vmatprep.subr.mxu0 0.0
        %1014 = vmatpush1.msra.mxu0 %v504
        %1015 = vmatprep.subr.mxu0 0.0
        %1016 = vmatpush1.msra.mxu0 %v505
        %1017 = vmatprep.subr.mxu0 0.0
        %1018 = vmatpush1.msra.mxu0 %v506
        %1019 = vmatprep.subr.mxu0 0.0
        %1020 = vmatpush1.msra.mxu0 %v507
        %1021 = vmatprep.subr.mxu0 0.0
        %1022 = vmatpush1.msra.mxu0 %v508
        %1023 = vmatprep.subr.mxu0 0.0
        %1024 = vmatpush1.msra.mxu0 %v509
        %1025 = vmatprep.subr.mxu0 0.0
        %1026 = vmatpush1.msra.mxu0 %v510
        %1027 = vmatprep.subr.mxu0 0.0
        %1028 = vmatpush1.msra.mxu0 %v511
        %1029 = vmatprep.subr.mxu0 0.0
        %1030 = vmatpush1.msra.mxu0 %v512
        %1031 = vmatprep.subr.mxu0 0.0
        %1032 = vmatpush1.msra.mxu0 %v513
        %1033 = vmatprep.subr.mxu0 0.0
        %1034 = vmatpush1.msra.mxu0 %v514
        %1035 = vmatprep.subr.mxu0 0.0
        %1036 = vmatpush1.msra.mxu0 %v515
        %1037 = vmatprep.subr.mxu0 0.0
        %1038 = vmatpush1.msra.mxu0 %v516
        %1039 = vmatprep.subr.mxu0 0.0
        %1040 = vmatpush1.msra.mxu0 %v517
        %1041 = vmatprep.mubr.f32.mxu0 %v604
        %1042 = vmatmul.mubr.f32.gmra.mrb[0].mxu0 %v602
        %v1043 = vpop.f32.mrb[0].mxu0
        %v1044 = vadd.f32 %v974, %v1043
        %v1045 = vpop.f32.mrb[0].mxu0
        %1046 = vdwg.mxu0
        %1047 = vmatprep.subr.mxu0 0.0
        %1048 = vmatpush1.msra.mxu0 %v518
        %1049 = vmatprep.subr.mxu0 0.0
        %1050 = vmatpush1.msra.mxu0 %v519
        %1051 = vmatprep.subr.mxu0 0.0
        %1052 = vmatpush1.msra.mxu0 %v520
        %1053 = vmatprep.subr.mxu0 0.0
        %1054 = vmatpush1.msra.mxu0 %v521
        %1055 = vmatprep.subr.mxu0 0.0
        %1056 = vmatpush1.msra.mxu0 %v522
        %1057 = vmatprep.subr.mxu0 0.0
        %1058 = vmatpush1.msra.mxu0 %v523
        %1059 = vmatprep.subr.mxu0 0.0
        %1060 = vmatpush1.msra.mxu0 %v524
        %1061 = vmatprep.subr.mxu0 0.0
        %1062 = vmatpush1.msra.mxu0 %v525
        %1063 = vmatprep.subr.mxu0 0.0
        %1064 = vmatpush1.msra.mxu0 %v526
        %1065 = vmatprep.subr.mxu0 0.0
        %1066 = vmatpush1.msra.mxu0 %v527
        %1067 = vmatprep.subr.mxu0 0.0
        %1068 = vmatpush1.msra.mxu0 %v528
        %1069 = vmatprep.subr.mxu0 0.0
        %1070 = vmatpush1.msra.mxu0 %v529
        %1071 = vmatprep.subr.mxu0 0.0
        %1072 = vmatpush1.msra.mxu0 %v530
        %1073 = vmatprep.subr.mxu0 0.0
        %1074 = vmatpush1.msra.mxu0 %v531
        %1075 = vmatprep.subr.mxu0 0.0
        %1076 = vmatpush1.msra.mxu0 %v532
        %1077 = vmatprep.subr.mxu0 0.0
        %1078 = vmatpush1.msra.mxu0 %v533
        %1079 = vmatprep.subr.mxu0 0.0
        %1080 = vmatpush1.msra.mxu0 %v534
        %1081 = vmatprep.subr.mxu0 0.0
        %1082 = vmatpush1.msra.mxu0 %v535
        %1083 = vmatprep.subr.mxu0 0.0
        %1084 = vmatpush1.msra.mxu0 %v536
        %1085 = vmatprep.subr.mxu0 0.0
        %1086 = vmatpush1.msra.mxu0 %v537
        %1087 = vmatprep.subr.mxu0 0.0
        %1088 = vmatpush1.msra.mxu0 %v538
        %1089 = vmatprep.subr.mxu0 0.0
        %1090 = vmatpush1.msra.mxu0 %v539
        %1091 = vmatprep.subr.mxu0 0.0
        %1092 = vmatpush1.msra.mxu0 %v540
        %1093 = vmatprep.subr.mxu0 0.0
        %1094 = vmatpush1.msra.mxu0 %v541
        %1095 = vmatprep.subr.mxu0 0.0
        %1096 = vmatpush1.msra.mxu0 %v542
        %1097 = vmatprep.subr.mxu0 0.0
        %1098 = vmatpush1.msra.mxu0 %v543
        %1099 = vmatprep.subr.mxu0 0.0
        %1100 = vmatpush1.msra.mxu0 %v544
        %1101 = vmatprep.subr.mxu0 0.0
        %1102 = vmatpush1.msra.mxu0 %v545
        %1103 = vmatprep.subr.mxu0 0.0
        %1104 = vmatpush1.msra.mxu0 %v546
        %1105 = vmatprep.subr.mxu0 0.0
        %1106 = vmatpush1.msra.mxu0 %v547
        %1107 = vmatprep.subr.mxu0 0.0
        %1108 = vmatpush1.msra.mxu0 %v548
        %1109 = vmatprep.subr.mxu0 0.0
        %1110 = vmatpush1.msra.mxu0 %v549
        %1111 = vmatprep.mubr.f32.mxu0 %v612
        %1112 = vmatmul.mubr.f32.gmra.mrb[0].mxu0 %v611
        %v1113 = vpop.f32.mrb[0].mxu0
        %v1114 = vadd.f32 %v1044, %v1113
        %v1115 = vpop.f32.mrb[0].mxu0
        %1116 = vdwg.mxu0
        %v1117 = vadd.f32 %v321, %v1114
        %vm1118 = vcmask 812032
        %1119 = vst.msk [vmem:[#allocation2] sm:$0x3] %vm1118, %v1117
        %p1120 = scmp.eq.s32.totalorder %s22, 6
        // Predicated region
        $region53: #{mnist_model_forward.3} parent=47 // pred_check
          %p1121 = pneg %p1120
        $region54: #{mnist_model_forward.3} parent=47 // pred_check_branch
          %1123 = sbr.rel (%p1121) target = $region56
        $region55: #{mnist_model_forward.3} parent=47 // pred_region
          %v1124 = vld [vmem:[#allocation2] sm:$0x3]
          %v1125 = vld [vmem:[%s2] sm:$0x1]
          %v1127 = vlaneseq
          %v1128 = vshrl.u32 %v1127, 7
          %v1129 = vsub.s32 0, %v1128
          %v1130 = vrot.slane %v1125, %v1129
          %v1132 = vadd.f32 %v1124, %v1130
          %v1133 = vmax.f32 %v1132, 0.0
          %v1134 = vld [vmem:[%s3] sm:$0xff]
          %v1135 = vld [vmem:[%s3 + $0x8] sm:$0xff]
          %v1136 = vld [vmem:[%s3 + $0x10] sm:$0xff]
          %v1137 = vld [vmem:[%s3 + $0x18] sm:$0xff]
          %v1138 = vld [vmem:[%s3 + $0x20] sm:$0xff]
          %v1139 = vld [vmem:[%s3 + $0x28] sm:$0xff]
          %v1140 = vld [vmem:[%s3 + $0x30] sm:$0xff]
          %v1141 = vld [vmem:[%s3 + $0x38] sm:$0xff]
          %v1142 = vld [vmem:[%s3 + $0x40] sm:$0xff]
          %v1143 = vld [vmem:[%s3 + $0x48] sm:$0xff]
          %v1144 = vld [vmem:[%s3 + $0x50] sm:$0xff]
          %v1145 = vld [vmem:[%s3 + $0x58] sm:$0xff]
          %v1146 = vld [vmem:[%s3 + $0x60] sm:$0xf]
          %v1147 = vld [vmem:[%s4] sm:$0x1]
          %v1149 = vlaneseq
          %v1150 = vshrl.u32 %v1149, 7
          %v1151 = vsub.s32 0, %v1150
          %v1152 = vrot.slane %v1147, %v1151
          %vm1154 = vcmask 818176
          %v1156 = vsel %vm1154, %v1133, 0
          %vm1158 = vcmask 1043456
          %v1160 = vsel %vm1158, %v1146, 0
          %1162 = vmatprep.subr.mxu0 0.0
          %1163 = vmatpush1.msra.mxu0 %v1134
          %1164 = vmatprep.subr.mxu0 0.0
          %1165 = vmatpush1.msra.mxu0 %v1135
          %1166 = vmatprep.subr.mxu0 0.0
          %1167 = vmatpush1.msra.mxu0 %v1136
          %1168 = vmatprep.subr.mxu0 0.0
          %1169 = vmatpush1.msra.mxu0 %v1137
          %1170 = vmatprep.subr.mxu0 0.0
          %1171 = vmatpush1.msra.mxu0 %v1138
          %1172 = vmatprep.subr.mxu0 0.0
          %1173 = vmatpush1.msra.mxu0 %v1139
          %1174 = vmatprep.subr.mxu0 0.0
          %1175 = vmatpush1.msra.mxu0 %v1140
          %1176 = vmatprep.subr.mxu0 0.0
          %1177 = vmatpush1.msra.mxu0 %v1141
          %1178 = vmatprep.subr.mxu0 0.0
          %1179 = vmatpush1.msra.mxu0 %v1142
          %1180 = vmatprep.subr.mxu0 0.0
          %1181 = vmatpush1.msra.mxu0 %v1143
          %1182 = vmatprep.subr.mxu0 0.0
          %1183 = vmatpush1.msra.mxu0 %v1144
          %1184 = vmatprep.subr.mxu0 0.0
          %1185 = vmatpush1.msra.mxu0 %v1145
          %1186 = vmatprep.subr.mxu0 0.0
          %1187 = vmatpush1.msra.mxu0 %v1160
          %1188 = vmatprep.subr.mxu0 0.0
          %1189 = vmatpush1.msra.mxu0 0.0
          %1190 = vmatprep.subr.mxu0 0.0
          %1191 = vmatpush1.msra.mxu0 0.0
          %1192 = vmatprep.subr.mxu0 0.0
          %1193 = vmatpush1.msra.mxu0 0.0
          %1194 = vmatprep.subr.mxu0 0.0
          %1195 = vmatpush1.msra.mxu0 0.0
          %1196 = vmatprep.subr.mxu0 0.0
          %1197 = vmatpush1.msra.mxu0 0.0
          %1198 = vmatprep.subr.mxu0 0.0
          %1199 = vmatpush1.msra.mxu0 0.0
          %1200 = vmatprep.subr.mxu0 0.0
          %1201 = vmatpush1.msra.mxu0 0.0
          %1202 = vmatprep.subr.mxu0 0.0
          %1203 = vmatpush1.msra.mxu0 0.0
          %1204 = vmatprep.subr.mxu0 0.0
          %1205 = vmatpush1.msra.mxu0 0.0
          %1206 = vmatprep.subr.mxu0 0.0
          %1207 = vmatpush1.msra.mxu0 0.0
          %1208 = vmatprep.subr.mxu0 0.0
          %1209 = vmatpush1.msra.mxu0 0.0
          %1210 = vmatprep.subr.mxu0 0.0
          %1211 = vmatpush1.msra.mxu0 0.0
          %1212 = vmatprep.subr.mxu0 0.0
          %1213 = vmatpush1.msra.mxu0 0.0
          %1214 = vmatprep.subr.mxu0 0.0
          %1215 = vmatpush1.msra.mxu0 0.0
          %1216 = vmatprep.subr.mxu0 0.0
          %1217 = vmatpush1.msra.mxu0 0.0
          %1218 = vmatprep.subr.mxu0 0.0
          %1219 = vmatpush1.msra.mxu0 0.0
          %1220 = vmatprep.subr.mxu0 0.0
          %1221 = vmatpush1.msra.mxu0 0.0
          %1222 = vmatprep.subr.mxu0 0.0
          %1223 = vmatpush1.msra.mxu0 0.0
          %1224 = vmatprep.subr.mxu0 0.0
          %1225 = vmatpush1.msra.mxu0 0.0
          %1226 = vmatprep.mubr.f32.mxu0 0.0
          %1227 = vmatmul.mubr.f32.gmra.mrb[0].mxu0 %v1156
          %v1228 = vpop.f32.mrb[0].mxu0
          %v1229 = vadd.f32 %v1152, %v1228
          %v1230 = vpop.f32.mrb[0].mxu0
          %1231 = vdwg.mxu0
          %vm1232 = vcmask 123904
          %1233 = vst.msk [vmem:[#allocation3] sm:$0x3] %vm1232, %v1229
          %v1234 = vmax.f32 %v1229, 0.0
          %v1235 = vld [vmem:[%s5] sm:$0xff]
          %v1236 = vld [vmem:[%s5 + $0x8] sm:$0xff]
          %v1237 = vld [vmem:[%s6] sm:$0x1]
          %v1239 = vlaneseq
          %v1240 = vshrl.u32 %v1239, 7
          %v1241 = vsub.s32 0, %v1240
          %v1242 = vrot.slane %v1237, %v1241
          %vm1244 = vcmask 130048
          %v1246 = vsel %vm1244, %v1234, 0
          %1248 = vmatprep.subr.mxu0 0.0
          %1249 = vmatpush1.msra.mxu0 %v1235
          %1250 = vmatprep.subr.mxu0 0.0
          %1251 = vmatpush1.msra.mxu0 %v1236
          %1252 = vmatprep.subr.mxu0 0.0
          %1253 = vmatpush1.msra.mxu0 0.0
          %1254 = vmatprep.subr.mxu0 0.0
          %1255 = vmatpush1.msra.mxu0 0.0
          %1256 = vmatprep.subr.mxu0 0.0
          %1257 = vmatpush1.msra.mxu0 0.0
          %1258 = vmatprep.subr.mxu0 0.0
          %1259 = vmatpush1.msra.mxu0 0.0
          %1260 = vmatprep.subr.mxu0 0.0
          %1261 = vmatpush1.msra.mxu0 0.0
          %1262 = vmatprep.subr.mxu0 0.0
          %1263 = vmatpush1.msra.mxu0 0.0
          %1264 = vmatprep.subr.mxu0 0.0
          %1265 = vmatpush1.msra.mxu0 0.0
          %1266 = vmatprep.subr.mxu0 0.0
          %1267 = vmatpush1.msra.mxu0 0.0
          %1268 = vmatprep.subr.mxu0 0.0
          %1269 = vmatpush1.msra.mxu0 0.0
          %1270 = vmatprep.subr.mxu0 0.0
          %1271 = vmatpush1.msra.mxu0 0.0
          %1272 = vmatprep.subr.mxu0 0.0
          %1273 = vmatpush1.msra.mxu0 0.0
          %1274 = vmatprep.subr.mxu0 0.0
          %1275 = vmatpush1.msra.mxu0 0.0
          %1276 = vmatprep.subr.mxu0 0.0
          %1277 = vmatpush1.msra.mxu0 0.0
          %1278 = vmatprep.subr.mxu0 0.0
          %1279 = vmatpush1.msra.mxu0 0.0
          %1280 = vmatprep.subr.mxu0 0.0
          %1281 = vmatpush1.msra.mxu0 0.0
          %1282 = vmatprep.subr.mxu0 0.0
          %1283 = vmatpush1.msra.mxu0 0.0
          %1284 = vmatprep.subr.mxu0 0.0
          %1285 = vmatpush1.msra.mxu0 0.0
          %1286 = vmatprep.subr.mxu0 0.0
          %1287 = vmatpush1.msra.mxu0 0.0
          %1288 = vmatprep.subr.mxu0 0.0
          %1289 = vmatpush1.msra.mxu0 0.0
          %1290 = vmatprep.subr.mxu0 0.0
          %1291 = vmatpush1.msra.mxu0 0.0
          %1292 = vmatprep.subr.mxu0 0.0
          %1293 = vmatpush1.msra.mxu0 0.0
          %1294 = vmatprep.subr.mxu0 0.0
          %1295 = vmatpush1.msra.mxu0 0.0
          %1296 = vmatprep.subr.mxu0 0.0
          %1297 = vmatpush1.msra.mxu0 0.0
          %1298 = vmatprep.subr.mxu0 0.0
          %1299 = vmatpush1.msra.mxu0 0.0
          %1300 = vmatprep.subr.mxu0 0.0
          %1301 = vmatpush1.msra.mxu0 0.0
          %1302 = vmatprep.subr.mxu0 0.0
          %1303 = vmatpush1.msra.mxu0 0.0
          %1304 = vmatprep.subr.mxu0 0.0
          %1305 = vmatpush1.msra.mxu0 0.0
          %1306 = vmatprep.subr.mxu0 0.0
          %1307 = vmatpush1.msra.mxu0 0.0
          %1308 = vmatprep.subr.mxu0 0.0
          %1309 = vmatpush1.msra.mxu0 0.0
          %1310 = vmatprep.subr.mxu0 0.0
          %1311 = vmatpush1.msra.mxu0 0.0
          %1312 = vmatprep.mubr.f32.mxu0 0.0
          %1313 = vmatmul.mubr.f32.gmra.mrb[0].mxu0 %v1246
          %v1314 = vpop.f32.mrb[0].mxu0
          %v1315 = vadd.f32 %v1242, %v1314
          %v1316 = vpop.f32.mrb[0].mxu0
          %1317 = vdwg.mxu0
          %vm1318 = vcmask 74752
          %1319 = vst.msk [vmem:[#allocation5] sm:$0x3] %vm1318, %v1315
        $region56: #{mnist_model_forward.3} parent=47 // pred_fallthru
          _
        // Predicated region
        $region57: #{mnist_model_forward.3} parent=47 // pred_check
          %p1320 = pneg %p192
        $region58: #{mnist_model_forward.3} parent=47 // pred_check_branch
          %1322 = sbr.rel (%p1320) target = $region60
        $region59: #{mnist_model_forward.3} parent=47 // pred_region
          %s1324 = ssub.s32 32, 32
          %1325 = vsyncadd [#allocation4], %s1324
          %s1327 = sshll.u32 [#allocation3], 4
          %s1328 = int_to_ptr.vmem [resolvable:$true] %s1327
          %1330 = dma.vmem_to_hbm [thread:$0]  %s1328, 32, %s7, [#allocation4]
        $region60: #{mnist_model_forward.3} parent=47 // pred_fallthru
          _
        // Predicated region
        $region61: #{mnist_model_forward.3} parent=47 // pred_check
          %p1331 = pneg %p213
        $region62: #{mnist_model_forward.3} parent=47 // pred_check_branch
          %1333 = sbr.rel (%p1331) target = $region64
        $region63: #{mnist_model_forward.3} parent=47 // pred_region
          %s1335 = ssub.s32 32, 32
          %1336 = vsyncadd [#allocation6], %s1335
          %s1338 = sshll.u32 [#allocation5], 4
          %s1339 = int_to_ptr.vmem [resolvable:$true] %s1338
          %1341 = dma.vmem_to_hbm [thread:$0]  %s1339, 32, %s8, [#allocation6]
        $region64: #{mnist_model_forward.3} parent=47 // pred_fallthru
          _
        // Predicated region
        $region65: #{mnist_model_forward.3} parent=47 // pred_check
          %p1342 = pneg %p192
        $region66: #{mnist_model_forward.3} parent=47 // pred_check_branch
          %1344 = sbr.rel (%p1342) target = $region68
        $region67: #{mnist_model_forward.3} parent=47 // pred_region
          %1345 = dma.done [#allocation4], 32
        $region68: #{mnist_model_forward.3} parent=47 // pred_fallthru
          _
        // Predicated region
        $region69: #{mnist_model_forward.3} parent=47 // pred_check
          %p1346 = pneg %p213
        $region70: #{mnist_model_forward.3} parent=47 // pred_check_branch
          %1348 = sbr.rel (%p1346) target = $region72
        $region71: #{mnist_model_forward.3} parent=47 // pred_region
          %1349 = dma.done [#allocation6], 32
        $region72: #{mnist_model_forward.3} parent=47 // pred_fallthru
          _
      $region48: #{mnist_model_forward.3} parent=5 // pred_fallthru
        _
      %p1350 = scmp.le.s32.totalorder 2, %s17
      // Predicated region
      $region73: #{mnist_model_forward.3} parent=5 // pred_check
        %p1351 = pneg %p1350
      $region74: #{mnist_model_forward.3} parent=5 // pred_check_branch
        %1353 = sbr.rel (%p1351) target = $region76
      $region75: #{mnist_model_forward.3} parent=5 // pred_region
        %s1354 = ssub.s32 %s17, 2
      $region76: #{mnist_model_forward.3} parent=5 // pred_fallthru
        _
    $region6: #{mnist_model_forward.3} parent=1 // loop_footer
      %s21 = sadd.s32 1, %s17
    $region7: #{mnist_model_forward.3} parent=1 // loop_footer_branch
      %16 = sbr.rel target = $region3
    $region8: #{mnist_model_forward.3} parent=1 // loop_exit
      _
    %1355 = vsyncpa [#allocation4], 1
    %s1356 = scalar_lea.sflag [#allocation4], 1
    %1357 = vsyncpa %s1356, 1
    %1358 = vsyncpa [#allocation6], 1

// kernel: mnist_model_forward.2
$region0: #{mnist_model_forward.2}
  #allocation0 [shape = 'u32[]', space=smem, size = 0x4, offset = 0x4, fixed_abs, tag = 'smem constant byte address 0x4 - core index']
  #allocation1 [shape = 'u32[144,128]{1,0:T(1,128)}', space=vmem, size = 0x12000, scoped, tag = 'internal scratch']
  #allocation2 [shape = 'f32[968,32]{1,0:T(8,128)}', space=vmem, size = 0x79000, scoped, tag = 'scratch operand']
  #allocation3 [shape = 'f32[904,64]{1,0:T(8,128)}', space=vmem, size = 0x71000, scoped, tag = 'scratch operand']
  %s0 = inlined_call_operand.vmem [shape: f32[2,968,9], index: 0, kind: input, shape index: {}]
  %s1 = inlined_call_operand.hbm [shape: f32[9,32], index: 1, kind: input, shape index: {}]
  %s2 = inlined_call_operand.hbm [shape: f32[1,32], index: 2, kind: input, shape index: {}]
  %s3 = inlined_call_operand.vmem [shape: f32[288,64], index: 3, kind: input, shape index: {}]
  %s4 = inlined_call_operand.hbm [shape: f32[1,64], index: 4, kind: input, shape index: {}]
  %s5 = inlined_call_operand.vmem [shape: f32[196,864], index: 5, kind: input, shape index: {}]
  %s6 = inlined_call_operand.vmem [shape: f32[2,196,64], index: 6, kind: output, shape index: {}]
  %s7 = sld [smem:[#allocation0]]
  $region69: #{mnist_model_forward.2} parent=0
    _
  %s9 = ssub.s32 1, %s7
  %s10 = scalar_select 0, %s9, %s7
  $region1: #{mnist_model_forward.2} parent=0
    #allocation4 [shape = 'u8[8192]{0}', space=vmem, size = 0x2000, scoped, tag = 'input window, operand 1, single buffered']
    #allocation5 [shape = 's32[2]{0}', space=sflag, size = 0x8, scoped, tag = 'scoped memory for mnist_model_forward.2']
    #allocation6 [shape = 'u8[512]{0}', space=vmem, size = 0x400, scoped, tag = 'input window, operand 2, single buffered']
    #allocation7 [shape = 's32[1]{0}', space=sflag, size = 0x4, scoped, tag = 'scoped memory for mnist_model_forward.2']
    #allocation8 [shape = 'u8[512]{0}', space=vmem, size = 0x400, scoped, tag = 'input window, operand 4, single buffered']
    %11 = vsyncpa [#allocation5], 0
    %12 = vsyncpa [#allocation7], 0
    loop: start=0, step=1, limit=4
    $region2: #{mnist_model_forward.2} parent=1 // loop_pre_header
      _
    $region3: #{mnist_model_forward.2} parent=1 // loop_header
      %s14 = sphi 0, %s18
      %p15 = scmp.ge.s32.totalorder %s14, 4
      %s24 = sphi 0, %s26
      %s27 = sphi 0, %s24
      %s28 = sphi 0, %s27
      %s44 = sphi 0, %s28
      %s48 = sphi 0, %s48
      %s50 = sphi 0, %s48
      %s51 = sphi 0, %s50
      %s65 = sphi 0, %s51
      %s69 = sphi 0, %s69
      %s71 = sphi 0, %s69
      %s72 = sphi 0, %s71
      %s86 = sphi 0, %s72
      %s90 = sphi 0, %s90
      %s92 = sphi 0, %s90
      %s93 = sphi 0, %s92
      %s107 = sphi 0, %s93
      %s111 = sphi 0, %s111
      %s113 = sphi 0, %s111
      %s114 = sphi 0, %s113
      %s128 = sphi 0, %s114
      %s132 = sphi 0, %s132
      %s134 = sphi 0, %s132
      %s135 = sphi 0, %s134
      %s149 = sphi 0, %s135
      %s155 = sphi 0, %s157
      %s158 = sphi 0, %s155
      %s159 = sphi 0, %s158
      %s175 = sphi 0, %s159
    $region4: #{mnist_model_forward.2} parent=1 // loop_header_branch
      %17 = sbr.rel (%p15) target = $region8
    $region5: #{mnist_model_forward.2} parent=1 // loop_body
      %s19 = ssub.s32 %s14, 1
      %s20 = ssub.s32 %s14, 2
      %s21 = sadd.s32 %s14, 1
      %s22 = ssub.s32 %s14, %s21
      %p23 = scmp.eq.s32.totalorder %s22, 0
      %s25 = sadd.s32 %s24, 1
      %s26 = scalar_select %p23, %s24, %s25
      %p29 = pneg %p23
      %p30 = scmp.eq.s32.totalorder %s14, 1
      %p31 = por %p29, %p30
      %p32 = scmp.ne.s32.totalorder %s24, %s27
      %p33 = scmp.eq.s32.totalorder %s14, 0
      %p34 = por %p32, %p33
      %p35 = scmp.ne.s32.totalorder %s24, %s27
      %p36 = scmp.eq.s32.totalorder %s19, 1
      %p37 = por %p35, %p36
      %p38 = scmp.ne.s32.totalorder %s27, %s28
      %p39 = scmp.eq.s32.totalorder %s19, 0
      %p40 = por %p38, %p39
      %p41 = scmp.ne.s32.totalorder %s27, %s28
      %p42 = scmp.eq.s32.totalorder %s20, 1
      %p43 = por %p41, %p42
      %p45 = scmp.ne.s32.totalorder %s28, %s44
      %p46 = scmp.eq.s32.totalorder %s20, 0
      %p47 = por %p45, %p46
      %s49 = sadd.s32 %s48, 1
      %p52 = scmp.eq.s32.totalorder %s14, 1
      %p53 = scmp.ne.s32.totalorder %s48, %s50
      %p54 = scmp.eq.s32.totalorder %s14, 0
      %p55 = por %p53, %p54
      %p56 = scmp.ne.s32.totalorder %s48, %s50
      %p57 = scmp.eq.s32.totalorder %s19, 1
      %p58 = por %p56, %p57
      %p59 = scmp.ne.s32.totalorder %s50, %s51
      %p60 = scmp.eq.s32.totalorder %s19, 0
      %p61 = por %p59, %p60
      %p62 = scmp.ne.s32.totalorder %s50, %s51
      %p63 = scmp.eq.s32.totalorder %s20, 1
      %p64 = por %p62, %p63
      %p66 = scmp.ne.s32.totalorder %s51, %s65
      %p67 = scmp.eq.s32.totalorder %s20, 0
      %p68 = por %p66, %p67
      %s70 = sadd.s32 %s69, 1
      %p73 = scmp.eq.s32.totalorder %s14, 1
      %p74 = scmp.ne.s32.totalorder %s69, %s71
      %p75 = scmp.eq.s32.totalorder %s14, 0
      %p76 = por %p74, %p75
      %p77 = scmp.ne.s32.totalorder %s69, %s71
      %p78 = scmp.eq.s32.totalorder %s19, 1
      %p79 = por %p77, %p78
      %p80 = scmp.ne.s32.totalorder %s71, %s72
      %p81 = scmp.eq.s32.totalorder %s19, 0
      %p82 = por %p80, %p81
      %p83 = scmp.ne.s32.totalorder %s71, %s72
      %p84 = scmp.eq.s32.totalorder %s20, 1
      %p85 = por %p83, %p84
      %p87 = scmp.ne.s32.totalorder %s72, %s86
      %p88 = scmp.eq.s32.totalorder %s20, 0
      %p89 = por %p87, %p88
      %s91 = sadd.s32 %s90, 1
      %p94 = scmp.eq.s32.totalorder %s14, 1
      %p95 = scmp.ne.s32.totalorder %s90, %s92
      %p96 = scmp.eq.s32.totalorder %s14, 0
      %p97 = por %p95, %p96
      %p98 = scmp.ne.s32.totalorder %s90, %s92
      %p99 = scmp.eq.s32.totalorder %s19, 1
      %p100 = por %p98, %p99
      %p101 = scmp.ne.s32.totalorder %s92, %s93
      %p102 = scmp.eq.s32.totalorder %s19, 0
      %p103 = por %p101, %p102
      %p104 = scmp.ne.s32.totalorder %s92, %s93
      %p105 = scmp.eq.s32.totalorder %s20, 1
      %p106 = por %p104, %p105
      %p108 = scmp.ne.s32.totalorder %s93, %s107
      %p109 = scmp.eq.s32.totalorder %s20, 0
      %p110 = por %p108, %p109
      %s112 = sadd.s32 %s111, 1
      %p115 = scmp.eq.s32.totalorder %s14, 1
      %p116 = scmp.ne.s32.totalorder %s111, %s113
      %p117 = scmp.eq.s32.totalorder %s14, 0
      %p118 = por %p116, %p117
      %p119 = scmp.ne.s32.totalorder %s111, %s113
      %p120 = scmp.eq.s32.totalorder %s19, 1
      %p121 = por %p119, %p120
      %p122 = scmp.ne.s32.totalorder %s113, %s114
      %p123 = scmp.eq.s32.totalorder %s19, 0
      %p124 = por %p122, %p123
      %p125 = scmp.ne.s32.totalorder %s113, %s114
      %p126 = scmp.eq.s32.totalorder %s20, 1
      %p127 = por %p125, %p126
      %p129 = scmp.ne.s32.totalorder %s114, %s128
      %p130 = scmp.eq.s32.totalorder %s20, 0
      %p131 = por %p129, %p130
      %s133 = sadd.s32 %s132, 1
      %p136 = scmp.eq.s32.totalorder %s14, 1
      %p137 = scmp.ne.s32.totalorder %s132, %s134
      %p138 = scmp.eq.s32.totalorder %s14, 0
      %p139 = por %p137, %p138
      %p140 = scmp.ne.s32.totalorder %s132, %s134
      %p141 = scmp.eq.s32.totalorder %s19, 1
      %p142 = por %p140, %p141
      %p143 = scmp.ne.s32.totalorder %s134, %s135
      %p144 = scmp.eq.s32.totalorder %s19, 0
      %p145 = por %p143, %p144
      %p146 = scmp.ne.s32.totalorder %s134, %s135
      %p147 = scmp.eq.s32.totalorder %s20, 1
      %p148 = por %p146, %p147
      %p150 = scmp.ne.s32.totalorder %s135, %s149
      %p151 = scmp.eq.s32.totalorder %s20, 0
      %p152 = por %p150, %p151
      %s153 = ssub.s32 %s14, %s21
      %p154 = scmp.eq.s32.totalorder %s153, 0
      %s156 = sadd.s32 %s155, 1
      %s157 = scalar_select %p154, %s155, %s156
      %p160 = pneg %p154
      %p161 = scmp.eq.s32.totalorder %s14, 1
      %p162 = por %p160, %p161
      %p163 = scmp.ne.s32.totalorder %s155, %s158
      %p164 = scmp.eq.s32.totalorder %s14, 0
      %p165 = por %p163, %p164
      %p166 = scmp.ne.s32.totalorder %s155, %s158
      %p167 = scmp.eq.s32.totalorder %s19, 1
      %p168 = por %p166, %p167
      %p169 = scmp.ne.s32.totalorder %s158, %s159
      %p170 = scmp.eq.s32.totalorder %s19, 0
      %p171 = por %p169, %p170
      %p172 = scmp.ne.s32.totalorder %s158, %s159
      %p173 = scmp.eq.s32.totalorder %s20, 1
      %p174 = por %p172, %p173
      %p176 = scmp.ne.s32.totalorder %s159, %s175
      %p177 = scmp.eq.s32.totalorder %s20, 0
      %p178 = por %p176, %p177
      %p179 = scmp.le.s32.totalorder 1, %s14
      %p180 = scmp.lt.s32.totalorder %s14, 3
      %p181 = pnand %p179, %p180
      %p182 = pneg %p181
      // Predicated region
      $region9: #{mnist_model_forward.2} parent=5 // pred_check
        _
      $region10: #{mnist_model_forward.2} parent=5 // pred_check_branch
        %184 = sbr.rel (%p181) target = $region12
      $region11: #{mnist_model_forward.2} parent=5 // pred_region
        %s185 = ssub.s32 %s14, 1
        // Predicated region
        $region13: #{mnist_model_forward.2} parent=11 // pred_check
          %p186 = pneg %p61
        $region14: #{mnist_model_forward.2} parent=11 // pred_check_branch
          %188 = sbr.rel (%p186) target = $region16
        $region15: #{mnist_model_forward.2} parent=11 // pred_region
          %s190 = ssub.s32 256, 256
          %191 = vsyncadd [#allocation5], %s190
          %s192 = sshll.u32 [#allocation4], 4
          %s193 = int_to_ptr.vmem [resolvable:$true] %s192
          %198 = dma.hbm_to_vmem [thread:$0]  %s1, 256, %s193, [#allocation5], 128, 128, 8
        $region16: #{mnist_model_forward.2} parent=11 // pred_fallthru
          _
        // Predicated region
        $region17: #{mnist_model_forward.2} parent=11 // pred_check
          %p199 = pneg %p82
        $region18: #{mnist_model_forward.2} parent=11 // pred_check_branch
          %201 = sbr.rel (%p199) target = $region20
        $region19: #{mnist_model_forward.2} parent=11 // pred_region
          %s203 = ssub.s32 16, 16
          %204 = vsyncadd [#allocation7], %s203
          %s206 = sshll.u32 [#allocation6], 4
          %s207 = int_to_ptr.vmem [resolvable:$true] %s206
          %209 = dma.hbm_to_vmem [thread:$0]  %s2, 16, %s207, [#allocation7]
        $region20: #{mnist_model_forward.2} parent=11 // pred_fallthru
          _
        // Predicated region
        $region21: #{mnist_model_forward.2} parent=11 // pred_check
          %p210 = pneg %p103
        $region22: #{mnist_model_forward.2} parent=11 // pred_check_branch
          %212 = sbr.rel (%p210) target = $region24
        $region23: #{mnist_model_forward.2} parent=11 // pred_region
          _
        $region24: #{mnist_model_forward.2} parent=11 // pred_fallthru
          _
        // Predicated region
        $region25: #{mnist_model_forward.2} parent=11 // pred_check
          %p213 = pneg %p124
        $region26: #{mnist_model_forward.2} parent=11 // pred_check_branch
          %215 = sbr.rel (%p213) target = $region28
        $region27: #{mnist_model_forward.2} parent=11 // pred_region
          %s217 = ssub.s32 16, 16
          %218 = vsyncadd [#allocation7], %s217
          %s220 = sshll.u32 [#allocation8], 4
          %s221 = int_to_ptr.vmem [resolvable:$true] %s220
          %223 = dma.hbm_to_vmem [thread:$0]  %s4, 16, %s221, [#allocation7]
        $region28: #{mnist_model_forward.2} parent=11 // pred_fallthru
          _
        // Predicated region
        $region29: #{mnist_model_forward.2} parent=11 // pred_check
          %p224 = pneg %p145
        $region30: #{mnist_model_forward.2} parent=11 // pred_check_branch
          %226 = sbr.rel (%p224) target = $region32
        $region31: #{mnist_model_forward.2} parent=11 // pred_region
          _
        $region32: #{mnist_model_forward.2} parent=11 // pred_fallthru
          _
      $region12: #{mnist_model_forward.2} parent=5 // pred_fallthru
        _
      %p227 = scmp.lt.s32.totalorder %s14, 2
      // Predicated region
      $region33: #{mnist_model_forward.2} parent=5 // pred_check
        %p228 = pneg %p227
      $region34: #{mnist_model_forward.2} parent=5 // pred_check_branch
        %230 = sbr.rel (%p228) target = $region36
      $region35: #{mnist_model_forward.2} parent=5 // pred_region
        // Predicated region
        $region37: #{mnist_model_forward.2} parent=35 // pred_check
          %p231 = pneg %p34
        $region38: #{mnist_model_forward.2} parent=35 // pred_check_branch
          %233 = sbr.rel (%p231) target = $region40
        $region39: #{mnist_model_forward.2} parent=35 // pred_region
          %p234 = scmp.lt.s32.totalorder %s14, 1
          %s235 = scalar_select %p234, %s14, 1
          %s236 = smul.addr %s235, 121
          %s237 = smul.addr %s236, 8
          %s238 = scalar_lea.vmem %s0, %s237
        $region40: #{mnist_model_forward.2} parent=35 // pred_fallthru
          _
      $region36: #{mnist_model_forward.2} parent=5 // pred_fallthru
        _
      %p239 = scmp.le.s32.totalorder 1, %s14
      %p240 = scmp.lt.s32.totalorder %s14, 3
      %p241 = pnand %p239, %p240
      %p242 = pneg %p241
      // Predicated region
      $region41: #{mnist_model_forward.2} parent=5 // pred_check
        _
      $region42: #{mnist_model_forward.2} parent=5 // pred_check_branch
        %244 = sbr.rel (%p241) target = $region44
      $region43: #{mnist_model_forward.2} parent=5 // pred_region
        %s245 = ssub.s32 %s14, 1
        // Predicated region
        $region45: #{mnist_model_forward.2} parent=43 // pred_check
          %p246 = pneg %p61
        $region46: #{mnist_model_forward.2} parent=43 // pred_check_branch
          %248 = sbr.rel (%p246) target = $region48
        $region47: #{mnist_model_forward.2} parent=43 // pred_region
          %249 = dma.done [#allocation5], 256
        $region48: #{mnist_model_forward.2} parent=43 // pred_fallthru
          _
        // Predicated region
        $region49: #{mnist_model_forward.2} parent=43 // pred_check
          %p250 = pneg %p82
        $region50: #{mnist_model_forward.2} parent=43 // pred_check_branch
          %252 = sbr.rel (%p250) target = $region52
        $region51: #{mnist_model_forward.2} parent=43 // pred_region
          %253 = dma.done [#allocation7], 16
        $region52: #{mnist_model_forward.2} parent=43 // pred_fallthru
          _
        // Predicated region
        $region53: #{mnist_model_forward.2} parent=43 // pred_check
          %p254 = pneg %p124
        $region54: #{mnist_model_forward.2} parent=43 // pred_check_branch
          %256 = sbr.rel (%p254) target = $region56
        $region55: #{mnist_model_forward.2} parent=43 // pred_region
          %257 = dma.done [#allocation7], 16
        $region56: #{mnist_model_forward.2} parent=43 // pred_fallthru
          _
        %p258 = scmp.lt.s32.totalorder %s19, 1
        %s259 = scalar_select %p258, %s19, 1
        %s260 = smul.addr %s259, 121
        %s261 = smul.addr %s260, 8
        %s262 = scalar_lea.vmem %s0, %s261
        %p263 = pneg %p40
        %p264 = pneg %p37
        %p265 = pneg %p61
        %p266 = pneg %p58
        %p267 = pneg %p82
        %p268 = pneg %p79
        %p269 = pneg %p103
        %p270 = pneg %p100
        %p271 = pneg %p124
        %p272 = pneg %p121
        %p273 = pneg %p145
        %p274 = pneg %p142
        %p275 = pneg %p171
        %p276 = pneg %p168
        %p277 = scmp.lt.s32.totalorder %s19, 1
        %s278 = scalar_select %p277, %s19, 1
        %s279 = smul.addr %s278, 25
        %s280 = smul.addr %s279, 8
        %s281 = scalar_lea.vmem %s6, %s280
        %p282 = scmp.lt.s32.totalorder %s19, 1
        %s283 = scalar_select %p282, %s19, 1
        %s284 = smul.addr %s283, 121
        %s285 = smul.addr %s284, 8
        %s286 = scalar_lea.vmem %s0, %s285
        %p287 = scmp.lt.s32.totalorder %s19, 1
        %s288 = scalar_select %p287, %s19, 1
        %s289 = smul.addr %s288, 25
        %s290 = smul.addr %s289, 8
        %s291 = scalar_lea.vmem %s6, %s290
        %v292 = vld [vmem:[%s286] sm:$0xff]
        %v293 = vld [vmem:[%s286 + $0x8] sm:$0xff]
        %v294 = vld [vmem:[%s286 + $0x10] sm:$0xff]
        %v295 = vld [vmem:[%s286 + $0x18] sm:$0xff]
        %v296 = vld [vmem:[%s286 + $0x20] sm:$0xff]
        %v297 = vld [vmem:[%s286 + $0x28] sm:$0xff]
        %v298 = vld [vmem:[%s286 + $0x30] sm:$0xff]
        %v299 = vld [vmem:[%s286 + $0x38] sm:$0xff]
        %v300 = vld [vmem:[%s286 + $0x40] sm:$0xff]
        %v301 = vld [vmem:[%s286 + $0x48] sm:$0xff]
        %v302 = vld [vmem:[%s286 + $0x50] sm:$0xff]
        %v303 = vld [vmem:[%s286 + $0x58] sm:$0xff]
        %v304 = vld [vmem:[%s286 + $0x60] sm:$0xff]
        %v305 = vld [vmem:[%s286 + $0x68] sm:$0xff]
        %v306 = vld [vmem:[%s286 + $0x70] sm:$0xff]
        %v307 = vld [vmem:[%s286 + $0x78] sm:$0xff]
        %v308 = vld [vmem:[%s286 + $0x80] sm:$0xff]
        %v309 = vld [vmem:[%s286 + $0x88] sm:$0xff]
        %v310 = vld [vmem:[%s286 + $0x90] sm:$0xff]
        %v311 = vld [vmem:[%s286 + $0x98] sm:$0xff]
        %v312 = vld [vmem:[%s286 + $0xa0] sm:$0xff]
        %v313 = vld [vmem:[%s286 + $0xa8] sm:$0xff]
        %v314 = vld [vmem:[%s286 + $0xb0] sm:$0xff]
        %v315 = vld [vmem:[%s286 + $0xb8] sm:$0xff]
        %v316 = vld [vmem:[%s286 + $0xc0] sm:$0xff]
        %v317 = vld [vmem:[%s286 + $0xc8] sm:$0xff]
        %v318 = vld [vmem:[%s286 + $0xd0] sm:$0xff]
        %v319 = vld [vmem:[%s286 + $0xd8] sm:$0xff]
        %v320 = vld [vmem:[%s286 + $0xe0] sm:$0xff]
        %v321 = vld [vmem:[%s286 + $0xe8] sm:$0xff]
        %v322 = vld [vmem:[%s286 + $0xf0] sm:$0xff]
        %v323 = vld [vmem:[%s286 + $0xf8] sm:$0xff]
        %v324 = vld [vmem:[%s286 + $0x100] sm:$0xff]
        %v325 = vld [vmem:[%s286 + $0x108] sm:$0xff]
        %v326 = vld [vmem:[%s286 + $0x110] sm:$0xff]
        %v327 = vld [vmem:[%s286 + $0x118] sm:$0xff]
        %v328 = vld [vmem:[%s286 + $0x120] sm:$0xff]
        %v329 = vld [vmem:[%s286 + $0x128] sm:$0xff]
        %v330 = vld [vmem:[%s286 + $0x130] sm:$0xff]
        %v331 = vld [vmem:[%s286 + $0x138] sm:$0xff]
        %v332 = vld [vmem:[%s286 + $0x140] sm:$0xff]
        %v333 = vld [vmem:[%s286 + $0x148] sm:$0xff]
        %v334 = vld [vmem:[%s286 + $0x150] sm:$0xff]
        %v335 = vld [vmem:[%s286 + $0x158] sm:$0xff]
        %v336 = vld [vmem:[%s286 + $0x160] sm:$0xff]
        %v337 = vld [vmem:[%s286 + $0x168] sm:$0xff]
        %v338 = vld [vmem:[%s286 + $0x170] sm:$0xff]
        %v339 = vld [vmem:[%s286 + $0x178] sm:$0xff]
        %v340 = vld [vmem:[%s286 + $0x180] sm:$0xff]
        %v341 = vld [vmem:[%s286 + $0x188] sm:$0xff]
        %v342 = vld [vmem:[%s286 + $0x190] sm:$0xff]
        %v343 = vld [vmem:[%s286 + $0x198] sm:$0xff]
        %v344 = vld [vmem:[%s286 + $0x1a0] sm:$0xff]
        %v345 = vld [vmem:[%s286 + $0x1a8] sm:$0xff]
        %v346 = vld [vmem:[%s286 + $0x1b0] sm:$0xff]
        %v347 = vld [vmem:[%s286 + $0x1b8] sm:$0xff]
        %v348 = vld [vmem:[%s286 + $0x1c0] sm:$0xff]
        %v349 = vld [vmem:[%s286 + $0x1c8] sm:$0xff]
        %v350 = vld [vmem:[%s286 + $0x1d0] sm:$0xff]
        %v351 = vld [vmem:[%s286 + $0x1d8] sm:$0xff]
        %v352 = vld [vmem:[%s286 + $0x1e0] sm:$0xff]
        %v353 = vld [vmem:[%s286 + $0x1e8] sm:$0xff]
        %v354 = vld [vmem:[%s286 + $0x1f0] sm:$0xff]
        %v355 = vld [vmem:[%s286 + $0x1f8] sm:$0xff]
        %v356 = vld [vmem:[%s286 + $0x200] sm:$0xff]
        %v357 = vld [vmem:[%s286 + $0x208] sm:$0xff]
        %v358 = vld [vmem:[%s286 + $0x210] sm:$0xff]
        %v359 = vld [vmem:[%s286 + $0x218] sm:$0xff]
        %v360 = vld [vmem:[%s286 + $0x220] sm:$0xff]
        %v361 = vld [vmem:[%s286 + $0x228] sm:$0xff]
        %v362 = vld [vmem:[%s286 + $0x230] sm:$0xff]
        %v363 = vld [vmem:[%s286 + $0x238] sm:$0xff]
        %v364 = vld [vmem:[%s286 + $0x240] sm:$0xff]
        %v365 = vld [vmem:[%s286 + $0x248] sm:$0xff]
        %v366 = vld [vmem:[%s286 + $0x250] sm:$0xff]
        %v367 = vld [vmem:[%s286 + $0x258] sm:$0xff]
        %v368 = vld [vmem:[%s286 + $0x260] sm:$0xff]
        %v369 = vld [vmem:[%s286 + $0x268] sm:$0xff]
        %v370 = vld [vmem:[%s286 + $0x270] sm:$0xff]
        %v371 = vld [vmem:[%s286 + $0x278] sm:$0xff]
        %v372 = vld [vmem:[%s286 + $0x280] sm:$0xff]
        %v373 = vld [vmem:[%s286 + $0x288] sm:$0xff]
        %v374 = vld [vmem:[%s286 + $0x290] sm:$0xff]
        %v375 = vld [vmem:[%s286 + $0x298] sm:$0xff]
        %v376 = vld [vmem:[%s286 + $0x2a0] sm:$0xff]
        %v377 = vld [vmem:[%s286 + $0x2a8] sm:$0xff]
        %v378 = vld [vmem:[%s286 + $0x2b0] sm:$0xff]
        %v379 = vld [vmem:[%s286 + $0x2b8] sm:$0xff]
        %v380 = vld [vmem:[%s286 + $0x2c0] sm:$0xff]
        %v381 = vld [vmem:[%s286 + $0x2c8] sm:$0xff]
        %v382 = vld [vmem:[%s286 + $0x2d0] sm:$0xff]
        %v383 = vld [vmem:[%s286 + $0x2d8] sm:$0xff]
        %v384 = vld [vmem:[%s286 + $0x2e0] sm:$0xff]
        %v385 = vld [vmem:[%s286 + $0x2e8] sm:$0xff]
        %v386 = vld [vmem:[%s286 + $0x2f0] sm:$0xff]
        %v387 = vld [vmem:[%s286 + $0x2f8] sm:$0xff]
        %v388 = vld [vmem:[%s286 + $0x300] sm:$0xff]
        %v389 = vld [vmem:[%s286 + $0x308] sm:$0xff]
        %v390 = vld [vmem:[%s286 + $0x310] sm:$0xff]
        %v391 = vld [vmem:[%s286 + $0x318] sm:$0xff]
        %v392 = vld [vmem:[%s286 + $0x320] sm:$0xff]
        %v393 = vld [vmem:[%s286 + $0x328] sm:$0xff]
        %v394 = vld [vmem:[%s286 + $0x330] sm:$0xff]
        %v395 = vld [vmem:[%s286 + $0x338] sm:$0xff]
        %v396 = vld [vmem:[%s286 + $0x340] sm:$0xff]
        %v397 = vld [vmem:[%s286 + $0x348] sm:$0xff]
        %v398 = vld [vmem:[%s286 + $0x350] sm:$0xff]
        %v399 = vld [vmem:[%s286 + $0x358] sm:$0xff]
        %v400 = vld [vmem:[%s286 + $0x360] sm:$0xff]
        %v401 = vld [vmem:[%s286 + $0x368] sm:$0xff]
        %v402 = vld [vmem:[%s286 + $0x370] sm:$0xff]
        %v403 = vld [vmem:[%s286 + $0x378] sm:$0xff]
        %v404 = vld [vmem:[%s286 + $0x380] sm:$0xff]
        %v405 = vld [vmem:[%s286 + $0x388] sm:$0xff]
        %v406 = vld [vmem:[%s286 + $0x390] sm:$0xff]
        %v407 = vld [vmem:[%s286 + $0x398] sm:$0xff]
        %v408 = vld [vmem:[%s286 + $0x3a0] sm:$0xff]
        %v409 = vld [vmem:[%s286 + $0x3a8] sm:$0xff]
        %v410 = vld [vmem:[%s286 + $0x3b0] sm:$0xff]
        %v411 = vld [vmem:[%s286 + $0x3b8] sm:$0xff]
        %v412 = vld [vmem:[%s286 + $0x3c0] sm:$0xff]
        %v413 = vld [vmem:[#allocation4] sm:$0xff]
        %v414 = vld [vmem:[#allocation4 + $0x8] sm:$0x1]
        %v415 = vld [vmem:[#allocation6] sm:$0x1]
        %v417 = vlaneseq
        %v418 = vshrl.u32 %v417, 7
        %v419 = vsub.s32 0, %v418
        %v420 = vrot.slane %v415, %v419
        %vm422 = vcmask 72704
        %v424 = vsel %vm422, %v292, 0
        %v427 = vsel %vm422, %v293, 0
        %v430 = vsel %vm422, %v294, 0
        %v433 = vsel %vm422, %v295, 0
        %v436 = vsel %vm422, %v296, 0
        %v439 = vsel %vm422, %v297, 0
        %v442 = vsel %vm422, %v298, 0
        %v445 = vsel %vm422, %v299, 0
        %v448 = vsel %vm422, %v300, 0
        %v451 = vsel %vm422, %v301, 0
        %v454 = vsel %vm422, %v302, 0
        %v457 = vsel %vm422, %v303, 0
        %v460 = vsel %vm422, %v304, 0
        %v463 = vsel %vm422, %v305, 0
        %v466 = vsel %vm422, %v306, 0
        %v469 = vsel %vm422, %v307, 0
        %v472 = vsel %vm422, %v308, 0
        %v475 = vsel %vm422, %v309, 0
        %v478 = vsel %vm422, %v310, 0
        %v481 = vsel %vm422, %v311, 0
        %v484 = vsel %vm422, %v312, 0
        %v487 = vsel %vm422, %v313, 0
        %v490 = vsel %vm422, %v314, 0
        %v493 = vsel %vm422, %v315, 0
        %v496 = vsel %vm422, %v316, 0
        %v499 = vsel %vm422, %v317, 0
        %v502 = vsel %vm422, %v318, 0
        %v505 = vsel %vm422, %v319, 0
        %v508 = vsel %vm422, %v320, 0
        %v511 = vsel %vm422, %v321, 0
        %v514 = vsel %vm422, %v322, 0
        %v517 = vsel %vm422, %v323, 0
        %v520 = vsel %vm422, %v324, 0
        %v523 = vsel %vm422, %v325, 0
        %v526 = vsel %vm422, %v326, 0
        %v529 = vsel %vm422, %v327, 0
        %v532 = vsel %vm422, %v328, 0
        %v535 = vsel %vm422, %v329, 0
        %v538 = vsel %vm422, %v330, 0
        %v541 = vsel %vm422, %v331, 0
        %v544 = vsel %vm422, %v332, 0
        %v547 = vsel %vm422, %v333, 0
        %v550 = vsel %vm422, %v334, 0
        %v553 = vsel %vm422, %v335, 0
        %v556 = vsel %vm422, %v336, 0
        %v559 = vsel %vm422, %v337, 0
        %v562 = vsel %vm422, %v338, 0
        %v565 = vsel %vm422, %v339, 0
        %v568 = vsel %vm422, %v340, 0
        %v571 = vsel %vm422, %v341, 0
        %v574 = vsel %vm422, %v342, 0
        %v577 = vsel %vm422, %v343, 0
        %v580 = vsel %vm422, %v344, 0
        %v583 = vsel %vm422, %v345, 0
        %v586 = vsel %vm422, %v346, 0
        %v589 = vsel %vm422, %v347, 0
        %v592 = vsel %vm422, %v348, 0
        %v595 = vsel %vm422, %v349, 0
        %v598 = vsel %vm422, %v350, 0
        %v601 = vsel %vm422, %v351, 0
        %v604 = vsel %vm422, %v352, 0
        %v607 = vsel %vm422, %v353, 0
        %v610 = vsel %vm422, %v354, 0
        %v613 = vsel %vm422, %v355, 0
        %v616 = vsel %vm422, %v356, 0
        %v619 = vsel %vm422, %v357, 0
        %v622 = vsel %vm422, %v358, 0
        %v625 = vsel %vm422, %v359, 0
        %v628 = vsel %vm422, %v360, 0
        %v631 = vsel %vm422, %v361, 0
        %v634 = vsel %vm422, %v362, 0
        %v637 = vsel %vm422, %v363, 0
        %v640 = vsel %vm422, %v364, 0
        %v643 = vsel %vm422, %v365, 0
        %v646 = vsel %vm422, %v366, 0
        %v649 = vsel %vm422, %v367, 0
        %v652 = vsel %vm422, %v368, 0
        %v655 = vsel %vm422, %v369, 0
        %v658 = vsel %vm422, %v370, 0
        %v661 = vsel %vm422, %v371, 0
        %v664 = vsel %vm422, %v372, 0
        %v667 = vsel %vm422, %v373, 0
        %v670 = vsel %vm422, %v374, 0
        %v673 = vsel %vm422, %v375, 0
        %v676 = vsel %vm422, %v376, 0
        %v679 = vsel %vm422, %v377, 0
        %v682 = vsel %vm422, %v378, 0
        %v685 = vsel %vm422, %v379, 0
        %v688 = vsel %vm422, %v380, 0
        %v691 = vsel %vm422, %v381, 0
        %v694 = vsel %vm422, %v382, 0
        %v697 = vsel %vm422, %v383, 0
        %v700 = vsel %vm422, %v384, 0
        %v703 = vsel %vm422, %v385, 0
        %v706 = vsel %vm422, %v386, 0
        %v709 = vsel %vm422, %v387, 0
        %v712 = vsel %vm422, %v388, 0
        %v715 = vsel %vm422, %v389, 0
        %v718 = vsel %vm422, %v390, 0
        %v721 = vsel %vm422, %v391, 0
        %v724 = vsel %vm422, %v392, 0
        %v727 = vsel %vm422, %v393, 0
        %v730 = vsel %vm422, %v394, 0
        %v733 = vsel %vm422, %v395, 0
        %v736 = vsel %vm422, %v396, 0
        %v739 = vsel %vm422, %v397, 0
        %v742 = vsel %vm422, %v398, 0
        %v745 = vsel %vm422, %v399, 0
        %v748 = vsel %vm422, %v400, 0
        %v751 = vsel %vm422, %v401, 0
        %v754 = vsel %vm422, %v402, 0
        %v757 = vsel %vm422, %v403, 0
        %v760 = vsel %vm422, %v404, 0
        %v763 = vsel %vm422, %v405, 0
        %v766 = vsel %vm422, %v406, 0
        %v769 = vsel %vm422, %v407, 0
        %v772 = vsel %vm422, %v408, 0
        %v775 = vsel %vm422, %v409, 0
        %v778 = vsel %vm422, %v410, 0
        %v781 = vsel %vm422, %v411, 0
        %v784 = vsel %vm422, %v412, 0
        %vm786 = vcmask 1040384
        %v788 = vsel %vm786, %v414, 0
        %790 = vmatprep.subr.mxu0 0.0
        %791 = vmatpush1.msra.mxu0 %v413
        %792 = vmatprep.subr.mxu0 0.0
        %793 = vmatpush1.msra.mxu0 %v788
        %794 = vmatprep.subr.mxu0 0.0
        %795 = vmatpush1.msra.mxu0 0.0
        %796 = vmatprep.subr.mxu0 0.0
        %797 = vmatpush1.msra.mxu0 0.0
        %798 = vmatprep.subr.mxu0 0.0
        %799 = vmatpush1.msra.mxu0 0.0
        %800 = vmatprep.subr.mxu0 0.0
        %801 = vmatpush1.msra.mxu0 0.0
        %802 = vmatprep.subr.mxu0 0.0
        %803 = vmatpush1.msra.mxu0 0.0
        %804 = vmatprep.subr.mxu0 0.0
        %805 = vmatpush1.msra.mxu0 0.0
        %806 = vmatprep.subr.mxu0 0.0
        %807 = vmatpush1.msra.mxu0 0.0
        %808 = vmatprep.subr.mxu0 0.0
        %809 = vmatpush1.msra.mxu0 0.0
        %810 = vmatprep.subr.mxu0 0.0
        %811 = vmatpush1.msra.mxu0 0.0
        %812 = vmatprep.subr.mxu0 0.0
        %813 = vmatpush1.msra.mxu0 0.0
        %814 = vmatprep.subr.mxu0 0.0
        %815 = vmatpush1.msra.mxu0 0.0
        %816 = vmatprep.subr.mxu0 0.0
        %817 = vmatpush1.msra.mxu0 0.0
        %818 = vmatprep.subr.mxu0 0.0
        %819 = vmatpush1.msra.mxu0 0.0
        %820 = vmatprep.subr.mxu0 0.0
        %821 = vmatpush1.msra.mxu0 0.0
        %822 = vmatprep.subr.mxu0 0.0
        %823 = vmatpush1.msra.mxu0 0.0
        %824 = vmatprep.subr.mxu0 0.0
        %825 = vmatpush1.msra.mxu0 0.0
        %826 = vmatprep.subr.mxu0 0.0
        %827 = vmatpush1.msra.mxu0 0.0
        %828 = vmatprep.subr.mxu0 0.0
        %829 = vmatpush1.msra.mxu0 0.0
        %830 = vmatprep.subr.mxu0 0.0
        %831 = vmatpush1.msra.mxu0 0.0
        %832 = vmatprep.subr.mxu0 0.0
        %833 = vmatpush1.msra.mxu0 0.0
        %834 = vmatprep.subr.mxu0 0.0
        %835 = vmatpush1.msra.mxu0 0.0
        %836 = vmatprep.subr.mxu0 0.0
        %837 = vmatpush1.msra.mxu0 0.0
        %838 = vmatprep.subr.mxu0 0.0
        %839 = vmatpush1.msra.mxu0 0.0
        %840 = vmatprep.subr.mxu0 0.0
        %841 = vmatpush1.msra.mxu0 0.0
        %842 = vmatprep.subr.mxu0 0.0
        %843 = vmatpush1.msra.mxu0 0.0
        %844 = vmatprep.subr.mxu0 0.0
        %845 = vmatpush1.msra.mxu0 0.0
        %846 = vmatprep.subr.mxu0 0.0
        %847 = vmatpush1.msra.mxu0 0.0
        %848 = vmatprep.subr.mxu0 0.0
        %849 = vmatpush1.msra.mxu0 0.0
        %850 = vmatprep.subr.mxu0 0.0
        %851 = vmatpush1.msra.mxu0 0.0
        %852 = vmatprep.subr.mxu0 0.0
        %853 = vmatpush1.msra.mxu0 0.0
        %854 = vmatprep.mubr.f32.mxu0 0.0
        %855 = vmatmul.mubr.f32.gmra.mrb[0].mxu0 %v424
        %v856 = vpop.f32.mrb[0].mxu0
        %v857 = vadd.f32 %v420, %v856
        %v858 = vpop.f32.mrb[0].mxu0
        %859 = vmatprep.mubr.f32.mxu0 0.0
        %860 = vmatmul.mubr.f32.gmra.mrb[0].mxu0 %v427
        %v861 = vpop.f32.mrb[0].mxu0
        %v862 = vadd.f32 %v420, %v861
        %v863 = vpop.f32.mrb[0].mxu0
        %864 = vmatprep.mubr.f32.mxu0 0.0
        %865 = vmatmul.mubr.f32.gmra.mrb[0].mxu0 %v430
        %v866 = vpop.f32.mrb[0].mxu0
        %v867 = vadd.f32 %v420, %v866
        %v868 = vpop.f32.mrb[0].mxu0
        %869 = vmatprep.mubr.f32.mxu0 0.0
        %870 = vmatmul.mubr.f32.gmra.mrb[0].mxu0 %v433
        %v871 = vpop.f32.mrb[0].mxu0
        %v872 = vadd.f32 %v420, %v871
        %v873 = vpop.f32.mrb[0].mxu0
        %874 = vmatprep.mubr.f32.mxu0 0.0
        %875 = vmatmul.mubr.f32.gmra.mrb[0].mxu0 %v436
        %v876 = vpop.f32.mrb[0].mxu0
        %v877 = vadd.f32 %v420, %v876
        %v878 = vpop.f32.mrb[0].mxu0
        %879 = vmatprep.mubr.f32.mxu0 0.0
        %880 = vmatmul.mubr.f32.gmra.mrb[0].mxu0 %v439
        %v881 = vpop.f32.mrb[0].mxu0
        %v882 = vadd.f32 %v420, %v881
        %v883 = vpop.f32.mrb[0].mxu0
        %884 = vmatprep.mubr.f32.mxu0 0.0
        %885 = vmatmul.mubr.f32.gmra.mrb[0].mxu0 %v442
        %v886 = vpop.f32.mrb[0].mxu0
        %v887 = vadd.f32 %v420, %v886
        %v888 = vpop.f32.mrb[0].mxu0
        %889 = vmatprep.mubr.f32.mxu0 0.0
        %890 = vmatmul.mubr.f32.gmra.mrb[0].mxu0 %v445
        %v891 = vpop.f32.mrb[0].mxu0
        %v892 = vadd.f32 %v420, %v891
        %v893 = vpop.f32.mrb[0].mxu0
        %894 = vmatprep.mubr.f32.mxu0 0.0
        %895 = vmatmul.mubr.f32.gmra.mrb[0].mxu0 %v448
        %v896 = vpop.f32.mrb[0].mxu0
        %v897 = vadd.f32 %v420, %v896
        %v898 = vpop.f32.mrb[0].mxu0
        %899 = vmatprep.mubr.f32.mxu0 0.0
        %900 = vmatmul.mubr.f32.gmra.mrb[0].mxu0 %v451
        %v901 = vpop.f32.mrb[0].mxu0
        %v902 = vadd.f32 %v420, %v901
        %v903 = vpop.f32.mrb[0].mxu0
        %904 = vmatprep.mubr.f32.mxu0 0.0
        %905 = vmatmul.mubr.f32.gmra.mrb[0].mxu0 %v454
        %v906 = vpop.f32.mrb[0].mxu0
        %v907 = vadd.f32 %v420, %v906
        %v908 = vpop.f32.mrb[0].mxu0
        %909 = vmatprep.mubr.f32.mxu0 0.0
        %910 = vmatmul.mubr.f32.gmra.mrb[0].mxu0 %v457
        %v911 = vpop.f32.mrb[0].mxu0
        %v912 = vadd.f32 %v420, %v911
        %v913 = vpop.f32.mrb[0].mxu0
        %914 = vmatprep.mubr.f32.mxu0 0.0
        %915 = vmatmul.mubr.f32.gmra.mrb[0].mxu0 %v460
        %v916 = vpop.f32.mrb[0].mxu0
        %v917 = vadd.f32 %v420, %v916
        %v918 = vpop.f32.mrb[0].mxu0
        %919 = vmatprep.mubr.f32.mxu0 0.0
        %920 = vmatmul.mubr.f32.gmra.mrb[0].mxu0 %v463
        %v921 = vpop.f32.mrb[0].mxu0
        %v922 = vadd.f32 %v420, %v921
        %v923 = vpop.f32.mrb[0].mxu0
        %924 = vmatprep.mubr.f32.mxu0 0.0
        %925 = vmatmul.mubr.f32.gmra.mrb[0].mxu0 %v466
        %v926 = vpop.f32.mrb[0].mxu0
        %v927 = vadd.f32 %v420, %v926
        %v928 = vpop.f32.mrb[0].mxu0
        %929 = vmatprep.mubr.f32.mxu0 0.0
        %930 = vmatmul.mubr.f32.gmra.mrb[0].mxu0 %v469
        %v931 = vpop.f32.mrb[0].mxu0
        %v932 = vadd.f32 %v420, %v931
        %v933 = vpop.f32.mrb[0].mxu0
        %934 = vmatprep.mubr.f32.mxu0 0.0
        %935 = vmatmul.mubr.f32.gmra.mrb[0].mxu0 %v472
        %v936 = vpop.f32.mrb[0].mxu0
        %v937 = vadd.f32 %v420, %v936
        %v938 = vpop.f32.mrb[0].mxu0
        %939 = vmatprep.mubr.f32.mxu0 0.0
        %940 = vmatmul.mubr.f32.gmra.mrb[0].mxu0 %v475
        %v941 = vpop.f32.mrb[0].mxu0
        %v942 = vadd.f32 %v420, %v941
        %v943 = vpop.f32.mrb[0].mxu0
        %944 = vmatprep.mubr.f32.mxu0 0.0
        %945 = vmatmul.mubr.f32.gmra.mrb[0].mxu0 %v478
        %v946 = vpop.f32.mrb[0].mxu0
        %v947 = vadd.f32 %v420, %v946
        %v948 = vpop.f32.mrb[0].mxu0
        %949 = vmatprep.mubr.f32.mxu0 0.0
        %950 = vmatmul.mubr.f32.gmra.mrb[0].mxu0 %v481
        %v951 = vpop.f32.mrb[0].mxu0
        %v952 = vadd.f32 %v420, %v951
        %v953 = vpop.f32.mrb[0].mxu0
        %954 = vmatprep.mubr.f32.mxu0 0.0
        %955 = vmatmul.mubr.f32.gmra.mrb[0].mxu0 %v484
        %v956 = vpop.f32.mrb[0].mxu0
        %v957 = vadd.f32 %v420, %v956
        %v958 = vpop.f32.mrb[0].mxu0
        %959 = vmatprep.mubr.f32.mxu0 0.0
        %960 = vmatmul.mubr.f32.gmra.mrb[0].mxu0 %v487
        %v961 = vpop.f32.mrb[0].mxu0
        %v962 = vadd.f32 %v420, %v961
        %v963 = vpop.f32.mrb[0].mxu0
        %964 = vmatprep.mubr.f32.mxu0 0.0
        %965 = vmatmul.mubr.f32.gmra.mrb[0].mxu0 %v490
        %v966 = vpop.f32.mrb[0].mxu0
        %v967 = vadd.f32 %v420, %v966
        %v968 = vpop.f32.mrb[0].mxu0
        %969 = vmatprep.mubr.f32.mxu0 0.0
        %970 = vmatmul.mubr.f32.gmra.mrb[0].mxu0 %v493
        %v971 = vpop.f32.mrb[0].mxu0
        %v972 = vadd.f32 %v420, %v971
        %v973 = vpop.f32.mrb[0].mxu0
        %974 = vmatprep.mubr.f32.mxu0 0.0
        %975 = vmatmul.mubr.f32.gmra.mrb[0].mxu0 %v496
        %v976 = vpop.f32.mrb[0].mxu0
        %v977 = vadd.f32 %v420, %v976
        %v978 = vpop.f32.mrb[0].mxu0
        %979 = vmatprep.mubr.f32.mxu0 0.0
        %980 = vmatmul.mubr.f32.gmra.mrb[0].mxu0 %v499
        %v981 = vpop.f32.mrb[0].mxu0
        %v982 = vadd.f32 %v420, %v981
        %v983 = vpop.f32.mrb[0].mxu0
        %984 = vmatprep.mubr.f32.mxu0 0.0
        %985 = vmatmul.mubr.f32.gmra.mrb[0].mxu0 %v502
        %v986 = vpop.f32.mrb[0].mxu0
        %v987 = vadd.f32 %v420, %v986
        %v988 = vpop.f32.mrb[0].mxu0
        %989 = vmatprep.mubr.f32.mxu0 0.0
        %990 = vmatmul.mubr.f32.gmra.mrb[0].mxu0 %v505
        %v991 = vpop.f32.mrb[0].mxu0
        %v992 = vadd.f32 %v420, %v991
        %v993 = vpop.f32.mrb[0].mxu0
        %994 = vmatprep.mubr.f32.mxu0 0.0
        %995 = vmatmul.mubr.f32.gmra.mrb[0].mxu0 %v508
        %v996 = vpop.f32.mrb[0].mxu0
        %v997 = vadd.f32 %v420, %v996
        %v998 = vpop.f32.mrb[0].mxu0
        %999 = vmatprep.mubr.f32.mxu0 0.0
        %1000 = vmatmul.mubr.f32.gmra.mrb[0].mxu0 %v511
        %v1001 = vpop.f32.mrb[0].mxu0
        %v1002 = vadd.f32 %v420, %v1001
        %v1003 = vpop.f32.mrb[0].mxu0
        %1004 = vmatprep.mubr.f32.mxu0 0.0
        %1005 = vmatmul.mubr.f32.gmra.mrb[0].mxu0 %v514
        %v1006 = vpop.f32.mrb[0].mxu0
        %v1007 = vadd.f32 %v420, %v1006
        %v1008 = vpop.f32.mrb[0].mxu0
        %1009 = vmatprep.mubr.f32.mxu0 0.0
        %1010 = vmatmul.mubr.f32.gmra.mrb[0].mxu0 %v517
        %v1011 = vpop.f32.mrb[0].mxu0
        %v1012 = vadd.f32 %v420, %v1011
        %v1013 = vpop.f32.mrb[0].mxu0
        %1014 = vmatprep.mubr.f32.mxu0 0.0
        %1015 = vmatmul.mubr.f32.gmra.mrb[0].mxu0 %v520
        %v1016 = vpop.f32.mrb[0].mxu0
        %v1017 = vadd.f32 %v420, %v1016
        %v1018 = vpop.f32.mrb[0].mxu0
        %1019 = vmatprep.mubr.f32.mxu0 0.0
        %1020 = vmatmul.mubr.f32.gmra.mrb[0].mxu0 %v523
        %v1021 = vpop.f32.mrb[0].mxu0
        %v1022 = vadd.f32 %v420, %v1021
        %v1023 = vpop.f32.mrb[0].mxu0
        %1024 = vmatprep.mubr.f32.mxu0 0.0
        %1025 = vmatmul.mubr.f32.gmra.mrb[0].mxu0 %v526
        %v1026 = vpop.f32.mrb[0].mxu0
        %v1027 = vadd.f32 %v420, %v1026
        %v1028 = vpop.f32.mrb[0].mxu0
        %1029 = vmatprep.mubr.f32.mxu0 0.0
        %1030 = vmatmul.mubr.f32.gmra.mrb[0].mxu0 %v529
        %v1031 = vpop.f32.mrb[0].mxu0
        %v1032 = vadd.f32 %v420, %v1031
        %v1033 = vpop.f32.mrb[0].mxu0
        %1034 = vmatprep.mubr.f32.mxu0 0.0
        %1035 = vmatmul.mubr.f32.gmra.mrb[0].mxu0 %v532
        %v1036 = vpop.f32.mrb[0].mxu0
        %v1037 = vadd.f32 %v420, %v1036
        %v1038 = vpop.f32.mrb[0].mxu0
        %1039 = vmatprep.mubr.f32.mxu0 0.0
        %1040 = vmatmul.mubr.f32.gmra.mrb[0].mxu0 %v535
        %v1041 = vpop.f32.mrb[0].mxu0
        %v1042 = vadd.f32 %v420, %v1041
        %v1043 = vpop.f32.mrb[0].mxu0
        %1044 = vmatprep.mubr.f32.mxu0 0.0
        %1045 = vmatmul.mubr.f32.gmra.mrb[0].mxu0 %v538
        %v1046 = vpop.f32.mrb[0].mxu0
        %v1047 = vadd.f32 %v420, %v1046
        %v1048 = vpop.f32.mrb[0].mxu0
        %1049 = vmatprep.mubr.f32.mxu0 0.0
        %1050 = vmatmul.mubr.f32.gmra.mrb[0].mxu0 %v541
        %v1051 = vpop.f32.mrb[0].mxu0
        %v1052 = vadd.f32 %v420, %v1051
        %v1053 = vpop.f32.mrb[0].mxu0
        %1054 = vmatprep.mubr.f32.mxu0 0.0
        %1055 = vmatmul.mubr.f32.gmra.mrb[0].mxu0 %v544
        %v1056 = vpop.f32.mrb[0].mxu0
        %v1057 = vadd.f32 %v420, %v1056
        %v1058 = vpop.f32.mrb[0].mxu0
        %1059 = vmatprep.mubr.f32.mxu0 0.0
        %1060 = vmatmul.mubr.f32.gmra.mrb[0].mxu0 %v547
        %v1061 = vpop.f32.mrb[0].mxu0
        %v1062 = vadd.f32 %v420, %v1061
        %v1063 = vpop.f32.mrb[0].mxu0
        %1064 = vmatprep.mubr.f32.mxu0 0.0
        %1065 = vmatmul.mubr.f32.gmra.mrb[0].mxu0 %v550
        %v1066 = vpop.f32.mrb[0].mxu0
        %v1067 = vadd.f32 %v420, %v1066
        %v1068 = vpop.f32.mrb[0].mxu0
        %1069 = vmatprep.mubr.f32.mxu0 0.0
        %1070 = vmatmul.mubr.f32.gmra.mrb[0].mxu0 %v553
        %v1071 = vpop.f32.mrb[0].mxu0
        %v1072 = vadd.f32 %v420, %v1071
        %v1073 = vpop.f32.mrb[0].mxu0
        %1074 = vmatprep.mubr.f32.mxu0 0.0
        %1075 = vmatmul.mubr.f32.gmra.mrb[0].mxu0 %v556
        %v1076 = vpop.f32.mrb[0].mxu0
        %v1077 = vadd.f32 %v420, %v1076
        %v1078 = vpop.f32.mrb[0].mxu0
        %1079 = vmatprep.mubr.f32.mxu0 0.0
        %1080 = vmatmul.mubr.f32.gmra.mrb[0].mxu0 %v559
        %v1081 = vpop.f32.mrb[0].mxu0
        %v1082 = vadd.f32 %v420, %v1081
        %v1083 = vpop.f32.mrb[0].mxu0
        %1084 = vmatprep.mubr.f32.mxu0 0.0
        %1085 = vmatmul.mubr.f32.gmra.mrb[0].mxu0 %v562
        %v1086 = vpop.f32.mrb[0].mxu0
        %v1087 = vadd.f32 %v420, %v1086
        %v1088 = vpop.f32.mrb[0].mxu0
        %1089 = vmatprep.mubr.f32.mxu0 0.0
        %1090 = vmatmul.mubr.f32.gmra.mrb[0].mxu0 %v565
        %v1091 = vpop.f32.mrb[0].mxu0
        %v1092 = vadd.f32 %v420, %v1091
        %v1093 = vpop.f32.mrb[0].mxu0
        %1094 = vmatprep.mubr.f32.mxu0 0.0
        %1095 = vmatmul.mubr.f32.gmra.mrb[0].mxu0 %v568
        %v1096 = vpop.f32.mrb[0].mxu0
        %v1097 = vadd.f32 %v420, %v1096
        %v1098 = vpop.f32.mrb[0].mxu0
        %1099 = vmatprep.mubr.f32.mxu0 0.0
        %1100 = vmatmul.mubr.f32.gmra.mrb[0].mxu0 %v571
        %v1101 = vpop.f32.mrb[0].mxu0
        %v1102 = vadd.f32 %v420, %v1101
        %v1103 = vpop.f32.mrb[0].mxu0
        %1104 = vmatprep.mubr.f32.mxu0 0.0
        %1105 = vmatmul.mubr.f32.gmra.mrb[0].mxu0 %v574
        %v1106 = vpop.f32.mrb[0].mxu0
        %v1107 = vadd.f32 %v420, %v1106
        %v1108 = vpop.f32.mrb[0].mxu0
        %1109 = vmatprep.mubr.f32.mxu0 0.0
        %1110 = vmatmul.mubr.f32.gmra.mrb[0].mxu0 %v577
        %v1111 = vpop.f32.mrb[0].mxu0
        %v1112 = vadd.f32 %v420, %v1111
        %v1113 = vpop.f32.mrb[0].mxu0
        %1114 = vmatprep.mubr.f32.mxu0 0.0
        %1115 = vmatmul.mubr.f32.gmra.mrb[0].mxu0 %v580
        %v1116 = vpop.f32.mrb[0].mxu0
        %v1117 = vadd.f32 %v420, %v1116
        %v1118 = vpop.f32.mrb[0].mxu0
        %1119 = vmatprep.mubr.f32.mxu0 0.0
        %1120 = vmatmul.mubr.f32.gmra.mrb[0].mxu0 %v583
        %v1121 = vpop.f32.mrb[0].mxu0
        %v1122 = vadd.f32 %v420, %v1121
        %v1123 = vpop.f32.mrb[0].mxu0
        %1124 = vmatprep.mubr.f32.mxu0 0.0
        %1125 = vmatmul.mubr.f32.gmra.mrb[0].mxu0 %v586
        %v1126 = vpop.f32.mrb[0].mxu0
        %v1127 = vadd.f32 %v420, %v1126
        %v1128 = vpop.f32.mrb[0].mxu0
        %1129 = vmatprep.mubr.f32.mxu0 0.0
        %1130 = vmatmul.mubr.f32.gmra.mrb[0].mxu0 %v589
        %v1131 = vpop.f32.mrb[0].mxu0
        %v1132 = vadd.f32 %v420, %v1131
        %v1133 = vpop.f32.mrb[0].mxu0
        %1134 = vmatprep.mubr.f32.mxu0 0.0
        %1135 = vmatmul.mubr.f32.gmra.mrb[0].mxu0 %v592
        %v1136 = vpop.f32.mrb[0].mxu0
        %v1137 = vadd.f32 %v420, %v1136
        %v1138 = vpop.f32.mrb[0].mxu0
        %1139 = vmatprep.mubr.f32.mxu0 0.0
        %1140 = vmatmul.mubr.f32.gmra.mrb[0].mxu0 %v595
        %v1141 = vpop.f32.mrb[0].mxu0
        %v1142 = vadd.f32 %v420, %v1141
        %v1143 = vpop.f32.mrb[0].mxu0
        %1144 = vmatprep.mubr.f32.mxu0 0.0
        %1145 = vmatmul.mubr.f32.gmra.mrb[0].mxu0 %v598
        %v1146 = vpop.f32.mrb[0].mxu0
        %v1147 = vadd.f32 %v420, %v1146
        %v1148 = vpop.f32.mrb[0].mxu0
        %1149 = vmatprep.mubr.f32.mxu0 0.0
        %1150 = vmatmul.mubr.f32.gmra.mrb[0].mxu0 %v601
        %v1151 = vpop.f32.mrb[0].mxu0
        %v1152 = vadd.f32 %v420, %v1151
        %v1153 = vpop.f32.mrb[0].mxu0
        %1154 = vmatprep.mubr.f32.mxu0 0.0
        %1155 = vmatmul.mubr.f32.gmra.mrb[0].mxu0 %v604
        %v1156 = vpop.f32.mrb[0].mxu0
        %v1157 = vadd.f32 %v420, %v1156
        %v1158 = vpop.f32.mrb[0].mxu0
        %1159 = vmatprep.mubr.f32.mxu0 0.0
        %1160 = vmatmul.mubr.f32.gmra.mrb[0].mxu0 %v607
        %v1161 = vpop.f32.mrb[0].mxu0
        %v1162 = vadd.f32 %v420, %v1161
        %v1163 = vpop.f32.mrb[0].mxu0
        %1164 = vmatprep.mubr.f32.mxu0 0.0
        %1165 = vmatmul.mubr.f32.gmra.mrb[0].mxu0 %v610
        %v1166 = vpop.f32.mrb[0].mxu0
        %v1167 = vadd.f32 %v420, %v1166
        %v1168 = vpop.f32.mrb[0].mxu0
        %1169 = vmatprep.mubr.f32.mxu0 0.0
        %1170 = vmatmul.mubr.f32.gmra.mrb[0].mxu0 %v613
        %v1171 = vpop.f32.mrb[0].mxu0
        %v1172 = vadd.f32 %v420, %v1171
        %v1173 = vpop.f32.mrb[0].mxu0
        %1174 = vmatprep.mubr.f32.mxu0 0.0
        %1175 = vmatmul.mubr.f32.gmra.mrb[0].mxu0 %v616
        %v1176 = vpop.f32.mrb[0].mxu0
        %v1177 = vadd.f32 %v420, %v1176
        %v1178 = vpop.f32.mrb[0].mxu0
        %1179 = vmatprep.mubr.f32.mxu0 0.0
        %1180 = vmatmul.mubr.f32.gmra.mrb[0].mxu0 %v619
        %v1181 = vpop.f32.mrb[0].mxu0
        %v1182 = vadd.f32 %v420, %v1181
        %v1183 = vpop.f32.mrb[0].mxu0
        %1184 = vmatprep.mubr.f32.mxu0 0.0
        %1185 = vmatmul.mubr.f32.gmra.mrb[0].mxu0 %v622
        %v1186 = vpop.f32.mrb[0].mxu0
        %v1187 = vadd.f32 %v420, %v1186
        %v1188 = vpop.f32.mrb[0].mxu0
        %1189 = vmatprep.mubr.f32.mxu0 0.0
        %1190 = vmatmul.mubr.f32.gmra.mrb[0].mxu0 %v625
        %v1191 = vpop.f32.mrb[0].mxu0
        %v1192 = vadd.f32 %v420, %v1191
        %v1193 = vpop.f32.mrb[0].mxu0
        %1194 = vmatprep.mubr.f32.mxu0 0.0
        %1195 = vmatmul.mubr.f32.gmra.mrb[0].mxu0 %v628
        %v1196 = vpop.f32.mrb[0].mxu0
        %v1197 = vadd.f32 %v420, %v1196
        %v1198 = vpop.f32.mrb[0].mxu0
        %1199 = vmatprep.mubr.f32.mxu0 0.0
        %1200 = vmatmul.mubr.f32.gmra.mrb[0].mxu0 %v631
        %v1201 = vpop.f32.mrb[0].mxu0
        %v1202 = vadd.f32 %v420, %v1201
        %v1203 = vpop.f32.mrb[0].mxu0
        %1204 = vmatprep.mubr.f32.mxu0 0.0
        %1205 = vmatmul.mubr.f32.gmra.mrb[0].mxu0 %v634
        %v1206 = vpop.f32.mrb[0].mxu0
        %v1207 = vadd.f32 %v420, %v1206
        %v1208 = vpop.f32.mrb[0].mxu0
        %1209 = vmatprep.mubr.f32.mxu0 0.0
        %1210 = vmatmul.mubr.f32.gmra.mrb[0].mxu0 %v637
        %v1211 = vpop.f32.mrb[0].mxu0
        %v1212 = vadd.f32 %v420, %v1211
        %v1213 = vpop.f32.mrb[0].mxu0
        %1214 = vmatprep.mubr.f32.mxu0 0.0
        %1215 = vmatmul.mubr.f32.gmra.mrb[0].mxu0 %v640
        %v1216 = vpop.f32.mrb[0].mxu0
        %v1217 = vadd.f32 %v420, %v1216
        %v1218 = vpop.f32.mrb[0].mxu0
        %1219 = vmatprep.mubr.f32.mxu0 0.0
        %1220 = vmatmul.mubr.f32.gmra.mrb[0].mxu0 %v643
        %v1221 = vpop.f32.mrb[0].mxu0
        %v1222 = vadd.f32 %v420, %v1221
        %v1223 = vpop.f32.mrb[0].mxu0
        %1224 = vmatprep.mubr.f32.mxu0 0.0
        %1225 = vmatmul.mubr.f32.gmra.mrb[0].mxu0 %v646
        %v1226 = vpop.f32.mrb[0].mxu0
        %v1227 = vadd.f32 %v420, %v1226
        %v1228 = vpop.f32.mrb[0].mxu0
        %1229 = vmatprep.mubr.f32.mxu0 0.0
        %1230 = vmatmul.mubr.f32.gmra.mrb[0].mxu0 %v649
        %v1231 = vpop.f32.mrb[0].mxu0
        %v1232 = vadd.f32 %v420, %v1231
        %v1233 = vpop.f32.mrb[0].mxu0
        %1234 = vmatprep.mubr.f32.mxu0 0.0
        %1235 = vmatmul.mubr.f32.gmra.mrb[0].mxu0 %v652
        %v1236 = vpop.f32.mrb[0].mxu0
        %v1237 = vadd.f32 %v420, %v1236
        %v1238 = vpop.f32.mrb[0].mxu0
        %1239 = vmatprep.mubr.f32.mxu0 0.0
        %1240 = vmatmul.mubr.f32.gmra.mrb[0].mxu0 %v655
        %v1241 = vpop.f32.mrb[0].mxu0
        %v1242 = vadd.f32 %v420, %v1241
        %v1243 = vpop.f32.mrb[0].mxu0
        %1244 = vmatprep.mubr.f32.mxu0 0.0
        %1245 = vmatmul.mubr.f32.gmra.mrb[0].mxu0 %v658
        %v1246 = vpop.f32.mrb[0].mxu0
        %v1247 = vadd.f32 %v420, %v1246
        %v1248 = vpop.f32.mrb[0].mxu0
        %1249 = vmatprep.mubr.f32.mxu0 0.0
        %1250 = vmatmul.mubr.f32.gmra.mrb[0].mxu0 %v661
        %v1251 = vpop.f32.mrb[0].mxu0
        %v1252 = vadd.f32 %v420, %v1251
        %v1253 = vpop.f32.mrb[0].mxu0
        %1254 = vmatprep.mubr.f32.mxu0 0.0
        %1255 = vmatmul.mubr.f32.gmra.mrb[0].mxu0 %v664
        %v1256 = vpop.f32.mrb[0].mxu0
        %v1257 = vadd.f32 %v420, %v1256
        %v1258 = vpop.f32.mrb[0].mxu0
        %1259 = vmatprep.mubr.f32.mxu0 0.0
        %1260 = vmatmul.mubr.f32.gmra.mrb[0].mxu0 %v667
        %v1261 = vpop.f32.mrb[0].mxu0
        %v1262 = vadd.f32 %v420, %v1261
        %v1263 = vpop.f32.mrb[0].mxu0
        %1264 = vmatprep.mubr.f32.mxu0 0.0
        %1265 = vmatmul.mubr.f32.gmra.mrb[0].mxu0 %v670
        %v1266 = vpop.f32.mrb[0].mxu0
        %v1267 = vadd.f32 %v420, %v1266
        %v1268 = vpop.f32.mrb[0].mxu0
        %1269 = vmatprep.mubr.f32.mxu0 0.0
        %1270 = vmatmul.mubr.f32.gmra.mrb[0].mxu0 %v673
        %v1271 = vpop.f32.mrb[0].mxu0
        %v1272 = vadd.f32 %v420, %v1271
        %v1273 = vpop.f32.mrb[0].mxu0
        %1274 = vmatprep.mubr.f32.mxu0 0.0
        %1275 = vmatmul.mubr.f32.gmra.mrb[0].mxu0 %v676
        %v1276 = vpop.f32.mrb[0].mxu0
        %v1277 = vadd.f32 %v420, %v1276
        %v1278 = vpop.f32.mrb[0].mxu0
        %1279 = vmatprep.mubr.f32.mxu0 0.0
        %1280 = vmatmul.mubr.f32.gmra.mrb[0].mxu0 %v679
        %v1281 = vpop.f32.mrb[0].mxu0
        %v1282 = vadd.f32 %v420, %v1281
        %v1283 = vpop.f32.mrb[0].mxu0
        %1284 = vmatprep.mubr.f32.mxu0 0.0
        %1285 = vmatmul.mubr.f32.gmra.mrb[0].mxu0 %v682
        %v1286 = vpop.f32.mrb[0].mxu0
        %v1287 = vadd.f32 %v420, %v1286
        %v1288 = vpop.f32.mrb[0].mxu0
        %1289 = vmatprep.mubr.f32.mxu0 0.0
        %1290 = vmatmul.mubr.f32.gmra.mrb[0].mxu0 %v685
        %v1291 = vpop.f32.mrb[0].mxu0
        %v1292 = vadd.f32 %v420, %v1291
        %v1293 = vpop.f32.mrb[0].mxu0
        %1294 = vmatprep.mubr.f32.mxu0 0.0
        %1295 = vmatmul.mubr.f32.gmra.mrb[0].mxu0 %v688
        %v1296 = vpop.f32.mrb[0].mxu0
        %v1297 = vadd.f32 %v420, %v1296
        %v1298 = vpop.f32.mrb[0].mxu0
        %1299 = vmatprep.mubr.f32.mxu0 0.0
        %1300 = vmatmul.mubr.f32.gmra.mrb[0].mxu0 %v691
        %v1301 = vpop.f32.mrb[0].mxu0
        %v1302 = vadd.f32 %v420, %v1301
        %v1303 = vpop.f32.mrb[0].mxu0
        %1304 = vmatprep.mubr.f32.mxu0 0.0
        %1305 = vmatmul.mubr.f32.gmra.mrb[0].mxu0 %v694
        %v1306 = vpop.f32.mrb[0].mxu0
        %v1307 = vadd.f32 %v420, %v1306
        %v1308 = vpop.f32.mrb[0].mxu0
        %1309 = vmatprep.mubr.f32.mxu0 0.0
        %1310 = vmatmul.mubr.f32.gmra.mrb[0].mxu0 %v697
        %v1311 = vpop.f32.mrb[0].mxu0
        %v1312 = vadd.f32 %v420, %v1311
        %v1313 = vpop.f32.mrb[0].mxu0
        %1314 = vmatprep.mubr.f32.mxu0 0.0
        %1315 = vmatmul.mubr.f32.gmra.mrb[0].mxu0 %v700
        %v1316 = vpop.f32.mrb[0].mxu0
        %v1317 = vadd.f32 %v420, %v1316
        %v1318 = vpop.f32.mrb[0].mxu0
        %1319 = vmatprep.mubr.f32.mxu0 0.0
        %1320 = vmatmul.mubr.f32.gmra.mrb[0].mxu0 %v703
        %v1321 = vpop.f32.mrb[0].mxu0
        %v1322 = vadd.f32 %v420, %v1321
        %v1323 = vpop.f32.mrb[0].mxu0
        %1324 = vmatprep.mubr.f32.mxu0 0.0
        %1325 = vmatmul.mubr.f32.gmra.mrb[0].mxu0 %v706
        %v1326 = vpop.f32.mrb[0].mxu0
        %v1327 = vadd.f32 %v420, %v1326
        %v1328 = vpop.f32.mrb[0].mxu0
        %1329 = vmatprep.mubr.f32.mxu0 0.0
        %1330 = vmatmul.mubr.f32.gmra.mrb[0].mxu0 %v709
        %v1331 = vpop.f32.mrb[0].mxu0
        %v1332 = vadd.f32 %v420, %v1331
        %v1333 = vpop.f32.mrb[0].mxu0
        %1334 = vmatprep.mubr.f32.mxu0 0.0
        %1335 = vmatmul.mubr.f32.gmra.mrb[0].mxu0 %v712
        %v1336 = vpop.f32.mrb[0].mxu0
        %v1337 = vadd.f32 %v420, %v1336
        %v1338 = vpop.f32.mrb[0].mxu0
        %1339 = vmatprep.mubr.f32.mxu0 0.0
        %1340 = vmatmul.mubr.f32.gmra.mrb[0].mxu0 %v715
        %v1341 = vpop.f32.mrb[0].mxu0
        %v1342 = vadd.f32 %v420, %v1341
        %v1343 = vpop.f32.mrb[0].mxu0
        %1344 = vmatprep.mubr.f32.mxu0 0.0
        %1345 = vmatmul.mubr.f32.gmra.mrb[0].mxu0 %v718
        %v1346 = vpop.f32.mrb[0].mxu0
        %v1347 = vadd.f32 %v420, %v1346
        %v1348 = vpop.f32.mrb[0].mxu0
        %1349 = vmatprep.mubr.f32.mxu0 0.0
        %1350 = vmatmul.mubr.f32.gmra.mrb[0].mxu0 %v721
        %v1351 = vpop.f32.mrb[0].mxu0
        %v1352 = vadd.f32 %v420, %v1351
        %v1353 = vpop.f32.mrb[0].mxu0
        %1354 = vmatprep.mubr.f32.mxu0 0.0
        %1355 = vmatmul.mubr.f32.gmra.mrb[0].mxu0 %v724
        %v1356 = vpop.f32.mrb[0].mxu0
        %v1357 = vadd.f32 %v420, %v1356
        %v1358 = vpop.f32.mrb[0].mxu0
        %1359 = vmatprep.mubr.f32.mxu0 0.0
        %1360 = vmatmul.mubr.f32.gmra.mrb[0].mxu0 %v727
        %v1361 = vpop.f32.mrb[0].mxu0
        %v1362 = vadd.f32 %v420, %v1361
        %v1363 = vpop.f32.mrb[0].mxu0
        %1364 = vmatprep.mubr.f32.mxu0 0.0
        %1365 = vmatmul.mubr.f32.gmra.mrb[0].mxu0 %v730
        %v1366 = vpop.f32.mrb[0].mxu0
        %v1367 = vadd.f32 %v420, %v1366
        %v1368 = vpop.f32.mrb[0].mxu0
        %1369 = vmatprep.mubr.f32.mxu0 0.0
        %1370 = vmatmul.mubr.f32.gmra.mrb[0].mxu0 %v733
        %v1371 = vpop.f32.mrb[0].mxu0
        %v1372 = vadd.f32 %v420, %v1371
        %v1373 = vpop.f32.mrb[0].mxu0
        %1374 = vmatprep.mubr.f32.mxu0 0.0
        %1375 = vmatmul.mubr.f32.gmra.mrb[0].mxu0 %v736
        %v1376 = vpop.f32.mrb[0].mxu0
        %v1377 = vadd.f32 %v420, %v1376
        %v1378 = vpop.f32.mrb[0].mxu0
        %1379 = vmatprep.mubr.f32.mxu0 0.0
        %1380 = vmatmul.mubr.f32.gmra.mrb[0].mxu0 %v739
        %v1381 = vpop.f32.mrb[0].mxu0
        %v1382 = vadd.f32 %v420, %v1381
        %v1383 = vpop.f32.mrb[0].mxu0
        %1384 = vmatprep.mubr.f32.mxu0 0.0
        %1385 = vmatmul.mubr.f32.gmra.mrb[0].mxu0 %v742
        %v1386 = vpop.f32.mrb[0].mxu0
        %v1387 = vadd.f32 %v420, %v1386
        %v1388 = vpop.f32.mrb[0].mxu0
        %1389 = vmatprep.mubr.f32.mxu0 0.0
        %1390 = vmatmul.mubr.f32.gmra.mrb[0].mxu0 %v745
        %v1391 = vpop.f32.mrb[0].mxu0
        %v1392 = vadd.f32 %v420, %v1391
        %v1393 = vpop.f32.mrb[0].mxu0
        %1394 = vmatprep.mubr.f32.mxu0 0.0
        %1395 = vmatmul.mubr.f32.gmra.mrb[0].mxu0 %v748
        %v1396 = vpop.f32.mrb[0].mxu0
        %v1397 = vadd.f32 %v420, %v1396
        %v1398 = vpop.f32.mrb[0].mxu0
        %1399 = vmatprep.mubr.f32.mxu0 0.0
        %1400 = vmatmul.mubr.f32.gmra.mrb[0].mxu0 %v751
        %v1401 = vpop.f32.mrb[0].mxu0
        %v1402 = vadd.f32 %v420, %v1401
        %v1403 = vpop.f32.mrb[0].mxu0
        %1404 = vmatprep.mubr.f32.mxu0 0.0
        %1405 = vmatmul.mubr.f32.gmra.mrb[0].mxu0 %v754
        %v1406 = vpop.f32.mrb[0].mxu0
        %v1407 = vadd.f32 %v420, %v1406
        %v1408 = vpop.f32.mrb[0].mxu0
        %1409 = vmatprep.mubr.f32.mxu0 0.0
        %1410 = vmatmul.mubr.f32.gmra.mrb[0].mxu0 %v757
        %v1411 = vpop.f32.mrb[0].mxu0
        %v1412 = vadd.f32 %v420, %v1411
        %v1413 = vpop.f32.mrb[0].mxu0
        %1414 = vmatprep.mubr.f32.mxu0 0.0
        %1415 = vmatmul.mubr.f32.gmra.mrb[0].mxu0 %v760
        %v1416 = vpop.f32.mrb[0].mxu0
        %v1417 = vadd.f32 %v420, %v1416
        %v1418 = vpop.f32.mrb[0].mxu0
        %1419 = vmatprep.mubr.f32.mxu0 0.0
        %1420 = vmatmul.mubr.f32.gmra.mrb[0].mxu0 %v763
        %v1421 = vpop.f32.mrb[0].mxu0
        %v1422 = vadd.f32 %v420, %v1421
        %v1423 = vpop.f32.mrb[0].mxu0
        %1424 = vmatprep.mubr.f32.mxu0 0.0
        %1425 = vmatmul.mubr.f32.gmra.mrb[0].mxu0 %v766
        %v1426 = vpop.f32.mrb[0].mxu0
        %v1427 = vadd.f32 %v420, %v1426
        %v1428 = vpop.f32.mrb[0].mxu0
        %1429 = vmatprep.mubr.f32.mxu0 0.0
        %1430 = vmatmul.mubr.f32.gmra.mrb[0].mxu0 %v769
        %v1431 = vpop.f32.mrb[0].mxu0
        %v1432 = vadd.f32 %v420, %v1431
        %v1433 = vpop.f32.mrb[0].mxu0
        %1434 = vmatprep.mubr.f32.mxu0 0.0
        %1435 = vmatmul.mubr.f32.gmra.mrb[0].mxu0 %v772
        %v1436 = vpop.f32.mrb[0].mxu0
        %v1437 = vadd.f32 %v420, %v1436
        %v1438 = vpop.f32.mrb[0].mxu0
        %1439 = vmatprep.mubr.f32.mxu0 0.0
        %1440 = vmatmul.mubr.f32.gmra.mrb[0].mxu0 %v775
        %v1441 = vpop.f32.mrb[0].mxu0
        %v1442 = vadd.f32 %v420, %v1441
        %v1443 = vpop.f32.mrb[0].mxu0
        %1444 = vmatprep.mubr.f32.mxu0 0.0
        %1445 = vmatmul.mubr.f32.gmra.mrb[0].mxu0 %v778
        %v1446 = vpop.f32.mrb[0].mxu0
        %v1447 = vadd.f32 %v420, %v1446
        %v1448 = vpop.f32.mrb[0].mxu0
        %1449 = vmatprep.mubr.f32.mxu0 0.0
        %1450 = vmatmul.mubr.f32.gmra.mrb[0].mxu0 %v781
        %v1451 = vpop.f32.mrb[0].mxu0
        %v1452 = vadd.f32 %v420, %v1451
        %v1453 = vpop.f32.mrb[0].mxu0
        %1454 = vmatprep.mubr.f32.mxu0 0.0
        %1455 = vmatmul.mubr.f32.gmra.mrb[0].mxu0 %v784
        %v1456 = vpop.f32.mrb[0].mxu0
        %v1457 = vadd.f32 %v420, %v1456
        %v1458 = vpop.f32.mrb[0].mxu0
        %1459 = vdwg.mxu0
        %v1460 = vmax.f32 %v857, 0.0
        %v1461 = vmax.f32 %v862, 0.0
        %v1462 = vmax.f32 %v867, 0.0
        %v1463 = vmax.f32 %v872, 0.0
        %v1464 = vmax.f32 %v877, 0.0
        %v1465 = vmax.f32 %v882, 0.0
        %v1466 = vmax.f32 %v887, 0.0
        %v1467 = vmax.f32 %v892, 0.0
        %v1468 = vmax.f32 %v897, 0.0
        %v1469 = vmax.f32 %v902, 0.0
        %v1470 = vmax.f32 %v907, 0.0
        %v1471 = vmax.f32 %v912, 0.0
        %v1472 = vmax.f32 %v917, 0.0
        %v1473 = vmax.f32 %v922, 0.0
        %v1474 = vmax.f32 %v927, 0.0
        %v1475 = vmax.f32 %v932, 0.0
        %v1476 = vmax.f32 %v937, 0.0
        %v1477 = vmax.f32 %v942, 0.0
        %v1478 = vmax.f32 %v947, 0.0
        %v1479 = vmax.f32 %v952, 0.0
        %v1480 = vmax.f32 %v957, 0.0
        %v1481 = vmax.f32 %v962, 0.0
        %v1482 = vmax.f32 %v967, 0.0
        %v1483 = vmax.f32 %v972, 0.0
        %v1484 = vmax.f32 %v977, 0.0
        %v1485 = vmax.f32 %v982, 0.0
        %v1486 = vmax.f32 %v987, 0.0
        %v1487 = vmax.f32 %v992, 0.0
        %v1488 = vmax.f32 %v997, 0.0
        %v1489 = vmax.f32 %v1002, 0.0
        %v1490 = vmax.f32 %v1007, 0.0
        %v1491 = vmax.f32 %v1012, 0.0
        %v1492 = vmax.f32 %v1017, 0.0
        %v1493 = vmax.f32 %v1022, 0.0
        %v1494 = vmax.f32 %v1027, 0.0
        %v1495 = vmax.f32 %v1032, 0.0
        %v1496 = vmax.f32 %v1037, 0.0
        %v1497 = vmax.f32 %v1042, 0.0
        %v1498 = vmax.f32 %v1047, 0.0
        %v1499 = vmax.f32 %v1052, 0.0
        %v1500 = vmax.f32 %v1057, 0.0
        %v1501 = vmax.f32 %v1062, 0.0
        %v1502 = vmax.f32 %v1067, 0.0
        %v1503 = vmax.f32 %v1072, 0.0
        %v1504 = vmax.f32 %v1077, 0.0
        %v1505 = vmax.f32 %v1082, 0.0
        %v1506 = vmax.f32 %v1087, 0.0
        %v1507 = vmax.f32 %v1092, 0.0
        %v1508 = vmax.f32 %v1097, 0.0
        %v1509 = vmax.f32 %v1102, 0.0
        %v1510 = vmax.f32 %v1107, 0.0
        %v1511 = vmax.f32 %v1112, 0.0
        %v1512 = vmax.f32 %v1117, 0.0
        %v1513 = vmax.f32 %v1122, 0.0
        %v1514 = vmax.f32 %v1127, 0.0
        %v1515 = vmax.f32 %v1132, 0.0
        %v1516 = vmax.f32 %v1137, 0.0
        %v1517 = vmax.f32 %v1142, 0.0
        %v1518 = vmax.f32 %v1147, 0.0
        %v1519 = vmax.f32 %v1152, 0.0
        %v1520 = vmax.f32 %v1157, 0.0
        %v1521 = vmax.f32 %v1162, 0.0
        %v1522 = vmax.f32 %v1167, 0.0
        %v1523 = vmax.f32 %v1172, 0.0
        %v1524 = vmax.f32 %v1177, 0.0
        %v1525 = vmax.f32 %v1182, 0.0
        %v1526 = vmax.f32 %v1187, 0.0
        %v1527 = vmax.f32 %v1192, 0.0
        %v1528 = vmax.f32 %v1197, 0.0
        %v1529 = vmax.f32 %v1202, 0.0
        %v1530 = vmax.f32 %v1207, 0.0
        %v1531 = vmax.f32 %v1212, 0.0
        %v1532 = vmax.f32 %v1217, 0.0
        %v1533 = vmax.f32 %v1222, 0.0
        %v1534 = vmax.f32 %v1227, 0.0
        %v1535 = vmax.f32 %v1232, 0.0
        %v1536 = vmax.f32 %v1237, 0.0
        %v1537 = vmax.f32 %v1242, 0.0
        %v1538 = vmax.f32 %v1247, 0.0
        %v1539 = vmax.f32 %v1252, 0.0
        %v1540 = vmax.f32 %v1257, 0.0
        %v1541 = vmax.f32 %v1262, 0.0
        %v1542 = vmax.f32 %v1267, 0.0
        %v1543 = vmax.f32 %v1272, 0.0
        %v1544 = vmax.f32 %v1277, 0.0
        %v1545 = vmax.f32 %v1282, 0.0
        %v1546 = vmax.f32 %v1287, 0.0
        %v1547 = vmax.f32 %v1292, 0.0
        %v1548 = vmax.f32 %v1297, 0.0
        %v1549 = vmax.f32 %v1302, 0.0
        %v1550 = vmax.f32 %v1307, 0.0
        %v1551 = vmax.f32 %v1312, 0.0
        %v1552 = vmax.f32 %v1317, 0.0
        %v1553 = vmax.f32 %v1322, 0.0
        %v1554 = vmax.f32 %v1327, 0.0
        %v1555 = vmax.f32 %v1332, 0.0
        %v1556 = vmax.f32 %v1337, 0.0
        %v1557 = vmax.f32 %v1342, 0.0
        %v1558 = vmax.f32 %v1347, 0.0
        %v1559 = vmax.f32 %v1352, 0.0
        %v1560 = vmax.f32 %v1357, 0.0
        %v1561 = vmax.f32 %v1362, 0.0
        %v1562 = vmax.f32 %v1367, 0.0
        %v1563 = vmax.f32 %v1372, 0.0
        %v1564 = vmax.f32 %v1377, 0.0
        %v1565 = vmax.f32 %v1382, 0.0
        %v1566 = vmax.f32 %v1387, 0.0
        %v1567 = vmax.f32 %v1392, 0.0
        %v1568 = vmax.f32 %v1397, 0.0
        %v1569 = vmax.f32 %v1402, 0.0
        %v1570 = vmax.f32 %v1407, 0.0
        %v1571 = vmax.f32 %v1412, 0.0
        %v1572 = vmax.f32 %v1417, 0.0
        %v1573 = vmax.f32 %v1422, 0.0
        %v1574 = vmax.f32 %v1427, 0.0
        %v1575 = vmax.f32 %v1432, 0.0
        %v1576 = vmax.f32 %v1437, 0.0
        %v1577 = vmax.f32 %v1442, 0.0
        %v1578 = vmax.f32 %v1447, 0.0
        %v1579 = vmax.f32 %v1452, 0.0
        %v1580 = vmax.f32 %v1457, 0.0
        %v1581 = vlaneseq
        %v1582 = vshrl.u32 %v1581, 7
        %v1583 = vadd.s32 %v1582, 8
        %v1584 = vadd.s32 %v1582, 16
        %v1585 = vadd.s32 %v1582, 24
        %v1586 = vadd.s32 %v1582, 32
        %v1587 = vadd.s32 %v1582, 40
        %v1588 = vadd.s32 %v1582, 48
        %v1589 = vadd.s32 %v1582, 56
        %v1590 = vadd.s32 %v1582, 64
        %v1591 = vadd.s32 %v1582, 72
        %v1592 = vadd.s32 %v1582, 80
        %v1593 = vadd.s32 %v1582, 88
        %v1594 = vadd.s32 %v1582, 96
        %v1595 = vadd.s32 %v1582, 104
        %v1596 = vadd.s32 %v1582, 112
        %v1597 = vadd.s32 %v1582, 120
        %v1598 = vadd.s32 %v1582, 128
        %v1599 = vadd.s32 %v1582, 136
        %v1600 = vadd.s32 %v1582, 144
        %v1601 = vadd.s32 %v1582, 152
        %v1602 = vadd.s32 %v1582, 160
        %v1603 = vadd.s32 %v1582, 168
        %v1604 = vadd.s32 %v1582, 176
        %v1605 = vadd.s32 %v1582, 184
        %v1606 = vadd.s32 %v1582, 192
        %v1607 = vadd.s32 %v1582, 200
        %v1608 = vadd.s32 %v1582, 208
        %v1609 = vadd.s32 %v1582, 216
        %v1610 = vadd.s32 %v1582, 224
        %v1611 = vadd.s32 %v1582, 232
        %v1612 = vadd.s32 %v1582, 240
        %v1613 = vadd.s32 %v1582, 248
        %v1614 = vadd.s32 %v1582, 256
        %v1615 = vadd.s32 %v1582, 264
        %v1616 = vadd.s32 %v1582, 272
        %v1617 = vadd.s32 %v1582, 280
        %v1618 = vadd.s32 %v1582, 288
        %v1619 = vadd.s32 %v1582, 296
        %v1620 = vadd.s32 %v1582, 304
        %v1621 = vadd.s32 %v1582, 312
        %v1622 = vadd.s32 %v1582, 320
        %v1623 = vadd.s32 %v1582, 328
        %v1624 = vadd.s32 %v1582, 336
        %v1625 = vadd.s32 %v1582, 344
        %v1626 = vadd.s32 %v1582, 352
        %v1627 = vadd.s32 %v1582, 360
        %v1628 = vadd.s32 %v1582, 368
        %v1629 = vadd.s32 %v1582, 376
        %v1630 = vadd.s32 %v1582, 384
        %v1631 = vadd.s32 %v1582, 392
        %v1632 = vadd.s32 %v1582, 400
        %v1633 = vadd.s32 %v1582, 408
        %v1634 = vadd.s32 %v1582, 416
        %v1635 = vadd.s32 %v1582, 424
        %v1636 = vadd.s32 %v1582, 432
        %v1637 = vadd.s32 %v1582, 440
        %v1638 = vadd.s32 %v1582, 448
        %v1639 = vadd.s32 %v1582, 456
        %v1640 = vadd.s32 %v1582, 464
        %v1641 = vadd.s32 %v1582, 472
        %v1642 = vadd.s32 %v1582, 480
        %v1643 = vadd.s32 %v1582, 488
        %v1644 = vadd.s32 %v1582, 496
        %v1645 = vadd.s32 %v1582, 504
        %v1646 = vadd.s32 %v1582, 512
        %v1647 = vadd.s32 %v1582, 520
        %v1648 = vadd.s32 %v1582, 528
        %v1649 = vadd.s32 %v1582, 536
        %v1650 = vadd.s32 %v1582, 544
        %v1651 = vadd.s32 %v1582, 552
        %v1652 = vadd.s32 %v1582, 560
        %v1653 = vadd.s32 %v1582, 568
        %v1654 = vadd.s32 %v1582, 576
        %v1655 = vadd.s32 %v1582, 584
        %v1656 = vadd.s32 %v1582, 592
        %v1657 = vadd.s32 %v1582, 600
        %v1658 = vadd.s32 %v1582, 608
        %v1659 = vadd.s32 %v1582, 616
        %v1660 = vadd.s32 %v1582, 624
        %v1661 = vadd.s32 %v1582, 632
        %v1662 = vadd.s32 %v1582, 640
        %v1663 = vadd.s32 %v1582, 648
        %v1664 = vadd.s32 %v1582, 656
        %v1665 = vadd.s32 %v1582, 664
        %v1666 = vadd.s32 %v1582, 672
        %v1667 = vadd.s32 %v1582, 680
        %v1668 = vadd.s32 %v1582, 688
        %v1669 = vadd.s32 %v1582, 696
        %v1670 = vadd.s32 %v1582, 704
        %v1671 = vadd.s32 %v1582, 712
        %v1672 = vadd.s32 %v1582, 720
        %v1673 = vadd.s32 %v1582, 728
        %v1674 = vadd.s32 %v1582, 736
        %v1675 = vadd.s32 %v1582, 744
        %v1676 = vadd.s32 %v1582, 752
        %v1677 = vadd.s32 %v1582, 760
        %v1678 = vadd.s32 %v1582, 768
        %v1679 = vadd.s32 %v1582, 776
        %v1680 = vadd.s32 %v1582, 784
        %v1681 = vadd.s32 %v1582, 792
        %v1682 = vadd.s32 %v1582, 800
        %v1683 = vadd.s32 %v1582, 808
        %v1684 = vadd.s32 %v1582, 816
        %v1685 = vadd.s32 %v1582, 824
        %v1686 = vadd.s32 %v1582, 832
        %v1687 = vadd.s32 %v1582, 840
        %v1688 = vadd.s32 %v1582, 848
        %v1689 = vadd.s32 %v1582, 856
        %v1690 = vadd.s32 %v1582, 864
        %v1691 = vadd.s32 %v1582, 872
        %v1692 = vadd.s32 %v1582, 880
        %v1693 = vadd.s32 %v1582, 888
        %v1694 = vadd.s32 %v1582, 896
        %v1695 = vadd.s32 %v1582, 904
        %v1696 = vadd.s32 %v1582, 912
        %v1697 = vadd.s32 %v1582, 920
        %v1698 = vadd.s32 %v1582, 928
        %v1699 = vadd.s32 %v1582, 936
        %v1700 = vadd.s32 %v1582, 944
        %v1701 = vadd.s32 %v1582, 952
        %v1702 = vadd.s32 %v1582, 960
        %v1703 = vshra.s32 %v1582, 5
        %v1704 = vshra.s32 %v1583, 5
        %v1705 = vshra.s32 %v1584, 5
        %v1706 = vshra.s32 %v1585, 5
        %v1707 = vshra.s32 %v1586, 5
        %v1708 = vshra.s32 %v1587, 5
        %v1709 = vshra.s32 %v1588, 5
        %v1710 = vshra.s32 %v1589, 5
        %v1711 = vshra.s32 %v1590, 5
        %v1712 = vshra.s32 %v1591, 5
        %v1713 = vshra.s32 %v1592, 5
        %v1714 = vshra.s32 %v1593, 5
        %v1715 = vshra.s32 %v1594, 5
        %v1716 = vshra.s32 %v1595, 5
        %v1717 = vshra.s32 %v1596, 5
        %v1718 = vshra.s32 %v1597, 5
        %v1719 = vshra.s32 %v1598, 5
        %v1720 = vshra.s32 %v1599, 5
        %v1721 = vshra.s32 %v1600, 5
        %v1722 = vshra.s32 %v1601, 5
        %v1723 = vshra.s32 %v1602, 5
        %v1724 = vshra.s32 %v1603, 5
        %v1725 = vshra.s32 %v1604, 5
        %v1726 = vshra.s32 %v1605, 5
        %v1727 = vshra.s32 %v1606, 5
        %v1728 = vshra.s32 %v1607, 5
        %v1729 = vshra.s32 %v1608, 5
        %v1730 = vshra.s32 %v1609, 5
        %v1731 = vshra.s32 %v1610, 5
        %v1732 = vshra.s32 %v1611, 5
        %v1733 = vshra.s32 %v1612, 5
        %v1734 = vshra.s32 %v1613, 5
        %v1735 = vshra.s32 %v1614, 5
        %v1736 = vshra.s32 %v1615, 5
        %v1737 = vshra.s32 %v1616, 5
        %v1738 = vshra.s32 %v1617, 5
        %v1739 = vshra.s32 %v1618, 5
        %v1740 = vshra.s32 %v1619, 5
        %v1741 = vshra.s32 %v1620, 5
        %v1742 = vshra.s32 %v1621, 5
        %v1743 = vshra.s32 %v1622, 5
        %v1744 = vshra.s32 %v1623, 5
        %v1745 = vshra.s32 %v1624, 5
        %v1746 = vshra.s32 %v1625, 5
        %v1747 = vshra.s32 %v1626, 5
        %v1748 = vshra.s32 %v1627, 5
        %v1749 = vshra.s32 %v1628, 5
        %v1750 = vshra.s32 %v1629, 5
        %v1751 = vshra.s32 %v1630, 5
        %v1752 = vshra.s32 %v1631, 5
        %v1753 = vshra.s32 %v1632, 5
        %v1754 = vshra.s32 %v1633, 5
        %v1755 = vshra.s32 %v1634, 5
        %v1756 = vshra.s32 %v1635, 5
        %v1757 = vshra.s32 %v1636, 5
        %v1758 = vshra.s32 %v1637, 5
        %v1759 = vshra.s32 %v1638, 5
        %v1760 = vshra.s32 %v1639, 5
        %v1761 = vshra.s32 %v1640, 5
        %v1762 = vshra.s32 %v1641, 5
        %v1763 = vshra.s32 %v1642, 5
        %v1764 = vshra.s32 %v1643, 5
        %v1765 = vshra.s32 %v1644, 5
        %v1766 = vshra.s32 %v1645, 5
        %v1767 = vshra.s32 %v1646, 5
        %v1768 = vshra.s32 %v1647, 5
        %v1769 = vshra.s32 %v1648, 5
        %v1770 = vshra.s32 %v1649, 5
        %v1771 = vshra.s32 %v1650, 5
        %v1772 = vshra.s32 %v1651, 5
        %v1773 = vshra.s32 %v1652, 5
        %v1774 = vshra.s32 %v1653, 5
        %v1775 = vshra.s32 %v1654, 5
        %v1776 = vshra.s32 %v1655, 5
        %v1777 = vshra.s32 %v1656, 5
        %v1778 = vshra.s32 %v1657, 5
        %v1779 = vshra.s32 %v1658, 5
        %v1780 = vshra.s32 %v1659, 5
        %v1781 = vshra.s32 %v1660, 5
        %v1782 = vshra.s32 %v1661, 5
        %v1783 = vshra.s32 %v1662, 5
        %v1784 = vshra.s32 %v1663, 5
        %v1785 = vshra.s32 %v1664, 5
        %v1786 = vshra.s32 %v1665, 5
        %v1787 = vshra.s32 %v1666, 5
        %v1788 = vshra.s32 %v1667, 5
        %v1789 = vshra.s32 %v1668, 5
        %v1790 = vshra.s32 %v1669, 5
        %v1791 = vshra.s32 %v1670, 5
        %v1792 = vshra.s32 %v1671, 5
        %v1793 = vshra.s32 %v1672, 5
        %v1794 = vshra.s32 %v1673, 5
        %v1795 = vshra.s32 %v1674, 5
        %v1796 = vshra.s32 %v1675, 5
        %v1797 = vshra.s32 %v1676, 5
        %v1798 = vshra.s32 %v1677, 5
        %v1799 = vshra.s32 %v1678, 5
        %v1800 = vshra.s32 %v1679, 5
        %v1801 = vshra.s32 %v1680, 5
        %v1802 = vshra.s32 %v1681, 5
        %v1803 = vshra.s32 %v1682, 5
        %v1804 = vshra.s32 %v1683, 5
        %v1805 = vshra.s32 %v1684, 5
        %v1806 = vshra.s32 %v1685, 5
        %v1807 = vshra.s32 %v1686, 5
        %v1808 = vshra.s32 %v1687, 5
        %v1809 = vshra.s32 %v1688, 5
        %v1810 = vshra.s32 %v1689, 5
        %v1811 = vshra.s32 %v1690, 5
        %v1812 = vshra.s32 %v1691, 5
        %v1813 = vshra.s32 %v1692, 5
        %v1814 = vshra.s32 %v1693, 5
        %v1815 = vshra.s32 %v1694, 5
        %v1816 = vshra.s32 %v1695, 5
        %v1817 = vshra.s32 %v1696, 5
        %v1818 = vshra.s32 %v1697, 5
        %v1819 = vshra.s32 %v1698, 5
        %v1820 = vshra.s32 %v1699, 5
        %v1821 = vshra.s32 %v1700, 5
        %v1822 = vshra.s32 %v1701, 5
        %v1823 = vshra.s32 %v1702, 5
        %v1824 = vand.u32 %v1582, 31
        %v1825 = vand.u32 %v1583, 31
        %v1826 = vand.u32 %v1584, 31
        %v1827 = vand.u32 %v1585, 31
        %v1828 = vand.u32 %v1586, 31
        %v1829 = vand.u32 %v1587, 31
        %v1830 = vand.u32 %v1588, 31
        %v1831 = vand.u32 %v1589, 31
        %v1832 = vand.u32 %v1590, 31
        %v1833 = vand.u32 %v1591, 31
        %v1834 = vand.u32 %v1592, 31
        %v1835 = vand.u32 %v1593, 31
        %v1836 = vand.u32 %v1594, 31
        %v1837 = vand.u32 %v1595, 31
        %v1838 = vand.u32 %v1596, 31
        %v1839 = vand.u32 %v1597, 31
        %v1840 = vand.u32 %v1598, 31
        %v1841 = vand.u32 %v1599, 31
        %v1842 = vand.u32 %v1600, 31
        %v1843 = vand.u32 %v1601, 31
        %v1844 = vand.u32 %v1602, 31
        %v1845 = vand.u32 %v1603, 31
        %v1846 = vand.u32 %v1604, 31
        %v1847 = vand.u32 %v1605, 31
        %v1848 = vand.u32 %v1606, 31
        %v1849 = vand.u32 %v1607, 31
        %v1850 = vand.u32 %v1608, 31
        %v1851 = vand.u32 %v1609, 31
        %v1852 = vand.u32 %v1610, 31
        %v1853 = vand.u32 %v1611, 31
        %v1854 = vand.u32 %v1612, 31
        %v1855 = vand.u32 %v1613, 31
        %v1856 = vand.u32 %v1614, 31
        %v1857 = vand.u32 %v1615, 31
        %v1858 = vand.u32 %v1616, 31
        %v1859 = vand.u32 %v1617, 31
        %v1860 = vand.u32 %v1618, 31
        %v1861 = vand.u32 %v1619, 31
        %v1862 = vand.u32 %v1620, 31
        %v1863 = vand.u32 %v1621, 31
        %v1864 = vand.u32 %v1622, 31
        %v1865 = vand.u32 %v1623, 31
        %v1866 = vand.u32 %v1624, 31
        %v1867 = vand.u32 %v1625, 31
        %v1868 = vand.u32 %v1626, 31
        %v1869 = vand.u32 %v1627, 31
        %v1870 = vand.u32 %v1628, 31
        %v1871 = vand.u32 %v1629, 31
        %v1872 = vand.u32 %v1630, 31
        %v1873 = vand.u32 %v1631, 31
        %v1874 = vand.u32 %v1632, 31
        %v1875 = vand.u32 %v1633, 31
        %v1876 = vand.u32 %v1634, 31
        %v1877 = vand.u32 %v1635, 31
        %v1878 = vand.u32 %v1636, 31
        %v1879 = vand.u32 %v1637, 31
        %v1880 = vand.u32 %v1638, 31
        %v1881 = vand.u32 %v1639, 31
        %v1882 = vand.u32 %v1640, 31
        %v1883 = vand.u32 %v1641, 31
        %v1884 = vand.u32 %v1642, 31
        %v1885 = vand.u32 %v1643, 31
        %v1886 = vand.u32 %v1644, 31
        %v1887 = vand.u32 %v1645, 31
        %v1888 = vand.u32 %v1646, 31
        %v1889 = vand.u32 %v1647, 31
        %v1890 = vand.u32 %v1648, 31
        %v1891 = vand.u32 %v1649, 31
        %v1892 = vand.u32 %v1650, 31
        %v1893 = vand.u32 %v1651, 31
        %v1894 = vand.u32 %v1652, 31
        %v1895 = vand.u32 %v1653, 31
        %v1896 = vand.u32 %v1654, 31
        %v1897 = vand.u32 %v1655, 31
        %v1898 = vand.u32 %v1656, 31
        %v1899 = vand.u32 %v1657, 31
        %v1900 = vand.u32 %v1658, 31
        %v1901 = vand.u32 %v1659, 31
        %v1902 = vand.u32 %v1660, 31
        %v1903 = vand.u32 %v1661, 31
        %v1904 = vand.u32 %v1662, 31
        %v1905 = vand.u32 %v1663, 31
        %v1906 = vand.u32 %v1664, 31
        %v1907 = vand.u32 %v1665, 31
        %v1908 = vand.u32 %v1666, 31
        %v1909 = vand.u32 %v1667, 31
        %v1910 = vand.u32 %v1668, 31
        %v1911 = vand.u32 %v1669, 31
        %v1912 = vand.u32 %v1670, 31
        %v1913 = vand.u32 %v1671, 31
        %v1914 = vand.u32 %v1672, 31
        %v1915 = vand.u32 %v1673, 31
        %v1916 = vand.u32 %v1674, 31
        %v1917 = vand.u32 %v1675, 31
        %v1918 = vand.u32 %v1676, 31
        %v1919 = vand.u32 %v1677, 31
        %v1920 = vand.u32 %v1678, 31
        %v1921 = vand.u32 %v1679, 31
        %v1922 = vand.u32 %v1680, 31
        %v1923 = vand.u32 %v1681, 31
        %v1924 = vand.u32 %v1682, 31
        %v1925 = vand.u32 %v1683, 31
        %v1926 = vand.u32 %v1684, 31
        %v1927 = vand.u32 %v1685, 31
        %v1928 = vand.u32 %v1686, 31
        %v1929 = vand.u32 %v1687, 31
        %v1930 = vand.u32 %v1688, 31
        %v1931 = vand.u32 %v1689, 31
        %v1932 = vand.u32 %v1690, 31
        %v1933 = vand.u32 %v1691, 31
        %v1934 = vand.u32 %v1692, 31
        %v1935 = vand.u32 %v1693, 31
        %v1936 = vand.u32 %v1694, 31
        %v1937 = vand.u32 %v1695, 31
        %v1938 = vand.u32 %v1696, 31
        %v1939 = vand.u32 %v1697, 31
        %v1940 = vand.u32 %v1698, 31
        %v1941 = vand.u32 %v1699, 31
        %v1942 = vand.u32 %v1700, 31
        %v1943 = vand.u32 %v1701, 31
        %v1944 = vand.u32 %v1702, 31
        %vm1945 = vcmp.ge.s32.totalorder %v1703, 1
        %vm1946 = vcmp.ge.s32.totalorder %v1704, 1
        %vm1947 = vcmp.ge.s32.totalorder %v1705, 1
        %vm1948 = vcmp.ge.s32.totalorder %v1706, 1
        %vm1949 = vcmp.ge.s32.totalorder %v1707, 1
        %vm1950 = vcmp.ge.s32.totalorder %v1708, 1
        %vm1951 = vcmp.ge.s32.totalorder %v1709, 1
        %vm1952 = vcmp.ge.s32.totalorder %v1710, 1
        %vm1953 = vcmp.ge.s32.totalorder %v1711, 1
        %vm1954 = vcmp.ge.s32.totalorder %v1712, 1
        %vm1955 = vcmp.ge.s32.totalorder %v1713, 1
        %vm1956 = vcmp.ge.s32.totalorder %v1714, 1
        %vm1957 = vcmp.ge.s32.totalorder %v1715, 1
        %vm1958 = vcmp.ge.s32.totalorder %v1716, 1
        %vm1959 = vcmp.ge.s32.totalorder %v1717, 1
        %vm1960 = vcmp.ge.s32.totalorder %v1718, 1
        %vm1961 = vcmp.ge.s32.totalorder %v1719, 1
        %vm1962 = vcmp.ge.s32.totalorder %v1720, 1
        %vm1963 = vcmp.ge.s32.totalorder %v1721, 1
        %vm1964 = vcmp.ge.s32.totalorder %v1722, 1
        %vm1965 = vcmp.ge.s32.totalorder %v1723, 1
        %vm1966 = vcmp.ge.s32.totalorder %v1724, 1
        %vm1967 = vcmp.ge.s32.totalorder %v1725, 1
        %vm1968 = vcmp.ge.s32.totalorder %v1726, 1
        %vm1969 = vcmp.ge.s32.totalorder %v1727, 1
        %vm1970 = vcmp.ge.s32.totalorder %v1728, 1
        %vm1971 = vcmp.ge.s32.totalorder %v1729, 1
        %vm1972 = vcmp.ge.s32.totalorder %v1730, 1
        %vm1973 = vcmp.ge.s32.totalorder %v1731, 1
        %vm1974 = vcmp.ge.s32.totalorder %v1732, 1
        %vm1975 = vcmp.ge.s32.totalorder %v1733, 1
        %vm1976 = vcmp.ge.s32.totalorder %v1734, 1
        %vm1977 = vcmp.ge.s32.totalorder %v1735, 1
        %vm1978 = vcmp.ge.s32.totalorder %v1736, 1
        %vm1979 = vcmp.ge.s32.totalorder %v1737, 1
        %vm1980 = vcmp.ge.s32.totalorder %v1738, 1
        %vm1981 = vcmp.ge.s32.totalorder %v1739, 1
        %vm1982 = vcmp.ge.s32.totalorder %v1740, 1
        %vm1983 = vcmp.ge.s32.totalorder %v1741, 1
        %vm1984 = vcmp.ge.s32.totalorder %v1742, 1
        %vm1985 = vcmp.ge.s32.totalorder %v1743, 1
        %vm1986 = vcmp.ge.s32.totalorder %v1744, 1
        %vm1987 = vcmp.ge.s32.totalorder %v1745, 1
        %vm1988 = vcmp.ge.s32.totalorder %v1746, 1
        %vm1989 = vcmp.ge.s32.totalorder %v1747, 1
        %vm1990 = vcmp.ge.s32.totalorder %v1748, 1
        %vm1991 = vcmp.ge.s32.totalorder %v1749, 1
        %vm1992 = vcmp.ge.s32.totalorder %v1750, 1
        %vm1993 = vcmp.ge.s32.totalorder %v1751, 1
        %vm1994 = vcmp.ge.s32.totalorder %v1752, 1
        %vm1995 = vcmp.ge.s32.totalorder %v1753, 1
        %vm1996 = vcmp.ge.s32.totalorder %v1754, 1
        %vm1997 = vcmp.ge.s32.totalorder %v1755, 1
        %vm1998 = vcmp.ge.s32.totalorder %v1756, 1
        %vm1999 = vcmp.ge.s32.totalorder %v1757, 1
        %vm2000 = vcmp.ge.s32.totalorder %v1758, 1
        %vm2001 = vcmp.ge.s32.totalorder %v1759, 1
        %vm2002 = vcmp.ge.s32.totalorder %v1760, 1
        %vm2003 = vcmp.ge.s32.totalorder %v1761, 1
        %vm2004 = vcmp.ge.s32.totalorder %v1762, 1
        %vm2005 = vcmp.ge.s32.totalorder %v1763, 1
        %vm2006 = vcmp.ge.s32.totalorder %v1764, 1
        %vm2007 = vcmp.ge.s32.totalorder %v1765, 1
        %vm2008 = vcmp.ge.s32.totalorder %v1766, 1
        %vm2009 = vcmp.ge.s32.totalorder %v1767, 1
        %vm2010 = vcmp.ge.s32.totalorder %v1768, 1
        %vm2011 = vcmp.ge.s32.totalorder %v1769, 1
        %vm2012 = vcmp.ge.s32.totalorder %v1770, 1
        %vm2013 = vcmp.ge.s32.totalorder %v1771, 1
        %vm2014 = vcmp.ge.s32.totalorder %v1772, 1
        %vm2015 = vcmp.ge.s32.totalorder %v1773, 1
        %vm2016 = vcmp.ge.s32.totalorder %v1774, 1
        %vm2017 = vcmp.ge.s32.totalorder %v1775, 1
        %vm2018 = vcmp.ge.s32.totalorder %v1776, 1
        %vm2019 = vcmp.ge.s32.totalorder %v1777, 1
        %vm2020 = vcmp.ge.s32.totalorder %v1778, 1
        %vm2021 = vcmp.ge.s32.totalorder %v1779, 1
        %vm2022 = vcmp.ge.s32.totalorder %v1780, 1
        %vm2023 = vcmp.ge.s32.totalorder %v1781, 1
        %vm2024 = vcmp.ge.s32.totalorder %v1782, 1
        %vm2025 = vcmp.ge.s32.totalorder %v1783, 1
        %vm2026 = vcmp.ge.s32.totalorder %v1784, 1
        %vm2027 = vcmp.ge.s32.totalorder %v1785, 1
        %vm2028 = vcmp.ge.s32.totalorder %v1786, 1
        %vm2029 = vcmp.ge.s32.totalorder %v1787, 1
        %vm2030 = vcmp.ge.s32.totalorder %v1788, 1
        %vm2031 = vcmp.ge.s32.totalorder %v1789, 1
        %vm2032 = vcmp.ge.s32.totalorder %v1790, 1
        %vm2033 = vcmp.ge.s32.totalorder %v1791, 1
        %vm2034 = vcmp.ge.s32.totalorder %v1792, 1
        %vm2035 = vcmp.ge.s32.totalorder %v1793, 1
        %vm2036 = vcmp.ge.s32.totalorder %v1794, 1
        %vm2037 = vcmp.ge.s32.totalorder %v1795, 1
        %vm2038 = vcmp.ge.s32.totalorder %v1796, 1
        %vm2039 = vcmp.ge.s32.totalorder %v1797, 1
        %vm2040 = vcmp.ge.s32.totalorder %v1798, 1
        %vm2041 = vcmp.ge.s32.totalorder %v1799, 1
        %vm2042 = vcmp.ge.s32.totalorder %v1800, 1
        %vm2043 = vcmp.ge.s32.totalorder %v1801, 1
        %vm2044 = vcmp.ge.s32.totalorder %v1802, 1
        %vm2045 = vcmp.ge.s32.totalorder %v1803, 1
        %vm2046 = vcmp.ge.s32.totalorder %v1804, 1
        %vm2047 = vcmp.ge.s32.totalorder %v1805, 1
        %vm2048 = vcmp.ge.s32.totalorder %v1806, 1
        %vm2049 = vcmp.ge.s32.totalorder %v1807, 1
        %vm2050 = vcmp.ge.s32.totalorder %v1808, 1
        %vm2051 = vcmp.ge.s32.totalorder %v1809, 1
        %vm2052 = vcmp.ge.s32.totalorder %v1810, 1
        %vm2053 = vcmp.ge.s32.totalorder %v1811, 1
        %vm2054 = vcmp.ge.s32.totalorder %v1812, 1
        %vm2055 = vcmp.ge.s32.totalorder %v1813, 1
        %vm2056 = vcmp.ge.s32.totalorder %v1814, 1
        %vm2057 = vcmp.ge.s32.totalorder %v1815, 1
        %vm2058 = vcmp.ge.s32.totalorder %v1816, 1
        %vm2059 = vcmp.ge.s32.totalorder %v1817, 1
        %vm2060 = vcmp.ge.s32.totalorder %v1818, 1
        %vm2061 = vcmp.ge.s32.totalorder %v1819, 1
        %vm2062 = vcmp.ge.s32.totalorder %v1820, 1
        %vm2063 = vcmp.ge.s32.totalorder %v1821, 1
        %vm2064 = vcmp.ge.s32.totalorder %v1822, 1
        %vm2065 = vcmp.ge.s32.totalorder %v1823, 1
        %vm2066 = vcmp.le.s32.totalorder %v1703, 28
        %vm2067 = vcmp.le.s32.totalorder %v1704, 28
        %vm2068 = vcmp.le.s32.totalorder %v1705, 28
        %vm2069 = vcmp.le.s32.totalorder %v1706, 28
        %vm2070 = vcmp.le.s32.totalorder %v1707, 28
        %vm2071 = vcmp.le.s32.totalorder %v1708, 28
        %vm2072 = vcmp.le.s32.totalorder %v1709, 28
        %vm2073 = vcmp.le.s32.totalorder %v1710, 28
        %vm2074 = vcmp.le.s32.totalorder %v1711, 28
        %vm2075 = vcmp.le.s32.totalorder %v1712, 28
        %vm2076 = vcmp.le.s32.totalorder %v1713, 28
        %vm2077 = vcmp.le.s32.totalorder %v1714, 28
        %vm2078 = vcmp.le.s32.totalorder %v1715, 28
        %vm2079 = vcmp.le.s32.totalorder %v1716, 28
        %vm2080 = vcmp.le.s32.totalorder %v1717, 28
        %vm2081 = vcmp.le.s32.totalorder %v1718, 28
        %vm2082 = vcmp.le.s32.totalorder %v1719, 28
        %vm2083 = vcmp.le.s32.totalorder %v1720, 28
        %vm2084 = vcmp.le.s32.totalorder %v1721, 28
        %vm2085 = vcmp.le.s32.totalorder %v1722, 28
        %vm2086 = vcmp.le.s32.totalorder %v1723, 28
        %vm2087 = vcmp.le.s32.totalorder %v1724, 28
        %vm2088 = vcmp.le.s32.totalorder %v1725, 28
        %vm2089 = vcmp.le.s32.totalorder %v1726, 28
        %vm2090 = vcmp.le.s32.totalorder %v1727, 28
        %vm2091 = vcmp.le.s32.totalorder %v1728, 28
        %vm2092 = vcmp.le.s32.totalorder %v1729, 28
        %vm2093 = vcmp.le.s32.totalorder %v1730, 28
        %vm2094 = vcmp.le.s32.totalorder %v1731, 28
        %vm2095 = vcmp.le.s32.totalorder %v1732, 28
        %vm2096 = vcmp.le.s32.totalorder %v1733, 28
        %vm2097 = vcmp.le.s32.totalorder %v1734, 28
        %vm2098 = vcmp.le.s32.totalorder %v1735, 28
        %vm2099 = vcmp.le.s32.totalorder %v1736, 28
        %vm2100 = vcmp.le.s32.totalorder %v1737, 28
        %vm2101 = vcmp.le.s32.totalorder %v1738, 28
        %vm2102 = vcmp.le.s32.totalorder %v1739, 28
        %vm2103 = vcmp.le.s32.totalorder %v1740, 28
        %vm2104 = vcmp.le.s32.totalorder %v1741, 28
        %vm2105 = vcmp.le.s32.totalorder %v1742, 28
        %vm2106 = vcmp.le.s32.totalorder %v1743, 28
        %vm2107 = vcmp.le.s32.totalorder %v1744, 28
        %vm2108 = vcmp.le.s32.totalorder %v1745, 28
        %vm2109 = vcmp.le.s32.totalorder %v1746, 28
        %vm2110 = vcmp.le.s32.totalorder %v1747, 28
        %vm2111 = vcmp.le.s32.totalorder %v1748, 28
        %vm2112 = vcmp.le.s32.totalorder %v1749, 28
        %vm2113 = vcmp.le.s32.totalorder %v1750, 28
        %vm2114 = vcmp.le.s32.totalorder %v1751, 28
        %vm2115 = vcmp.le.s32.totalorder %v1752, 28
        %vm2116 = vcmp.le.s32.totalorder %v1753, 28
        %vm2117 = vcmp.le.s32.totalorder %v1754, 28
        %vm2118 = vcmp.le.s32.totalorder %v1755, 28
        %vm2119 = vcmp.le.s32.totalorder %v1756, 28
        %vm2120 = vcmp.le.s32.totalorder %v1757, 28
        %vm2121 = vcmp.le.s32.totalorder %v1758, 28
        %vm2122 = vcmp.le.s32.totalorder %v1759, 28
        %vm2123 = vcmp.le.s32.totalorder %v1760, 28
        %vm2124 = vcmp.le.s32.totalorder %v1761, 28
        %vm2125 = vcmp.le.s32.totalorder %v1762, 28
        %vm2126 = vcmp.le.s32.totalorder %v1763, 28
        %vm2127 = vcmp.le.s32.totalorder %v1764, 28
        %vm2128 = vcmp.le.s32.totalorder %v1765, 28
        %vm2129 = vcmp.le.s32.totalorder %v1766, 28
        %vm2130 = vcmp.le.s32.totalorder %v1767, 28
        %vm2131 = vcmp.le.s32.totalorder %v1768, 28
        %vm2132 = vcmp.le.s32.totalorder %v1769, 28
        %vm2133 = vcmp.le.s32.totalorder %v1770, 28
        %vm2134 = vcmp.le.s32.totalorder %v1771, 28
        %vm2135 = vcmp.le.s32.totalorder %v1772, 28
        %vm2136 = vcmp.le.s32.totalorder %v1773, 28
        %vm2137 = vcmp.le.s32.totalorder %v1774, 28
        %vm2138 = vcmp.le.s32.totalorder %v1775, 28
        %vm2139 = vcmp.le.s32.totalorder %v1776, 28
        %vm2140 = vcmp.le.s32.totalorder %v1777, 28
        %vm2141 = vcmp.le.s32.totalorder %v1778, 28
        %vm2142 = vcmp.le.s32.totalorder %v1779, 28
        %vm2143 = vcmp.le.s32.totalorder %v1780, 28
        %vm2144 = vcmp.le.s32.totalorder %v1781, 28
        %vm2145 = vcmp.le.s32.totalorder %v1782, 28
        %vm2146 = vcmp.le.s32.totalorder %v1783, 28
        %vm2147 = vcmp.le.s32.totalorder %v1784, 28
        %vm2148 = vcmp.le.s32.totalorder %v1785, 28
        %vm2149 = vcmp.le.s32.totalorder %v1786, 28
        %vm2150 = vcmp.le.s32.totalorder %v1787, 28
        %vm2151 = vcmp.le.s32.totalorder %v1788, 28
        %vm2152 = vcmp.le.s32.totalorder %v1789, 28
        %vm2153 = vcmp.le.s32.totalorder %v1790, 28
        %vm2154 = vcmp.le.s32.totalorder %v1791, 28
        %vm2155 = vcmp.le.s32.totalorder %v1792, 28
        %vm2156 = vcmp.le.s32.totalorder %v1793, 28
        %vm2157 = vcmp.le.s32.totalorder %v1794, 28
        %vm2158 = vcmp.le.s32.totalorder %v1795, 28
        %vm2159 = vcmp.le.s32.totalorder %v1796, 28
        %vm2160 = vcmp.le.s32.totalorder %v1797, 28
        %vm2161 = vcmp.le.s32.totalorder %v1798, 28
        %vm2162 = vcmp.le.s32.totalorder %v1799, 28
        %vm2163 = vcmp.le.s32.totalorder %v1800, 28
        %vm2164 = vcmp.le.s32.totalorder %v1801, 28
        %vm2165 = vcmp.le.s32.totalorder %v1802, 28
        %vm2166 = vcmp.le.s32.totalorder %v1803, 28
        %vm2167 = vcmp.le.s32.totalorder %v1804, 28
        %vm2168 = vcmp.le.s32.totalorder %v1805, 28
        %vm2169 = vcmp.le.s32.totalorder %v1806, 28
        %vm2170 = vcmp.le.s32.totalorder %v1807, 28
        %vm2171 = vcmp.le.s32.totalorder %v1808, 28
        %vm2172 = vcmp.le.s32.totalorder %v1809, 28
        %vm2173 = vcmp.le.s32.totalorder %v1810, 28
        %vm2174 = vcmp.le.s32.totalorder %v1811, 28
        %vm2175 = vcmp.le.s32.totalorder %v1812, 28
        %vm2176 = vcmp.le.s32.totalorder %v1813, 28
        %vm2177 = vcmp.le.s32.totalorder %v1814, 28
        %vm2178 = vcmp.le.s32.totalorder %v1815, 28
        %vm2179 = vcmp.le.s32.totalorder %v1816, 28
        %vm2180 = vcmp.le.s32.totalorder %v1817, 28
        %vm2181 = vcmp.le.s32.totalorder %v1818, 28
        %vm2182 = vcmp.le.s32.totalorder %v1819, 28
        %vm2183 = vcmp.le.s32.totalorder %v1820, 28
        %vm2184 = vcmp.le.s32.totalorder %v1821, 28
        %vm2185 = vcmp.le.s32.totalorder %v1822, 28
        %vm2186 = vcmp.le.s32.totalorder %v1823, 28
        %vm2187 = vmand %vm1945, %vm2066
        %vm2188 = vmand %vm1946, %vm2067
        %vm2189 = vmand %vm1947, %vm2068
        %vm2190 = vmand %vm1948, %vm2069
        %vm2191 = vmand %vm1949, %vm2070
        %vm2192 = vmand %vm1950, %vm2071
        %vm2193 = vmand %vm1951, %vm2072
        %vm2194 = vmand %vm1952, %vm2073
        %vm2195 = vmand %vm1953, %vm2074
        %vm2196 = vmand %vm1954, %vm2075
        %vm2197 = vmand %vm1955, %vm2076
        %vm2198 = vmand %vm1956, %vm2077
        %vm2199 = vmand %vm1957, %vm2078
        %vm2200 = vmand %vm1958, %vm2079
        %vm2201 = vmand %vm1959, %vm2080
        %vm2202 = vmand %vm1960, %vm2081
        %vm2203 = vmand %vm1961, %vm2082
        %vm2204 = vmand %vm1962, %vm2083
        %vm2205 = vmand %vm1963, %vm2084
        %vm2206 = vmand %vm1964, %vm2085
        %vm2207 = vmand %vm1965, %vm2086
        %vm2208 = vmand %vm1966, %vm2087
        %vm2209 = vmand %vm1967, %vm2088
        %vm2210 = vmand %vm1968, %vm2089
        %vm2211 = vmand %vm1969, %vm2090
        %vm2212 = vmand %vm1970, %vm2091
        %vm2213 = vmand %vm1971, %vm2092
        %vm2214 = vmand %vm1972, %vm2093
        %vm2215 = vmand %vm1973, %vm2094
        %vm2216 = vmand %vm1974, %vm2095
        %vm2217 = vmand %vm1975, %vm2096
        %vm2218 = vmand %vm1976, %vm2097
        %vm2219 = vmand %vm1977, %vm2098
        %vm2220 = vmand %vm1978, %vm2099
        %vm2221 = vmand %vm1979, %vm2100
        %vm2222 = vmand %vm1980, %vm2101
        %vm2223 = vmand %vm1981, %vm2102
        %vm2224 = vmand %vm1982, %vm2103
        %vm2225 = vmand %vm1983, %vm2104
        %vm2226 = vmand %vm1984, %vm2105
        %vm2227 = vmand %vm1985, %vm2106
        %vm2228 = vmand %vm1986, %vm2107
        %vm2229 = vmand %vm1987, %vm2108
        %vm2230 = vmand %vm1988, %vm2109
        %vm2231 = vmand %vm1989, %vm2110
        %vm2232 = vmand %vm1990, %vm2111
        %vm2233 = vmand %vm1991, %vm2112
        %vm2234 = vmand %vm1992, %vm2113
        %vm2235 = vmand %vm1993, %vm2114
        %vm2236 = vmand %vm1994, %vm2115
        %vm2237 = vmand %vm1995, %vm2116
        %vm2238 = vmand %vm1996, %vm2117
        %vm2239 = vmand %vm1997, %vm2118
        %vm2240 = vmand %vm1998, %vm2119
        %vm2241 = vmand %vm1999, %vm2120
        %vm2242 = vmand %vm2000, %vm2121
        %vm2243 = vmand %vm2001, %vm2122
        %vm2244 = vmand %vm2002, %vm2123
        %vm2245 = vmand %vm2003, %vm2124
        %vm2246 = vmand %vm2004, %vm2125
        %vm2247 = vmand %vm2005, %vm2126
        %vm2248 = vmand %vm2006, %vm2127
        %vm2249 = vmand %vm2007, %vm2128
        %vm2250 = vmand %vm2008, %vm2129
        %vm2251 = vmand %vm2009, %vm2130
        %vm2252 = vmand %vm2010, %vm2131
        %vm2253 = vmand %vm2011, %vm2132
        %vm2254 = vmand %vm2012, %vm2133
        %vm2255 = vmand %vm2013, %vm2134
        %vm2256 = vmand %vm2014, %vm2135
        %vm2257 = vmand %vm2015, %vm2136
        %vm2258 = vmand %vm2016, %vm2137
        %vm2259 = vmand %vm2017, %vm2138
        %vm2260 = vmand %vm2018, %vm2139
        %vm2261 = vmand %vm2019, %vm2140
        %vm2262 = vmand %vm2020, %vm2141
        %vm2263 = vmand %vm2021, %vm2142
        %vm2264 = vmand %vm2022, %vm2143
        %vm2265 = vmand %vm2023, %vm2144
        %vm2266 = vmand %vm2024, %vm2145
        %vm2267 = vmand %vm2025, %vm2146
        %vm2268 = vmand %vm2026, %vm2147
        %vm2269 = vmand %vm2027, %vm2148
        %vm2270 = vmand %vm2028, %vm2149
        %vm2271 = vmand %vm2029, %vm2150
        %vm2272 = vmand %vm2030, %vm2151
        %vm2273 = vmand %vm2031, %vm2152
        %vm2274 = vmand %vm2032, %vm2153
        %vm2275 = vmand %vm2033, %vm2154
        %vm2276 = vmand %vm2034, %vm2155
        %vm2277 = vmand %vm2035, %vm2156
        %vm2278 = vmand %vm2036, %vm2157
        %vm2279 = vmand %vm2037, %vm2158
        %vm2280 = vmand %vm2038, %vm2159
        %vm2281 = vmand %vm2039, %vm2160
        %vm2282 = vmand %vm2040, %vm2161
        %vm2283 = vmand %vm2041, %vm2162
        %vm2284 = vmand %vm2042, %vm2163
        %vm2285 = vmand %vm2043, %vm2164
        %vm2286 = vmand %vm2044, %vm2165
        %vm2287 = vmand %vm2045, %vm2166
        %vm2288 = vmand %vm2046, %vm2167
        %vm2289 = vmand %vm2047, %vm2168
        %vm2290 = vmand %vm2048, %vm2169
        %vm2291 = vmand %vm2049, %vm2170
        %vm2292 = vmand %vm2050, %vm2171
        %vm2293 = vmand %vm2051, %vm2172
        %vm2294 = vmand %vm2052, %vm2173
        %vm2295 = vmand %vm2053, %vm2174
        %vm2296 = vmand %vm2054, %vm2175
        %vm2297 = vmand %vm2055, %vm2176
        %vm2298 = vmand %vm2056, %vm2177
        %vm2299 = vmand %vm2057, %vm2178
        %vm2300 = vmand %vm2058, %vm2179
        %vm2301 = vmand %vm2059, %vm2180
        %vm2302 = vmand %vm2060, %vm2181
        %vm2303 = vmand %vm2061, %vm2182
        %vm2304 = vmand %vm2062, %vm2183
        %vm2305 = vmand %vm2063, %vm2184
        %vm2306 = vmand %vm2064, %vm2185
        %vm2307 = vmand %vm2065, %vm2186
        %vm2308 = vcmp.ge.s32.totalorder %v1824, 1
        %vm2309 = vcmp.ge.s32.totalorder %v1825, 1
        %vm2310 = vcmp.ge.s32.totalorder %v1826, 1
        %vm2311 = vcmp.ge.s32.totalorder %v1827, 1
        %vm2312 = vcmp.ge.s32.totalorder %v1828, 1
        %vm2313 = vcmp.ge.s32.totalorder %v1829, 1
        %vm2314 = vcmp.ge.s32.totalorder %v1830, 1
        %vm2315 = vcmp.ge.s32.totalorder %v1831, 1
        %vm2316 = vcmp.ge.s32.totalorder %v1832, 1
        %vm2317 = vcmp.ge.s32.totalorder %v1833, 1
        %vm2318 = vcmp.ge.s32.totalorder %v1834, 1
        %vm2319 = vcmp.ge.s32.totalorder %v1835, 1
        %vm2320 = vcmp.ge.s32.totalorder %v1836, 1
        %vm2321 = vcmp.ge.s32.totalorder %v1837, 1
        %vm2322 = vcmp.ge.s32.totalorder %v1838, 1
        %vm2323 = vcmp.ge.s32.totalorder %v1839, 1
        %vm2324 = vcmp.ge.s32.totalorder %v1840, 1
        %vm2325 = vcmp.ge.s32.totalorder %v1841, 1
        %vm2326 = vcmp.ge.s32.totalorder %v1842, 1
        %vm2327 = vcmp.ge.s32.totalorder %v1843, 1
        %vm2328 = vcmp.ge.s32.totalorder %v1844, 1
        %vm2329 = vcmp.ge.s32.totalorder %v1845, 1
        %vm2330 = vcmp.ge.s32.totalorder %v1846, 1
        %vm2331 = vcmp.ge.s32.totalorder %v1847, 1
        %vm2332 = vcmp.ge.s32.totalorder %v1848, 1
        %vm2333 = vcmp.ge.s32.totalorder %v1849, 1
        %vm2334 = vcmp.ge.s32.totalorder %v1850, 1
        %vm2335 = vcmp.ge.s32.totalorder %v1851, 1
        %vm2336 = vcmp.ge.s32.totalorder %v1852, 1
        %vm2337 = vcmp.ge.s32.totalorder %v1853, 1
        %vm2338 = vcmp.ge.s32.totalorder %v1854, 1
        %vm2339 = vcmp.ge.s32.totalorder %v1855, 1
        %vm2340 = vcmp.ge.s32.totalorder %v1856, 1
        %vm2341 = vcmp.ge.s32.totalorder %v1857, 1
        %vm2342 = vcmp.ge.s32.totalorder %v1858, 1
        %vm2343 = vcmp.ge.s32.totalorder %v1859, 1
        %vm2344 = vcmp.ge.s32.totalorder %v1860, 1
        %vm2345 = vcmp.ge.s32.totalorder %v1861, 1
        %vm2346 = vcmp.ge.s32.totalorder %v1862, 1
        %vm2347 = vcmp.ge.s32.totalorder %v1863, 1
        %vm2348 = vcmp.ge.s32.totalorder %v1864, 1
        %vm2349 = vcmp.ge.s32.totalorder %v1865, 1
        %vm2350 = vcmp.ge.s32.totalorder %v1866, 1
        %vm2351 = vcmp.ge.s32.totalorder %v1867, 1
        %vm2352 = vcmp.ge.s32.totalorder %v1868, 1
        %vm2353 = vcmp.ge.s32.totalorder %v1869, 1
        %vm2354 = vcmp.ge.s32.totalorder %v1870, 1
        %vm2355 = vcmp.ge.s32.totalorder %v1871, 1
        %vm2356 = vcmp.ge.s32.totalorder %v1872, 1
        %vm2357 = vcmp.ge.s32.totalorder %v1873, 1
        %vm2358 = vcmp.ge.s32.totalorder %v1874, 1
        %vm2359 = vcmp.ge.s32.totalorder %v1875, 1
        %vm2360 = vcmp.ge.s32.totalorder %v1876, 1
        %vm2361 = vcmp.ge.s32.totalorder %v1877, 1
        %vm2362 = vcmp.ge.s32.totalorder %v1878, 1
        %vm2363 = vcmp.ge.s32.totalorder %v1879, 1
        %vm2364 = vcmp.ge.s32.totalorder %v1880, 1
        %vm2365 = vcmp.ge.s32.totalorder %v1881, 1
        %vm2366 = vcmp.ge.s32.totalorder %v1882, 1
        %vm2367 = vcmp.ge.s32.totalorder %v1883, 1
        %vm2368 = vcmp.ge.s32.totalorder %v1884, 1
        %vm2369 = vcmp.ge.s32.totalorder %v1885, 1
        %vm2370 = vcmp.ge.s32.totalorder %v1886, 1
        %vm2371 = vcmp.ge.s32.totalorder %v1887, 1
        %vm2372 = vcmp.ge.s32.totalorder %v1888, 1
        %vm2373 = vcmp.ge.s32.totalorder %v1889, 1
        %vm2374 = vcmp.ge.s32.totalorder %v1890, 1
        %vm2375 = vcmp.ge.s32.totalorder %v1891, 1
        %vm2376 = vcmp.ge.s32.totalorder %v1892, 1
        %vm2377 = vcmp.ge.s32.totalorder %v1893, 1
        %vm2378 = vcmp.ge.s32.totalorder %v1894, 1
        %vm2379 = vcmp.ge.s32.totalorder %v1895, 1
        %vm2380 = vcmp.ge.s32.totalorder %v1896, 1
        %vm2381 = vcmp.ge.s32.totalorder %v1897, 1
        %vm2382 = vcmp.ge.s32.totalorder %v1898, 1
        %vm2383 = vcmp.ge.s32.totalorder %v1899, 1
        %vm2384 = vcmp.ge.s32.totalorder %v1900, 1
        %vm2385 = vcmp.ge.s32.totalorder %v1901, 1
        %vm2386 = vcmp.ge.s32.totalorder %v1902, 1
        %vm2387 = vcmp.ge.s32.totalorder %v1903, 1
        %vm2388 = vcmp.ge.s32.totalorder %v1904, 1
        %vm2389 = vcmp.ge.s32.totalorder %v1905, 1
        %vm2390 = vcmp.ge.s32.totalorder %v1906, 1
        %vm2391 = vcmp.ge.s32.totalorder %v1907, 1
        %vm2392 = vcmp.ge.s32.totalorder %v1908, 1
        %vm2393 = vcmp.ge.s32.totalorder %v1909, 1
        %vm2394 = vcmp.ge.s32.totalorder %v1910, 1
        %vm2395 = vcmp.ge.s32.totalorder %v1911, 1
        %vm2396 = vcmp.ge.s32.totalorder %v1912, 1
        %vm2397 = vcmp.ge.s32.totalorder %v1913, 1
        %vm2398 = vcmp.ge.s32.totalorder %v1914, 1
        %vm2399 = vcmp.ge.s32.totalorder %v1915, 1
        %vm2400 = vcmp.ge.s32.totalorder %v1916, 1
        %vm2401 = vcmp.ge.s32.totalorder %v1917, 1
        %vm2402 = vcmp.ge.s32.totalorder %v1918, 1
        %vm2403 = vcmp.ge.s32.totalorder %v1919, 1
        %vm2404 = vcmp.ge.s32.totalorder %v1920, 1
        %vm2405 = vcmp.ge.s32.totalorder %v1921, 1
        %vm2406 = vcmp.ge.s32.totalorder %v1922, 1
        %vm2407 = vcmp.ge.s32.totalorder %v1923, 1
        %vm2408 = vcmp.ge.s32.totalorder %v1924, 1
        %vm2409 = vcmp.ge.s32.totalorder %v1925, 1
        %vm2410 = vcmp.ge.s32.totalorder %v1926, 1
        %vm2411 = vcmp.ge.s32.totalorder %v1927, 1
        %vm2412 = vcmp.ge.s32.totalorder %v1928, 1
        %vm2413 = vcmp.ge.s32.totalorder %v1929, 1
        %vm2414 = vcmp.ge.s32.totalorder %v1930, 1
        %vm2415 = vcmp.ge.s32.totalorder %v1931, 1
        %vm2416 = vcmp.ge.s32.totalorder %v1932, 1
        %vm2417 = vcmp.ge.s32.totalorder %v1933, 1
        %vm2418 = vcmp.ge.s32.totalorder %v1934, 1
        %vm2419 = vcmp.ge.s32.totalorder %v1935, 1
        %vm2420 = vcmp.ge.s32.totalorder %v1936, 1
        %vm2421 = vcmp.ge.s32.totalorder %v1937, 1
        %vm2422 = vcmp.ge.s32.totalorder %v1938, 1
        %vm2423 = vcmp.ge.s32.totalorder %v1939, 1
        %vm2424 = vcmp.ge.s32.totalorder %v1940, 1
        %vm2425 = vcmp.ge.s32.totalorder %v1941, 1
        %vm2426 = vcmp.ge.s32.totalorder %v1942, 1
        %vm2427 = vcmp.ge.s32.totalorder %v1943, 1
        %vm2428 = vcmp.ge.s32.totalorder %v1944, 1
        %vm2429 = vmand %vm2187, %vm2308
        %vm2430 = vmand %vm2188, %vm2309
        %vm2431 = vmand %vm2189, %vm2310
        %vm2432 = vmand %vm2190, %vm2311
        %vm2433 = vmand %vm2191, %vm2312
        %vm2434 = vmand %vm2192, %vm2313
        %vm2435 = vmand %vm2193, %vm2314
        %vm2436 = vmand %vm2194, %vm2315
        %vm2437 = vmand %vm2195, %vm2316
        %vm2438 = vmand %vm2196, %vm2317
        %vm2439 = vmand %vm2197, %vm2318
        %vm2440 = vmand %vm2198, %vm2319
        %vm2441 = vmand %vm2199, %vm2320
        %vm2442 = vmand %vm2200, %vm2321
        %vm2443 = vmand %vm2201, %vm2322
        %vm2444 = vmand %vm2202, %vm2323
        %vm2445 = vmand %vm2203, %vm2324
        %vm2446 = vmand %vm2204, %vm2325
        %vm2447 = vmand %vm2205, %vm2326
        %vm2448 = vmand %vm2206, %vm2327
        %vm2449 = vmand %vm2207, %vm2328
        %vm2450 = vmand %vm2208, %vm2329
        %vm2451 = vmand %vm2209, %vm2330
        %vm2452 = vmand %vm2210, %vm2331
        %vm2453 = vmand %vm2211, %vm2332
        %vm2454 = vmand %vm2212, %vm2333
        %vm2455 = vmand %vm2213, %vm2334
        %vm2456 = vmand %vm2214, %vm2335
        %vm2457 = vmand %vm2215, %vm2336
        %vm2458 = vmand %vm2216, %vm2337
        %vm2459 = vmand %vm2217, %vm2338
        %vm2460 = vmand %vm2218, %vm2339
        %vm2461 = vmand %vm2219, %vm2340
        %vm2462 = vmand %vm2220, %vm2341
        %vm2463 = vmand %vm2221, %vm2342
        %vm2464 = vmand %vm2222, %vm2343
        %vm2465 = vmand %vm2223, %vm2344
        %vm2466 = vmand %vm2224, %vm2345
        %vm2467 = vmand %vm2225, %vm2346
        %vm2468 = vmand %vm2226, %vm2347
        %vm2469 = vmand %vm2227, %vm2348
        %vm2470 = vmand %vm2228, %vm2349
        %vm2471 = vmand %vm2229, %vm2350
        %vm2472 = vmand %vm2230, %vm2351
        %vm2473 = vmand %vm2231, %vm2352
        %vm2474 = vmand %vm2232, %vm2353
        %vm2475 = vmand %vm2233, %vm2354
        %vm2476 = vmand %vm2234, %vm2355
        %vm2477 = vmand %vm2235, %vm2356
        %vm2478 = vmand %vm2236, %vm2357
        %vm2479 = vmand %vm2237, %vm2358
        %vm2480 = vmand %vm2238, %vm2359
        %vm2481 = vmand %vm2239, %vm2360
        %vm2482 = vmand %vm2240, %vm2361
        %vm2483 = vmand %vm2241, %vm2362
        %vm2484 = vmand %vm2242, %vm2363
        %vm2485 = vmand %vm2243, %vm2364
        %vm2486 = vmand %vm2244, %vm2365
        %vm2487 = vmand %vm2245, %vm2366
        %vm2488 = vmand %vm2246, %vm2367
        %vm2489 = vmand %vm2247, %vm2368
        %vm2490 = vmand %vm2248, %vm2369
        %vm2491 = vmand %vm2249, %vm2370
        %vm2492 = vmand %vm2250, %vm2371
        %vm2493 = vmand %vm2251, %vm2372
        %vm2494 = vmand %vm2252, %vm2373
        %vm2495 = vmand %vm2253, %vm2374
        %vm2496 = vmand %vm2254, %vm2375
        %vm2497 = vmand %vm2255, %vm2376
        %vm2498 = vmand %vm2256, %vm2377
        %vm2499 = vmand %vm2257, %vm2378
        %vm2500 = vmand %vm2258, %vm2379
        %vm2501 = vmand %vm2259, %vm2380
        %vm2502 = vmand %vm2260, %vm2381
        %vm2503 = vmand %vm2261, %vm2382
        %vm2504 = vmand %vm2262, %vm2383
        %vm2505 = vmand %vm2263, %vm2384
        %vm2506 = vmand %vm2264, %vm2385
        %vm2507 = vmand %vm2265, %vm2386
        %vm2508 = vmand %vm2266, %vm2387
        %vm2509 = vmand %vm2267, %vm2388
        %vm2510 = vmand %vm2268, %vm2389
        %vm2511 = vmand %vm2269, %vm2390
        %vm2512 = vmand %vm2270, %vm2391
        %vm2513 = vmand %vm2271, %vm2392
        %vm2514 = vmand %vm2272, %vm2393
        %vm2515 = vmand %vm2273, %vm2394
        %vm2516 = vmand %vm2274, %vm2395
        %vm2517 = vmand %vm2275, %vm2396
        %vm2518 = vmand %vm2276, %vm2397
        %vm2519 = vmand %vm2277, %vm2398
        %vm2520 = vmand %vm2278, %vm2399
        %vm2521 = vmand %vm2279, %vm2400
        %vm2522 = vmand %vm2280, %vm2401
        %vm2523 = vmand %vm2281, %vm2402
        %vm2524 = vmand %vm2282, %vm2403
        %vm2525 = vmand %vm2283, %vm2404
        %vm2526 = vmand %vm2284, %vm2405
        %vm2527 = vmand %vm2285, %vm2406
        %vm2528 = vmand %vm2286, %vm2407
        %vm2529 = vmand %vm2287, %vm2408
        %vm2530 = vmand %vm2288, %vm2409
        %vm2531 = vmand %vm2289, %vm2410
        %vm2532 = vmand %vm2290, %vm2411
        %vm2533 = vmand %vm2291, %vm2412
        %vm2534 = vmand %vm2292, %vm2413
        %vm2535 = vmand %vm2293, %vm2414
        %vm2536 = vmand %vm2294, %vm2415
        %vm2537 = vmand %vm2295, %vm2416
        %vm2538 = vmand %vm2296, %vm2417
        %vm2539 = vmand %vm2297, %vm2418
        %vm2540 = vmand %vm2298, %vm2419
        %vm2541 = vmand %vm2299, %vm2420
        %vm2542 = vmand %vm2300, %vm2421
        %vm2543 = vmand %vm2301, %vm2422
        %vm2544 = vmand %vm2302, %vm2423
        %vm2545 = vmand %vm2303, %vm2424
        %vm2546 = vmand %vm2304, %vm2425
        %vm2547 = vmand %vm2305, %vm2426
        %vm2548 = vmand %vm2306, %vm2427
        %vm2549 = vmand %vm2307, %vm2428
        %vm2550 = vcmp.le.s32.totalorder %v1824, 28
        %vm2551 = vcmp.le.s32.totalorder %v1825, 28
        %vm2552 = vcmp.le.s32.totalorder %v1826, 28
        %vm2553 = vcmp.le.s32.totalorder %v1827, 28
        %vm2554 = vcmp.le.s32.totalorder %v1828, 28
        %vm2555 = vcmp.le.s32.totalorder %v1829, 28
        %vm2556 = vcmp.le.s32.totalorder %v1830, 28
        %vm2557 = vcmp.le.s32.totalorder %v1831, 28
        %vm2558 = vcmp.le.s32.totalorder %v1832, 28
        %vm2559 = vcmp.le.s32.totalorder %v1833, 28
        %vm2560 = vcmp.le.s32.totalorder %v1834, 28
        %vm2561 = vcmp.le.s32.totalorder %v1835, 28
        %vm2562 = vcmp.le.s32.totalorder %v1836, 28
        %vm2563 = vcmp.le.s32.totalorder %v1837, 28
        %vm2564 = vcmp.le.s32.totalorder %v1838, 28
        %vm2565 = vcmp.le.s32.totalorder %v1839, 28
        %vm2566 = vcmp.le.s32.totalorder %v1840, 28
        %vm2567 = vcmp.le.s32.totalorder %v1841, 28
        %vm2568 = vcmp.le.s32.totalorder %v1842, 28
        %vm2569 = vcmp.le.s32.totalorder %v1843, 28
        %vm2570 = vcmp.le.s32.totalorder %v1844, 28
        %vm2571 = vcmp.le.s32.totalorder %v1845, 28
        %vm2572 = vcmp.le.s32.totalorder %v1846, 28
        %vm2573 = vcmp.le.s32.totalorder %v1847, 28
        %vm2574 = vcmp.le.s32.totalorder %v1848, 28
        %vm2575 = vcmp.le.s32.totalorder %v1849, 28
        %vm2576 = vcmp.le.s32.totalorder %v1850, 28
        %vm2577 = vcmp.le.s32.totalorder %v1851, 28
        %vm2578 = vcmp.le.s32.totalorder %v1852, 28
        %vm2579 = vcmp.le.s32.totalorder %v1853, 28
        %vm2580 = vcmp.le.s32.totalorder %v1854, 28
        %vm2581 = vcmp.le.s32.totalorder %v1855, 28
        %vm2582 = vcmp.le.s32.totalorder %v1856, 28
        %vm2583 = vcmp.le.s32.totalorder %v1857, 28
        %vm2584 = vcmp.le.s32.totalorder %v1858, 28
        %vm2585 = vcmp.le.s32.totalorder %v1859, 28
        %vm2586 = vcmp.le.s32.totalorder %v1860, 28
        %vm2587 = vcmp.le.s32.totalorder %v1861, 28
        %vm2588 = vcmp.le.s32.totalorder %v1862, 28
        %vm2589 = vcmp.le.s32.totalorder %v1863, 28
        %vm2590 = vcmp.le.s32.totalorder %v1864, 28
        %vm2591 = vcmp.le.s32.totalorder %v1865, 28
        %vm2592 = vcmp.le.s32.totalorder %v1866, 28
        %vm2593 = vcmp.le.s32.totalorder %v1867, 28
        %vm2594 = vcmp.le.s32.totalorder %v1868, 28
        %vm2595 = vcmp.le.s32.totalorder %v1869, 28
        %vm2596 = vcmp.le.s32.totalorder %v1870, 28
        %vm2597 = vcmp.le.s32.totalorder %v1871, 28
        %vm2598 = vcmp.le.s32.totalorder %v1872, 28
        %vm2599 = vcmp.le.s32.totalorder %v1873, 28
        %vm2600 = vcmp.le.s32.totalorder %v1874, 28
        %vm2601 = vcmp.le.s32.totalorder %v1875, 28
        %vm2602 = vcmp.le.s32.totalorder %v1876, 28
        %vm2603 = vcmp.le.s32.totalorder %v1877, 28
        %vm2604 = vcmp.le.s32.totalorder %v1878, 28
        %vm2605 = vcmp.le.s32.totalorder %v1879, 28
        %vm2606 = vcmp.le.s32.totalorder %v1880, 28
        %vm2607 = vcmp.le.s32.totalorder %v1881, 28
        %vm2608 = vcmp.le.s32.totalorder %v1882, 28
        %vm2609 = vcmp.le.s32.totalorder %v1883, 28
        %vm2610 = vcmp.le.s32.totalorder %v1884, 28
        %vm2611 = vcmp.le.s32.totalorder %v1885, 28
        %vm2612 = vcmp.le.s32.totalorder %v1886, 28
        %vm2613 = vcmp.le.s32.totalorder %v1887, 28
        %vm2614 = vcmp.le.s32.totalorder %v1888, 28
        %vm2615 = vcmp.le.s32.totalorder %v1889, 28
        %vm2616 = vcmp.le.s32.totalorder %v1890, 28
        %vm2617 = vcmp.le.s32.totalorder %v1891, 28
        %vm2618 = vcmp.le.s32.totalorder %v1892, 28
        %vm2619 = vcmp.le.s32.totalorder %v1893, 28
        %vm2620 = vcmp.le.s32.totalorder %v1894, 28
        %vm2621 = vcmp.le.s32.totalorder %v1895, 28
        %vm2622 = vcmp.le.s32.totalorder %v1896, 28
        %vm2623 = vcmp.le.s32.totalorder %v1897, 28
        %vm2624 = vcmp.le.s32.totalorder %v1898, 28
        %vm2625 = vcmp.le.s32.totalorder %v1899, 28
        %vm2626 = vcmp.le.s32.totalorder %v1900, 28
        %vm2627 = vcmp.le.s32.totalorder %v1901, 28
        %vm2628 = vcmp.le.s32.totalorder %v1902, 28
        %vm2629 = vcmp.le.s32.totalorder %v1903, 28
        %vm2630 = vcmp.le.s32.totalorder %v1904, 28
        %vm2631 = vcmp.le.s32.totalorder %v1905, 28
        %vm2632 = vcmp.le.s32.totalorder %v1906, 28
        %vm2633 = vcmp.le.s32.totalorder %v1907, 28
        %vm2634 = vcmp.le.s32.totalorder %v1908, 28
        %vm2635 = vcmp.le.s32.totalorder %v1909, 28
        %vm2636 = vcmp.le.s32.totalorder %v1910, 28
        %vm2637 = vcmp.le.s32.totalorder %v1911, 28
        %vm2638 = vcmp.le.s32.totalorder %v1912, 28
        %vm2639 = vcmp.le.s32.totalorder %v1913, 28
        %vm2640 = vcmp.le.s32.totalorder %v1914, 28
        %vm2641 = vcmp.le.s32.totalorder %v1915, 28
        %vm2642 = vcmp.le.s32.totalorder %v1916, 28
        %vm2643 = vcmp.le.s32.totalorder %v1917, 28
        %vm2644 = vcmp.le.s32.totalorder %v1918, 28
        %vm2645 = vcmp.le.s32.totalorder %v1919, 28
        %vm2646 = vcmp.le.s32.totalorder %v1920, 28
        %vm2647 = vcmp.le.s32.totalorder %v1921, 28
        %vm2648 = vcmp.le.s32.totalorder %v1922, 28
        %vm2649 = vcmp.le.s32.totalorder %v1923, 28
        %vm2650 = vcmp.le.s32.totalorder %v1924, 28
        %vm2651 = vcmp.le.s32.totalorder %v1925, 28
        %vm2652 = vcmp.le.s32.totalorder %v1926, 28
        %vm2653 = vcmp.le.s32.totalorder %v1927, 28
        %vm2654 = vcmp.le.s32.totalorder %v1928, 28
        %vm2655 = vcmp.le.s32.totalorder %v1929, 28
        %vm2656 = vcmp.le.s32.totalorder %v1930, 28
        %vm2657 = vcmp.le.s32.totalorder %v1931, 28
        %vm2658 = vcmp.le.s32.totalorder %v1932, 28
        %vm2659 = vcmp.le.s32.totalorder %v1933, 28
        %vm2660 = vcmp.le.s32.totalorder %v1934, 28
        %vm2661 = vcmp.le.s32.totalorder %v1935, 28
        %vm2662 = vcmp.le.s32.totalorder %v1936, 28
        %vm2663 = vcmp.le.s32.totalorder %v1937, 28
        %vm2664 = vcmp.le.s32.totalorder %v1938, 28
        %vm2665 = vcmp.le.s32.totalorder %v1939, 28
        %vm2666 = vcmp.le.s32.totalorder %v1940, 28
        %vm2667 = vcmp.le.s32.totalorder %v1941, 28
        %vm2668 = vcmp.le.s32.totalorder %v1942, 28
        %vm2669 = vcmp.le.s32.totalorder %v1943, 28
        %vm2670 = vcmp.le.s32.totalorder %v1944, 28
        %vm2671 = vmand %vm2429, %vm2550
        %vm2672 = vmand %vm2430, %vm2551
        %vm2673 = vmand %vm2431, %vm2552
        %vm2674 = vmand %vm2432, %vm2553
        %vm2675 = vmand %vm2433, %vm2554
        %vm2676 = vmand %vm2434, %vm2555
        %vm2677 = vmand %vm2435, %vm2556
        %vm2678 = vmand %vm2436, %vm2557
        %vm2679 = vmand %vm2437, %vm2558
        %vm2680 = vmand %vm2438, %vm2559
        %vm2681 = vmand %vm2439, %vm2560
        %vm2682 = vmand %vm2440, %vm2561
        %vm2683 = vmand %vm2441, %vm2562
        %vm2684 = vmand %vm2442, %vm2563
        %vm2685 = vmand %vm2443, %vm2564
        %vm2686 = vmand %vm2444, %vm2565
        %vm2687 = vmand %vm2445, %vm2566
        %vm2688 = vmand %vm2446, %vm2567
        %vm2689 = vmand %vm2447, %vm2568
        %vm2690 = vmand %vm2448, %vm2569
        %vm2691 = vmand %vm2449, %vm2570
        %vm2692 = vmand %vm2450, %vm2571
        %vm2693 = vmand %vm2451, %vm2572
        %vm2694 = vmand %vm2452, %vm2573
        %vm2695 = vmand %vm2453, %vm2574
        %vm2696 = vmand %vm2454, %vm2575
        %vm2697 = vmand %vm2455, %vm2576
        %vm2698 = vmand %vm2456, %vm2577
        %vm2699 = vmand %vm2457, %vm2578
        %vm2700 = vmand %vm2458, %vm2579
        %vm2701 = vmand %vm2459, %vm2580
        %vm2702 = vmand %vm2460, %vm2581
        %vm2703 = vmand %vm2461, %vm2582
        %vm2704 = vmand %vm2462, %vm2583
        %vm2705 = vmand %vm2463, %vm2584
        %vm2706 = vmand %vm2464, %vm2585
        %vm2707 = vmand %vm2465, %vm2586
        %vm2708 = vmand %vm2466, %vm2587
        %vm2709 = vmand %vm2467, %vm2588
        %vm2710 = vmand %vm2468, %vm2589
        %vm2711 = vmand %vm2469, %vm2590
        %vm2712 = vmand %vm2470, %vm2591
        %vm2713 = vmand %vm2471, %vm2592
        %vm2714 = vmand %vm2472, %vm2593
        %vm2715 = vmand %vm2473, %vm2594
        %vm2716 = vmand %vm2474, %vm2595
        %vm2717 = vmand %vm2475, %vm2596
        %vm2718 = vmand %vm2476, %vm2597
        %vm2719 = vmand %vm2477, %vm2598
        %vm2720 = vmand %vm2478, %vm2599
        %vm2721 = vmand %vm2479, %vm2600
        %vm2722 = vmand %vm2480, %vm2601
        %vm2723 = vmand %vm2481, %vm2602
        %vm2724 = vmand %vm2482, %vm2603
        %vm2725 = vmand %vm2483, %vm2604
        %vm2726 = vmand %vm2484, %vm2605
        %vm2727 = vmand %vm2485, %vm2606
        %vm2728 = vmand %vm2486, %vm2607
        %vm2729 = vmand %vm2487, %vm2608
        %vm2730 = vmand %vm2488, %vm2609
        %vm2731 = vmand %vm2489, %vm2610
        %vm2732 = vmand %vm2490, %vm2611
        %vm2733 = vmand %vm2491, %vm2612
        %vm2734 = vmand %vm2492, %vm2613
        %vm2735 = vmand %vm2493, %vm2614
        %vm2736 = vmand %vm2494, %vm2615
        %vm2737 = vmand %vm2495, %vm2616
        %vm2738 = vmand %vm2496, %vm2617
        %vm2739 = vmand %vm2497, %vm2618
        %vm2740 = vmand %vm2498, %vm2619
        %vm2741 = vmand %vm2499, %vm2620
        %vm2742 = vmand %vm2500, %vm2621
        %vm2743 = vmand %vm2501, %vm2622
        %vm2744 = vmand %vm2502, %vm2623
        %vm2745 = vmand %vm2503, %vm2624
        %vm2746 = vmand %vm2504, %vm2625
        %vm2747 = vmand %vm2505, %vm2626
        %vm2748 = vmand %vm2506, %vm2627
        %vm2749 = vmand %vm2507, %vm2628
        %vm2750 = vmand %vm2508, %vm2629
        %vm2751 = vmand %vm2509, %vm2630
        %vm2752 = vmand %vm2510, %vm2631
        %vm2753 = vmand %vm2511, %vm2632
        %vm2754 = vmand %vm2512, %vm2633
        %vm2755 = vmand %vm2513, %vm2634
        %vm2756 = vmand %vm2514, %vm2635
        %vm2757 = vmand %vm2515, %vm2636
        %vm2758 = vmand %vm2516, %vm2637
        %vm2759 = vmand %vm2517, %vm2638
        %vm2760 = vmand %vm2518, %vm2639
        %vm2761 = vmand %vm2519, %vm2640
        %vm2762 = vmand %vm2520, %vm2641
        %vm2763 = vmand %vm2521, %vm2642
        %vm2764 = vmand %vm2522, %vm2643
        %vm2765 = vmand %vm2523, %vm2644
        %vm2766 = vmand %vm2524, %vm2645
        %vm2767 = vmand %vm2525, %vm2646
        %vm2768 = vmand %vm2526, %vm2647
        %vm2769 = vmand %vm2527, %vm2648
        %vm2770 = vmand %vm2528, %vm2649
        %vm2771 = vmand %vm2529, %vm2650
        %vm2772 = vmand %vm2530, %vm2651
        %vm2773 = vmand %vm2531, %vm2652
        %vm2774 = vmand %vm2532, %vm2653
        %vm2775 = vmand %vm2533, %vm2654
        %vm2776 = vmand %vm2534, %vm2655
        %vm2777 = vmand %vm2535, %vm2656
        %vm2778 = vmand %vm2536, %vm2657
        %vm2779 = vmand %vm2537, %vm2658
        %vm2780 = vmand %vm2538, %vm2659
        %vm2781 = vmand %vm2539, %vm2660
        %vm2782 = vmand %vm2540, %vm2661
        %vm2783 = vmand %vm2541, %vm2662
        %vm2784 = vmand %vm2542, %vm2663
        %vm2785 = vmand %vm2543, %vm2664
        %vm2786 = vmand %vm2544, %vm2665
        %vm2787 = vmand %vm2545, %vm2666
        %vm2788 = vmand %vm2546, %vm2667
        %vm2789 = vmand %vm2547, %vm2668
        %vm2790 = vmand %vm2548, %vm2669
        %vm2791 = vmand %vm2549, %vm2670
        %v2792 = vsel %vm2671, %v1460, 0.0
        %v2793 = vsel %vm2672, %v1461, 0.0
        %v2794 = vsel %vm2673, %v1462, 0.0
        %v2795 = vsel %vm2674, %v1463, 0.0
        %v2796 = vsel %vm2675, %v1464, 0.0
        %v2797 = vsel %vm2676, %v1465, 0.0
        %v2798 = vsel %vm2677, %v1466, 0.0
        %v2799 = vsel %vm2678, %v1467, 0.0
        %v2800 = vsel %vm2679, %v1468, 0.0
        %v2801 = vsel %vm2680, %v1469, 0.0
        %v2802 = vsel %vm2681, %v1470, 0.0
        %v2803 = vsel %vm2682, %v1471, 0.0
        %v2804 = vsel %vm2683, %v1472, 0.0
        %v2805 = vsel %vm2684, %v1473, 0.0
        %v2806 = vsel %vm2685, %v1474, 0.0
        %v2807 = vsel %vm2686, %v1475, 0.0
        %v2808 = vsel %vm2687, %v1476, 0.0
        %v2809 = vsel %vm2688, %v1477, 0.0
        %v2810 = vsel %vm2689, %v1478, 0.0
        %v2811 = vsel %vm2690, %v1479, 0.0
        %v2812 = vsel %vm2691, %v1480, 0.0
        %v2813 = vsel %vm2692, %v1481, 0.0
        %v2814 = vsel %vm2693, %v1482, 0.0
        %v2815 = vsel %vm2694, %v1483, 0.0
        %v2816 = vsel %vm2695, %v1484, 0.0
        %v2817 = vsel %vm2696, %v1485, 0.0
        %v2818 = vsel %vm2697, %v1486, 0.0
        %v2819 = vsel %vm2698, %v1487, 0.0
        %v2820 = vsel %vm2699, %v1488, 0.0
        %v2821 = vsel %vm2700, %v1489, 0.0
        %v2822 = vsel %vm2701, %v1490, 0.0
        %v2823 = vsel %vm2702, %v1491, 0.0
        %v2824 = vsel %vm2703, %v1492, 0.0
        %v2825 = vsel %vm2704, %v1493, 0.0
        %v2826 = vsel %vm2705, %v1494, 0.0
        %v2827 = vsel %vm2706, %v1495, 0.0
        %v2828 = vsel %vm2707, %v1496, 0.0
        %v2829 = vsel %vm2708, %v1497, 0.0
        %v2830 = vsel %vm2709, %v1498, 0.0
        %v2831 = vsel %vm2710, %v1499, 0.0
        %v2832 = vsel %vm2711, %v1500, 0.0
        %v2833 = vsel %vm2712, %v1501, 0.0
        %v2834 = vsel %vm2713, %v1502, 0.0
        %v2835 = vsel %vm2714, %v1503, 0.0
        %v2836 = vsel %vm2715, %v1504, 0.0
        %v2837 = vsel %vm2716, %v1505, 0.0
        %v2838 = vsel %vm2717, %v1506, 0.0
        %v2839 = vsel %vm2718, %v1507, 0.0
        %v2840 = vsel %vm2719, %v1508, 0.0
        %v2841 = vsel %vm2720, %v1509, 0.0
        %v2842 = vsel %vm2721, %v1510, 0.0
        %v2843 = vsel %vm2722, %v1511, 0.0
        %v2844 = vsel %vm2723, %v1512, 0.0
        %v2845 = vsel %vm2724, %v1513, 0.0
        %v2846 = vsel %vm2725, %v1514, 0.0
        %v2847 = vsel %vm2726, %v1515, 0.0
        %v2848 = vsel %vm2727, %v1516, 0.0
        %v2849 = vsel %vm2728, %v1517, 0.0
        %v2850 = vsel %vm2729, %v1518, 0.0
        %v2851 = vsel %vm2730, %v1519, 0.0
        %v2852 = vsel %vm2731, %v1520, 0.0
        %v2853 = vsel %vm2732, %v1521, 0.0
        %v2854 = vsel %vm2733, %v1522, 0.0
        %v2855 = vsel %vm2734, %v1523, 0.0
        %v2856 = vsel %vm2735, %v1524, 0.0
        %v2857 = vsel %vm2736, %v1525, 0.0
        %v2858 = vsel %vm2737, %v1526, 0.0
        %v2859 = vsel %vm2738, %v1527, 0.0
        %v2860 = vsel %vm2739, %v1528, 0.0
        %v2861 = vsel %vm2740, %v1529, 0.0
        %v2862 = vsel %vm2741, %v1530, 0.0
        %v2863 = vsel %vm2742, %v1531, 0.0
        %v2864 = vsel %vm2743, %v1532, 0.0
        %v2865 = vsel %vm2744, %v1533, 0.0
        %v2866 = vsel %vm2745, %v1534, 0.0
        %v2867 = vsel %vm2746, %v1535, 0.0
        %v2868 = vsel %vm2747, %v1536, 0.0
        %v2869 = vsel %vm2748, %v1537, 0.0
        %v2870 = vsel %vm2749, %v1538, 0.0
        %v2871 = vsel %vm2750, %v1539, 0.0
        %v2872 = vsel %vm2751, %v1540, 0.0
        %v2873 = vsel %vm2752, %v1541, 0.0
        %v2874 = vsel %vm2753, %v1542, 0.0
        %v2875 = vsel %vm2754, %v1543, 0.0
        %v2876 = vsel %vm2755, %v1544, 0.0
        %v2877 = vsel %vm2756, %v1545, 0.0
        %v2878 = vsel %vm2757, %v1546, 0.0
        %v2879 = vsel %vm2758, %v1547, 0.0
        %v2880 = vsel %vm2759, %v1548, 0.0
        %v2881 = vsel %vm2760, %v1549, 0.0
        %v2882 = vsel %vm2761, %v1550, 0.0
        %v2883 = vsel %vm2762, %v1551, 0.0
        %v2884 = vsel %vm2763, %v1552, 0.0
        %v2885 = vsel %vm2764, %v1553, 0.0
        %v2886 = vsel %vm2765, %v1554, 0.0
        %v2887 = vsel %vm2766, %v1555, 0.0
        %v2888 = vsel %vm2767, %v1556, 0.0
        %v2889 = vsel %vm2768, %v1557, 0.0
        %v2890 = vsel %vm2769, %v1558, 0.0
        %v2891 = vsel %vm2770, %v1559, 0.0
        %v2892 = vsel %vm2771, %v1560, 0.0
        %v2893 = vsel %vm2772, %v1561, 0.0
        %v2894 = vsel %vm2773, %v1562, 0.0
        %v2895 = vsel %vm2774, %v1563, 0.0
        %v2896 = vsel %vm2775, %v1564, 0.0
        %v2897 = vsel %vm2776, %v1565, 0.0
        %v2898 = vsel %vm2777, %v1566, 0.0
        %v2899 = vsel %vm2778, %v1567, 0.0
        %v2900 = vsel %vm2779, %v1568, 0.0
        %v2901 = vsel %vm2780, %v1569, 0.0
        %v2902 = vsel %vm2781, %v1570, 0.0
        %v2903 = vsel %vm2782, %v1571, 0.0
        %v2904 = vsel %vm2783, %v1572, 0.0
        %v2905 = vsel %vm2784, %v1573, 0.0
        %v2906 = vsel %vm2785, %v1574, 0.0
        %v2907 = vsel %vm2786, %v1575, 0.0
        %v2908 = vsel %vm2787, %v1576, 0.0
        %v2909 = vsel %vm2788, %v1577, 0.0
        %v2910 = vsel %vm2789, %v1578, 0.0
        %v2911 = vsel %vm2790, %v1579, 0.0
        %v2912 = vsel %vm2791, %v1580, 0.0
        %vm2913 = vcmask 261120
        %2914 = vst.msk [vmem:[#allocation2] sm:$0xff] %vm2913, %v2792
        %2915 = vst.msk [vmem:[#allocation2 + $0x8] sm:$0xff] %vm2913, %v2793
        %2916 = vst.msk [vmem:[#allocation2 + $0x10] sm:$0xff] %vm2913, %v2794
        %2917 = vst.msk [vmem:[#allocation2 + $0x18] sm:$0xff] %vm2913, %v2795
        %2918 = vst.msk [vmem:[#allocation2 + $0x20] sm:$0xff] %vm2913, %v2796
        %2919 = vst.msk [vmem:[#allocation2 + $0x28] sm:$0xff] %vm2913, %v2797
        %2920 = vst.msk [vmem:[#allocation2 + $0x30] sm:$0xff] %vm2913, %v2798
        %2921 = vst.msk [vmem:[#allocation2 + $0x38] sm:$0xff] %vm2913, %v2799
        %2922 = vst.msk [vmem:[#allocation2 + $0x40] sm:$0xff] %vm2913, %v2800
        %2923 = vst.msk [vmem:[#allocation2 + $0x48] sm:$0xff] %vm2913, %v2801
        %2924 = vst.msk [vmem:[#allocation2 + $0x50] sm:$0xff] %vm2913, %v2802
        %2925 = vst.msk [vmem:[#allocation2 + $0x58] sm:$0xff] %vm2913, %v2803
        %2926 = vst.msk [vmem:[#allocation2 + $0x60] sm:$0xff] %vm2913, %v2804
        %2927 = vst.msk [vmem:[#allocation2 + $0x68] sm:$0xff] %vm2913, %v2805
        %2928 = vst.msk [vmem:[#allocation2 + $0x70] sm:$0xff] %vm2913, %v2806
        %2929 = vst.msk [vmem:[#allocation2 + $0x78] sm:$0xff] %vm2913, %v2807
        %2930 = vst.msk [vmem:[#allocation2 + $0x80] sm:$0xff] %vm2913, %v2808
        %2931 = vst.msk [vmem:[#allocation2 + $0x88] sm:$0xff] %vm2913, %v2809
        %2932 = vst.msk [vmem:[#allocation2 + $0x90] sm:$0xff] %vm2913, %v2810
        %2933 = vst.msk [vmem:[#allocation2 + $0x98] sm:$0xff] %vm2913, %v2811
        %2934 = vst.msk [vmem:[#allocation2 + $0xa0] sm:$0xff] %vm2913, %v2812
        %2935 = vst.msk [vmem:[#allocation2 + $0xa8] sm:$0xff] %vm2913, %v2813
        %2936 = vst.msk [vmem:[#allocation2 + $0xb0] sm:$0xff] %vm2913, %v2814
        %2937 = vst.msk [vmem:[#allocation2 + $0xb8] sm:$0xff] %vm2913, %v2815
        %2938 = vst.msk [vmem:[#allocation2 + $0xc0] sm:$0xff] %vm2913, %v2816
        %2939 = vst.msk [vmem:[#allocation2 + $0xc8] sm:$0xff] %vm2913, %v2817
        %2940 = vst.msk [vmem:[#allocation2 + $0xd0] sm:$0xff] %vm2913, %v2818
        %2941 = vst.msk [vmem:[#allocation2 + $0xd8] sm:$0xff] %vm2913, %v2819
        %2942 = vst.msk [vmem:[#allocation2 + $0xe0] sm:$0xff] %vm2913, %v2820
        %2943 = vst.msk [vmem:[#allocation2 + $0xe8] sm:$0xff] %vm2913, %v2821
        %2944 = vst.msk [vmem:[#allocation2 + $0xf0] sm:$0xff] %vm2913, %v2822
        %2945 = vst.msk [vmem:[#allocation2 + $0xf8] sm:$0xff] %vm2913, %v2823
        %2946 = vst.msk [vmem:[#allocation2 + $0x100] sm:$0xff] %vm2913, %v2824
        %2947 = vst.msk [vmem:[#allocation2 + $0x108] sm:$0xff] %vm2913, %v2825
        %2948 = vst.msk [vmem:[#allocation2 + $0x110] sm:$0xff] %vm2913, %v2826
        %2949 = vst.msk [vmem:[#allocation2 + $0x118] sm:$0xff] %vm2913, %v2827
        %2950 = vst.msk [vmem:[#allocation2 + $0x120] sm:$0xff] %vm2913, %v2828
        %2951 = vst.msk [vmem:[#allocation2 + $0x128] sm:$0xff] %vm2913, %v2829
        %2952 = vst.msk [vmem:[#allocation2 + $0x130] sm:$0xff] %vm2913, %v2830
        %2953 = vst.msk [vmem:[#allocation2 + $0x138] sm:$0xff] %vm2913, %v2831
        %2954 = vst.msk [vmem:[#allocation2 + $0x140] sm:$0xff] %vm2913, %v2832
        %2955 = vst.msk [vmem:[#allocation2 + $0x148] sm:$0xff] %vm2913, %v2833
        %2956 = vst.msk [vmem:[#allocation2 + $0x150] sm:$0xff] %vm2913, %v2834
        %2957 = vst.msk [vmem:[#allocation2 + $0x158] sm:$0xff] %vm2913, %v2835
        %2958 = vst.msk [vmem:[#allocation2 + $0x160] sm:$0xff] %vm2913, %v2836
        %2959 = vst.msk [vmem:[#allocation2 + $0x168] sm:$0xff] %vm2913, %v2837
        %2960 = vst.msk [vmem:[#allocation2 + $0x170] sm:$0xff] %vm2913, %v2838
        %2961 = vst.msk [vmem:[#allocation2 + $0x178] sm:$0xff] %vm2913, %v2839
        %2962 = vst.msk [vmem:[#allocation2 + $0x180] sm:$0xff] %vm2913, %v2840
        %2963 = vst.msk [vmem:[#allocation2 + $0x188] sm:$0xff] %vm2913, %v2841
        %2964 = vst.msk [vmem:[#allocation2 + $0x190] sm:$0xff] %vm2913, %v2842
        %2965 = vst.msk [vmem:[#allocation2 + $0x198] sm:$0xff] %vm2913, %v2843
        %2966 = vst.msk [vmem:[#allocation2 + $0x1a0] sm:$0xff] %vm2913, %v2844
        %2967 = vst.msk [vmem:[#allocation2 + $0x1a8] sm:$0xff] %vm2913, %v2845
        %2968 = vst.msk [vmem:[#allocation2 + $0x1b0] sm:$0xff] %vm2913, %v2846
        %2969 = vst.msk [vmem:[#allocation2 + $0x1b8] sm:$0xff] %vm2913, %v2847
        %2970 = vst.msk [vmem:[#allocation2 + $0x1c0] sm:$0xff] %vm2913, %v2848
        %2971 = vst.msk [vmem:[#allocation2 + $0x1c8] sm:$0xff] %vm2913, %v2849
        %2972 = vst.msk [vmem:[#allocation2 + $0x1d0] sm:$0xff] %vm2913, %v2850
        %2973 = vst.msk [vmem:[#allocation2 + $0x1d8] sm:$0xff] %vm2913, %v2851
        %2974 = vst.msk [vmem:[#allocation2 + $0x1e0] sm:$0xff] %vm2913, %v2852
        %2975 = vst.msk [vmem:[#allocation2 + $0x1e8] sm:$0xff] %vm2913, %v2853
        %2976 = vst.msk [vmem:[#allocation2 + $0x1f0] sm:$0xff] %vm2913, %v2854
        %2977 = vst.msk [vmem:[#allocation2 + $0x1f8] sm:$0xff] %vm2913, %v2855
        %2978 = vst.msk [vmem:[#allocation2 + $0x200] sm:$0xff] %vm2913, %v2856
        %2979 = vst.msk [vmem:[#allocation2 + $0x208] sm:$0xff] %vm2913, %v2857
        %2980 = vst.msk [vmem:[#allocation2 + $0x210] sm:$0xff] %vm2913, %v2858
        %2981 = vst.msk [vmem:[#allocation2 + $0x218] sm:$0xff] %vm2913, %v2859
        %2982 = vst.msk [vmem:[#allocation2 + $0x220] sm:$0xff] %vm2913, %v2860
        %2983 = vst.msk [vmem:[#allocation2 + $0x228] sm:$0xff] %vm2913, %v2861
        %2984 = vst.msk [vmem:[#allocation2 + $0x230] sm:$0xff] %vm2913, %v2862
        %2985 = vst.msk [vmem:[#allocation2 + $0x238] sm:$0xff] %vm2913, %v2863
        %2986 = vst.msk [vmem:[#allocation2 + $0x240] sm:$0xff] %vm2913, %v2864
        %2987 = vst.msk [vmem:[#allocation2 + $0x248] sm:$0xff] %vm2913, %v2865
        %2988 = vst.msk [vmem:[#allocation2 + $0x250] sm:$0xff] %vm2913, %v2866
        %2989 = vst.msk [vmem:[#allocation2 + $0x258] sm:$0xff] %vm2913, %v2867
        %2990 = vst.msk [vmem:[#allocation2 + $0x260] sm:$0xff] %vm2913, %v2868
        %2991 = vst.msk [vmem:[#allocation2 + $0x268] sm:$0xff] %vm2913, %v2869
        %2992 = vst.msk [vmem:[#allocation2 + $0x270] sm:$0xff] %vm2913, %v2870
        %2993 = vst.msk [vmem:[#allocation2 + $0x278] sm:$0xff] %vm2913, %v2871
        %2994 = vst.msk [vmem:[#allocation2 + $0x280] sm:$0xff] %vm2913, %v2872
        %2995 = vst.msk [vmem:[#allocation2 + $0x288] sm:$0xff] %vm2913, %v2873
        %2996 = vst.msk [vmem:[#allocation2 + $0x290] sm:$0xff] %vm2913, %v2874
        %2997 = vst.msk [vmem:[#allocation2 + $0x298] sm:$0xff] %vm2913, %v2875
        %2998 = vst.msk [vmem:[#allocation2 + $0x2a0] sm:$0xff] %vm2913, %v2876
        %2999 = vst.msk [vmem:[#allocation2 + $0x2a8] sm:$0xff] %vm2913, %v2877
        %3000 = vst.msk [vmem:[#allocation2 + $0x2b0] sm:$0xff] %vm2913, %v2878
        %3001 = vst.msk [vmem:[#allocation2 + $0x2b8] sm:$0xff] %vm2913, %v2879
        %3002 = vst.msk [vmem:[#allocation2 + $0x2c0] sm:$0xff] %vm2913, %v2880
        %3003 = vst.msk [vmem:[#allocation2 + $0x2c8] sm:$0xff] %vm2913, %v2881
        %3004 = vst.msk [vmem:[#allocation2 + $0x2d0] sm:$0xff] %vm2913, %v2882
        %3005 = vst.msk [vmem:[#allocation2 + $0x2d8] sm:$0xff] %vm2913, %v2883
        %3006 = vst.msk [vmem:[#allocation2 + $0x2e0] sm:$0xff] %vm2913, %v2884
        %3007 = vst.msk [vmem:[#allocation2 + $0x2e8] sm:$0xff] %vm2913, %v2885
        %3008 = vst.msk [vmem:[#allocation2 + $0x2f0] sm:$0xff] %vm2913, %v2886
        %3009 = vst.msk [vmem:[#allocation2 + $0x2f8] sm:$0xff] %vm2913, %v2887
        %3010 = vst.msk [vmem:[#allocation2 + $0x300] sm:$0xff] %vm2913, %v2888
        %3011 = vst.msk [vmem:[#allocation2 + $0x308] sm:$0xff] %vm2913, %v2889
        %3012 = vst.msk [vmem:[#allocation2 + $0x310] sm:$0xff] %vm2913, %v2890
        %3013 = vst.msk [vmem:[#allocation2 + $0x318] sm:$0xff] %vm2913, %v2891
        %3014 = vst.msk [vmem:[#allocation2 + $0x320] sm:$0xff] %vm2913, %v2892
        %3015 = vst.msk [vmem:[#allocation2 + $0x328] sm:$0xff] %vm2913, %v2893
        %3016 = vst.msk [vmem:[#allocation2 + $0x330] sm:$0xff] %vm2913, %v2894
        %3017 = vst.msk [vmem:[#allocation2 + $0x338] sm:$0xff] %vm2913, %v2895
        %3018 = vst.msk [vmem:[#allocation2 + $0x340] sm:$0xff] %vm2913, %v2896
        %3019 = vst.msk [vmem:[#allocation2 + $0x348] sm:$0xff] %vm2913, %v2897
        %3020 = vst.msk [vmem:[#allocation2 + $0x350] sm:$0xff] %vm2913, %v2898
        %3021 = vst.msk [vmem:[#allocation2 + $0x358] sm:$0xff] %vm2913, %v2899
        %3022 = vst.msk [vmem:[#allocation2 + $0x360] sm:$0xff] %vm2913, %v2900
        %3023 = vst.msk [vmem:[#allocation2 + $0x368] sm:$0xff] %vm2913, %v2901
        %3024 = vst.msk [vmem:[#allocation2 + $0x370] sm:$0xff] %vm2913, %v2902
        %3025 = vst.msk [vmem:[#allocation2 + $0x378] sm:$0xff] %vm2913, %v2903
        %3026 = vst.msk [vmem:[#allocation2 + $0x380] sm:$0xff] %vm2913, %v2904
        %3027 = vst.msk [vmem:[#allocation2 + $0x388] sm:$0xff] %vm2913, %v2905
        %3028 = vst.msk [vmem:[#allocation2 + $0x390] sm:$0xff] %vm2913, %v2906
        %3029 = vst.msk [vmem:[#allocation2 + $0x398] sm:$0xff] %vm2913, %v2907
        %3030 = vst.msk [vmem:[#allocation2 + $0x3a0] sm:$0xff] %vm2913, %v2908
        %3031 = vst.msk [vmem:[#allocation2 + $0x3a8] sm:$0xff] %vm2913, %v2909
        %3032 = vst.msk [vmem:[#allocation2 + $0x3b0] sm:$0xff] %vm2913, %v2910
        %3033 = vst.msk [vmem:[#allocation2 + $0x3b8] sm:$0xff] %vm2913, %v2911
        %3034 = vst.msk [vmem:[#allocation2 + $0x3c0] sm:$0xff] %vm2913, %v2912
        %v3035 = vld [vmem:[#allocation2] sm:$0xff]
        %v3036 = vld [vmem:[#allocation2 + $0x8] sm:$0xff]
        %v3037 = vld [vmem:[#allocation2 + $0x10] sm:$0xff]
        %v3038 = vld [vmem:[#allocation2 + $0x18] sm:$0xff]
        %v3039 = vld [vmem:[#allocation2 + $0x20] sm:$0xff]
        %v3040 = vld [vmem:[#allocation2 + $0x28] sm:$0xff]
        %v3041 = vld [vmem:[#allocation2 + $0x30] sm:$0xff]
        %v3042 = vld [vmem:[#allocation2 + $0x38] sm:$0xff]
        %v3043 = vld [vmem:[#allocation2 + $0x40] sm:$0xff]
        %v3044 = vld [vmem:[#allocation2 + $0x48] sm:$0xff]
        %v3045 = vld [vmem:[#allocation2 + $0x50] sm:$0xff]
        %v3046 = vld [vmem:[#allocation2 + $0x58] sm:$0xff]
        %v3047 = vld [vmem:[#allocation2 + $0x60] sm:$0xff]
        %v3048 = vld [vmem:[#allocation2 + $0x68] sm:$0xff]
        %v3049 = vld [vmem:[#allocation2 + $0x70] sm:$0xff]
        %v3050 = vld [vmem:[#allocation2 + $0x78] sm:$0xff]
        %v3051 = vld [vmem:[#allocation2 + $0x80] sm:$0xff]
        %v3052 = vld [vmem:[#allocation2 + $0x88] sm:$0xff]
        %v3053 = vld [vmem:[#allocation2 + $0x90] sm:$0xff]
        %v3054 = vld [vmem:[#allocation2 + $0x98] sm:$0xff]
        %v3055 = vld [vmem:[#allocation2 + $0xa0] sm:$0xff]
        %v3056 = vld [vmem:[#allocation2 + $0xa8] sm:$0xff]
        %v3057 = vld [vmem:[#allocation2 + $0xb0] sm:$0xff]
        %v3058 = vld [vmem:[#allocation2 + $0xb8] sm:$0xff]
        %v3059 = vld [vmem:[#allocation2 + $0xc0] sm:$0xff]
        %v3060 = vld [vmem:[#allocation2 + $0xc8] sm:$0xff]
        %v3061 = vld [vmem:[#allocation2 + $0xd0] sm:$0xff]
        %v3062 = vld [vmem:[#allocation2 + $0xd8] sm:$0xff]
        %v3063 = vld [vmem:[#allocation2 + $0xe0] sm:$0xff]
        %v3064 = vld [vmem:[#allocation2 + $0xe8] sm:$0xff]
        %v3065 = vld [vmem:[#allocation2 + $0xf0] sm:$0xff]
        %v3066 = vld [vmem:[#allocation2 + $0xf8] sm:$0xff]
        %v3067 = vld [vmem:[#allocation2 + $0x100] sm:$0xff]
        %v3068 = vld [vmem:[#allocation2 + $0x108] sm:$0xff]
        %v3069 = vld [vmem:[#allocation2 + $0x110] sm:$0xff]
        %v3070 = vld [vmem:[#allocation2 + $0x118] sm:$0xff]
        %v3071 = vld [vmem:[#allocation2 + $0x120] sm:$0xff]
        %v3072 = vld [vmem:[#allocation2 + $0x128] sm:$0xff]
        %v3073 = vld [vmem:[#allocation2 + $0x130] sm:$0xff]
        %v3074 = vld [vmem:[#allocation2 + $0x138] sm:$0xff]
        %v3075 = vld [vmem:[#allocation2 + $0x140] sm:$0xff]
        %v3076 = vld [vmem:[#allocation2 + $0x148] sm:$0xff]
        %v3077 = vld [vmem:[#allocation2 + $0x150] sm:$0xff]
        %v3078 = vld [vmem:[#allocation2 + $0x158] sm:$0xff]
        %v3079 = vld [vmem:[#allocation2 + $0x160] sm:$0xff]
        %v3080 = vld [vmem:[#allocation2 + $0x168] sm:$0xff]
        %v3081 = vld [vmem:[#allocation2 + $0x170] sm:$0xff]
        %v3082 = vld [vmem:[#allocation2 + $0x178] sm:$0xff]
        %v3083 = vld [vmem:[#allocation2 + $0x180] sm:$0xff]
        %v3084 = vld [vmem:[#allocation2 + $0x188] sm:$0xff]
        %v3085 = vld [vmem:[#allocation2 + $0x190] sm:$0xff]
        %v3086 = vld [vmem:[#allocation2 + $0x198] sm:$0xff]
        %v3087 = vld [vmem:[#allocation2 + $0x1a0] sm:$0xff]
        %v3088 = vld [vmem:[#allocation2 + $0x1a8] sm:$0xff]
        %v3089 = vld [vmem:[#allocation2 + $0x1b0] sm:$0xff]
        %v3090 = vld [vmem:[#allocation2 + $0x1b8] sm:$0xff]
        %v3091 = vld [vmem:[#allocation2 + $0x1c0] sm:$0xff]
        %v3092 = vld [vmem:[#allocation2 + $0x1c8] sm:$0xff]
        %v3093 = vld [vmem:[#allocation2 + $0x1d0] sm:$0xff]
        %v3094 = vld [vmem:[#allocation2 + $0x1d8] sm:$0xff]
        %v3095 = vld [vmem:[#allocation2 + $0x1e0] sm:$0xff]
        %v3096 = vld [vmem:[#allocation2 + $0x1e8] sm:$0xff]
        %v3097 = vld [vmem:[#allocation2 + $0x1f0] sm:$0xff]
        %v3098 = vld [vmem:[#allocation2 + $0x1f8] sm:$0xff]
        %v3099 = vld [vmem:[#allocation2 + $0x200] sm:$0xff]
        %v3100 = vld [vmem:[#allocation2 + $0x208] sm:$0xff]
        %v3101 = vld [vmem:[#allocation2 + $0x210] sm:$0xff]
        %v3102 = vld [vmem:[#allocation2 + $0x218] sm:$0xff]
        %v3103 = vld [vmem:[#allocation2 + $0x220] sm:$0xff]
        %v3104 = vld [vmem:[#allocation2 + $0x228] sm:$0xff]
        %v3105 = vld [vmem:[#allocation2 + $0x230] sm:$0xff]
        %v3106 = vld [vmem:[#allocation2 + $0x238] sm:$0xff]
        %v3107 = vld [vmem:[#allocation2 + $0x240] sm:$0xff]
        %v3108 = vld [vmem:[#allocation2 + $0x248] sm:$0xff]
        %v3109 = vld [vmem:[#allocation2 + $0x250] sm:$0xff]
        %v3110 = vld [vmem:[#allocation2 + $0x258] sm:$0xff]
        %v3111 = vld [vmem:[#allocation2 + $0x260] sm:$0xff]
        %v3112 = vld [vmem:[#allocation2 + $0x268] sm:$0xff]
        %v3113 = vld [vmem:[#allocation2 + $0x270] sm:$0xff]
        %v3114 = vld [vmem:[#allocation2 + $0x278] sm:$0xff]
        %v3115 = vld [vmem:[#allocation2 + $0x280] sm:$0xff]
        %v3116 = vld [vmem:[#allocation2 + $0x288] sm:$0xff]
        %v3117 = vld [vmem:[#allocation2 + $0x290] sm:$0xff]
        %v3118 = vld [vmem:[#allocation2 + $0x298] sm:$0xff]
        %v3119 = vld [vmem:[#allocation2 + $0x2a0] sm:$0xff]
        %v3120 = vld [vmem:[#allocation2 + $0x2a8] sm:$0xff]
        %v3121 = vld [vmem:[#allocation2 + $0x2b0] sm:$0xff]
        %v3122 = vld [vmem:[#allocation2 + $0x2b8] sm:$0xff]
        %v3123 = vld [vmem:[#allocation2 + $0x2c0] sm:$0xff]
        %v3124 = vld [vmem:[#allocation2 + $0x2c8] sm:$0xff]
        %v3125 = vld [vmem:[#allocation2 + $0x2d0] sm:$0xff]
        %v3126 = vld [vmem:[#allocation2 + $0x2d8] sm:$0xff]
        %v3127 = vld [vmem:[#allocation2 + $0x2e0] sm:$0xff]
        %v3128 = vld [vmem:[#allocation2 + $0x2e8] sm:$0xff]
        %v3129 = vld [vmem:[#allocation2 + $0x2f0] sm:$0xff]
        %v3130 = vld [vmem:[#allocation2 + $0x2f8] sm:$0xff]
        %v3131 = vld [vmem:[#allocation2 + $0x300] sm:$0xff]
        %v3132 = vld [vmem:[#allocation2 + $0x308] sm:$0xff]
        %v3133 = vld [vmem:[#allocation2 + $0x310] sm:$0xff]
        %v3134 = vld [vmem:[#allocation2 + $0x318] sm:$0xff]
        %v3135 = vld [vmem:[#allocation2 + $0x320] sm:$0xff]
        %v3136 = vld [vmem:[#allocation2 + $0x328] sm:$0xff]
        %v3137 = vld [vmem:[#allocation2 + $0x330] sm:$0xff]
        %v3138 = vld [vmem:[#allocation2 + $0x338] sm:$0xff]
        %v3139 = vld [vmem:[#allocation2 + $0x340] sm:$0xff]
        %v3140 = vld [vmem:[#allocation2 + $0x348] sm:$0xff]
        %v3141 = vld [vmem:[#allocation2 + $0x350] sm:$0xff]
        %v3142 = vld [vmem:[#allocation2 + $0x358] sm:$0xff]
        %v3143 = vld [vmem:[#allocation2 + $0x360] sm:$0xff]
        %v3144 = vld [vmem:[#allocation2 + $0x368] sm:$0xff]
        %v3145 = vld [vmem:[#allocation2 + $0x370] sm:$0xff]
        %v3146 = vld [vmem:[#allocation2 + $0x378] sm:$0xff]
        %v3147 = vld [vmem:[#allocation2 + $0x1] sm:$0xff]
        %v3148 = vld [vmem:[#allocation2 + $0x9] sm:$0xff]
        %v3149 = vld [vmem:[#allocation2 + $0x11] sm:$0xff]
        %v3150 = vld [vmem:[#allocation2 + $0x19] sm:$0xff]
        %v3151 = vld [vmem:[#allocation2 + $0x21] sm:$0xff]
        %v3152 = vld [vmem:[#allocation2 + $0x29] sm:$0xff]
        %v3153 = vld [vmem:[#allocation2 + $0x31] sm:$0xff]
        %v3154 = vld [vmem:[#allocation2 + $0x39] sm:$0xff]
        %v3155 = vld [vmem:[#allocation2 + $0x41] sm:$0xff]
        %v3156 = vld [vmem:[#allocation2 + $0x49] sm:$0xff]
        %v3157 = vld [vmem:[#allocation2 + $0x51] sm:$0xff]
        %v3158 = vld [vmem:[#allocation2 + $0x59] sm:$0xff]
        %v3159 = vld [vmem:[#allocation2 + $0x61] sm:$0xff]
        %v3160 = vld [vmem:[#allocation2 + $0x69] sm:$0xff]
        %v3161 = vld [vmem:[#allocation2 + $0x71] sm:$0xff]
        %v3162 = vld [vmem:[#allocation2 + $0x79] sm:$0xff]
        %v3163 = vld [vmem:[#allocation2 + $0x81] sm:$0xff]
        %v3164 = vld [vmem:[#allocation2 + $0x89] sm:$0xff]
        %v3165 = vld [vmem:[#allocation2 + $0x91] sm:$0xff]
        %v3166 = vld [vmem:[#allocation2 + $0x99] sm:$0xff]
        %v3167 = vld [vmem:[#allocation2 + $0xa1] sm:$0xff]
        %v3168 = vld [vmem:[#allocation2 + $0xa9] sm:$0xff]
        %v3169 = vld [vmem:[#allocation2 + $0xb1] sm:$0xff]
        %v3170 = vld [vmem:[#allocation2 + $0xb9] sm:$0xff]
        %v3171 = vld [vmem:[#allocation2 + $0xc1] sm:$0xff]
        %v3172 = vld [vmem:[#allocation2 + $0xc9] sm:$0xff]
        %v3173 = vld [vmem:[#allocation2 + $0xd1] sm:$0xff]
        %v3174 = vld [vmem:[#allocation2 + $0xd9] sm:$0xff]
        %v3175 = vld [vmem:[#allocation2 + $0xe1] sm:$0xff]
        %v3176 = vld [vmem:[#allocation2 + $0xe9] sm:$0xff]
        %v3177 = vld [vmem:[#allocation2 + $0xf1] sm:$0xff]
        %v3178 = vld [vmem:[#allocation2 + $0xf9] sm:$0xff]
        %v3179 = vld [vmem:[#allocation2 + $0x101] sm:$0xff]
        %v3180 = vld [vmem:[#allocation2 + $0x109] sm:$0xff]
        %v3181 = vld [vmem:[#allocation2 + $0x111] sm:$0xff]
        %v3182 = vld [vmem:[#allocation2 + $0x119] sm:$0xff]
        %v3183 = vld [vmem:[#allocation2 + $0x121] sm:$0xff]
        %v3184 = vld [vmem:[#allocation2 + $0x129] sm:$0xff]
        %v3185 = vld [vmem:[#allocation2 + $0x131] sm:$0xff]
        %v3186 = vld [vmem:[#allocation2 + $0x139] sm:$0xff]
        %v3187 = vld [vmem:[#allocation2 + $0x141] sm:$0xff]
        %v3188 = vld [vmem:[#allocation2 + $0x149] sm:$0xff]
        %v3189 = vld [vmem:[#allocation2 + $0x151] sm:$0xff]
        %v3190 = vld [vmem:[#allocation2 + $0x159] sm:$0xff]
        %v3191 = vld [vmem:[#allocation2 + $0x161] sm:$0xff]
        %v3192 = vld [vmem:[#allocation2 + $0x169] sm:$0xff]
        %v3193 = vld [vmem:[#allocation2 + $0x171] sm:$0xff]
        %v3194 = vld [vmem:[#allocation2 + $0x179] sm:$0xff]
        %v3195 = vld [vmem:[#allocation2 + $0x181] sm:$0xff]
        %v3196 = vld [vmem:[#allocation2 + $0x189] sm:$0xff]
        %v3197 = vld [vmem:[#allocation2 + $0x191] sm:$0xff]
        %v3198 = vld [vmem:[#allocation2 + $0x199] sm:$0xff]
        %v3199 = vld [vmem:[#allocation2 + $0x1a1] sm:$0xff]
        %v3200 = vld [vmem:[#allocation2 + $0x1a9] sm:$0xff]
        %v3201 = vld [vmem:[#allocation2 + $0x1b1] sm:$0xff]
        %v3202 = vld [vmem:[#allocation2 + $0x1b9] sm:$0xff]
        %v3203 = vld [vmem:[#allocation2 + $0x1c1] sm:$0xff]
        %v3204 = vld [vmem:[#allocation2 + $0x1c9] sm:$0xff]
        %v3205 = vld [vmem:[#allocation2 + $0x1d1] sm:$0xff]
        %v3206 = vld [vmem:[#allocation2 + $0x1d9] sm:$0xff]
        %v3207 = vld [vmem:[#allocation2 + $0x1e1] sm:$0xff]
        %v3208 = vld [vmem:[#allocation2 + $0x1e9] sm:$0xff]
        %v3209 = vld [vmem:[#allocation2 + $0x1f1] sm:$0xff]
        %v3210 = vld [vmem:[#allocation2 + $0x1f9] sm:$0xff]
        %v3211 = vld [vmem:[#allocation2 + $0x201] sm:$0xff]
        %v3212 = vld [vmem:[#allocation2 + $0x209] sm:$0xff]
        %v3213 = vld [vmem:[#allocation2 + $0x211] sm:$0xff]
        %v3214 = vld [vmem:[#allocation2 + $0x219] sm:$0xff]
        %v3215 = vld [vmem:[#allocation2 + $0x221] sm:$0xff]
        %v3216 = vld [vmem:[#allocation2 + $0x229] sm:$0xff]
        %v3217 = vld [vmem:[#allocation2 + $0x231] sm:$0xff]
        %v3218 = vld [vmem:[#allocation2 + $0x239] sm:$0xff]
        %v3219 = vld [vmem:[#allocation2 + $0x241] sm:$0xff]
        %v3220 = vld [vmem:[#allocation2 + $0x249] sm:$0xff]
        %v3221 = vld [vmem:[#allocation2 + $0x251] sm:$0xff]
        %v3222 = vld [vmem:[#allocation2 + $0x259] sm:$0xff]
        %v3223 = vld [vmem:[#allocation2 + $0x261] sm:$0xff]
        %v3224 = vld [vmem:[#allocation2 + $0x269] sm:$0xff]
        %v3225 = vld [vmem:[#allocation2 + $0x271] sm:$0xff]
        %v3226 = vld [vmem:[#allocation2 + $0x279] sm:$0xff]
        %v3227 = vld [vmem:[#allocation2 + $0x281] sm:$0xff]
        %v3228 = vld [vmem:[#allocation2 + $0x289] sm:$0xff]
        %v3229 = vld [vmem:[#allocation2 + $0x291] sm:$0xff]
        %v3230 = vld [vmem:[#allocation2 + $0x299] sm:$0xff]
        %v3231 = vld [vmem:[#allocation2 + $0x2a1] sm:$0xff]
        %v3232 = vld [vmem:[#allocation2 + $0x2a9] sm:$0xff]
        %v3233 = vld [vmem:[#allocation2 + $0x2b1] sm:$0xff]
        %v3234 = vld [vmem:[#allocation2 + $0x2b9] sm:$0xff]
        %v3235 = vld [vmem:[#allocation2 + $0x2c1] sm:$0xff]
        %v3236 = vld [vmem:[#allocation2 + $0x2c9] sm:$0xff]
        %v3237 = vld [vmem:[#allocation2 + $0x2d1] sm:$0xff]
        %v3238 = vld [vmem:[#allocation2 + $0x2d9] sm:$0xff]
        %v3239 = vld [vmem:[#allocation2 + $0x2e1] sm:$0xff]
        %v3240 = vld [vmem:[#allocation2 + $0x2e9] sm:$0xff]
        %v3241 = vld [vmem:[#allocation2 + $0x2f1] sm:$0xff]
        %v3242 = vld [vmem:[#allocation2 + $0x2f9] sm:$0xff]
        %v3243 = vld [vmem:[#allocation2 + $0x301] sm:$0xff]
        %v3244 = vld [vmem:[#allocation2 + $0x309] sm:$0xff]
        %v3245 = vld [vmem:[#allocation2 + $0x311] sm:$0xff]
        %v3246 = vld [vmem:[#allocation2 + $0x319] sm:$0xff]
        %v3247 = vld [vmem:[#allocation2 + $0x321] sm:$0xff]
        %v3248 = vld [vmem:[#allocation2 + $0x329] sm:$0xff]
        %v3249 = vld [vmem:[#allocation2 + $0x331] sm:$0xff]
        %v3250 = vld [vmem:[#allocation2 + $0x339] sm:$0xff]
        %v3251 = vld [vmem:[#allocation2 + $0x341] sm:$0xff]
        %v3252 = vld [vmem:[#allocation2 + $0x349] sm:$0xff]
        %v3253 = vld [vmem:[#allocation2 + $0x351] sm:$0xff]
        %v3254 = vld [vmem:[#allocation2 + $0x359] sm:$0xff]
        %v3255 = vld [vmem:[#allocation2 + $0x361] sm:$0xff]
        %v3256 = vld [vmem:[#allocation2 + $0x369] sm:$0xff]
        %v3257 = vld [vmem:[#allocation2 + $0x371] sm:$0xff]
        %v3258 = vld [vmem:[#allocation2 + $0x379] sm:$0xff]
        %v3259 = vld [vmem:[#allocation2 + $0x2] sm:$0xff]
        %v3260 = vld [vmem:[#allocation2 + $0xa] sm:$0xff]
        %v3261 = vld [vmem:[#allocation2 + $0x12] sm:$0xff]
        %v3262 = vld [vmem:[#allocation2 + $0x1a] sm:$0xff]
        %v3263 = vld [vmem:[#allocation2 + $0x22] sm:$0xff]
        %v3264 = vld [vmem:[#allocation2 + $0x2a] sm:$0xff]
        %v3265 = vld [vmem:[#allocation2 + $0x32] sm:$0xff]
        %v3266 = vld [vmem:[#allocation2 + $0x3a] sm:$0xff]
        %v3267 = vld [vmem:[#allocation2 + $0x42] sm:$0xff]
        %v3268 = vld [vmem:[#allocation2 + $0x4a] sm:$0xff]
        %v3269 = vld [vmem:[#allocation2 + $0x52] sm:$0xff]
        %v3270 = vld [vmem:[#allocation2 + $0x5a] sm:$0xff]
        %v3271 = vld [vmem:[#allocation2 + $0x62] sm:$0xff]
        %v3272 = vld [vmem:[#allocation2 + $0x6a] sm:$0xff]
        %v3273 = vld [vmem:[#allocation2 + $0x72] sm:$0xff]
        %v3274 = vld [vmem:[#allocation2 + $0x7a] sm:$0xff]
        %v3275 = vld [vmem:[#allocation2 + $0x82] sm:$0xff]
        %v3276 = vld [vmem:[#allocation2 + $0x8a] sm:$0xff]
        %v3277 = vld [vmem:[#allocation2 + $0x92] sm:$0xff]
        %v3278 = vld [vmem:[#allocation2 + $0x9a] sm:$0xff]
        %v3279 = vld [vmem:[#allocation2 + $0xa2] sm:$0xff]
        %v3280 = vld [vmem:[#allocation2 + $0xaa] sm:$0xff]
        %v3281 = vld [vmem:[#allocation2 + $0xb2] sm:$0xff]
        %v3282 = vld [vmem:[#allocation2 + $0xba] sm:$0xff]
        %v3283 = vld [vmem:[#allocation2 + $0xc2] sm:$0xff]
        %v3284 = vld [vmem:[#allocation2 + $0xca] sm:$0xff]
        %v3285 = vld [vmem:[#allocation2 + $0xd2] sm:$0xff]
        %v3286 = vld [vmem:[#allocation2 + $0xda] sm:$0xff]
        %v3287 = vld [vmem:[#allocation2 + $0xe2] sm:$0xff]
        %v3288 = vld [vmem:[#allocation2 + $0xea] sm:$0xff]
        %v3289 = vld [vmem:[#allocation2 + $0xf2] sm:$0xff]
        %v3290 = vld [vmem:[#allocation2 + $0xfa] sm:$0xff]
        %v3291 = vld [vmem:[#allocation2 + $0x102] sm:$0xff]
        %v3292 = vld [vmem:[#allocation2 + $0x10a] sm:$0xff]
        %v3293 = vld [vmem:[#allocation2 + $0x112] sm:$0xff]
        %v3294 = vld [vmem:[#allocation2 + $0x11a] sm:$0xff]
        %v3295 = vld [vmem:[#allocation2 + $0x122] sm:$0xff]
        %v3296 = vld [vmem:[#allocation2 + $0x12a] sm:$0xff]
        %v3297 = vld [vmem:[#allocation2 + $0x132] sm:$0xff]
        %v3298 = vld [vmem:[#allocation2 + $0x13a] sm:$0xff]
        %v3299 = vld [vmem:[#allocation2 + $0x142] sm:$0xff]
        %v3300 = vld [vmem:[#allocation2 + $0x14a] sm:$0xff]
        %v3301 = vld [vmem:[#allocation2 + $0x152] sm:$0xff]
        %v3302 = vld [vmem:[#allocation2 + $0x15a] sm:$0xff]
        %v3303 = vld [vmem:[#allocation2 + $0x162] sm:$0xff]
        %v3304 = vld [vmem:[#allocation2 + $0x16a] sm:$0xff]
        %v3305 = vld [vmem:[#allocation2 + $0x172] sm:$0xff]
        %v3306 = vld [vmem:[#allocation2 + $0x17a] sm:$0xff]
        %v3307 = vld [vmem:[#allocation2 + $0x182] sm:$0xff]
        %v3308 = vld [vmem:[#allocation2 + $0x18a] sm:$0xff]
        %v3309 = vld [vmem:[#allocation2 + $0x192] sm:$0xff]
        %v3310 = vld [vmem:[#allocation2 + $0x19a] sm:$0xff]
        %v3311 = vld [vmem:[#allocation2 + $0x1a2] sm:$0xff]
        %v3312 = vld [vmem:[#allocation2 + $0x1aa] sm:$0xff]
        %v3313 = vld [vmem:[#allocation2 + $0x1b2] sm:$0xff]
        %v3314 = vld [vmem:[#allocation2 + $0x1ba] sm:$0xff]
        %v3315 = vld [vmem:[#allocation2 + $0x1c2] sm:$0xff]
        %v3316 = vld [vmem:[#allocation2 + $0x1ca] sm:$0xff]
        %v3317 = vld [vmem:[#allocation2 + $0x1d2] sm:$0xff]
        %v3318 = vld [vmem:[#allocation2 + $0x1da] sm:$0xff]
        %v3319 = vld [vmem:[#allocation2 + $0x1e2] sm:$0xff]
        %v3320 = vld [vmem:[#allocation2 + $0x1ea] sm:$0xff]
        %v3321 = vld [vmem:[#allocation2 + $0x1f2] sm:$0xff]
        %v3322 = vld [vmem:[#allocation2 + $0x1fa] sm:$0xff]
        %v3323 = vld [vmem:[#allocation2 + $0x202] sm:$0xff]
        %v3324 = vld [vmem:[#allocation2 + $0x20a] sm:$0xff]
        %v3325 = vld [vmem:[#allocation2 + $0x212] sm:$0xff]
        %v3326 = vld [vmem:[#allocation2 + $0x21a] sm:$0xff]
        %v3327 = vld [vmem:[#allocation2 + $0x222] sm:$0xff]
        %v3328 = vld [vmem:[#allocation2 + $0x22a] sm:$0xff]
        %v3329 = vld [vmem:[#allocation2 + $0x232] sm:$0xff]
        %v3330 = vld [vmem:[#allocation2 + $0x23a] sm:$0xff]
        %v3331 = vld [vmem:[#allocation2 + $0x242] sm:$0xff]
        %v3332 = vld [vmem:[#allocation2 + $0x24a] sm:$0xff]
        %v3333 = vld [vmem:[#allocation2 + $0x252] sm:$0xff]
        %v3334 = vld [vmem:[#allocation2 + $0x25a] sm:$0xff]
        %v3335 = vld [vmem:[#allocation2 + $0x262] sm:$0xff]
        %v3336 = vld [vmem:[#allocation2 + $0x26a] sm:$0xff]
        %v3337 = vld [vmem:[#allocation2 + $0x272] sm:$0xff]
        %v3338 = vld [vmem:[#allocation2 + $0x27a] sm:$0xff]
        %v3339 = vld [vmem:[#allocation2 + $0x282] sm:$0xff]
        %v3340 = vld [vmem:[#allocation2 + $0x28a] sm:$0xff]
        %v3341 = vld [vmem:[#allocation2 + $0x292] sm:$0xff]
        %v3342 = vld [vmem:[#allocation2 + $0x29a] sm:$0xff]
        %v3343 = vld [vmem:[#allocation2 + $0x2a2] sm:$0xff]
        %v3344 = vld [vmem:[#allocation2 + $0x2aa] sm:$0xff]
        %v3345 = vld [vmem:[#allocation2 + $0x2b2] sm:$0xff]
        %v3346 = vld [vmem:[#allocation2 + $0x2ba] sm:$0xff]
        %v3347 = vld [vmem:[#allocation2 + $0x2c2] sm:$0xff]
        %v3348 = vld [vmem:[#allocation2 + $0x2ca] sm:$0xff]
        %v3349 = vld [vmem:[#allocation2 + $0x2d2] sm:$0xff]
        %v3350 = vld [vmem:[#allocation2 + $0x2da] sm:$0xff]
        %v3351 = vld [vmem:[#allocation2 + $0x2e2] sm:$0xff]
        %v3352 = vld [vmem:[#allocation2 + $0x2ea] sm:$0xff]
        %v3353 = vld [vmem:[#allocation2 + $0x2f2] sm:$0xff]
        %v3354 = vld [vmem:[#allocation2 + $0x2fa] sm:$0xff]
        %v3355 = vld [vmem:[#allocation2 + $0x302] sm:$0xff]
        %v3356 = vld [vmem:[#allocation2 + $0x30a] sm:$0xff]
        %v3357 = vld [vmem:[#allocation2 + $0x312] sm:$0xff]
        %v3358 = vld [vmem:[#allocation2 + $0x31a] sm:$0xff]
        %v3359 = vld [vmem:[#allocation2 + $0x322] sm:$0xff]
        %v3360 = vld [vmem:[#allocation2 + $0x32a] sm:$0xff]
        %v3361 = vld [vmem:[#allocation2 + $0x332] sm:$0xff]
        %v3362 = vld [vmem:[#allocation2 + $0x33a] sm:$0xff]
        %v3363 = vld [vmem:[#allocation2 + $0x342] sm:$0xff]
        %v3364 = vld [vmem:[#allocation2 + $0x34a] sm:$0xff]
        %v3365 = vld [vmem:[#allocation2 + $0x352] sm:$0xff]
        %v3366 = vld [vmem:[#allocation2 + $0x35a] sm:$0xff]
        %v3367 = vld [vmem:[#allocation2 + $0x362] sm:$0xff]
        %v3368 = vld [vmem:[#allocation2 + $0x36a] sm:$0xff]
        %v3369 = vld [vmem:[#allocation2 + $0x372] sm:$0xff]
        %v3370 = vld [vmem:[#allocation2 + $0x37a] sm:$0xff]
        %v3371 = vld [vmem:[#allocation2 + $0x380] sm:$0xff]
        %v3372 = vld [vmem:[#allocation2 + $0x388] sm:$0xff]
        %v3373 = vld [vmem:[#allocation2 + $0x390] sm:$0xff]
        %v3374 = vld [vmem:[#allocation2 + $0x398] sm:$0xff]
        %v3375 = vld [vmem:[#allocation2 + $0x381] sm:$0xff]
        %v3376 = vld [vmem:[#allocation2 + $0x389] sm:$0xff]
        %v3377 = vld [vmem:[#allocation2 + $0x391] sm:$0xff]
        %v3378 = vld [vmem:[#allocation2 + $0x399] sm:$0xff]
        %v3379 = vld [vmem:[#allocation2 + $0x382] sm:$0xff]
        %v3380 = vld [vmem:[#allocation2 + $0x38a] sm:$0xff]
        %v3381 = vld [vmem:[#allocation2 + $0x392] sm:$0xff]
        %v3382 = vld [vmem:[#allocation2 + $0x39a] sm:$0xff]
        %v3383 = vld [vmem:[#allocation2 + $0x3a0] sm:$0xff]
        %v3384 = vld [vmem:[#allocation2 + $0x3a8] sm:$0xff]
        %v3385 = vld [vmem:[#allocation2 + $0x3b0] sm:$0xff]
        %v3386 = vld [vmem:[#allocation2 + $0x3b8] sm:$0xff]
        %v3387 = vld [vmem:[#allocation2 + $0x3a1] sm:$0xff]
        %v3388 = vld [vmem:[#allocation2 + $0x3a9] sm:$0xff]
        %v3389 = vld [vmem:[#allocation2 + $0x3b1] sm:$0xff]
        %v3390 = vld [vmem:[#allocation2 + $0x3b9] sm:$0xff]
        %v3391 = vld [vmem:[#allocation2 + $0x3a2] sm:$0xff]
        %v3392 = vld [vmem:[#allocation2 + $0x3aa] sm:$0xff]
        %v3393 = vld [vmem:[#allocation2 + $0x3b2] sm:$0xff]
        %v3394 = vld [vmem:[#allocation2 + $0x3ba] sm:$0xff]
        %3507 = vrot.lane.b32.xlu0 %v3147, 32
        %v3508 = vpop.permute.xlu0 %3507
        %3509 = vrot.lane.b32.xlu0 %v3148, 32
        %v3510 = vpop.permute.xlu0 %3509
        %3511 = vrot.lane.b32.xlu0 %v3149, 32
        %v3512 = vpop.permute.xlu0 %3511
        %3513 = vrot.lane.b32.xlu0 %v3150, 32
        %v3514 = vpop.permute.xlu0 %3513
        %3515 = vrot.lane.b32.xlu0 %v3151, 32
        %v3516 = vpop.permute.xlu0 %3515
        %3517 = vrot.lane.b32.xlu0 %v3152, 32
        %v3518 = vpop.permute.xlu0 %3517
        %3519 = vrot.lane.b32.xlu0 %v3153, 32
        %v3520 = vpop.permute.xlu0 %3519
        %3521 = vrot.lane.b32.xlu0 %v3154, 32
        %v3522 = vpop.permute.xlu0 %3521
        %3523 = vrot.lane.b32.xlu0 %v3155, 32
        %v3524 = vpop.permute.xlu0 %3523
        %3525 = vrot.lane.b32.xlu0 %v3156, 32
        %v3526 = vpop.permute.xlu0 %3525
        %3527 = vrot.lane.b32.xlu0 %v3157, 32
        %v3528 = vpop.permute.xlu0 %3527
        %3529 = vrot.lane.b32.xlu0 %v3158, 32
        %v3530 = vpop.permute.xlu0 %3529
        %3531 = vrot.lane.b32.xlu0 %v3159, 32
        %v3532 = vpop.permute.xlu0 %3531
        %3533 = vrot.lane.b32.xlu0 %v3160, 32
        %v3534 = vpop.permute.xlu0 %3533
        %3535 = vrot.lane.b32.xlu0 %v3161, 32
        %v3536 = vpop.permute.xlu0 %3535
        %3537 = vrot.lane.b32.xlu0 %v3162, 32
        %v3538 = vpop.permute.xlu0 %3537
        %3539 = vrot.lane.b32.xlu0 %v3163, 32
        %v3540 = vpop.permute.xlu0 %3539
        %3541 = vrot.lane.b32.xlu0 %v3164, 32
        %v3542 = vpop.permute.xlu0 %3541
        %3543 = vrot.lane.b32.xlu0 %v3165, 32
        %v3544 = vpop.permute.xlu0 %3543
        %3545 = vrot.lane.b32.xlu0 %v3166, 32
        %v3546 = vpop.permute.xlu0 %3545
        %3547 = vrot.lane.b32.xlu0 %v3167, 32
        %v3548 = vpop.permute.xlu0 %3547
        %3549 = vrot.lane.b32.xlu0 %v3168, 32
        %v3550 = vpop.permute.xlu0 %3549
        %3551 = vrot.lane.b32.xlu0 %v3169, 32
        %v3552 = vpop.permute.xlu0 %3551
        %3553 = vrot.lane.b32.xlu0 %v3170, 32
        %v3554 = vpop.permute.xlu0 %3553
        %3555 = vrot.lane.b32.xlu0 %v3171, 32
        %v3556 = vpop.permute.xlu0 %3555
        %3557 = vrot.lane.b32.xlu0 %v3172, 32
        %v3558 = vpop.permute.xlu0 %3557
        %3559 = vrot.lane.b32.xlu0 %v3173, 32
        %v3560 = vpop.permute.xlu0 %3559
        %3561 = vrot.lane.b32.xlu0 %v3174, 32
        %v3562 = vpop.permute.xlu0 %3561
        %3563 = vrot.lane.b32.xlu0 %v3175, 32
        %v3564 = vpop.permute.xlu0 %3563
        %3565 = vrot.lane.b32.xlu0 %v3176, 32
        %v3566 = vpop.permute.xlu0 %3565
        %3567 = vrot.lane.b32.xlu0 %v3177, 32
        %v3568 = vpop.permute.xlu0 %3567
        %3569 = vrot.lane.b32.xlu0 %v3178, 32
        %v3570 = vpop.permute.xlu0 %3569
        %3571 = vrot.lane.b32.xlu0 %v3179, 32
        %v3572 = vpop.permute.xlu0 %3571
        %3573 = vrot.lane.b32.xlu0 %v3180, 32
        %v3574 = vpop.permute.xlu0 %3573
        %3575 = vrot.lane.b32.xlu0 %v3181, 32
        %v3576 = vpop.permute.xlu0 %3575
        %3577 = vrot.lane.b32.xlu0 %v3182, 32
        %v3578 = vpop.permute.xlu0 %3577
        %3579 = vrot.lane.b32.xlu0 %v3183, 32
        %v3580 = vpop.permute.xlu0 %3579
        %3581 = vrot.lane.b32.xlu0 %v3184, 32
        %v3582 = vpop.permute.xlu0 %3581
        %3583 = vrot.lane.b32.xlu0 %v3185, 32
        %v3584 = vpop.permute.xlu0 %3583
        %3585 = vrot.lane.b32.xlu0 %v3186, 32
        %v3586 = vpop.permute.xlu0 %3585
        %3587 = vrot.lane.b32.xlu0 %v3187, 32
        %v3588 = vpop.permute.xlu0 %3587
        %3589 = vrot.lane.b32.xlu0 %v3188, 32
        %v3590 = vpop.permute.xlu0 %3589
        %3591 = vrot.lane.b32.xlu0 %v3189, 32
        %v3592 = vpop.permute.xlu0 %3591
        %3593 = vrot.lane.b32.xlu0 %v3190, 32
        %v3594 = vpop.permute.xlu0 %3593
        %3595 = vrot.lane.b32.xlu0 %v3191, 32
        %v3596 = vpop.permute.xlu0 %3595
        %3597 = vrot.lane.b32.xlu0 %v3192, 32
        %v3598 = vpop.permute.xlu0 %3597
        %3599 = vrot.lane.b32.xlu0 %v3193, 32
        %v3600 = vpop.permute.xlu0 %3599
        %3601 = vrot.lane.b32.xlu0 %v3194, 32
        %v3602 = vpop.permute.xlu0 %3601
        %3603 = vrot.lane.b32.xlu0 %v3195, 32
        %v3604 = vpop.permute.xlu0 %3603
        %3605 = vrot.lane.b32.xlu0 %v3196, 32
        %v3606 = vpop.permute.xlu0 %3605
        %3607 = vrot.lane.b32.xlu0 %v3197, 32
        %v3608 = vpop.permute.xlu0 %3607
        %3609 = vrot.lane.b32.xlu0 %v3198, 32
        %v3610 = vpop.permute.xlu0 %3609
        %3611 = vrot.lane.b32.xlu0 %v3199, 32
        %v3612 = vpop.permute.xlu0 %3611
        %3613 = vrot.lane.b32.xlu0 %v3200, 32
        %v3614 = vpop.permute.xlu0 %3613
        %3615 = vrot.lane.b32.xlu0 %v3201, 32
        %v3616 = vpop.permute.xlu0 %3615
        %3617 = vrot.lane.b32.xlu0 %v3202, 32
        %v3618 = vpop.permute.xlu0 %3617
        %3619 = vrot.lane.b32.xlu0 %v3203, 32
        %v3620 = vpop.permute.xlu0 %3619
        %3621 = vrot.lane.b32.xlu0 %v3204, 32
        %v3622 = vpop.permute.xlu0 %3621
        %3623 = vrot.lane.b32.xlu0 %v3205, 32
        %v3624 = vpop.permute.xlu0 %3623
        %3625 = vrot.lane.b32.xlu0 %v3206, 32
        %v3626 = vpop.permute.xlu0 %3625
        %3627 = vrot.lane.b32.xlu0 %v3207, 32
        %v3628 = vpop.permute.xlu0 %3627
        %3629 = vrot.lane.b32.xlu0 %v3208, 32
        %v3630 = vpop.permute.xlu0 %3629
        %3631 = vrot.lane.b32.xlu0 %v3209, 32
        %v3632 = vpop.permute.xlu0 %3631
        %3633 = vrot.lane.b32.xlu0 %v3210, 32
        %v3634 = vpop.permute.xlu0 %3633
        %3635 = vrot.lane.b32.xlu0 %v3211, 32
        %v3636 = vpop.permute.xlu0 %3635
        %3637 = vrot.lane.b32.xlu0 %v3212, 32
        %v3638 = vpop.permute.xlu0 %3637
        %3639 = vrot.lane.b32.xlu0 %v3213, 32
        %v3640 = vpop.permute.xlu0 %3639
        %3641 = vrot.lane.b32.xlu0 %v3214, 32
        %v3642 = vpop.permute.xlu0 %3641
        %3643 = vrot.lane.b32.xlu0 %v3215, 32
        %v3644 = vpop.permute.xlu0 %3643
        %3645 = vrot.lane.b32.xlu0 %v3216, 32
        %v3646 = vpop.permute.xlu0 %3645
        %3647 = vrot.lane.b32.xlu0 %v3217, 32
        %v3648 = vpop.permute.xlu0 %3647
        %3649 = vrot.lane.b32.xlu0 %v3218, 32
        %v3650 = vpop.permute.xlu0 %3649
        %3651 = vrot.lane.b32.xlu0 %v3219, 32
        %v3652 = vpop.permute.xlu0 %3651
        %3653 = vrot.lane.b32.xlu0 %v3220, 32
        %v3654 = vpop.permute.xlu0 %3653
        %3655 = vrot.lane.b32.xlu0 %v3221, 32
        %v3656 = vpop.permute.xlu0 %3655
        %3657 = vrot.lane.b32.xlu0 %v3222, 32
        %v3658 = vpop.permute.xlu0 %3657
        %3659 = vrot.lane.b32.xlu0 %v3223, 32
        %v3660 = vpop.permute.xlu0 %3659
        %3661 = vrot.lane.b32.xlu0 %v3224, 32
        %v3662 = vpop.permute.xlu0 %3661
        %3663 = vrot.lane.b32.xlu0 %v3225, 32
        %v3664 = vpop.permute.xlu0 %3663
        %3665 = vrot.lane.b32.xlu0 %v3226, 32
        %v3666 = vpop.permute.xlu0 %3665
        %3667 = vrot.lane.b32.xlu0 %v3227, 32
        %v3668 = vpop.permute.xlu0 %3667
        %3669 = vrot.lane.b32.xlu0 %v3228, 32
        %v3670 = vpop.permute.xlu0 %3669
        %3671 = vrot.lane.b32.xlu0 %v3229, 32
        %v3672 = vpop.permute.xlu0 %3671
        %3673 = vrot.lane.b32.xlu0 %v3230, 32
        %v3674 = vpop.permute.xlu0 %3673
        %3675 = vrot.lane.b32.xlu0 %v3231, 32
        %v3676 = vpop.permute.xlu0 %3675
        %3677 = vrot.lane.b32.xlu0 %v3232, 32
        %v3678 = vpop.permute.xlu0 %3677
        %3679 = vrot.lane.b32.xlu0 %v3233, 32
        %v3680 = vpop.permute.xlu0 %3679
        %3681 = vrot.lane.b32.xlu0 %v3234, 32
        %v3682 = vpop.permute.xlu0 %3681
        %3683 = vrot.lane.b32.xlu0 %v3235, 32
        %v3684 = vpop.permute.xlu0 %3683
        %3685 = vrot.lane.b32.xlu0 %v3236, 32
        %v3686 = vpop.permute.xlu0 %3685
        %3687 = vrot.lane.b32.xlu0 %v3237, 32
        %v3688 = vpop.permute.xlu0 %3687
        %3689 = vrot.lane.b32.xlu0 %v3238, 32
        %v3690 = vpop.permute.xlu0 %3689
        %3691 = vrot.lane.b32.xlu0 %v3239, 32
        %v3692 = vpop.permute.xlu0 %3691
        %3693 = vrot.lane.b32.xlu0 %v3240, 32
        %v3694 = vpop.permute.xlu0 %3693
        %3695 = vrot.lane.b32.xlu0 %v3241, 32
        %v3696 = vpop.permute.xlu0 %3695
        %3697 = vrot.lane.b32.xlu0 %v3242, 32
        %v3698 = vpop.permute.xlu0 %3697
        %3699 = vrot.lane.b32.xlu0 %v3243, 32
        %v3700 = vpop.permute.xlu0 %3699
        %3701 = vrot.lane.b32.xlu0 %v3244, 32
        %v3702 = vpop.permute.xlu0 %3701
        %3703 = vrot.lane.b32.xlu0 %v3245, 32
        %v3704 = vpop.permute.xlu0 %3703
        %3705 = vrot.lane.b32.xlu0 %v3246, 32
        %v3706 = vpop.permute.xlu0 %3705
        %3707 = vrot.lane.b32.xlu0 %v3247, 32
        %v3708 = vpop.permute.xlu0 %3707
        %3709 = vrot.lane.b32.xlu0 %v3248, 32
        %v3710 = vpop.permute.xlu0 %3709
        %3711 = vrot.lane.b32.xlu0 %v3249, 32
        %v3712 = vpop.permute.xlu0 %3711
        %3713 = vrot.lane.b32.xlu0 %v3250, 32
        %v3714 = vpop.permute.xlu0 %3713
        %3715 = vrot.lane.b32.xlu0 %v3251, 32
        %v3716 = vpop.permute.xlu0 %3715
        %3717 = vrot.lane.b32.xlu0 %v3252, 32
        %v3718 = vpop.permute.xlu0 %3717
        %3719 = vrot.lane.b32.xlu0 %v3253, 32
        %v3720 = vpop.permute.xlu0 %3719
        %3721 = vrot.lane.b32.xlu0 %v3254, 32
        %v3722 = vpop.permute.xlu0 %3721
        %3723 = vrot.lane.b32.xlu0 %v3255, 32
        %v3724 = vpop.permute.xlu0 %3723
        %3725 = vrot.lane.b32.xlu0 %v3256, 32
        %v3726 = vpop.permute.xlu0 %3725
        %3727 = vrot.lane.b32.xlu0 %v3257, 32
        %v3728 = vpop.permute.xlu0 %3727
        %3729 = vrot.lane.b32.xlu0 %v3258, 32
        %v3730 = vpop.permute.xlu0 %3729
        %3955 = vrot.lane.b32.xlu0 %v3259, 64
        %v3956 = vpop.permute.xlu0 %3955
        %3957 = vrot.lane.b32.xlu0 %v3260, 64
        %v3958 = vpop.permute.xlu0 %3957
        %3959 = vrot.lane.b32.xlu0 %v3261, 64
        %v3960 = vpop.permute.xlu0 %3959
        %3961 = vrot.lane.b32.xlu0 %v3262, 64
        %v3962 = vpop.permute.xlu0 %3961
        %3963 = vrot.lane.b32.xlu0 %v3263, 64
        %v3964 = vpop.permute.xlu0 %3963
        %3965 = vrot.lane.b32.xlu0 %v3264, 64
        %v3966 = vpop.permute.xlu0 %3965
        %3967 = vrot.lane.b32.xlu0 %v3265, 64
        %v3968 = vpop.permute.xlu0 %3967
        %3969 = vrot.lane.b32.xlu0 %v3266, 64
        %v3970 = vpop.permute.xlu0 %3969
        %3971 = vrot.lane.b32.xlu0 %v3267, 64
        %v3972 = vpop.permute.xlu0 %3971
        %3973 = vrot.lane.b32.xlu0 %v3268, 64
        %v3974 = vpop.permute.xlu0 %3973
        %3975 = vrot.lane.b32.xlu0 %v3269, 64
        %v3976 = vpop.permute.xlu0 %3975
        %3977 = vrot.lane.b32.xlu0 %v3270, 64
        %v3978 = vpop.permute.xlu0 %3977
        %3979 = vrot.lane.b32.xlu0 %v3271, 64
        %v3980 = vpop.permute.xlu0 %3979
        %3981 = vrot.lane.b32.xlu0 %v3272, 64
        %v3982 = vpop.permute.xlu0 %3981
        %3983 = vrot.lane.b32.xlu0 %v3273, 64
        %v3984 = vpop.permute.xlu0 %3983
        %3985 = vrot.lane.b32.xlu0 %v3274, 64
        %v3986 = vpop.permute.xlu0 %3985
        %3987 = vrot.lane.b32.xlu0 %v3275, 64
        %v3988 = vpop.permute.xlu0 %3987
        %3989 = vrot.lane.b32.xlu0 %v3276, 64
        %v3990 = vpop.permute.xlu0 %3989
        %3991 = vrot.lane.b32.xlu0 %v3277, 64
        %v3992 = vpop.permute.xlu0 %3991
        %3993 = vrot.lane.b32.xlu0 %v3278, 64
        %v3994 = vpop.permute.xlu0 %3993
        %3995 = vrot.lane.b32.xlu0 %v3279, 64
        %v3996 = vpop.permute.xlu0 %3995
        %3997 = vrot.lane.b32.xlu0 %v3280, 64
        %v3998 = vpop.permute.xlu0 %3997
        %3999 = vrot.lane.b32.xlu0 %v3281, 64
        %v4000 = vpop.permute.xlu0 %3999
        %4001 = vrot.lane.b32.xlu0 %v3282, 64
        %v4002 = vpop.permute.xlu0 %4001
        %4003 = vrot.lane.b32.xlu0 %v3283, 64
        %v4004 = vpop.permute.xlu0 %4003
        %4005 = vrot.lane.b32.xlu0 %v3284, 64
        %v4006 = vpop.permute.xlu0 %4005
        %4007 = vrot.lane.b32.xlu0 %v3285, 64
        %v4008 = vpop.permute.xlu0 %4007
        %4009 = vrot.lane.b32.xlu0 %v3286, 64
        %v4010 = vpop.permute.xlu0 %4009
        %4011 = vrot.lane.b32.xlu0 %v3287, 64
        %v4012 = vpop.permute.xlu0 %4011
        %4013 = vrot.lane.b32.xlu0 %v3288, 64
        %v4014 = vpop.permute.xlu0 %4013
        %4015 = vrot.lane.b32.xlu0 %v3289, 64
        %v4016 = vpop.permute.xlu0 %4015
        %4017 = vrot.lane.b32.xlu0 %v3290, 64
        %v4018 = vpop.permute.xlu0 %4017
        %4019 = vrot.lane.b32.xlu0 %v3291, 64
        %v4020 = vpop.permute.xlu0 %4019
        %4021 = vrot.lane.b32.xlu0 %v3292, 64
        %v4022 = vpop.permute.xlu0 %4021
        %4023 = vrot.lane.b32.xlu0 %v3293, 64
        %v4024 = vpop.permute.xlu0 %4023
        %4025 = vrot.lane.b32.xlu0 %v3294, 64
        %v4026 = vpop.permute.xlu0 %4025
        %4027 = vrot.lane.b32.xlu0 %v3295, 64
        %v4028 = vpop.permute.xlu0 %4027
        %4029 = vrot.lane.b32.xlu0 %v3296, 64
        %v4030 = vpop.permute.xlu0 %4029
        %4031 = vrot.lane.b32.xlu0 %v3297, 64
        %v4032 = vpop.permute.xlu0 %4031
        %4033 = vrot.lane.b32.xlu0 %v3298, 64
        %v4034 = vpop.permute.xlu0 %4033
        %4035 = vrot.lane.b32.xlu0 %v3299, 64
        %v4036 = vpop.permute.xlu0 %4035
        %4037 = vrot.lane.b32.xlu0 %v3300, 64
        %v4038 = vpop.permute.xlu0 %4037
        %4039 = vrot.lane.b32.xlu0 %v3301, 64
        %v4040 = vpop.permute.xlu0 %4039
        %4041 = vrot.lane.b32.xlu0 %v3302, 64
        %v4042 = vpop.permute.xlu0 %4041
        %4043 = vrot.lane.b32.xlu0 %v3303, 64
        %v4044 = vpop.permute.xlu0 %4043
        %4045 = vrot.lane.b32.xlu0 %v3304, 64
        %v4046 = vpop.permute.xlu0 %4045
        %4047 = vrot.lane.b32.xlu0 %v3305, 64
        %v4048 = vpop.permute.xlu0 %4047
        %4049 = vrot.lane.b32.xlu0 %v3306, 64
        %v4050 = vpop.permute.xlu0 %4049
        %4051 = vrot.lane.b32.xlu0 %v3307, 64
        %v4052 = vpop.permute.xlu0 %4051
        %4053 = vrot.lane.b32.xlu0 %v3308, 64
        %v4054 = vpop.permute.xlu0 %4053
        %4055 = vrot.lane.b32.xlu0 %v3309, 64
        %v4056 = vpop.permute.xlu0 %4055
        %4057 = vrot.lane.b32.xlu0 %v3310, 64
        %v4058 = vpop.permute.xlu0 %4057
        %4059 = vrot.lane.b32.xlu0 %v3311, 64
        %v4060 = vpop.permute.xlu0 %4059
        %4061 = vrot.lane.b32.xlu0 %v3312, 64
        %v4062 = vpop.permute.xlu0 %4061
        %4063 = vrot.lane.b32.xlu0 %v3313, 64
        %v4064 = vpop.permute.xlu0 %4063
        %4065 = vrot.lane.b32.xlu0 %v3314, 64
        %v4066 = vpop.permute.xlu0 %4065
        %4067 = vrot.lane.b32.xlu0 %v3315, 64
        %v4068 = vpop.permute.xlu0 %4067
        %4069 = vrot.lane.b32.xlu0 %v3316, 64
        %v4070 = vpop.permute.xlu0 %4069
        %4071 = vrot.lane.b32.xlu0 %v3317, 64
        %v4072 = vpop.permute.xlu0 %4071
        %4073 = vrot.lane.b32.xlu0 %v3318, 64
        %v4074 = vpop.permute.xlu0 %4073
        %4075 = vrot.lane.b32.xlu0 %v3319, 64
        %v4076 = vpop.permute.xlu0 %4075
        %4077 = vrot.lane.b32.xlu0 %v3320, 64
        %v4078 = vpop.permute.xlu0 %4077
        %4079 = vrot.lane.b32.xlu0 %v3321, 64
        %v4080 = vpop.permute.xlu0 %4079
        %4081 = vrot.lane.b32.xlu0 %v3322, 64
        %v4082 = vpop.permute.xlu0 %4081
        %4083 = vrot.lane.b32.xlu0 %v3323, 64
        %v4084 = vpop.permute.xlu0 %4083
        %4085 = vrot.lane.b32.xlu0 %v3324, 64
        %v4086 = vpop.permute.xlu0 %4085
        %4087 = vrot.lane.b32.xlu0 %v3325, 64
        %v4088 = vpop.permute.xlu0 %4087
        %4089 = vrot.lane.b32.xlu0 %v3326, 64
        %v4090 = vpop.permute.xlu0 %4089
        %4091 = vrot.lane.b32.xlu0 %v3327, 64
        %v4092 = vpop.permute.xlu0 %4091
        %4093 = vrot.lane.b32.xlu0 %v3328, 64
        %v4094 = vpop.permute.xlu0 %4093
        %4095 = vrot.lane.b32.xlu0 %v3329, 64
        %v4096 = vpop.permute.xlu0 %4095
        %4097 = vrot.lane.b32.xlu0 %v3330, 64
        %v4098 = vpop.permute.xlu0 %4097
        %4099 = vrot.lane.b32.xlu0 %v3331, 64
        %v4100 = vpop.permute.xlu0 %4099
        %4101 = vrot.lane.b32.xlu0 %v3332, 64
        %v4102 = vpop.permute.xlu0 %4101
        %4103 = vrot.lane.b32.xlu0 %v3333, 64
        %v4104 = vpop.permute.xlu0 %4103
        %4105 = vrot.lane.b32.xlu0 %v3334, 64
        %v4106 = vpop.permute.xlu0 %4105
        %4107 = vrot.lane.b32.xlu0 %v3335, 64
        %v4108 = vpop.permute.xlu0 %4107
        %4109 = vrot.lane.b32.xlu0 %v3336, 64
        %v4110 = vpop.permute.xlu0 %4109
        %4111 = vrot.lane.b32.xlu0 %v3337, 64
        %v4112 = vpop.permute.xlu0 %4111
        %4113 = vrot.lane.b32.xlu0 %v3338, 64
        %v4114 = vpop.permute.xlu0 %4113
        %4115 = vrot.lane.b32.xlu0 %v3339, 64
        %v4116 = vpop.permute.xlu0 %4115
        %4117 = vrot.lane.b32.xlu0 %v3340, 64
        %v4118 = vpop.permute.xlu0 %4117
        %4119 = vrot.lane.b32.xlu0 %v3341, 64
        %v4120 = vpop.permute.xlu0 %4119
        %4121 = vrot.lane.b32.xlu0 %v3342, 64
        %v4122 = vpop.permute.xlu0 %4121
        %4123 = vrot.lane.b32.xlu0 %v3343, 64
        %v4124 = vpop.permute.xlu0 %4123
        %4125 = vrot.lane.b32.xlu0 %v3344, 64
        %v4126 = vpop.permute.xlu0 %4125
        %4127 = vrot.lane.b32.xlu0 %v3345, 64
        %v4128 = vpop.permute.xlu0 %4127
        %4129 = vrot.lane.b32.xlu0 %v3346, 64
        %v4130 = vpop.permute.xlu0 %4129
        %4131 = vrot.lane.b32.xlu0 %v3347, 64
        %v4132 = vpop.permute.xlu0 %4131
        %4133 = vrot.lane.b32.xlu0 %v3348, 64
        %v4134 = vpop.permute.xlu0 %4133
        %4135 = vrot.lane.b32.xlu0 %v3349, 64
        %v4136 = vpop.permute.xlu0 %4135
        %4137 = vrot.lane.b32.xlu0 %v3350, 64
        %v4138 = vpop.permute.xlu0 %4137
        %4139 = vrot.lane.b32.xlu0 %v3351, 64
        %v4140 = vpop.permute.xlu0 %4139
        %4141 = vrot.lane.b32.xlu0 %v3352, 64
        %v4142 = vpop.permute.xlu0 %4141
        %4143 = vrot.lane.b32.xlu0 %v3353, 64
        %v4144 = vpop.permute.xlu0 %4143
        %4145 = vrot.lane.b32.xlu0 %v3354, 64
        %v4146 = vpop.permute.xlu0 %4145
        %4147 = vrot.lane.b32.xlu0 %v3355, 64
        %v4148 = vpop.permute.xlu0 %4147
        %4149 = vrot.lane.b32.xlu0 %v3356, 64
        %v4150 = vpop.permute.xlu0 %4149
        %4151 = vrot.lane.b32.xlu0 %v3357, 64
        %v4152 = vpop.permute.xlu0 %4151
        %4153 = vrot.lane.b32.xlu0 %v3358, 64
        %v4154 = vpop.permute.xlu0 %4153
        %4155 = vrot.lane.b32.xlu0 %v3359, 64
        %v4156 = vpop.permute.xlu0 %4155
        %4157 = vrot.lane.b32.xlu0 %v3360, 64
        %v4158 = vpop.permute.xlu0 %4157
        %4159 = vrot.lane.b32.xlu0 %v3361, 64
        %v4160 = vpop.permute.xlu0 %4159
        %4161 = vrot.lane.b32.xlu0 %v3362, 64
        %v4162 = vpop.permute.xlu0 %4161
        %4163 = vrot.lane.b32.xlu0 %v3363, 64
        %v4164 = vpop.permute.xlu0 %4163
        %4165 = vrot.lane.b32.xlu0 %v3364, 64
        %v4166 = vpop.permute.xlu0 %4165
        %4167 = vrot.lane.b32.xlu0 %v3365, 64
        %v4168 = vpop.permute.xlu0 %4167
        %4169 = vrot.lane.b32.xlu0 %v3366, 64
        %v4170 = vpop.permute.xlu0 %4169
        %4171 = vrot.lane.b32.xlu0 %v3367, 64
        %v4172 = vpop.permute.xlu0 %4171
        %4173 = vrot.lane.b32.xlu0 %v3368, 64
        %v4174 = vpop.permute.xlu0 %4173
        %4175 = vrot.lane.b32.xlu0 %v3369, 64
        %v4176 = vpop.permute.xlu0 %4175
        %4177 = vrot.lane.b32.xlu0 %v3370, 64
        %v4178 = vpop.permute.xlu0 %4177
        %4403 = vrot.lane.b32.xlu0 %v3039, 96
        %v4404 = vpop.permute.xlu0 %4403
        %4405 = vrot.lane.b32.xlu0 %v3040, 96
        %v4406 = vpop.permute.xlu0 %4405
        %4407 = vrot.lane.b32.xlu0 %v3041, 96
        %v4408 = vpop.permute.xlu0 %4407
        %4409 = vrot.lane.b32.xlu0 %v3042, 96
        %v4410 = vpop.permute.xlu0 %4409
        %4411 = vrot.lane.b32.xlu0 %v3043, 96
        %v4412 = vpop.permute.xlu0 %4411
        %4413 = vrot.lane.b32.xlu0 %v3044, 96
        %v4414 = vpop.permute.xlu0 %4413
        %4415 = vrot.lane.b32.xlu0 %v3045, 96
        %v4416 = vpop.permute.xlu0 %4415
        %4417 = vrot.lane.b32.xlu0 %v3046, 96
        %v4418 = vpop.permute.xlu0 %4417
        %4419 = vrot.lane.b32.xlu0 %v3047, 96
        %v4420 = vpop.permute.xlu0 %4419
        %4421 = vrot.lane.b32.xlu0 %v3048, 96
        %v4422 = vpop.permute.xlu0 %4421
        %4423 = vrot.lane.b32.xlu0 %v3049, 96
        %v4424 = vpop.permute.xlu0 %4423
        %4425 = vrot.lane.b32.xlu0 %v3050, 96
        %v4426 = vpop.permute.xlu0 %4425
        %4427 = vrot.lane.b32.xlu0 %v3051, 96
        %v4428 = vpop.permute.xlu0 %4427
        %4429 = vrot.lane.b32.xlu0 %v3052, 96
        %v4430 = vpop.permute.xlu0 %4429
        %4431 = vrot.lane.b32.xlu0 %v3053, 96
        %v4432 = vpop.permute.xlu0 %4431
        %4433 = vrot.lane.b32.xlu0 %v3054, 96
        %v4434 = vpop.permute.xlu0 %4433
        %4435 = vrot.lane.b32.xlu0 %v3055, 96
        %v4436 = vpop.permute.xlu0 %4435
        %4437 = vrot.lane.b32.xlu0 %v3056, 96
        %v4438 = vpop.permute.xlu0 %4437
        %4439 = vrot.lane.b32.xlu0 %v3057, 96
        %v4440 = vpop.permute.xlu0 %4439
        %4441 = vrot.lane.b32.xlu0 %v3058, 96
        %v4442 = vpop.permute.xlu0 %4441
        %4443 = vrot.lane.b32.xlu0 %v3059, 96
        %v4444 = vpop.permute.xlu0 %4443
        %4445 = vrot.lane.b32.xlu0 %v3060, 96
        %v4446 = vpop.permute.xlu0 %4445
        %4447 = vrot.lane.b32.xlu0 %v3061, 96
        %v4448 = vpop.permute.xlu0 %4447
        %4449 = vrot.lane.b32.xlu0 %v3062, 96
        %v4450 = vpop.permute.xlu0 %4449
        %4451 = vrot.lane.b32.xlu0 %v3063, 96
        %v4452 = vpop.permute.xlu0 %4451
        %4453 = vrot.lane.b32.xlu0 %v3064, 96
        %v4454 = vpop.permute.xlu0 %4453
        %4455 = vrot.lane.b32.xlu0 %v3065, 96
        %v4456 = vpop.permute.xlu0 %4455
        %4457 = vrot.lane.b32.xlu0 %v3066, 96
        %v4458 = vpop.permute.xlu0 %4457
        %4459 = vrot.lane.b32.xlu0 %v3067, 96
        %v4460 = vpop.permute.xlu0 %4459
        %4461 = vrot.lane.b32.xlu0 %v3068, 96
        %v4462 = vpop.permute.xlu0 %4461
        %4463 = vrot.lane.b32.xlu0 %v3069, 96
        %v4464 = vpop.permute.xlu0 %4463
        %4465 = vrot.lane.b32.xlu0 %v3070, 96
        %v4466 = vpop.permute.xlu0 %4465
        %4467 = vrot.lane.b32.xlu0 %v3071, 96
        %v4468 = vpop.permute.xlu0 %4467
        %4469 = vrot.lane.b32.xlu0 %v3072, 96
        %v4470 = vpop.permute.xlu0 %4469
        %4471 = vrot.lane.b32.xlu0 %v3073, 96
        %v4472 = vpop.permute.xlu0 %4471
        %4473 = vrot.lane.b32.xlu0 %v3074, 96
        %v4474 = vpop.permute.xlu0 %4473
        %4475 = vrot.lane.b32.xlu0 %v3075, 96
        %v4476 = vpop.permute.xlu0 %4475
        %4477 = vrot.lane.b32.xlu0 %v3076, 96
        %v4478 = vpop.permute.xlu0 %4477
        %4479 = vrot.lane.b32.xlu0 %v3077, 96
        %v4480 = vpop.permute.xlu0 %4479
        %4481 = vrot.lane.b32.xlu0 %v3078, 96
        %v4482 = vpop.permute.xlu0 %4481
        %4483 = vrot.lane.b32.xlu0 %v3079, 96
        %v4484 = vpop.permute.xlu0 %4483
        %4485 = vrot.lane.b32.xlu0 %v3080, 96
        %v4486 = vpop.permute.xlu0 %4485
        %4487 = vrot.lane.b32.xlu0 %v3081, 96
        %v4488 = vpop.permute.xlu0 %4487
        %4489 = vrot.lane.b32.xlu0 %v3082, 96
        %v4490 = vpop.permute.xlu0 %4489
        %4491 = vrot.lane.b32.xlu0 %v3083, 96
        %v4492 = vpop.permute.xlu0 %4491
        %4493 = vrot.lane.b32.xlu0 %v3084, 96
        %v4494 = vpop.permute.xlu0 %4493
        %4495 = vrot.lane.b32.xlu0 %v3085, 96
        %v4496 = vpop.permute.xlu0 %4495
        %4497 = vrot.lane.b32.xlu0 %v3086, 96
        %v4498 = vpop.permute.xlu0 %4497
        %4499 = vrot.lane.b32.xlu0 %v3087, 96
        %v4500 = vpop.permute.xlu0 %4499
        %4501 = vrot.lane.b32.xlu0 %v3088, 96
        %v4502 = vpop.permute.xlu0 %4501
        %4503 = vrot.lane.b32.xlu0 %v3089, 96
        %v4504 = vpop.permute.xlu0 %4503
        %4505 = vrot.lane.b32.xlu0 %v3090, 96
        %v4506 = vpop.permute.xlu0 %4505
        %4507 = vrot.lane.b32.xlu0 %v3091, 96
        %v4508 = vpop.permute.xlu0 %4507
        %4509 = vrot.lane.b32.xlu0 %v3092, 96
        %v4510 = vpop.permute.xlu0 %4509
        %4511 = vrot.lane.b32.xlu0 %v3093, 96
        %v4512 = vpop.permute.xlu0 %4511
        %4513 = vrot.lane.b32.xlu0 %v3094, 96
        %v4514 = vpop.permute.xlu0 %4513
        %4515 = vrot.lane.b32.xlu0 %v3095, 96
        %v4516 = vpop.permute.xlu0 %4515
        %4517 = vrot.lane.b32.xlu0 %v3096, 96
        %v4518 = vpop.permute.xlu0 %4517
        %4519 = vrot.lane.b32.xlu0 %v3097, 96
        %v4520 = vpop.permute.xlu0 %4519
        %4521 = vrot.lane.b32.xlu0 %v3098, 96
        %v4522 = vpop.permute.xlu0 %4521
        %4523 = vrot.lane.b32.xlu0 %v3099, 96
        %v4524 = vpop.permute.xlu0 %4523
        %4525 = vrot.lane.b32.xlu0 %v3100, 96
        %v4526 = vpop.permute.xlu0 %4525
        %4527 = vrot.lane.b32.xlu0 %v3101, 96
        %v4528 = vpop.permute.xlu0 %4527
        %4529 = vrot.lane.b32.xlu0 %v3102, 96
        %v4530 = vpop.permute.xlu0 %4529
        %4531 = vrot.lane.b32.xlu0 %v3103, 96
        %v4532 = vpop.permute.xlu0 %4531
        %4533 = vrot.lane.b32.xlu0 %v3104, 96
        %v4534 = vpop.permute.xlu0 %4533
        %4535 = vrot.lane.b32.xlu0 %v3105, 96
        %v4536 = vpop.permute.xlu0 %4535
        %4537 = vrot.lane.b32.xlu0 %v3106, 96
        %v4538 = vpop.permute.xlu0 %4537
        %4539 = vrot.lane.b32.xlu0 %v3107, 96
        %v4540 = vpop.permute.xlu0 %4539
        %4541 = vrot.lane.b32.xlu0 %v3108, 96
        %v4542 = vpop.permute.xlu0 %4541
        %4543 = vrot.lane.b32.xlu0 %v3109, 96
        %v4544 = vpop.permute.xlu0 %4543
        %4545 = vrot.lane.b32.xlu0 %v3110, 96
        %v4546 = vpop.permute.xlu0 %4545
        %4547 = vrot.lane.b32.xlu0 %v3111, 96
        %v4548 = vpop.permute.xlu0 %4547
        %4549 = vrot.lane.b32.xlu0 %v3112, 96
        %v4550 = vpop.permute.xlu0 %4549
        %4551 = vrot.lane.b32.xlu0 %v3113, 96
        %v4552 = vpop.permute.xlu0 %4551
        %4553 = vrot.lane.b32.xlu0 %v3114, 96
        %v4554 = vpop.permute.xlu0 %4553
        %4555 = vrot.lane.b32.xlu0 %v3115, 96
        %v4556 = vpop.permute.xlu0 %4555
        %4557 = vrot.lane.b32.xlu0 %v3116, 96
        %v4558 = vpop.permute.xlu0 %4557
        %4559 = vrot.lane.b32.xlu0 %v3117, 96
        %v4560 = vpop.permute.xlu0 %4559
        %4561 = vrot.lane.b32.xlu0 %v3118, 96
        %v4562 = vpop.permute.xlu0 %4561
        %4563 = vrot.lane.b32.xlu0 %v3119, 96
        %v4564 = vpop.permute.xlu0 %4563
        %4565 = vrot.lane.b32.xlu0 %v3120, 96
        %v4566 = vpop.permute.xlu0 %4565
        %4567 = vrot.lane.b32.xlu0 %v3121, 96
        %v4568 = vpop.permute.xlu0 %4567
        %4569 = vrot.lane.b32.xlu0 %v3122, 96
        %v4570 = vpop.permute.xlu0 %4569
        %4571 = vrot.lane.b32.xlu0 %v3123, 96
        %v4572 = vpop.permute.xlu0 %4571
        %4573 = vrot.lane.b32.xlu0 %v3124, 96
        %v4574 = vpop.permute.xlu0 %4573
        %4575 = vrot.lane.b32.xlu0 %v3125, 96
        %v4576 = vpop.permute.xlu0 %4575
        %4577 = vrot.lane.b32.xlu0 %v3126, 96
        %v4578 = vpop.permute.xlu0 %4577
        %4579 = vrot.lane.b32.xlu0 %v3127, 96
        %v4580 = vpop.permute.xlu0 %4579
        %4581 = vrot.lane.b32.xlu0 %v3128, 96
        %v4582 = vpop.permute.xlu0 %4581
        %4583 = vrot.lane.b32.xlu0 %v3129, 96
        %v4584 = vpop.permute.xlu0 %4583
        %4585 = vrot.lane.b32.xlu0 %v3130, 96
        %v4586 = vpop.permute.xlu0 %4585
        %4587 = vrot.lane.b32.xlu0 %v3131, 96
        %v4588 = vpop.permute.xlu0 %4587
        %4589 = vrot.lane.b32.xlu0 %v3132, 96
        %v4590 = vpop.permute.xlu0 %4589
        %4591 = vrot.lane.b32.xlu0 %v3133, 96
        %v4592 = vpop.permute.xlu0 %4591
        %4593 = vrot.lane.b32.xlu0 %v3134, 96
        %v4594 = vpop.permute.xlu0 %4593
        %4595 = vrot.lane.b32.xlu0 %v3135, 96
        %v4596 = vpop.permute.xlu0 %4595
        %4597 = vrot.lane.b32.xlu0 %v3136, 96
        %v4598 = vpop.permute.xlu0 %4597
        %4599 = vrot.lane.b32.xlu0 %v3137, 96
        %v4600 = vpop.permute.xlu0 %4599
        %4601 = vrot.lane.b32.xlu0 %v3138, 96
        %v4602 = vpop.permute.xlu0 %4601
        %4603 = vrot.lane.b32.xlu0 %v3139, 96
        %v4604 = vpop.permute.xlu0 %4603
        %4605 = vrot.lane.b32.xlu0 %v3140, 96
        %v4606 = vpop.permute.xlu0 %4605
        %4607 = vrot.lane.b32.xlu0 %v3141, 96
        %v4608 = vpop.permute.xlu0 %4607
        %4609 = vrot.lane.b32.xlu0 %v3142, 96
        %v4610 = vpop.permute.xlu0 %4609
        %4611 = vrot.lane.b32.xlu0 %v3143, 96
        %v4612 = vpop.permute.xlu0 %4611
        %4613 = vrot.lane.b32.xlu0 %v3144, 96
        %v4614 = vpop.permute.xlu0 %4613
        %4615 = vrot.lane.b32.xlu0 %v3145, 96
        %v4616 = vpop.permute.xlu0 %4615
        %4617 = vrot.lane.b32.xlu0 %v3146, 96
        %v4618 = vpop.permute.xlu0 %4617
        %4619 = vrot.lane.b32.xlu0 %v3371, 96
        %v4620 = vpop.permute.xlu0 %4619
        %4621 = vrot.lane.b32.xlu0 %v3372, 96
        %v4622 = vpop.permute.xlu0 %4621
        %4623 = vrot.lane.b32.xlu0 %v3373, 96
        %v4624 = vpop.permute.xlu0 %4623
        %4625 = vrot.lane.b32.xlu0 %v3374, 96
        %v4626 = vpop.permute.xlu0 %4625
        %4743 = vrot.lane.b32.xlu0 %v3263, 32
        %v4744 = vpop.permute.xlu0 %4743
        %4745 = vrot.lane.b32.xlu0 %v3264, 32
        %v4746 = vpop.permute.xlu0 %4745
        %4747 = vrot.lane.b32.xlu0 %v3265, 32
        %v4748 = vpop.permute.xlu0 %4747
        %4749 = vrot.lane.b32.xlu0 %v3266, 32
        %v4750 = vpop.permute.xlu0 %4749
        %4751 = vrot.lane.b32.xlu0 %v3267, 32
        %v4752 = vpop.permute.xlu0 %4751
        %4753 = vrot.lane.b32.xlu0 %v3268, 32
        %v4754 = vpop.permute.xlu0 %4753
        %4755 = vrot.lane.b32.xlu0 %v3269, 32
        %v4756 = vpop.permute.xlu0 %4755
        %4757 = vrot.lane.b32.xlu0 %v3270, 32
        %v4758 = vpop.permute.xlu0 %4757
        %4759 = vrot.lane.b32.xlu0 %v3271, 32
        %v4760 = vpop.permute.xlu0 %4759
        %4761 = vrot.lane.b32.xlu0 %v3272, 32
        %v4762 = vpop.permute.xlu0 %4761
        %4763 = vrot.lane.b32.xlu0 %v3273, 32
        %v4764 = vpop.permute.xlu0 %4763
        %4765 = vrot.lane.b32.xlu0 %v3274, 32
        %v4766 = vpop.permute.xlu0 %4765
        %4767 = vrot.lane.b32.xlu0 %v3275, 32
        %v4768 = vpop.permute.xlu0 %4767
        %4769 = vrot.lane.b32.xlu0 %v3276, 32
        %v4770 = vpop.permute.xlu0 %4769
        %4771 = vrot.lane.b32.xlu0 %v3277, 32
        %v4772 = vpop.permute.xlu0 %4771
        %4773 = vrot.lane.b32.xlu0 %v3278, 32
        %v4774 = vpop.permute.xlu0 %4773
        %4775 = vrot.lane.b32.xlu0 %v3279, 32
        %v4776 = vpop.permute.xlu0 %4775
        %4777 = vrot.lane.b32.xlu0 %v3280, 32
        %v4778 = vpop.permute.xlu0 %4777
        %4779 = vrot.lane.b32.xlu0 %v3281, 32
        %v4780 = vpop.permute.xlu0 %4779
        %4781 = vrot.lane.b32.xlu0 %v3282, 32
        %v4782 = vpop.permute.xlu0 %4781
        %4783 = vrot.lane.b32.xlu0 %v3283, 32
        %v4784 = vpop.permute.xlu0 %4783
        %4785 = vrot.lane.b32.xlu0 %v3284, 32
        %v4786 = vpop.permute.xlu0 %4785
        %4787 = vrot.lane.b32.xlu0 %v3285, 32
        %v4788 = vpop.permute.xlu0 %4787
        %4789 = vrot.lane.b32.xlu0 %v3286, 32
        %v4790 = vpop.permute.xlu0 %4789
        %4791 = vrot.lane.b32.xlu0 %v3287, 32
        %v4792 = vpop.permute.xlu0 %4791
        %4793 = vrot.lane.b32.xlu0 %v3288, 32
        %v4794 = vpop.permute.xlu0 %4793
        %4795 = vrot.lane.b32.xlu0 %v3289, 32
        %v4796 = vpop.permute.xlu0 %4795
        %4797 = vrot.lane.b32.xlu0 %v3290, 32
        %v4798 = vpop.permute.xlu0 %4797
        %4799 = vrot.lane.b32.xlu0 %v3291, 32
        %v4800 = vpop.permute.xlu0 %4799
        %4801 = vrot.lane.b32.xlu0 %v3292, 32
        %v4802 = vpop.permute.xlu0 %4801
        %4803 = vrot.lane.b32.xlu0 %v3293, 32
        %v4804 = vpop.permute.xlu0 %4803
        %4805 = vrot.lane.b32.xlu0 %v3294, 32
        %v4806 = vpop.permute.xlu0 %4805
        %4807 = vrot.lane.b32.xlu0 %v3295, 32
        %v4808 = vpop.permute.xlu0 %4807
        %4809 = vrot.lane.b32.xlu0 %v3296, 32
        %v4810 = vpop.permute.xlu0 %4809
        %4811 = vrot.lane.b32.xlu0 %v3297, 32
        %v4812 = vpop.permute.xlu0 %4811
        %4813 = vrot.lane.b32.xlu0 %v3298, 32
        %v4814 = vpop.permute.xlu0 %4813
        %4815 = vrot.lane.b32.xlu0 %v3299, 32
        %v4816 = vpop.permute.xlu0 %4815
        %4817 = vrot.lane.b32.xlu0 %v3300, 32
        %v4818 = vpop.permute.xlu0 %4817
        %4819 = vrot.lane.b32.xlu0 %v3301, 32
        %v4820 = vpop.permute.xlu0 %4819
        %4821 = vrot.lane.b32.xlu0 %v3302, 32
        %v4822 = vpop.permute.xlu0 %4821
        %4823 = vrot.lane.b32.xlu0 %v3303, 32
        %v4824 = vpop.permute.xlu0 %4823
        %4825 = vrot.lane.b32.xlu0 %v3304, 32
        %v4826 = vpop.permute.xlu0 %4825
        %4827 = vrot.lane.b32.xlu0 %v3305, 32
        %v4828 = vpop.permute.xlu0 %4827
        %4829 = vrot.lane.b32.xlu0 %v3306, 32
        %v4830 = vpop.permute.xlu0 %4829
        %4831 = vrot.lane.b32.xlu0 %v3307, 32
        %v4832 = vpop.permute.xlu0 %4831
        %4833 = vrot.lane.b32.xlu0 %v3308, 32
        %v4834 = vpop.permute.xlu0 %4833
        %4835 = vrot.lane.b32.xlu0 %v3309, 32
        %v4836 = vpop.permute.xlu0 %4835
        %4837 = vrot.lane.b32.xlu0 %v3310, 32
        %v4838 = vpop.permute.xlu0 %4837
        %4839 = vrot.lane.b32.xlu0 %v3311, 32
        %v4840 = vpop.permute.xlu0 %4839
        %4841 = vrot.lane.b32.xlu0 %v3312, 32
        %v4842 = vpop.permute.xlu0 %4841
        %4843 = vrot.lane.b32.xlu0 %v3313, 32
        %v4844 = vpop.permute.xlu0 %4843
        %4845 = vrot.lane.b32.xlu0 %v3314, 32
        %v4846 = vpop.permute.xlu0 %4845
        %4847 = vrot.lane.b32.xlu0 %v3315, 32
        %v4848 = vpop.permute.xlu0 %4847
        %4849 = vrot.lane.b32.xlu0 %v3316, 32
        %v4850 = vpop.permute.xlu0 %4849
        %4851 = vrot.lane.b32.xlu0 %v3317, 32
        %v4852 = vpop.permute.xlu0 %4851
        %4853 = vrot.lane.b32.xlu0 %v3318, 32
        %v4854 = vpop.permute.xlu0 %4853
        %4855 = vrot.lane.b32.xlu0 %v3319, 32
        %v4856 = vpop.permute.xlu0 %4855
        %4857 = vrot.lane.b32.xlu0 %v3320, 32
        %v4858 = vpop.permute.xlu0 %4857
        %4859 = vrot.lane.b32.xlu0 %v3321, 32
        %v4860 = vpop.permute.xlu0 %4859
        %4861 = vrot.lane.b32.xlu0 %v3322, 32
        %v4862 = vpop.permute.xlu0 %4861
        %4863 = vrot.lane.b32.xlu0 %v3323, 32
        %v4864 = vpop.permute.xlu0 %4863
        %4865 = vrot.lane.b32.xlu0 %v3324, 32
        %v4866 = vpop.permute.xlu0 %4865
        %4867 = vrot.lane.b32.xlu0 %v3325, 32
        %v4868 = vpop.permute.xlu0 %4867
        %4869 = vrot.lane.b32.xlu0 %v3326, 32
        %v4870 = vpop.permute.xlu0 %4869
        %4871 = vrot.lane.b32.xlu0 %v3327, 32
        %v4872 = vpop.permute.xlu0 %4871
        %4873 = vrot.lane.b32.xlu0 %v3328, 32
        %v4874 = vpop.permute.xlu0 %4873
        %4875 = vrot.lane.b32.xlu0 %v3329, 32
        %v4876 = vpop.permute.xlu0 %4875
        %4877 = vrot.lane.b32.xlu0 %v3330, 32
        %v4878 = vpop.permute.xlu0 %4877
        %4879 = vrot.lane.b32.xlu0 %v3331, 32
        %v4880 = vpop.permute.xlu0 %4879
        %4881 = vrot.lane.b32.xlu0 %v3332, 32
        %v4882 = vpop.permute.xlu0 %4881
        %4883 = vrot.lane.b32.xlu0 %v3333, 32
        %v4884 = vpop.permute.xlu0 %4883
        %4885 = vrot.lane.b32.xlu0 %v3334, 32
        %v4886 = vpop.permute.xlu0 %4885
        %4887 = vrot.lane.b32.xlu0 %v3335, 32
        %v4888 = vpop.permute.xlu0 %4887
        %4889 = vrot.lane.b32.xlu0 %v3336, 32
        %v4890 = vpop.permute.xlu0 %4889
        %4891 = vrot.lane.b32.xlu0 %v3337, 32
        %v4892 = vpop.permute.xlu0 %4891
        %4893 = vrot.lane.b32.xlu0 %v3338, 32
        %v4894 = vpop.permute.xlu0 %4893
        %4895 = vrot.lane.b32.xlu0 %v3339, 32
        %v4896 = vpop.permute.xlu0 %4895
        %4897 = vrot.lane.b32.xlu0 %v3340, 32
        %v4898 = vpop.permute.xlu0 %4897
        %4899 = vrot.lane.b32.xlu0 %v3341, 32
        %v4900 = vpop.permute.xlu0 %4899
        %4901 = vrot.lane.b32.xlu0 %v3342, 32
        %v4902 = vpop.permute.xlu0 %4901
        %4903 = vrot.lane.b32.xlu0 %v3343, 32
        %v4904 = vpop.permute.xlu0 %4903
        %4905 = vrot.lane.b32.xlu0 %v3344, 32
        %v4906 = vpop.permute.xlu0 %4905
        %4907 = vrot.lane.b32.xlu0 %v3345, 32
        %v4908 = vpop.permute.xlu0 %4907
        %4909 = vrot.lane.b32.xlu0 %v3346, 32
        %v4910 = vpop.permute.xlu0 %4909
        %4911 = vrot.lane.b32.xlu0 %v3347, 32
        %v4912 = vpop.permute.xlu0 %4911
        %4913 = vrot.lane.b32.xlu0 %v3348, 32
        %v4914 = vpop.permute.xlu0 %4913
        %4915 = vrot.lane.b32.xlu0 %v3349, 32
        %v4916 = vpop.permute.xlu0 %4915
        %4917 = vrot.lane.b32.xlu0 %v3350, 32
        %v4918 = vpop.permute.xlu0 %4917
        %4919 = vrot.lane.b32.xlu0 %v3351, 32
        %v4920 = vpop.permute.xlu0 %4919
        %4921 = vrot.lane.b32.xlu0 %v3352, 32
        %v4922 = vpop.permute.xlu0 %4921
        %4923 = vrot.lane.b32.xlu0 %v3353, 32
        %v4924 = vpop.permute.xlu0 %4923
        %4925 = vrot.lane.b32.xlu0 %v3354, 32
        %v4926 = vpop.permute.xlu0 %4925
        %4927 = vrot.lane.b32.xlu0 %v3355, 32
        %v4928 = vpop.permute.xlu0 %4927
        %4929 = vrot.lane.b32.xlu0 %v3356, 32
        %v4930 = vpop.permute.xlu0 %4929
        %4931 = vrot.lane.b32.xlu0 %v3357, 32
        %v4932 = vpop.permute.xlu0 %4931
        %4933 = vrot.lane.b32.xlu0 %v3358, 32
        %v4934 = vpop.permute.xlu0 %4933
        %4935 = vrot.lane.b32.xlu0 %v3359, 32
        %v4936 = vpop.permute.xlu0 %4935
        %4937 = vrot.lane.b32.xlu0 %v3360, 32
        %v4938 = vpop.permute.xlu0 %4937
        %4939 = vrot.lane.b32.xlu0 %v3361, 32
        %v4940 = vpop.permute.xlu0 %4939
        %4941 = vrot.lane.b32.xlu0 %v3362, 32
        %v4942 = vpop.permute.xlu0 %4941
        %4943 = vrot.lane.b32.xlu0 %v3363, 32
        %v4944 = vpop.permute.xlu0 %4943
        %4945 = vrot.lane.b32.xlu0 %v3364, 32
        %v4946 = vpop.permute.xlu0 %4945
        %4947 = vrot.lane.b32.xlu0 %v3365, 32
        %v4948 = vpop.permute.xlu0 %4947
        %4949 = vrot.lane.b32.xlu0 %v3366, 32
        %v4950 = vpop.permute.xlu0 %4949
        %4951 = vrot.lane.b32.xlu0 %v3367, 32
        %v4952 = vpop.permute.xlu0 %4951
        %4953 = vrot.lane.b32.xlu0 %v3368, 32
        %v4954 = vpop.permute.xlu0 %4953
        %4955 = vrot.lane.b32.xlu0 %v3369, 32
        %v4956 = vpop.permute.xlu0 %4955
        %4957 = vrot.lane.b32.xlu0 %v3370, 32
        %v4958 = vpop.permute.xlu0 %4957
        %4959 = vrot.lane.b32.xlu0 %v3379, 32
        %v4960 = vpop.permute.xlu0 %4959
        %4961 = vrot.lane.b32.xlu0 %v3380, 32
        %v4962 = vpop.permute.xlu0 %4961
        %4963 = vrot.lane.b32.xlu0 %v3381, 32
        %v4964 = vpop.permute.xlu0 %4963
        %4965 = vrot.lane.b32.xlu0 %v3382, 32
        %v4966 = vpop.permute.xlu0 %4965
        %5083 = vrot.lane.b32.xlu0 %v3043, 64
        %v5084 = vpop.permute.xlu0 %5083
        %5085 = vrot.lane.b32.xlu0 %v3044, 64
        %v5086 = vpop.permute.xlu0 %5085
        %5087 = vrot.lane.b32.xlu0 %v3045, 64
        %v5088 = vpop.permute.xlu0 %5087
        %5089 = vrot.lane.b32.xlu0 %v3046, 64
        %v5090 = vpop.permute.xlu0 %5089
        %5091 = vrot.lane.b32.xlu0 %v3047, 64
        %v5092 = vpop.permute.xlu0 %5091
        %5093 = vrot.lane.b32.xlu0 %v3048, 64
        %v5094 = vpop.permute.xlu0 %5093
        %5095 = vrot.lane.b32.xlu0 %v3049, 64
        %v5096 = vpop.permute.xlu0 %5095
        %5097 = vrot.lane.b32.xlu0 %v3050, 64
        %v5098 = vpop.permute.xlu0 %5097
        %5099 = vrot.lane.b32.xlu0 %v3051, 64
        %v5100 = vpop.permute.xlu0 %5099
        %5101 = vrot.lane.b32.xlu0 %v3052, 64
        %v5102 = vpop.permute.xlu0 %5101
        %5103 = vrot.lane.b32.xlu0 %v3053, 64
        %v5104 = vpop.permute.xlu0 %5103
        %5105 = vrot.lane.b32.xlu0 %v3054, 64
        %v5106 = vpop.permute.xlu0 %5105
        %5107 = vrot.lane.b32.xlu0 %v3055, 64
        %v5108 = vpop.permute.xlu0 %5107
        %5109 = vrot.lane.b32.xlu0 %v3056, 64
        %v5110 = vpop.permute.xlu0 %5109
        %5111 = vrot.lane.b32.xlu0 %v3057, 64
        %v5112 = vpop.permute.xlu0 %5111
        %5113 = vrot.lane.b32.xlu0 %v3058, 64
        %v5114 = vpop.permute.xlu0 %5113
        %5115 = vrot.lane.b32.xlu0 %v3059, 64
        %v5116 = vpop.permute.xlu0 %5115
        %5117 = vrot.lane.b32.xlu0 %v3060, 64
        %v5118 = vpop.permute.xlu0 %5117
        %5119 = vrot.lane.b32.xlu0 %v3061, 64
        %v5120 = vpop.permute.xlu0 %5119
        %5121 = vrot.lane.b32.xlu0 %v3062, 64
        %v5122 = vpop.permute.xlu0 %5121
        %5123 = vrot.lane.b32.xlu0 %v3063, 64
        %v5124 = vpop.permute.xlu0 %5123
        %5125 = vrot.lane.b32.xlu0 %v3064, 64
        %v5126 = vpop.permute.xlu0 %5125
        %5127 = vrot.lane.b32.xlu0 %v3065, 64
        %v5128 = vpop.permute.xlu0 %5127
        %5129 = vrot.lane.b32.xlu0 %v3066, 64
        %v5130 = vpop.permute.xlu0 %5129
        %5131 = vrot.lane.b32.xlu0 %v3067, 64
        %v5132 = vpop.permute.xlu0 %5131
        %5133 = vrot.lane.b32.xlu0 %v3068, 64
        %v5134 = vpop.permute.xlu0 %5133
        %5135 = vrot.lane.b32.xlu0 %v3069, 64
        %v5136 = vpop.permute.xlu0 %5135
        %5137 = vrot.lane.b32.xlu0 %v3070, 64
        %v5138 = vpop.permute.xlu0 %5137
        %5139 = vrot.lane.b32.xlu0 %v3071, 64
        %v5140 = vpop.permute.xlu0 %5139
        %5141 = vrot.lane.b32.xlu0 %v3072, 64
        %v5142 = vpop.permute.xlu0 %5141
        %5143 = vrot.lane.b32.xlu0 %v3073, 64
        %v5144 = vpop.permute.xlu0 %5143
        %5145 = vrot.lane.b32.xlu0 %v3074, 64
        %v5146 = vpop.permute.xlu0 %5145
        %5147 = vrot.lane.b32.xlu0 %v3075, 64
        %v5148 = vpop.permute.xlu0 %5147
        %5149 = vrot.lane.b32.xlu0 %v3076, 64
        %v5150 = vpop.permute.xlu0 %5149
        %5151 = vrot.lane.b32.xlu0 %v3077, 64
        %v5152 = vpop.permute.xlu0 %5151
        %5153 = vrot.lane.b32.xlu0 %v3078, 64
        %v5154 = vpop.permute.xlu0 %5153
        %5155 = vrot.lane.b32.xlu0 %v3079, 64
        %v5156 = vpop.permute.xlu0 %5155
        %5157 = vrot.lane.b32.xlu0 %v3080, 64
        %v5158 = vpop.permute.xlu0 %5157
        %5159 = vrot.lane.b32.xlu0 %v3081, 64
        %v5160 = vpop.permute.xlu0 %5159
        %5161 = vrot.lane.b32.xlu0 %v3082, 64
        %v5162 = vpop.permute.xlu0 %5161
        %5163 = vrot.lane.b32.xlu0 %v3083, 64
        %v5164 = vpop.permute.xlu0 %5163
        %5165 = vrot.lane.b32.xlu0 %v3084, 64
        %v5166 = vpop.permute.xlu0 %5165
        %5167 = vrot.lane.b32.xlu0 %v3085, 64
        %v5168 = vpop.permute.xlu0 %5167
        %5169 = vrot.lane.b32.xlu0 %v3086, 64
        %v5170 = vpop.permute.xlu0 %5169
        %5171 = vrot.lane.b32.xlu0 %v3087, 64
        %v5172 = vpop.permute.xlu0 %5171
        %5173 = vrot.lane.b32.xlu0 %v3088, 64
        %v5174 = vpop.permute.xlu0 %5173
        %5175 = vrot.lane.b32.xlu0 %v3089, 64
        %v5176 = vpop.permute.xlu0 %5175
        %5177 = vrot.lane.b32.xlu0 %v3090, 64
        %v5178 = vpop.permute.xlu0 %5177
        %5179 = vrot.lane.b32.xlu0 %v3091, 64
        %v5180 = vpop.permute.xlu0 %5179
        %5181 = vrot.lane.b32.xlu0 %v3092, 64
        %v5182 = vpop.permute.xlu0 %5181
        %5183 = vrot.lane.b32.xlu0 %v3093, 64
        %v5184 = vpop.permute.xlu0 %5183
        %5185 = vrot.lane.b32.xlu0 %v3094, 64
        %v5186 = vpop.permute.xlu0 %5185
        %5187 = vrot.lane.b32.xlu0 %v3095, 64
        %v5188 = vpop.permute.xlu0 %5187
        %5189 = vrot.lane.b32.xlu0 %v3096, 64
        %v5190 = vpop.permute.xlu0 %5189
        %5191 = vrot.lane.b32.xlu0 %v3097, 64
        %v5192 = vpop.permute.xlu0 %5191
        %5193 = vrot.lane.b32.xlu0 %v3098, 64
        %v5194 = vpop.permute.xlu0 %5193
        %5195 = vrot.lane.b32.xlu0 %v3099, 64
        %v5196 = vpop.permute.xlu0 %5195
        %5197 = vrot.lane.b32.xlu0 %v3100, 64
        %v5198 = vpop.permute.xlu0 %5197
        %5199 = vrot.lane.b32.xlu0 %v3101, 64
        %v5200 = vpop.permute.xlu0 %5199
        %5201 = vrot.lane.b32.xlu0 %v3102, 64
        %v5202 = vpop.permute.xlu0 %5201
        %5203 = vrot.lane.b32.xlu0 %v3103, 64
        %v5204 = vpop.permute.xlu0 %5203
        %5205 = vrot.lane.b32.xlu0 %v3104, 64
        %v5206 = vpop.permute.xlu0 %5205
        %5207 = vrot.lane.b32.xlu0 %v3105, 64
        %v5208 = vpop.permute.xlu0 %5207
        %5209 = vrot.lane.b32.xlu0 %v3106, 64
        %v5210 = vpop.permute.xlu0 %5209
        %5211 = vrot.lane.b32.xlu0 %v3107, 64
        %v5212 = vpop.permute.xlu0 %5211
        %5213 = vrot.lane.b32.xlu0 %v3108, 64
        %v5214 = vpop.permute.xlu0 %5213
        %5215 = vrot.lane.b32.xlu0 %v3109, 64
        %v5216 = vpop.permute.xlu0 %5215
        %5217 = vrot.lane.b32.xlu0 %v3110, 64
        %v5218 = vpop.permute.xlu0 %5217
        %5219 = vrot.lane.b32.xlu0 %v3111, 64
        %v5220 = vpop.permute.xlu0 %5219
        %5221 = vrot.lane.b32.xlu0 %v3112, 64
        %v5222 = vpop.permute.xlu0 %5221
        %5223 = vrot.lane.b32.xlu0 %v3113, 64
        %v5224 = vpop.permute.xlu0 %5223
        %5225 = vrot.lane.b32.xlu0 %v3114, 64
        %v5226 = vpop.permute.xlu0 %5225
        %5227 = vrot.lane.b32.xlu0 %v3115, 64
        %v5228 = vpop.permute.xlu0 %5227
        %5229 = vrot.lane.b32.xlu0 %v3116, 64
        %v5230 = vpop.permute.xlu0 %5229
        %5231 = vrot.lane.b32.xlu0 %v3117, 64
        %v5232 = vpop.permute.xlu0 %5231
        %5233 = vrot.lane.b32.xlu0 %v3118, 64
        %v5234 = vpop.permute.xlu0 %5233
        %5235 = vrot.lane.b32.xlu0 %v3119, 64
        %v5236 = vpop.permute.xlu0 %5235
        %5237 = vrot.lane.b32.xlu0 %v3120, 64
        %v5238 = vpop.permute.xlu0 %5237
        %5239 = vrot.lane.b32.xlu0 %v3121, 64
        %v5240 = vpop.permute.xlu0 %5239
        %5241 = vrot.lane.b32.xlu0 %v3122, 64
        %v5242 = vpop.permute.xlu0 %5241
        %5243 = vrot.lane.b32.xlu0 %v3123, 64
        %v5244 = vpop.permute.xlu0 %5243
        %5245 = vrot.lane.b32.xlu0 %v3124, 64
        %v5246 = vpop.permute.xlu0 %5245
        %5247 = vrot.lane.b32.xlu0 %v3125, 64
        %v5248 = vpop.permute.xlu0 %5247
        %5249 = vrot.lane.b32.xlu0 %v3126, 64
        %v5250 = vpop.permute.xlu0 %5249
        %5251 = vrot.lane.b32.xlu0 %v3127, 64
        %v5252 = vpop.permute.xlu0 %5251
        %5253 = vrot.lane.b32.xlu0 %v3128, 64
        %v5254 = vpop.permute.xlu0 %5253
        %5255 = vrot.lane.b32.xlu0 %v3129, 64
        %v5256 = vpop.permute.xlu0 %5255
        %5257 = vrot.lane.b32.xlu0 %v3130, 64
        %v5258 = vpop.permute.xlu0 %5257
        %5259 = vrot.lane.b32.xlu0 %v3131, 64
        %v5260 = vpop.permute.xlu0 %5259
        %5261 = vrot.lane.b32.xlu0 %v3132, 64
        %v5262 = vpop.permute.xlu0 %5261
        %5263 = vrot.lane.b32.xlu0 %v3133, 64
        %v5264 = vpop.permute.xlu0 %5263
        %5265 = vrot.lane.b32.xlu0 %v3134, 64
        %v5266 = vpop.permute.xlu0 %5265
        %5267 = vrot.lane.b32.xlu0 %v3135, 64
        %v5268 = vpop.permute.xlu0 %5267
        %5269 = vrot.lane.b32.xlu0 %v3136, 64
        %v5270 = vpop.permute.xlu0 %5269
        %5271 = vrot.lane.b32.xlu0 %v3137, 64
        %v5272 = vpop.permute.xlu0 %5271
        %5273 = vrot.lane.b32.xlu0 %v3138, 64
        %v5274 = vpop.permute.xlu0 %5273
        %5275 = vrot.lane.b32.xlu0 %v3139, 64
        %v5276 = vpop.permute.xlu0 %5275
        %5277 = vrot.lane.b32.xlu0 %v3140, 64
        %v5278 = vpop.permute.xlu0 %5277
        %5279 = vrot.lane.b32.xlu0 %v3141, 64
        %v5280 = vpop.permute.xlu0 %5279
        %5281 = vrot.lane.b32.xlu0 %v3142, 64
        %v5282 = vpop.permute.xlu0 %5281
        %5283 = vrot.lane.b32.xlu0 %v3143, 64
        %v5284 = vpop.permute.xlu0 %5283
        %5285 = vrot.lane.b32.xlu0 %v3144, 64
        %v5286 = vpop.permute.xlu0 %5285
        %5287 = vrot.lane.b32.xlu0 %v3145, 64
        %v5288 = vpop.permute.xlu0 %5287
        %5289 = vrot.lane.b32.xlu0 %v3146, 64
        %v5290 = vpop.permute.xlu0 %5289
        %5291 = vrot.lane.b32.xlu0 %v3371, 64
        %v5292 = vpop.permute.xlu0 %5291
        %5293 = vrot.lane.b32.xlu0 %v3372, 64
        %v5294 = vpop.permute.xlu0 %5293
        %5295 = vrot.lane.b32.xlu0 %v3373, 64
        %v5296 = vpop.permute.xlu0 %5295
        %5297 = vrot.lane.b32.xlu0 %v3374, 64
        %v5298 = vpop.permute.xlu0 %5297
        %5299 = vrot.lane.b32.xlu0 %v3383, 64
        %v5300 = vpop.permute.xlu0 %5299
        %5301 = vrot.lane.b32.xlu0 %v3384, 64
        %v5302 = vpop.permute.xlu0 %5301
        %5303 = vrot.lane.b32.xlu0 %v3385, 64
        %v5304 = vpop.permute.xlu0 %5303
        %5305 = vrot.lane.b32.xlu0 %v3386, 64
        %v5306 = vpop.permute.xlu0 %5305
        %5427 = vrot.lane.b32.xlu0 %v3155, 96
        %v5428 = vpop.permute.xlu0 %5427
        %5429 = vrot.lane.b32.xlu0 %v3156, 96
        %v5430 = vpop.permute.xlu0 %5429
        %5431 = vrot.lane.b32.xlu0 %v3157, 96
        %v5432 = vpop.permute.xlu0 %5431
        %5433 = vrot.lane.b32.xlu0 %v3158, 96
        %v5434 = vpop.permute.xlu0 %5433
        %5435 = vrot.lane.b32.xlu0 %v3159, 96
        %v5436 = vpop.permute.xlu0 %5435
        %5437 = vrot.lane.b32.xlu0 %v3160, 96
        %v5438 = vpop.permute.xlu0 %5437
        %5439 = vrot.lane.b32.xlu0 %v3161, 96
        %v5440 = vpop.permute.xlu0 %5439
        %5441 = vrot.lane.b32.xlu0 %v3162, 96
        %v5442 = vpop.permute.xlu0 %5441
        %5443 = vrot.lane.b32.xlu0 %v3163, 96
        %v5444 = vpop.permute.xlu0 %5443
        %5445 = vrot.lane.b32.xlu0 %v3164, 96
        %v5446 = vpop.permute.xlu0 %5445
        %5447 = vrot.lane.b32.xlu0 %v3165, 96
        %v5448 = vpop.permute.xlu0 %5447
        %5449 = vrot.lane.b32.xlu0 %v3166, 96
        %v5450 = vpop.permute.xlu0 %5449
        %5451 = vrot.lane.b32.xlu0 %v3167, 96
        %v5452 = vpop.permute.xlu0 %5451
        %5453 = vrot.lane.b32.xlu0 %v3168, 96
        %v5454 = vpop.permute.xlu0 %5453
        %5455 = vrot.lane.b32.xlu0 %v3169, 96
        %v5456 = vpop.permute.xlu0 %5455
        %5457 = vrot.lane.b32.xlu0 %v3170, 96
        %v5458 = vpop.permute.xlu0 %5457
        %5459 = vrot.lane.b32.xlu0 %v3171, 96
        %v5460 = vpop.permute.xlu0 %5459
        %5461 = vrot.lane.b32.xlu0 %v3172, 96
        %v5462 = vpop.permute.xlu0 %5461
        %5463 = vrot.lane.b32.xlu0 %v3173, 96
        %v5464 = vpop.permute.xlu0 %5463
        %5465 = vrot.lane.b32.xlu0 %v3174, 96
        %v5466 = vpop.permute.xlu0 %5465
        %5467 = vrot.lane.b32.xlu0 %v3175, 96
        %v5468 = vpop.permute.xlu0 %5467
        %5469 = vrot.lane.b32.xlu0 %v3176, 96
        %v5470 = vpop.permute.xlu0 %5469
        %5471 = vrot.lane.b32.xlu0 %v3177, 96
        %v5472 = vpop.permute.xlu0 %5471
        %5473 = vrot.lane.b32.xlu0 %v3178, 96
        %v5474 = vpop.permute.xlu0 %5473
        %5475 = vrot.lane.b32.xlu0 %v3179, 96
        %v5476 = vpop.permute.xlu0 %5475
        %5477 = vrot.lane.b32.xlu0 %v3180, 96
        %v5478 = vpop.permute.xlu0 %5477
        %5479 = vrot.lane.b32.xlu0 %v3181, 96
        %v5480 = vpop.permute.xlu0 %5479
        %5481 = vrot.lane.b32.xlu0 %v3182, 96
        %v5482 = vpop.permute.xlu0 %5481
        %5483 = vrot.lane.b32.xlu0 %v3183, 96
        %v5484 = vpop.permute.xlu0 %5483
        %5485 = vrot.lane.b32.xlu0 %v3184, 96
        %v5486 = vpop.permute.xlu0 %5485
        %5487 = vrot.lane.b32.xlu0 %v3185, 96
        %v5488 = vpop.permute.xlu0 %5487
        %5489 = vrot.lane.b32.xlu0 %v3186, 96
        %v5490 = vpop.permute.xlu0 %5489
        %5491 = vrot.lane.b32.xlu0 %v3187, 96
        %v5492 = vpop.permute.xlu0 %5491
        %5493 = vrot.lane.b32.xlu0 %v3188, 96
        %v5494 = vpop.permute.xlu0 %5493
        %5495 = vrot.lane.b32.xlu0 %v3189, 96
        %v5496 = vpop.permute.xlu0 %5495
        %5497 = vrot.lane.b32.xlu0 %v3190, 96
        %v5498 = vpop.permute.xlu0 %5497
        %5499 = vrot.lane.b32.xlu0 %v3191, 96
        %v5500 = vpop.permute.xlu0 %5499
        %5501 = vrot.lane.b32.xlu0 %v3192, 96
        %v5502 = vpop.permute.xlu0 %5501
        %5503 = vrot.lane.b32.xlu0 %v3193, 96
        %v5504 = vpop.permute.xlu0 %5503
        %5505 = vrot.lane.b32.xlu0 %v3194, 96
        %v5506 = vpop.permute.xlu0 %5505
        %5507 = vrot.lane.b32.xlu0 %v3195, 96
        %v5508 = vpop.permute.xlu0 %5507
        %5509 = vrot.lane.b32.xlu0 %v3196, 96
        %v5510 = vpop.permute.xlu0 %5509
        %5511 = vrot.lane.b32.xlu0 %v3197, 96
        %v5512 = vpop.permute.xlu0 %5511
        %5513 = vrot.lane.b32.xlu0 %v3198, 96
        %v5514 = vpop.permute.xlu0 %5513
        %5515 = vrot.lane.b32.xlu0 %v3199, 96
        %v5516 = vpop.permute.xlu0 %5515
        %5517 = vrot.lane.b32.xlu0 %v3200, 96
        %v5518 = vpop.permute.xlu0 %5517
        %5519 = vrot.lane.b32.xlu0 %v3201, 96
        %v5520 = vpop.permute.xlu0 %5519
        %5521 = vrot.lane.b32.xlu0 %v3202, 96
        %v5522 = vpop.permute.xlu0 %5521
        %5523 = vrot.lane.b32.xlu0 %v3203, 96
        %v5524 = vpop.permute.xlu0 %5523
        %5525 = vrot.lane.b32.xlu0 %v3204, 96
        %v5526 = vpop.permute.xlu0 %5525
        %5527 = vrot.lane.b32.xlu0 %v3205, 96
        %v5528 = vpop.permute.xlu0 %5527
        %5529 = vrot.lane.b32.xlu0 %v3206, 96
        %v5530 = vpop.permute.xlu0 %5529
        %5531 = vrot.lane.b32.xlu0 %v3207, 96
        %v5532 = vpop.permute.xlu0 %5531
        %5533 = vrot.lane.b32.xlu0 %v3208, 96
        %v5534 = vpop.permute.xlu0 %5533
        %5535 = vrot.lane.b32.xlu0 %v3209, 96
        %v5536 = vpop.permute.xlu0 %5535
        %5537 = vrot.lane.b32.xlu0 %v3210, 96
        %v5538 = vpop.permute.xlu0 %5537
        %5539 = vrot.lane.b32.xlu0 %v3211, 96
        %v5540 = vpop.permute.xlu0 %5539
        %5541 = vrot.lane.b32.xlu0 %v3212, 96
        %v5542 = vpop.permute.xlu0 %5541
        %5543 = vrot.lane.b32.xlu0 %v3213, 96
        %v5544 = vpop.permute.xlu0 %5543
        %5545 = vrot.lane.b32.xlu0 %v3214, 96
        %v5546 = vpop.permute.xlu0 %5545
        %5547 = vrot.lane.b32.xlu0 %v3215, 96
        %v5548 = vpop.permute.xlu0 %5547
        %5549 = vrot.lane.b32.xlu0 %v3216, 96
        %v5550 = vpop.permute.xlu0 %5549
        %5551 = vrot.lane.b32.xlu0 %v3217, 96
        %v5552 = vpop.permute.xlu0 %5551
        %5553 = vrot.lane.b32.xlu0 %v3218, 96
        %v5554 = vpop.permute.xlu0 %5553
        %5555 = vrot.lane.b32.xlu0 %v3219, 96
        %v5556 = vpop.permute.xlu0 %5555
        %5557 = vrot.lane.b32.xlu0 %v3220, 96
        %v5558 = vpop.permute.xlu0 %5557
        %5559 = vrot.lane.b32.xlu0 %v3221, 96
        %v5560 = vpop.permute.xlu0 %5559
        %5561 = vrot.lane.b32.xlu0 %v3222, 96
        %v5562 = vpop.permute.xlu0 %5561
        %5563 = vrot.lane.b32.xlu0 %v3223, 96
        %v5564 = vpop.permute.xlu0 %5563
        %5565 = vrot.lane.b32.xlu0 %v3224, 96
        %v5566 = vpop.permute.xlu0 %5565
        %5567 = vrot.lane.b32.xlu0 %v3225, 96
        %v5568 = vpop.permute.xlu0 %5567
        %5569 = vrot.lane.b32.xlu0 %v3226, 96
        %v5570 = vpop.permute.xlu0 %5569
        %5571 = vrot.lane.b32.xlu0 %v3227, 96
        %v5572 = vpop.permute.xlu0 %5571
        %5573 = vrot.lane.b32.xlu0 %v3228, 96
        %v5574 = vpop.permute.xlu0 %5573
        %5575 = vrot.lane.b32.xlu0 %v3229, 96
        %v5576 = vpop.permute.xlu0 %5575
        %5577 = vrot.lane.b32.xlu0 %v3230, 96
        %v5578 = vpop.permute.xlu0 %5577
        %5579 = vrot.lane.b32.xlu0 %v3231, 96
        %v5580 = vpop.permute.xlu0 %5579
        %5581 = vrot.lane.b32.xlu0 %v3232, 96
        %v5582 = vpop.permute.xlu0 %5581
        %5583 = vrot.lane.b32.xlu0 %v3233, 96
        %v5584 = vpop.permute.xlu0 %5583
        %5585 = vrot.lane.b32.xlu0 %v3234, 96
        %v5586 = vpop.permute.xlu0 %5585
        %5587 = vrot.lane.b32.xlu0 %v3235, 96
        %v5588 = vpop.permute.xlu0 %5587
        %5589 = vrot.lane.b32.xlu0 %v3236, 96
        %v5590 = vpop.permute.xlu0 %5589
        %5591 = vrot.lane.b32.xlu0 %v3237, 96
        %v5592 = vpop.permute.xlu0 %5591
        %5593 = vrot.lane.b32.xlu0 %v3238, 96
        %v5594 = vpop.permute.xlu0 %5593
        %5595 = vrot.lane.b32.xlu0 %v3239, 96
        %v5596 = vpop.permute.xlu0 %5595
        %5597 = vrot.lane.b32.xlu0 %v3240, 96
        %v5598 = vpop.permute.xlu0 %5597
        %5599 = vrot.lane.b32.xlu0 %v3241, 96
        %v5600 = vpop.permute.xlu0 %5599
        %5601 = vrot.lane.b32.xlu0 %v3242, 96
        %v5602 = vpop.permute.xlu0 %5601
        %5603 = vrot.lane.b32.xlu0 %v3243, 96
        %v5604 = vpop.permute.xlu0 %5603
        %5605 = vrot.lane.b32.xlu0 %v3244, 96
        %v5606 = vpop.permute.xlu0 %5605
        %5607 = vrot.lane.b32.xlu0 %v3245, 96
        %v5608 = vpop.permute.xlu0 %5607
        %5609 = vrot.lane.b32.xlu0 %v3246, 96
        %v5610 = vpop.permute.xlu0 %5609
        %5611 = vrot.lane.b32.xlu0 %v3247, 96
        %v5612 = vpop.permute.xlu0 %5611
        %5613 = vrot.lane.b32.xlu0 %v3248, 96
        %v5614 = vpop.permute.xlu0 %5613
        %5615 = vrot.lane.b32.xlu0 %v3249, 96
        %v5616 = vpop.permute.xlu0 %5615
        %5617 = vrot.lane.b32.xlu0 %v3250, 96
        %v5618 = vpop.permute.xlu0 %5617
        %5619 = vrot.lane.b32.xlu0 %v3251, 96
        %v5620 = vpop.permute.xlu0 %5619
        %5621 = vrot.lane.b32.xlu0 %v3252, 96
        %v5622 = vpop.permute.xlu0 %5621
        %5623 = vrot.lane.b32.xlu0 %v3253, 96
        %v5624 = vpop.permute.xlu0 %5623
        %5625 = vrot.lane.b32.xlu0 %v3254, 96
        %v5626 = vpop.permute.xlu0 %5625
        %5627 = vrot.lane.b32.xlu0 %v3255, 96
        %v5628 = vpop.permute.xlu0 %5627
        %5629 = vrot.lane.b32.xlu0 %v3256, 96
        %v5630 = vpop.permute.xlu0 %5629
        %5631 = vrot.lane.b32.xlu0 %v3257, 96
        %v5632 = vpop.permute.xlu0 %5631
        %5633 = vrot.lane.b32.xlu0 %v3258, 96
        %v5634 = vpop.permute.xlu0 %5633
        %5635 = vrot.lane.b32.xlu0 %v3375, 96
        %v5636 = vpop.permute.xlu0 %5635
        %5637 = vrot.lane.b32.xlu0 %v3376, 96
        %v5638 = vpop.permute.xlu0 %5637
        %5639 = vrot.lane.b32.xlu0 %v3377, 96
        %v5640 = vpop.permute.xlu0 %5639
        %5641 = vrot.lane.b32.xlu0 %v3378, 96
        %v5642 = vpop.permute.xlu0 %5641
        %5643 = vrot.lane.b32.xlu0 %v3387, 96
        %v5644 = vpop.permute.xlu0 %5643
        %5645 = vrot.lane.b32.xlu0 %v3388, 96
        %v5646 = vpop.permute.xlu0 %5645
        %5647 = vrot.lane.b32.xlu0 %v3389, 96
        %v5648 = vpop.permute.xlu0 %5647
        %5649 = vrot.lane.b32.xlu0 %v3390, 96
        %v5650 = vpop.permute.xlu0 %5649
        %v5763 = vsel %vm2913, %v3035, %v3508
        %v5764 = vsel %vm2913, %v3036, %v3510
        %v5765 = vsel %vm2913, %v3037, %v3512
        %v5766 = vsel %vm2913, %v3038, %v3514
        %v5767 = vsel %vm2913, %v3039, %v3516
        %v5768 = vsel %vm2913, %v3040, %v3518
        %v5769 = vsel %vm2913, %v3041, %v3520
        %v5770 = vsel %vm2913, %v3042, %v3522
        %v5771 = vsel %vm2913, %v3043, %v3524
        %v5772 = vsel %vm2913, %v3044, %v3526
        %v5773 = vsel %vm2913, %v3045, %v3528
        %v5774 = vsel %vm2913, %v3046, %v3530
        %v5775 = vsel %vm2913, %v3047, %v3532
        %v5776 = vsel %vm2913, %v3048, %v3534
        %v5777 = vsel %vm2913, %v3049, %v3536
        %v5778 = vsel %vm2913, %v3050, %v3538
        %v5779 = vsel %vm2913, %v3051, %v3540
        %v5780 = vsel %vm2913, %v3052, %v3542
        %v5781 = vsel %vm2913, %v3053, %v3544
        %v5782 = vsel %vm2913, %v3054, %v3546
        %v5783 = vsel %vm2913, %v3055, %v3548
        %v5784 = vsel %vm2913, %v3056, %v3550
        %v5785 = vsel %vm2913, %v3057, %v3552
        %v5786 = vsel %vm2913, %v3058, %v3554
        %v5787 = vsel %vm2913, %v3059, %v3556
        %v5788 = vsel %vm2913, %v3060, %v3558
        %v5789 = vsel %vm2913, %v3061, %v3560
        %v5790 = vsel %vm2913, %v3062, %v3562
        %v5791 = vsel %vm2913, %v3063, %v3564
        %v5792 = vsel %vm2913, %v3064, %v3566
        %v5793 = vsel %vm2913, %v3065, %v3568
        %v5794 = vsel %vm2913, %v3066, %v3570
        %v5795 = vsel %vm2913, %v3067, %v3572
        %v5796 = vsel %vm2913, %v3068, %v3574
        %v5797 = vsel %vm2913, %v3069, %v3576
        %v5798 = vsel %vm2913, %v3070, %v3578
        %v5799 = vsel %vm2913, %v3071, %v3580
        %v5800 = vsel %vm2913, %v3072, %v3582
        %v5801 = vsel %vm2913, %v3073, %v3584
        %v5802 = vsel %vm2913, %v3074, %v3586
        %v5803 = vsel %vm2913, %v3075, %v3588
        %v5804 = vsel %vm2913, %v3076, %v3590
        %v5805 = vsel %vm2913, %v3077, %v3592
        %v5806 = vsel %vm2913, %v3078, %v3594
        %v5807 = vsel %vm2913, %v3079, %v3596
        %v5808 = vsel %vm2913, %v3080, %v3598
        %v5809 = vsel %vm2913, %v3081, %v3600
        %v5810 = vsel %vm2913, %v3082, %v3602
        %v5811 = vsel %vm2913, %v3083, %v3604
        %v5812 = vsel %vm2913, %v3084, %v3606
        %v5813 = vsel %vm2913, %v3085, %v3608
        %v5814 = vsel %vm2913, %v3086, %v3610
        %v5815 = vsel %vm2913, %v3087, %v3612
        %v5816 = vsel %vm2913, %v3088, %v3614
        %v5817 = vsel %vm2913, %v3089, %v3616
        %v5818 = vsel %vm2913, %v3090, %v3618
        %v5819 = vsel %vm2913, %v3091, %v3620
        %v5820 = vsel %vm2913, %v3092, %v3622
        %v5821 = vsel %vm2913, %v3093, %v3624
        %v5822 = vsel %vm2913, %v3094, %v3626
        %v5823 = vsel %vm2913, %v3095, %v3628
        %v5824 = vsel %vm2913, %v3096, %v3630
        %v5825 = vsel %vm2913, %v3097, %v3632
        %v5826 = vsel %vm2913, %v3098, %v3634
        %v5827 = vsel %vm2913, %v3099, %v3636
        %v5828 = vsel %vm2913, %v3100, %v3638
        %v5829 = vsel %vm2913, %v3101, %v3640
        %v5830 = vsel %vm2913, %v3102, %v3642
        %v5831 = vsel %vm2913, %v3103, %v3644
        %v5832 = vsel %vm2913, %v3104, %v3646
        %v5833 = vsel %vm2913, %v3105, %v3648
        %v5834 = vsel %vm2913, %v3106, %v3650
        %v5835 = vsel %vm2913, %v3107, %v3652
        %v5836 = vsel %vm2913, %v3108, %v3654
        %v5837 = vsel %vm2913, %v3109, %v3656
        %v5838 = vsel %vm2913, %v3110, %v3658
        %v5839 = vsel %vm2913, %v3111, %v3660
        %v5840 = vsel %vm2913, %v3112, %v3662
        %v5841 = vsel %vm2913, %v3113, %v3664
        %v5842 = vsel %vm2913, %v3114, %v3666
        %v5843 = vsel %vm2913, %v3115, %v3668
        %v5844 = vsel %vm2913, %v3116, %v3670
        %v5845 = vsel %vm2913, %v3117, %v3672
        %v5846 = vsel %vm2913, %v3118, %v3674
        %v5847 = vsel %vm2913, %v3119, %v3676
        %v5848 = vsel %vm2913, %v3120, %v3678
        %v5849 = vsel %vm2913, %v3121, %v3680
        %v5850 = vsel %vm2913, %v3122, %v3682
        %v5851 = vsel %vm2913, %v3123, %v3684
        %v5852 = vsel %vm2913, %v3124, %v3686
        %v5853 = vsel %vm2913, %v3125, %v3688
        %v5854 = vsel %vm2913, %v3126, %v3690
        %v5855 = vsel %vm2913, %v3127, %v3692
        %v5856 = vsel %vm2913, %v3128, %v3694
        %v5857 = vsel %vm2913, %v3129, %v3696
        %v5858 = vsel %vm2913, %v3130, %v3698
        %v5859 = vsel %vm2913, %v3131, %v3700
        %v5860 = vsel %vm2913, %v3132, %v3702
        %v5861 = vsel %vm2913, %v3133, %v3704
        %v5862 = vsel %vm2913, %v3134, %v3706
        %v5863 = vsel %vm2913, %v3135, %v3708
        %v5864 = vsel %vm2913, %v3136, %v3710
        %v5865 = vsel %vm2913, %v3137, %v3712
        %v5866 = vsel %vm2913, %v3138, %v3714
        %v5867 = vsel %vm2913, %v3139, %v3716
        %v5868 = vsel %vm2913, %v3140, %v3718
        %v5869 = vsel %vm2913, %v3141, %v3720
        %v5870 = vsel %vm2913, %v3142, %v3722
        %v5871 = vsel %vm2913, %v3143, %v3724
        %v5872 = vsel %vm2913, %v3144, %v3726
        %v5873 = vsel %vm2913, %v3145, %v3728
        %v5874 = vsel %vm2913, %v3146, %v3730
        %vm5875 = vcmask 523264
        %v5876 = vsel %vm5875, %v5763, %v3956
        %v5877 = vsel %vm5875, %v5764, %v3958
        %v5878 = vsel %vm5875, %v5765, %v3960
        %v5879 = vsel %vm5875, %v5766, %v3962
        %v5880 = vsel %vm5875, %v5767, %v3964
        %v5881 = vsel %vm5875, %v5768, %v3966
        %v5882 = vsel %vm5875, %v5769, %v3968
        %v5883 = vsel %vm5875, %v5770, %v3970
        %v5884 = vsel %vm5875, %v5771, %v3972
        %v5885 = vsel %vm5875, %v5772, %v3974
        %v5886 = vsel %vm5875, %v5773, %v3976
        %v5887 = vsel %vm5875, %v5774, %v3978
        %v5888 = vsel %vm5875, %v5775, %v3980
        %v5889 = vsel %vm5875, %v5776, %v3982
        %v5890 = vsel %vm5875, %v5777, %v3984
        %v5891 = vsel %vm5875, %v5778, %v3986
        %v5892 = vsel %vm5875, %v5779, %v3988
        %v5893 = vsel %vm5875, %v5780, %v3990
        %v5894 = vsel %vm5875, %v5781, %v3992
        %v5895 = vsel %vm5875, %v5782, %v3994
        %v5896 = vsel %vm5875, %v5783, %v3996
        %v5897 = vsel %vm5875, %v5784, %v3998
        %v5898 = vsel %vm5875, %v5785, %v4000
        %v5899 = vsel %vm5875, %v5786, %v4002
        %v5900 = vsel %vm5875, %v5787, %v4004
        %v5901 = vsel %vm5875, %v5788, %v4006
        %v5902 = vsel %vm5875, %v5789, %v4008
        %v5903 = vsel %vm5875, %v5790, %v4010
        %v5904 = vsel %vm5875, %v5791, %v4012
        %v5905 = vsel %vm5875, %v5792, %v4014
        %v5906 = vsel %vm5875, %v5793, %v4016
        %v5907 = vsel %vm5875, %v5794, %v4018
        %v5908 = vsel %vm5875, %v5795, %v4020
        %v5909 = vsel %vm5875, %v5796, %v4022
        %v5910 = vsel %vm5875, %v5797, %v4024
        %v5911 = vsel %vm5875, %v5798, %v4026
        %v5912 = vsel %vm5875, %v5799, %v4028
        %v5913 = vsel %vm5875, %v5800, %v4030
        %v5914 = vsel %vm5875, %v5801, %v4032
        %v5915 = vsel %vm5875, %v5802, %v4034
        %v5916 = vsel %vm5875, %v5803, %v4036
        %v5917 = vsel %vm5875, %v5804, %v4038
        %v5918 = vsel %vm5875, %v5805, %v4040
        %v5919 = vsel %vm5875, %v5806, %v4042
        %v5920 = vsel %vm5875, %v5807, %v4044
        %v5921 = vsel %vm5875, %v5808, %v4046
        %v5922 = vsel %vm5875, %v5809, %v4048
        %v5923 = vsel %vm5875, %v5810, %v4050
        %v5924 = vsel %vm5875, %v5811, %v4052
        %v5925 = vsel %vm5875, %v5812, %v4054
        %v5926 = vsel %vm5875, %v5813, %v4056
        %v5927 = vsel %vm5875, %v5814, %v4058
        %v5928 = vsel %vm5875, %v5815, %v4060
        %v5929 = vsel %vm5875, %v5816, %v4062
        %v5930 = vsel %vm5875, %v5817, %v4064
        %v5931 = vsel %vm5875, %v5818, %v4066
        %v5932 = vsel %vm5875, %v5819, %v4068
        %v5933 = vsel %vm5875, %v5820, %v4070
        %v5934 = vsel %vm5875, %v5821, %v4072
        %v5935 = vsel %vm5875, %v5822, %v4074
        %v5936 = vsel %vm5875, %v5823, %v4076
        %v5937 = vsel %vm5875, %v5824, %v4078
        %v5938 = vsel %vm5875, %v5825, %v4080
        %v5939 = vsel %vm5875, %v5826, %v4082
        %v5940 = vsel %vm5875, %v5827, %v4084
        %v5941 = vsel %vm5875, %v5828, %v4086
        %v5942 = vsel %vm5875, %v5829, %v4088
        %v5943 = vsel %vm5875, %v5830, %v4090
        %v5944 = vsel %vm5875, %v5831, %v4092
        %v5945 = vsel %vm5875, %v5832, %v4094
        %v5946 = vsel %vm5875, %v5833, %v4096
        %v5947 = vsel %vm5875, %v5834, %v4098
        %v5948 = vsel %vm5875, %v5835, %v4100
        %v5949 = vsel %vm5875, %v5836, %v4102
        %v5950 = vsel %vm5875, %v5837, %v4104
        %v5951 = vsel %vm5875, %v5838, %v4106
        %v5952 = vsel %vm5875, %v5839, %v4108
        %v5953 = vsel %vm5875, %v5840, %v4110
        %v5954 = vsel %vm5875, %v5841, %v4112
        %v5955 = vsel %vm5875, %v5842, %v4114
        %v5956 = vsel %vm5875, %v5843, %v4116
        %v5957 = vsel %vm5875, %v5844, %v4118
        %v5958 = vsel %vm5875, %v5845, %v4120
        %v5959 = vsel %vm5875, %v5846, %v4122
        %v5960 = vsel %vm5875, %v5847, %v4124
        %v5961 = vsel %vm5875, %v5848, %v4126
        %v5962 = vsel %vm5875, %v5849, %v4128
        %v5963 = vsel %vm5875, %v5850, %v4130
        %v5964 = vsel %vm5875, %v5851, %v4132
        %v5965 = vsel %vm5875, %v5852, %v4134
        %v5966 = vsel %vm5875, %v5853, %v4136
        %v5967 = vsel %vm5875, %v5854, %v4138
        %v5968 = vsel %vm5875, %v5855, %v4140
        %v5969 = vsel %vm5875, %v5856, %v4142
        %v5970 = vsel %vm5875, %v5857, %v4144
        %v5971 = vsel %vm5875, %v5858, %v4146
        %v5972 = vsel %vm5875, %v5859, %v4148
        %v5973 = vsel %vm5875, %v5860, %v4150
        %v5974 = vsel %vm5875, %v5861, %v4152
        %v5975 = vsel %vm5875, %v5862, %v4154
        %v5976 = vsel %vm5875, %v5863, %v4156
        %v5977 = vsel %vm5875, %v5864, %v4158
        %v5978 = vsel %vm5875, %v5865, %v4160
        %v5979 = vsel %vm5875, %v5866, %v4162
        %v5980 = vsel %vm5875, %v5867, %v4164
        %v5981 = vsel %vm5875, %v5868, %v4166
        %v5982 = vsel %vm5875, %v5869, %v4168
        %v5983 = vsel %vm5875, %v5870, %v4170
        %v5984 = vsel %vm5875, %v5871, %v4172
        %v5985 = vsel %vm5875, %v5872, %v4174
        %v5986 = vsel %vm5875, %v5873, %v4176
        %v5987 = vsel %vm5875, %v5874, %v4178
        %vm5988 = vcmask 785408
        %v5989 = vsel %vm5988, %v5876, %v4404
        %v5990 = vsel %vm5988, %v5877, %v4406
        %v5991 = vsel %vm5988, %v5878, %v4408
        %v5992 = vsel %vm5988, %v5879, %v4410
        %v5993 = vsel %vm5988, %v5880, %v4412
        %v5994 = vsel %vm5988, %v5881, %v4414
        %v5995 = vsel %vm5988, %v5882, %v4416
        %v5996 = vsel %vm5988, %v5883, %v4418
        %v5997 = vsel %vm5988, %v5884, %v4420
        %v5998 = vsel %vm5988, %v5885, %v4422
        %v5999 = vsel %vm5988, %v5886, %v4424
        %v6000 = vsel %vm5988, %v5887, %v4426
        %v6001 = vsel %vm5988, %v5888, %v4428
        %v6002 = vsel %vm5988, %v5889, %v4430
        %v6003 = vsel %vm5988, %v5890, %v4432
        %v6004 = vsel %vm5988, %v5891, %v4434
        %v6005 = vsel %vm5988, %v5892, %v4436
        %v6006 = vsel %vm5988, %v5893, %v4438
        %v6007 = vsel %vm5988, %v5894, %v4440
        %v6008 = vsel %vm5988, %v5895, %v4442
        %v6009 = vsel %vm5988, %v5896, %v4444
        %v6010 = vsel %vm5988, %v5897, %v4446
        %v6011 = vsel %vm5988, %v5898, %v4448
        %v6012 = vsel %vm5988, %v5899, %v4450
        %v6013 = vsel %vm5988, %v5900, %v4452
        %v6014 = vsel %vm5988, %v5901, %v4454
        %v6015 = vsel %vm5988, %v5902, %v4456
        %v6016 = vsel %vm5988, %v5903, %v4458
        %v6017 = vsel %vm5988, %v5904, %v4460
        %v6018 = vsel %vm5988, %v5905, %v4462
        %v6019 = vsel %vm5988, %v5906, %v4464
        %v6020 = vsel %vm5988, %v5907, %v4466
        %v6021 = vsel %vm5988, %v5908, %v4468
        %v6022 = vsel %vm5988, %v5909, %v4470
        %v6023 = vsel %vm5988, %v5910, %v4472
        %v6024 = vsel %vm5988, %v5911, %v4474
        %v6025 = vsel %vm5988, %v5912, %v4476
        %v6026 = vsel %vm5988, %v5913, %v4478
        %v6027 = vsel %vm5988, %v5914, %v4480
        %v6028 = vsel %vm5988, %v5915, %v4482
        %v6029 = vsel %vm5988, %v5916, %v4484
        %v6030 = vsel %vm5988, %v5917, %v4486
        %v6031 = vsel %vm5988, %v5918, %v4488
        %v6032 = vsel %vm5988, %v5919, %v4490
        %v6033 = vsel %vm5988, %v5920, %v4492
        %v6034 = vsel %vm5988, %v5921, %v4494
        %v6035 = vsel %vm5988, %v5922, %v4496
        %v6036 = vsel %vm5988, %v5923, %v4498
        %v6037 = vsel %vm5988, %v5924, %v4500
        %v6038 = vsel %vm5988, %v5925, %v4502
        %v6039 = vsel %vm5988, %v5926, %v4504
        %v6040 = vsel %vm5988, %v5927, %v4506
        %v6041 = vsel %vm5988, %v5928, %v4508
        %v6042 = vsel %vm5988, %v5929, %v4510
        %v6043 = vsel %vm5988, %v5930, %v4512
        %v6044 = vsel %vm5988, %v5931, %v4514
        %v6045 = vsel %vm5988, %v5932, %v4516
        %v6046 = vsel %vm5988, %v5933, %v4518
        %v6047 = vsel %vm5988, %v5934, %v4520
        %v6048 = vsel %vm5988, %v5935, %v4522
        %v6049 = vsel %vm5988, %v5936, %v4524
        %v6050 = vsel %vm5988, %v5937, %v4526
        %v6051 = vsel %vm5988, %v5938, %v4528
        %v6052 = vsel %vm5988, %v5939, %v4530
        %v6053 = vsel %vm5988, %v5940, %v4532
        %v6054 = vsel %vm5988, %v5941, %v4534
        %v6055 = vsel %vm5988, %v5942, %v4536
        %v6056 = vsel %vm5988, %v5943, %v4538
        %v6057 = vsel %vm5988, %v5944, %v4540
        %v6058 = vsel %vm5988, %v5945, %v4542
        %v6059 = vsel %vm5988, %v5946, %v4544
        %v6060 = vsel %vm5988, %v5947, %v4546
        %v6061 = vsel %vm5988, %v5948, %v4548
        %v6062 = vsel %vm5988, %v5949, %v4550
        %v6063 = vsel %vm5988, %v5950, %v4552
        %v6064 = vsel %vm5988, %v5951, %v4554
        %v6065 = vsel %vm5988, %v5952, %v4556
        %v6066 = vsel %vm5988, %v5953, %v4558
        %v6067 = vsel %vm5988, %v5954, %v4560
        %v6068 = vsel %vm5988, %v5955, %v4562
        %v6069 = vsel %vm5988, %v5956, %v4564
        %v6070 = vsel %vm5988, %v5957, %v4566
        %v6071 = vsel %vm5988, %v5958, %v4568
        %v6072 = vsel %vm5988, %v5959, %v4570
        %v6073 = vsel %vm5988, %v5960, %v4572
        %v6074 = vsel %vm5988, %v5961, %v4574
        %v6075 = vsel %vm5988, %v5962, %v4576
        %v6076 = vsel %vm5988, %v5963, %v4578
        %v6077 = vsel %vm5988, %v5964, %v4580
        %v6078 = vsel %vm5988, %v5965, %v4582
        %v6079 = vsel %vm5988, %v5966, %v4584
        %v6080 = vsel %vm5988, %v5967, %v4586
        %v6081 = vsel %vm5988, %v5968, %v4588
        %v6082 = vsel %vm5988, %v5969, %v4590
        %v6083 = vsel %vm5988, %v5970, %v4592
        %v6084 = vsel %vm5988, %v5971, %v4594
        %v6085 = vsel %vm5988, %v5972, %v4596
        %v6086 = vsel %vm5988, %v5973, %v4598
        %v6087 = vsel %vm5988, %v5974, %v4600
        %v6088 = vsel %vm5988, %v5975, %v4602
        %v6089 = vsel %vm5988, %v5976, %v4604
        %v6090 = vsel %vm5988, %v5977, %v4606
        %v6091 = vsel %vm5988, %v5978, %v4608
        %v6092 = vsel %vm5988, %v5979, %v4610
        %v6093 = vsel %vm5988, %v5980, %v4612
        %v6094 = vsel %vm5988, %v5981, %v4614
        %v6095 = vsel %vm5988, %v5982, %v4616
        %v6096 = vsel %vm5988, %v5983, %v4618
        %v6097 = vsel %vm5988, %v5984, %v4620
        %v6098 = vsel %vm5988, %v5985, %v4622
        %v6099 = vsel %vm5988, %v5986, %v4624
        %v6100 = vsel %vm5988, %v5987, %v4626
        %v6101 = vsel %vm2913, %v3151, %v4744
        %v6102 = vsel %vm2913, %v3152, %v4746
        %v6103 = vsel %vm2913, %v3153, %v4748
        %v6104 = vsel %vm2913, %v3154, %v4750
        %v6105 = vsel %vm2913, %v3155, %v4752
        %v6106 = vsel %vm2913, %v3156, %v4754
        %v6107 = vsel %vm2913, %v3157, %v4756
        %v6108 = vsel %vm2913, %v3158, %v4758
        %v6109 = vsel %vm2913, %v3159, %v4760
        %v6110 = vsel %vm2913, %v3160, %v4762
        %v6111 = vsel %vm2913, %v3161, %v4764
        %v6112 = vsel %vm2913, %v3162, %v4766
        %v6113 = vsel %vm2913, %v3163, %v4768
        %v6114 = vsel %vm2913, %v3164, %v4770
        %v6115 = vsel %vm2913, %v3165, %v4772
        %v6116 = vsel %vm2913, %v3166, %v4774
        %v6117 = vsel %vm2913, %v3167, %v4776
        %v6118 = vsel %vm2913, %v3168, %v4778
        %v6119 = vsel %vm2913, %v3169, %v4780
        %v6120 = vsel %vm2913, %v3170, %v4782
        %v6121 = vsel %vm2913, %v3171, %v4784
        %v6122 = vsel %vm2913, %v3172, %v4786
        %v6123 = vsel %vm2913, %v3173, %v4788
        %v6124 = vsel %vm2913, %v3174, %v4790
        %v6125 = vsel %vm2913, %v3175, %v4792
        %v6126 = vsel %vm2913, %v3176, %v4794
        %v6127 = vsel %vm2913, %v3177, %v4796
        %v6128 = vsel %vm2913, %v3178, %v4798
        %v6129 = vsel %vm2913, %v3179, %v4800
        %v6130 = vsel %vm2913, %v3180, %v4802
        %v6131 = vsel %vm2913, %v3181, %v4804
        %v6132 = vsel %vm2913, %v3182, %v4806
        %v6133 = vsel %vm2913, %v3183, %v4808
        %v6134 = vsel %vm2913, %v3184, %v4810
        %v6135 = vsel %vm2913, %v3185, %v4812
        %v6136 = vsel %vm2913, %v3186, %v4814
        %v6137 = vsel %vm2913, %v3187, %v4816
        %v6138 = vsel %vm2913, %v3188, %v4818
        %v6139 = vsel %vm2913, %v3189, %v4820
        %v6140 = vsel %vm2913, %v3190, %v4822
        %v6141 = vsel %vm2913, %v3191, %v4824
        %v6142 = vsel %vm2913, %v3192, %v4826
        %v6143 = vsel %vm2913, %v3193, %v4828
        %v6144 = vsel %vm2913, %v3194, %v4830
        %v6145 = vsel %vm2913, %v3195, %v4832
        %v6146 = vsel %vm2913, %v3196, %v4834
        %v6147 = vsel %vm2913, %v3197, %v4836
        %v6148 = vsel %vm2913, %v3198, %v4838
        %v6149 = vsel %vm2913, %v3199, %v4840
        %v6150 = vsel %vm2913, %v3200, %v4842
        %v6151 = vsel %vm2913, %v3201, %v4844
        %v6152 = vsel %vm2913, %v3202, %v4846
        %v6153 = vsel %vm2913, %v3203, %v4848
        %v6154 = vsel %vm2913, %v3204, %v4850
        %v6155 = vsel %vm2913, %v3205, %v4852
        %v6156 = vsel %vm2913, %v3206, %v4854
        %v6157 = vsel %vm2913, %v3207, %v4856
        %v6158 = vsel %vm2913, %v3208, %v4858
        %v6159 = vsel %vm2913, %v3209, %v4860
        %v6160 = vsel %vm2913, %v3210, %v4862
        %v6161 = vsel %vm2913, %v3211, %v4864
        %v6162 = vsel %vm2913, %v3212, %v4866
        %v6163 = vsel %vm2913, %v3213, %v4868
        %v6164 = vsel %vm2913, %v3214, %v4870
        %v6165 = vsel %vm2913, %v3215, %v4872
        %v6166 = vsel %vm2913, %v3216, %v4874
        %v6167 = vsel %vm2913, %v3217, %v4876
        %v6168 = vsel %vm2913, %v3218, %v4878
        %v6169 = vsel %vm2913, %v3219, %v4880
        %v6170 = vsel %vm2913, %v3220, %v4882
        %v6171 = vsel %vm2913, %v3221, %v4884
        %v6172 = vsel %vm2913, %v3222, %v4886
        %v6173 = vsel %vm2913, %v3223, %v4888
        %v6174 = vsel %vm2913, %v3224, %v4890
        %v6175 = vsel %vm2913, %v3225, %v4892
        %v6176 = vsel %vm2913, %v3226, %v4894
        %v6177 = vsel %vm2913, %v3227, %v4896
        %v6178 = vsel %vm2913, %v3228, %v4898
        %v6179 = vsel %vm2913, %v3229, %v4900
        %v6180 = vsel %vm2913, %v3230, %v4902
        %v6181 = vsel %vm2913, %v3231, %v4904
        %v6182 = vsel %vm2913, %v3232, %v4906
        %v6183 = vsel %vm2913, %v3233, %v4908
        %v6184 = vsel %vm2913, %v3234, %v4910
        %v6185 = vsel %vm2913, %v3235, %v4912
        %v6186 = vsel %vm2913, %v3236, %v4914
        %v6187 = vsel %vm2913, %v3237, %v4916
        %v6188 = vsel %vm2913, %v3238, %v4918
        %v6189 = vsel %vm2913, %v3239, %v4920
        %v6190 = vsel %vm2913, %v3240, %v4922
        %v6191 = vsel %vm2913, %v3241, %v4924
        %v6192 = vsel %vm2913, %v3242, %v4926
        %v6193 = vsel %vm2913, %v3243, %v4928
        %v6194 = vsel %vm2913, %v3244, %v4930
        %v6195 = vsel %vm2913, %v3245, %v4932
        %v6196 = vsel %vm2913, %v3246, %v4934
        %v6197 = vsel %vm2913, %v3247, %v4936
        %v6198 = vsel %vm2913, %v3248, %v4938
        %v6199 = vsel %vm2913, %v3249, %v4940
        %v6200 = vsel %vm2913, %v3250, %v4942
        %v6201 = vsel %vm2913, %v3251, %v4944
        %v6202 = vsel %vm2913, %v3252, %v4946
        %v6203 = vsel %vm2913, %v3253, %v4948
        %v6204 = vsel %vm2913, %v3254, %v4950
        %v6205 = vsel %vm2913, %v3255, %v4952
        %v6206 = vsel %vm2913, %v3256, %v4954
        %v6207 = vsel %vm2913, %v3257, %v4956
        %v6208 = vsel %vm2913, %v3258, %v4958
        %v6209 = vsel %vm2913, %v3375, %v4960
        %v6210 = vsel %vm2913, %v3376, %v4962
        %v6211 = vsel %vm2913, %v3377, %v4964
        %v6212 = vsel %vm2913, %v3378, %v4966
        %v6213 = vsel %vm5875, %v6101, %v5084
        %v6214 = vsel %vm5875, %v6102, %v5086
        %v6215 = vsel %vm5875, %v6103, %v5088
        %v6216 = vsel %vm5875, %v6104, %v5090
        %v6217 = vsel %vm5875, %v6105, %v5092
        %v6218 = vsel %vm5875, %v6106, %v5094
        %v6219 = vsel %vm5875, %v6107, %v5096
        %v6220 = vsel %vm5875, %v6108, %v5098
        %v6221 = vsel %vm5875, %v6109, %v5100
        %v6222 = vsel %vm5875, %v6110, %v5102
        %v6223 = vsel %vm5875, %v6111, %v5104
        %v6224 = vsel %vm5875, %v6112, %v5106
        %v6225 = vsel %vm5875, %v6113, %v5108
        %v6226 = vsel %vm5875, %v6114, %v5110
        %v6227 = vsel %vm5875, %v6115, %v5112
        %v6228 = vsel %vm5875, %v6116, %v5114
        %v6229 = vsel %vm5875, %v6117, %v5116
        %v6230 = vsel %vm5875, %v6118, %v5118
        %v6231 = vsel %vm5875, %v6119, %v5120
        %v6232 = vsel %vm5875, %v6120, %v5122
        %v6233 = vsel %vm5875, %v6121, %v5124
        %v6234 = vsel %vm5875, %v6122, %v5126
        %v6235 = vsel %vm5875, %v6123, %v5128
        %v6236 = vsel %vm5875, %v6124, %v5130
        %v6237 = vsel %vm5875, %v6125, %v5132
        %v6238 = vsel %vm5875, %v6126, %v5134
        %v6239 = vsel %vm5875, %v6127, %v5136
        %v6240 = vsel %vm5875, %v6128, %v5138
        %v6241 = vsel %vm5875, %v6129, %v5140
        %v6242 = vsel %vm5875, %v6130, %v5142
        %v6243 = vsel %vm5875, %v6131, %v5144
        %v6244 = vsel %vm5875, %v6132, %v5146
        %v6245 = vsel %vm5875, %v6133, %v5148
        %v6246 = vsel %vm5875, %v6134, %v5150
        %v6247 = vsel %vm5875, %v6135, %v5152
        %v6248 = vsel %vm5875, %v6136, %v5154
        %v6249 = vsel %vm5875, %v6137, %v5156
        %v6250 = vsel %vm5875, %v6138, %v5158
        %v6251 = vsel %vm5875, %v6139, %v5160
        %v6252 = vsel %vm5875, %v6140, %v5162
        %v6253 = vsel %vm5875, %v6141, %v5164
        %v6254 = vsel %vm5875, %v6142, %v5166
        %v6255 = vsel %vm5875, %v6143, %v5168
        %v6256 = vsel %vm5875, %v6144, %v5170
        %v6257 = vsel %vm5875, %v6145, %v5172
        %v6258 = vsel %vm5875, %v6146, %v5174
        %v6259 = vsel %vm5875, %v6147, %v5176
        %v6260 = vsel %vm5875, %v6148, %v5178
        %v6261 = vsel %vm5875, %v6149, %v5180
        %v6262 = vsel %vm5875, %v6150, %v5182
        %v6263 = vsel %vm5875, %v6151, %v5184
        %v6264 = vsel %vm5875, %v6152, %v5186
        %v6265 = vsel %vm5875, %v6153, %v5188
        %v6266 = vsel %vm5875, %v6154, %v5190
        %v6267 = vsel %vm5875, %v6155, %v5192
        %v6268 = vsel %vm5875, %v6156, %v5194
        %v6269 = vsel %vm5875, %v6157, %v5196
        %v6270 = vsel %vm5875, %v6158, %v5198
        %v6271 = vsel %vm5875, %v6159, %v5200
        %v6272 = vsel %vm5875, %v6160, %v5202
        %v6273 = vsel %vm5875, %v6161, %v5204
        %v6274 = vsel %vm5875, %v6162, %v5206
        %v6275 = vsel %vm5875, %v6163, %v5208
        %v6276 = vsel %vm5875, %v6164, %v5210
        %v6277 = vsel %vm5875, %v6165, %v5212
        %v6278 = vsel %vm5875, %v6166, %v5214
        %v6279 = vsel %vm5875, %v6167, %v5216
        %v6280 = vsel %vm5875, %v6168, %v5218
        %v6281 = vsel %vm5875, %v6169, %v5220
        %v6282 = vsel %vm5875, %v6170, %v5222
        %v6283 = vsel %vm5875, %v6171, %v5224
        %v6284 = vsel %vm5875, %v6172, %v5226
        %v6285 = vsel %vm5875, %v6173, %v5228
        %v6286 = vsel %vm5875, %v6174, %v5230
        %v6287 = vsel %vm5875, %v6175, %v5232
        %v6288 = vsel %vm5875, %v6176, %v5234
        %v6289 = vsel %vm5875, %v6177, %v5236
        %v6290 = vsel %vm5875, %v6178, %v5238
        %v6291 = vsel %vm5875, %v6179, %v5240
        %v6292 = vsel %vm5875, %v6180, %v5242
        %v6293 = vsel %vm5875, %v6181, %v5244
        %v6294 = vsel %vm5875, %v6182, %v5246
        %v6295 = vsel %vm5875, %v6183, %v5248
        %v6296 = vsel %vm5875, %v6184, %v5250
        %v6297 = vsel %vm5875, %v6185, %v5252
        %v6298 = vsel %vm5875, %v6186, %v5254
        %v6299 = vsel %vm5875, %v6187, %v5256
        %v6300 = vsel %vm5875, %v6188, %v5258
        %v6301 = vsel %vm5875, %v6189, %v5260
        %v6302 = vsel %vm5875, %v6190, %v5262
        %v6303 = vsel %vm5875, %v6191, %v5264
        %v6304 = vsel %vm5875, %v6192, %v5266
        %v6305 = vsel %vm5875, %v6193, %v5268
        %v6306 = vsel %vm5875, %v6194, %v5270
        %v6307 = vsel %vm5875, %v6195, %v5272
        %v6308 = vsel %vm5875, %v6196, %v5274
        %v6309 = vsel %vm5875, %v6197, %v5276
        %v6310 = vsel %vm5875, %v6198, %v5278
        %v6311 = vsel %vm5875, %v6199, %v5280
        %v6312 = vsel %vm5875, %v6200, %v5282
        %v6313 = vsel %vm5875, %v6201, %v5284
        %v6314 = vsel %vm5875, %v6202, %v5286
        %v6315 = vsel %vm5875, %v6203, %v5288
        %v6316 = vsel %vm5875, %v6204, %v5290
        %v6317 = vsel %vm5875, %v6205, %v5292
        %v6318 = vsel %vm5875, %v6206, %v5294
        %v6319 = vsel %vm5875, %v6207, %v5296
        %v6320 = vsel %vm5875, %v6208, %v5298
        %v6321 = vsel %vm5875, %v6209, %v5300
        %v6322 = vsel %vm5875, %v6210, %v5302
        %v6323 = vsel %vm5875, %v6211, %v5304
        %v6324 = vsel %vm5875, %v6212, %v5306
        %v6325 = vsel %vm5988, %v6213, %v5428
        %v6326 = vsel %vm5988, %v6214, %v5430
        %v6327 = vsel %vm5988, %v6215, %v5432
        %v6328 = vsel %vm5988, %v6216, %v5434
        %v6329 = vsel %vm5988, %v6217, %v5436
        %v6330 = vsel %vm5988, %v6218, %v5438
        %v6331 = vsel %vm5988, %v6219, %v5440
        %v6332 = vsel %vm5988, %v6220, %v5442
        %v6333 = vsel %vm5988, %v6221, %v5444
        %v6334 = vsel %vm5988, %v6222, %v5446
        %v6335 = vsel %vm5988, %v6223, %v5448
        %v6336 = vsel %vm5988, %v6224, %v5450
        %v6337 = vsel %vm5988, %v6225, %v5452
        %v6338 = vsel %vm5988, %v6226, %v5454
        %v6339 = vsel %vm5988, %v6227, %v5456
        %v6340 = vsel %vm5988, %v6228, %v5458
        %v6341 = vsel %vm5988, %v6229, %v5460
        %v6342 = vsel %vm5988, %v6230, %v5462
        %v6343 = vsel %vm5988, %v6231, %v5464
        %v6344 = vsel %vm5988, %v6232, %v5466
        %v6345 = vsel %vm5988, %v6233, %v5468
        %v6346 = vsel %vm5988, %v6234, %v5470
        %v6347 = vsel %vm5988, %v6235, %v5472
        %v6348 = vsel %vm5988, %v6236, %v5474
        %v6349 = vsel %vm5988, %v6237, %v5476
        %v6350 = vsel %vm5988, %v6238, %v5478
        %v6351 = vsel %vm5988, %v6239, %v5480
        %v6352 = vsel %vm5988, %v6240, %v5482
        %v6353 = vsel %vm5988, %v6241, %v5484
        %v6354 = vsel %vm5988, %v6242, %v5486
        %v6355 = vsel %vm5988, %v6243, %v5488
        %v6356 = vsel %vm5988, %v6244, %v5490
        %v6357 = vsel %vm5988, %v6245, %v5492
        %v6358 = vsel %vm5988, %v6246, %v5494
        %v6359 = vsel %vm5988, %v6247, %v5496
        %v6360 = vsel %vm5988, %v6248, %v5498
        %v6361 = vsel %vm5988, %v6249, %v5500
        %v6362 = vsel %vm5988, %v6250, %v5502
        %v6363 = vsel %vm5988, %v6251, %v5504
        %v6364 = vsel %vm5988, %v6252, %v5506
        %v6365 = vsel %vm5988, %v6253, %v5508
        %v6366 = vsel %vm5988, %v6254, %v5510
        %v6367 = vsel %vm5988, %v6255, %v5512
        %v6368 = vsel %vm5988, %v6256, %v5514
        %v6369 = vsel %vm5988, %v6257, %v5516
        %v6370 = vsel %vm5988, %v6258, %v5518
        %v6371 = vsel %vm5988, %v6259, %v5520
        %v6372 = vsel %vm5988, %v6260, %v5522
        %v6373 = vsel %vm5988, %v6261, %v5524
        %v6374 = vsel %vm5988, %v6262, %v5526
        %v6375 = vsel %vm5988, %v6263, %v5528
        %v6376 = vsel %vm5988, %v6264, %v5530
        %v6377 = vsel %vm5988, %v6265, %v5532
        %v6378 = vsel %vm5988, %v6266, %v5534
        %v6379 = vsel %vm5988, %v6267, %v5536
        %v6380 = vsel %vm5988, %v6268, %v5538
        %v6381 = vsel %vm5988, %v6269, %v5540
        %v6382 = vsel %vm5988, %v6270, %v5542
        %v6383 = vsel %vm5988, %v6271, %v5544
        %v6384 = vsel %vm5988, %v6272, %v5546
        %v6385 = vsel %vm5988, %v6273, %v5548
        %v6386 = vsel %vm5988, %v6274, %v5550
        %v6387 = vsel %vm5988, %v6275, %v5552
        %v6388 = vsel %vm5988, %v6276, %v5554
        %v6389 = vsel %vm5988, %v6277, %v5556
        %v6390 = vsel %vm5988, %v6278, %v5558
        %v6391 = vsel %vm5988, %v6279, %v5560
        %v6392 = vsel %vm5988, %v6280, %v5562
        %v6393 = vsel %vm5988, %v6281, %v5564
        %v6394 = vsel %vm5988, %v6282, %v5566
        %v6395 = vsel %vm5988, %v6283, %v5568
        %v6396 = vsel %vm5988, %v6284, %v5570
        %v6397 = vsel %vm5988, %v6285, %v5572
        %v6398 = vsel %vm5988, %v6286, %v5574
        %v6399 = vsel %vm5988, %v6287, %v5576
        %v6400 = vsel %vm5988, %v6288, %v5578
        %v6401 = vsel %vm5988, %v6289, %v5580
        %v6402 = vsel %vm5988, %v6290, %v5582
        %v6403 = vsel %vm5988, %v6291, %v5584
        %v6404 = vsel %vm5988, %v6292, %v5586
        %v6405 = vsel %vm5988, %v6293, %v5588
        %v6406 = vsel %vm5988, %v6294, %v5590
        %v6407 = vsel %vm5988, %v6295, %v5592
        %v6408 = vsel %vm5988, %v6296, %v5594
        %v6409 = vsel %vm5988, %v6297, %v5596
        %v6410 = vsel %vm5988, %v6298, %v5598
        %v6411 = vsel %vm5988, %v6299, %v5600
        %v6412 = vsel %vm5988, %v6300, %v5602
        %v6413 = vsel %vm5988, %v6301, %v5604
        %v6414 = vsel %vm5988, %v6302, %v5606
        %v6415 = vsel %vm5988, %v6303, %v5608
        %v6416 = vsel %vm5988, %v6304, %v5610
        %v6417 = vsel %vm5988, %v6305, %v5612
        %v6418 = vsel %vm5988, %v6306, %v5614
        %v6419 = vsel %vm5988, %v6307, %v5616
        %v6420 = vsel %vm5988, %v6308, %v5618
        %v6421 = vsel %vm5988, %v6309, %v5620
        %v6422 = vsel %vm5988, %v6310, %v5622
        %v6423 = vsel %vm5988, %v6311, %v5624
        %v6424 = vsel %vm5988, %v6312, %v5626
        %v6425 = vsel %vm5988, %v6313, %v5628
        %v6426 = vsel %vm5988, %v6314, %v5630
        %v6427 = vsel %vm5988, %v6315, %v5632
        %v6428 = vsel %vm5988, %v6316, %v5634
        %v6429 = vsel %vm5988, %v6317, %v5636
        %v6430 = vsel %vm5988, %v6318, %v5638
        %v6431 = vsel %vm5988, %v6319, %v5640
        %v6432 = vsel %vm5988, %v6320, %v5642
        %v6433 = vsel %vm5988, %v6321, %v5644
        %v6434 = vsel %vm5988, %v6322, %v5646
        %v6435 = vsel %vm5988, %v6323, %v5648
        %v6436 = vsel %vm5988, %v6324, %v5650
        %v6437 = vld [vmem:[%s3] sm:$0xff]
        %v6438 = vld [vmem:[%s3 + $0x8] sm:$0xff]
        %v6439 = vld [vmem:[%s3 + $0x10] sm:$0xff]
        %v6440 = vld [vmem:[%s3 + $0x18] sm:$0xff]
        %v6441 = vld [vmem:[%s3 + $0x20] sm:$0xff]
        %v6442 = vld [vmem:[%s3 + $0x28] sm:$0xff]
        %v6443 = vld [vmem:[%s3 + $0x30] sm:$0xff]
        %v6444 = vld [vmem:[%s3 + $0x38] sm:$0xff]
        %v6445 = vld [vmem:[%s3 + $0x40] sm:$0xff]
        %v6446 = vld [vmem:[%s3 + $0x48] sm:$0xff]
        %v6447 = vld [vmem:[%s3 + $0x50] sm:$0xff]
        %v6448 = vld [vmem:[%s3 + $0x58] sm:$0xff]
        %v6449 = vld [vmem:[%s3 + $0x60] sm:$0xff]
        %v6450 = vld [vmem:[%s3 + $0x68] sm:$0xff]
        %v6451 = vld [vmem:[%s3 + $0x70] sm:$0xff]
        %v6452 = vld [vmem:[%s3 + $0x78] sm:$0xff]
        %v6453 = vld [vmem:[%s3 + $0x80] sm:$0xff]
        %v6454 = vld [vmem:[%s3 + $0x88] sm:$0xff]
        %v6455 = vld [vmem:[%s3 + $0x90] sm:$0xff]
        %v6456 = vld [vmem:[%s3 + $0x98] sm:$0xff]
        %v6457 = vld [vmem:[%s3 + $0xa0] sm:$0xff]
        %v6458 = vld [vmem:[%s3 + $0xa8] sm:$0xff]
        %v6459 = vld [vmem:[%s3 + $0xb0] sm:$0xff]
        %v6460 = vld [vmem:[%s3 + $0xb8] sm:$0xff]
        %v6461 = vld [vmem:[%s3 + $0xc0] sm:$0xff]
        %v6462 = vld [vmem:[%s3 + $0xc8] sm:$0xff]
        %v6463 = vld [vmem:[%s3 + $0xd0] sm:$0xff]
        %v6464 = vld [vmem:[%s3 + $0xd8] sm:$0xff]
        %v6465 = vld [vmem:[%s3 + $0xe0] sm:$0xff]
        %v6466 = vld [vmem:[%s3 + $0xe8] sm:$0xff]
        %v6467 = vld [vmem:[%s3 + $0xf0] sm:$0xff]
        %v6468 = vld [vmem:[%s3 + $0xf8] sm:$0xff]
        %v6469 = vld [vmem:[%s3 + $0x100] sm:$0xff]
        %v6470 = vld [vmem:[%s3 + $0x108] sm:$0xff]
        %v6471 = vld [vmem:[%s3 + $0x110] sm:$0xff]
        %v6472 = vld [vmem:[%s3 + $0x118] sm:$0xff]
        %v6473 = vld [vmem:[#allocation8] sm:$0x1]
        %v6475 = vlaneseq
        %v6476 = vshrl.u32 %v6475, 7
        %v6477 = vsub.s32 0, %v6476
        %v6478 = vrot.slane %v6473, %v6477
        %v6480 = vsel %vm2913, %v3267, 0
        %v6482 = vsel %vm2913, %v3268, 0
        %v6484 = vsel %vm2913, %v3269, 0
        %v6486 = vsel %vm2913, %v3270, 0
        %v6488 = vsel %vm2913, %v3271, 0
        %v6490 = vsel %vm2913, %v3272, 0
        %v6492 = vsel %vm2913, %v3273, 0
        %v6494 = vsel %vm2913, %v3274, 0
        %v6496 = vsel %vm2913, %v3275, 0
        %v6498 = vsel %vm2913, %v3276, 0
        %v6500 = vsel %vm2913, %v3277, 0
        %v6502 = vsel %vm2913, %v3278, 0
        %v6504 = vsel %vm2913, %v3279, 0
        %v6506 = vsel %vm2913, %v3280, 0
        %v6508 = vsel %vm2913, %v3281, 0
        %v6510 = vsel %vm2913, %v3282, 0
        %v6512 = vsel %vm2913, %v3283, 0
        %v6514 = vsel %vm2913, %v3284, 0
        %v6516 = vsel %vm2913, %v3285, 0
        %v6518 = vsel %vm2913, %v3286, 0
        %v6520 = vsel %vm2913, %v3287, 0
        %v6522 = vsel %vm2913, %v3288, 0
        %v6524 = vsel %vm2913, %v3289, 0
        %v6526 = vsel %vm2913, %v3290, 0
        %v6528 = vsel %vm2913, %v3291, 0
        %v6530 = vsel %vm2913, %v3292, 0
        %v6532 = vsel %vm2913, %v3293, 0
        %v6534 = vsel %vm2913, %v3294, 0
        %v6536 = vsel %vm2913, %v3295, 0
        %v6538 = vsel %vm2913, %v3296, 0
        %v6540 = vsel %vm2913, %v3297, 0
        %v6542 = vsel %vm2913, %v3298, 0
        %v6544 = vsel %vm2913, %v3299, 0
        %v6546 = vsel %vm2913, %v3300, 0
        %v6548 = vsel %vm2913, %v3301, 0
        %v6550 = vsel %vm2913, %v3302, 0
        %v6552 = vsel %vm2913, %v3303, 0
        %v6554 = vsel %vm2913, %v3304, 0
        %v6556 = vsel %vm2913, %v3305, 0
        %v6558 = vsel %vm2913, %v3306, 0
        %v6560 = vsel %vm2913, %v3307, 0
        %v6562 = vsel %vm2913, %v3308, 0
        %v6564 = vsel %vm2913, %v3309, 0
        %v6566 = vsel %vm2913, %v3310, 0
        %v6568 = vsel %vm2913, %v3311, 0
        %v6570 = vsel %vm2913, %v3312, 0
        %v6572 = vsel %vm2913, %v3313, 0
        %v6574 = vsel %vm2913, %v3314, 0
        %v6576 = vsel %vm2913, %v3315, 0
        %v6578 = vsel %vm2913, %v3316, 0
        %v6580 = vsel %vm2913, %v3317, 0
        %v6582 = vsel %vm2913, %v3318, 0
        %v6584 = vsel %vm2913, %v3319, 0
        %v6586 = vsel %vm2913, %v3320, 0
        %v6588 = vsel %vm2913, %v3321, 0
        %v6590 = vsel %vm2913, %v3322, 0
        %v6592 = vsel %vm2913, %v3323, 0
        %v6594 = vsel %vm2913, %v3324, 0
        %v6596 = vsel %vm2913, %v3325, 0
        %v6598 = vsel %vm2913, %v3326, 0
        %v6600 = vsel %vm2913, %v3327, 0
        %v6602 = vsel %vm2913, %v3328, 0
        %v6604 = vsel %vm2913, %v3329, 0
        %v6606 = vsel %vm2913, %v3330, 0
        %v6608 = vsel %vm2913, %v3331, 0
        %v6610 = vsel %vm2913, %v3332, 0
        %v6612 = vsel %vm2913, %v3333, 0
        %v6614 = vsel %vm2913, %v3334, 0
        %v6616 = vsel %vm2913, %v3335, 0
        %v6618 = vsel %vm2913, %v3336, 0
        %v6620 = vsel %vm2913, %v3337, 0
        %v6622 = vsel %vm2913, %v3338, 0
        %v6624 = vsel %vm2913, %v3339, 0
        %v6626 = vsel %vm2913, %v3340, 0
        %v6628 = vsel %vm2913, %v3341, 0
        %v6630 = vsel %vm2913, %v3342, 0
        %v6632 = vsel %vm2913, %v3343, 0
        %v6634 = vsel %vm2913, %v3344, 0
        %v6636 = vsel %vm2913, %v3345, 0
        %v6638 = vsel %vm2913, %v3346, 0
        %v6640 = vsel %vm2913, %v3347, 0
        %v6642 = vsel %vm2913, %v3348, 0
        %v6644 = vsel %vm2913, %v3349, 0
        %v6646 = vsel %vm2913, %v3350, 0
        %v6648 = vsel %vm2913, %v3351, 0
        %v6650 = vsel %vm2913, %v3352, 0
        %v6652 = vsel %vm2913, %v3353, 0
        %v6654 = vsel %vm2913, %v3354, 0
        %v6656 = vsel %vm2913, %v3355, 0
        %v6658 = vsel %vm2913, %v3356, 0
        %v6660 = vsel %vm2913, %v3357, 0
        %v6662 = vsel %vm2913, %v3358, 0
        %v6664 = vsel %vm2913, %v3359, 0
        %v6666 = vsel %vm2913, %v3360, 0
        %v6668 = vsel %vm2913, %v3361, 0
        %v6670 = vsel %vm2913, %v3362, 0
        %v6672 = vsel %vm2913, %v3363, 0
        %v6674 = vsel %vm2913, %v3364, 0
        %v6676 = vsel %vm2913, %v3365, 0
        %v6678 = vsel %vm2913, %v3366, 0
        %v6680 = vsel %vm2913, %v3367, 0
        %v6682 = vsel %vm2913, %v3368, 0
        %v6684 = vsel %vm2913, %v3369, 0
        %v6686 = vsel %vm2913, %v3370, 0
        %v6688 = vsel %vm2913, %v3379, 0
        %v6690 = vsel %vm2913, %v3380, 0
        %v6692 = vsel %vm2913, %v3381, 0
        %v6694 = vsel %vm2913, %v3382, 0
        %v6697 = vsel %vm2913, %v3391, 0
        %v6700 = vsel %vm2913, %v3392, 0
        %v6703 = vsel %vm2913, %v3393, 0
        %v6706 = vsel %vm2913, %v3394, 0
        %6708 = vmatprep.subr.mxu0 0.0
        %6709 = vmatpush1.msra.mxu0 %v6437
        %6710 = vmatprep.subr.mxu0 0.0
        %6711 = vmatpush1.msra.mxu0 %v6438
        %6712 = vmatprep.subr.mxu0 0.0
        %6713 = vmatpush1.msra.mxu0 %v6439
        %6714 = vmatprep.subr.mxu0 0.0
        %6715 = vmatpush1.msra.mxu0 %v6440
        %6716 = vmatprep.subr.mxu0 0.0
        %6717 = vmatpush1.msra.mxu0 %v6441
        %6718 = vmatprep.subr.mxu0 0.0
        %6719 = vmatpush1.msra.mxu0 %v6442
        %6720 = vmatprep.subr.mxu0 0.0
        %6721 = vmatpush1.msra.mxu0 %v6443
        %6722 = vmatprep.subr.mxu0 0.0
        %6723 = vmatpush1.msra.mxu0 %v6444
        %6724 = vmatprep.subr.mxu0 0.0
        %6725 = vmatpush1.msra.mxu0 %v6445
        %6726 = vmatprep.subr.mxu0 0.0
        %6727 = vmatpush1.msra.mxu0 %v6446
        %6728 = vmatprep.subr.mxu0 0.0
        %6729 = vmatpush1.msra.mxu0 %v6447
        %6730 = vmatprep.subr.mxu0 0.0
        %6731 = vmatpush1.msra.mxu0 %v6448
        %6732 = vmatprep.subr.mxu0 0.0
        %6733 = vmatpush1.msra.mxu0 %v6449
        %6734 = vmatprep.subr.mxu0 0.0
        %6735 = vmatpush1.msra.mxu0 %v6450
        %6736 = vmatprep.subr.mxu0 0.0
        %6737 = vmatpush1.msra.mxu0 %v6451
        %6738 = vmatprep.subr.mxu0 0.0
        %6739 = vmatpush1.msra.mxu0 %v6452
        %6740 = vmatprep.subr.mxu0 0.0
        %6741 = vmatpush1.msra.mxu0 %v6453
        %6742 = vmatprep.subr.mxu0 0.0
        %6743 = vmatpush1.msra.mxu0 %v6454
        %6744 = vmatprep.subr.mxu0 0.0
        %6745 = vmatpush1.msra.mxu0 %v6455
        %6746 = vmatprep.subr.mxu0 0.0
        %6747 = vmatpush1.msra.mxu0 %v6456
        %6748 = vmatprep.subr.mxu0 0.0
        %6749 = vmatpush1.msra.mxu0 %v6457
        %6750 = vmatprep.subr.mxu0 0.0
        %6751 = vmatpush1.msra.mxu0 %v6458
        %6752 = vmatprep.subr.mxu0 0.0
        %6753 = vmatpush1.msra.mxu0 %v6459
        %6754 = vmatprep.subr.mxu0 0.0
        %6755 = vmatpush1.msra.mxu0 %v6460
        %6756 = vmatprep.subr.mxu0 0.0
        %6757 = vmatpush1.msra.mxu0 %v6461
        %6758 = vmatprep.subr.mxu0 0.0
        %6759 = vmatpush1.msra.mxu0 %v6462
        %6760 = vmatprep.subr.mxu0 0.0
        %6761 = vmatpush1.msra.mxu0 %v6463
        %6762 = vmatprep.subr.mxu0 0.0
        %6763 = vmatpush1.msra.mxu0 %v6464
        %6764 = vmatprep.subr.mxu0 0.0
        %6765 = vmatpush1.msra.mxu0 %v6465
        %6766 = vmatprep.subr.mxu0 0.0
        %6767 = vmatpush1.msra.mxu0 %v6466
        %6768 = vmatprep.subr.mxu0 0.0
        %6769 = vmatpush1.msra.mxu0 %v6467
        %6770 = vmatprep.subr.mxu0 0.0
        %6771 = vmatpush1.msra.mxu0 %v6468
        %6772 = vmatprep.mubr.f32.mxu0 %v6325
        %6773 = vmatmul.mubr.f32.gmra.mrb[0].mxu0 %v5989
        %v6774 = vpop.f32.mrb[0].mxu0
        %v6775 = vadd.f32 %v6478, %v6774
        %v6776 = vpop.f32.mrb[0].mxu0
        %6777 = vmatprep.mubr.f32.mxu0 %v6326
        %6778 = vmatmul.mubr.f32.gmra.mrb[0].mxu0 %v5990
        %v6779 = vpop.f32.mrb[0].mxu0
        %v6780 = vadd.f32 %v6478, %v6779
        %v6781 = vpop.f32.mrb[0].mxu0
        %6782 = vmatprep.mubr.f32.mxu0 %v6327
        %6783 = vmatmul.mubr.f32.gmra.mrb[0].mxu0 %v5991
        %v6784 = vpop.f32.mrb[0].mxu0
        %v6785 = vadd.f32 %v6478, %v6784
        %v6786 = vpop.f32.mrb[0].mxu0
        %6787 = vmatprep.mubr.f32.mxu0 %v6328
        %6788 = vmatmul.mubr.f32.gmra.mrb[0].mxu0 %v5992
        %v6789 = vpop.f32.mrb[0].mxu0
        %v6790 = vadd.f32 %v6478, %v6789
        %v6791 = vpop.f32.mrb[0].mxu0
        %6792 = vmatprep.mubr.f32.mxu0 %v6329
        %6793 = vmatmul.mubr.f32.gmra.mrb[0].mxu0 %v5993
        %v6794 = vpop.f32.mrb[0].mxu0
        %v6795 = vadd.f32 %v6478, %v6794
        %v6796 = vpop.f32.mrb[0].mxu0
        %6797 = vmatprep.mubr.f32.mxu0 %v6330
        %6798 = vmatmul.mubr.f32.gmra.mrb[0].mxu0 %v5994
        %v6799 = vpop.f32.mrb[0].mxu0
        %v6800 = vadd.f32 %v6478, %v6799
        %v6801 = vpop.f32.mrb[0].mxu0
        %6802 = vmatprep.mubr.f32.mxu0 %v6331
        %6803 = vmatmul.mubr.f32.gmra.mrb[0].mxu0 %v5995
        %v6804 = vpop.f32.mrb[0].mxu0
        %v6805 = vadd.f32 %v6478, %v6804
        %v6806 = vpop.f32.mrb[0].mxu0
        %6807 = vmatprep.mubr.f32.mxu0 %v6332
        %6808 = vmatmul.mubr.f32.gmra.mrb[0].mxu0 %v5996
        %v6809 = vpop.f32.mrb[0].mxu0
        %v6810 = vadd.f32 %v6478, %v6809
        %v6811 = vpop.f32.mrb[0].mxu0
        %6812 = vmatprep.mubr.f32.mxu0 %v6333
        %6813 = vmatmul.mubr.f32.gmra.mrb[0].mxu0 %v5997
        %v6814 = vpop.f32.mrb[0].mxu0
        %v6815 = vadd.f32 %v6478, %v6814
        %v6816 = vpop.f32.mrb[0].mxu0
        %6817 = vmatprep.mubr.f32.mxu0 %v6334
        %6818 = vmatmul.mubr.f32.gmra.mrb[0].mxu0 %v5998
        %v6819 = vpop.f32.mrb[0].mxu0
        %v6820 = vadd.f32 %v6478, %v6819
        %v6821 = vpop.f32.mrb[0].mxu0
        %6822 = vmatprep.mubr.f32.mxu0 %v6335
        %6823 = vmatmul.mubr.f32.gmra.mrb[0].mxu0 %v5999
        %v6824 = vpop.f32.mrb[0].mxu0
        %v6825 = vadd.f32 %v6478, %v6824
        %v6826 = vpop.f32.mrb[0].mxu0
        %6827 = vmatprep.mubr.f32.mxu0 %v6336
        %6828 = vmatmul.mubr.f32.gmra.mrb[0].mxu0 %v6000
        %v6829 = vpop.f32.mrb[0].mxu0
        %v6830 = vadd.f32 %v6478, %v6829
        %v6831 = vpop.f32.mrb[0].mxu0
        %6832 = vmatprep.mubr.f32.mxu0 %v6337
        %6833 = vmatmul.mubr.f32.gmra.mrb[0].mxu0 %v6001
        %v6834 = vpop.f32.mrb[0].mxu0
        %v6835 = vadd.f32 %v6478, %v6834
        %v6836 = vpop.f32.mrb[0].mxu0
        %6837 = vmatprep.mubr.f32.mxu0 %v6338
        %6838 = vmatmul.mubr.f32.gmra.mrb[0].mxu0 %v6002
        %v6839 = vpop.f32.mrb[0].mxu0
        %v6840 = vadd.f32 %v6478, %v6839
        %v6841 = vpop.f32.mrb[0].mxu0
        %6842 = vmatprep.mubr.f32.mxu0 %v6339
        %6843 = vmatmul.mubr.f32.gmra.mrb[0].mxu0 %v6003
        %v6844 = vpop.f32.mrb[0].mxu0
        %v6845 = vadd.f32 %v6478, %v6844
        %v6846 = vpop.f32.mrb[0].mxu0
        %6847 = vmatprep.mubr.f32.mxu0 %v6340
        %6848 = vmatmul.mubr.f32.gmra.mrb[0].mxu0 %v6004
        %v6849 = vpop.f32.mrb[0].mxu0
        %v6850 = vadd.f32 %v6478, %v6849
        %v6851 = vpop.f32.mrb[0].mxu0
        %6852 = vmatprep.mubr.f32.mxu0 %v6341
        %6853 = vmatmul.mubr.f32.gmra.mrb[0].mxu0 %v6005
        %v6854 = vpop.f32.mrb[0].mxu0
        %v6855 = vadd.f32 %v6478, %v6854
        %v6856 = vpop.f32.mrb[0].mxu0
        %6857 = vmatprep.mubr.f32.mxu0 %v6342
        %6858 = vmatmul.mubr.f32.gmra.mrb[0].mxu0 %v6006
        %v6859 = vpop.f32.mrb[0].mxu0
        %v6860 = vadd.f32 %v6478, %v6859
        %v6861 = vpop.f32.mrb[0].mxu0
        %6862 = vmatprep.mubr.f32.mxu0 %v6343
        %6863 = vmatmul.mubr.f32.gmra.mrb[0].mxu0 %v6007
        %v6864 = vpop.f32.mrb[0].mxu0
        %v6865 = vadd.f32 %v6478, %v6864
        %v6866 = vpop.f32.mrb[0].mxu0
        %6867 = vmatprep.mubr.f32.mxu0 %v6344
        %6868 = vmatmul.mubr.f32.gmra.mrb[0].mxu0 %v6008
        %v6869 = vpop.f32.mrb[0].mxu0
        %v6870 = vadd.f32 %v6478, %v6869
        %v6871 = vpop.f32.mrb[0].mxu0
        %6872 = vmatprep.mubr.f32.mxu0 %v6345
        %6873 = vmatmul.mubr.f32.gmra.mrb[0].mxu0 %v6009
        %v6874 = vpop.f32.mrb[0].mxu0
        %v6875 = vadd.f32 %v6478, %v6874
        %v6876 = vpop.f32.mrb[0].mxu0
        %6877 = vmatprep.mubr.f32.mxu0 %v6346
        %6878 = vmatmul.mubr.f32.gmra.mrb[0].mxu0 %v6010
        %v6879 = vpop.f32.mrb[0].mxu0
        %v6880 = vadd.f32 %v6478, %v6879
        %v6881 = vpop.f32.mrb[0].mxu0
        %6882 = vmatprep.mubr.f32.mxu0 %v6347
        %6883 = vmatmul.mubr.f32.gmra.mrb[0].mxu0 %v6011
        %v6884 = vpop.f32.mrb[0].mxu0
        %v6885 = vadd.f32 %v6478, %v6884
        %v6886 = vpop.f32.mrb[0].mxu0
        %6887 = vmatprep.mubr.f32.mxu0 %v6348
        %6888 = vmatmul.mubr.f32.gmra.mrb[0].mxu0 %v6012
        %v6889 = vpop.f32.mrb[0].mxu0
        %v6890 = vadd.f32 %v6478, %v6889
        %v6891 = vpop.f32.mrb[0].mxu0
        %6892 = vmatprep.mubr.f32.mxu0 %v6349
        %6893 = vmatmul.mubr.f32.gmra.mrb[0].mxu0 %v6013
        %v6894 = vpop.f32.mrb[0].mxu0
        %v6895 = vadd.f32 %v6478, %v6894
        %v6896 = vpop.f32.mrb[0].mxu0
        %6897 = vmatprep.mubr.f32.mxu0 %v6350
        %6898 = vmatmul.mubr.f32.gmra.mrb[0].mxu0 %v6014
        %v6899 = vpop.f32.mrb[0].mxu0
        %v6900 = vadd.f32 %v6478, %v6899
        %v6901 = vpop.f32.mrb[0].mxu0
        %6902 = vmatprep.mubr.f32.mxu0 %v6351
        %6903 = vmatmul.mubr.f32.gmra.mrb[0].mxu0 %v6015
        %v6904 = vpop.f32.mrb[0].mxu0
        %v6905 = vadd.f32 %v6478, %v6904
        %v6906 = vpop.f32.mrb[0].mxu0
        %6907 = vmatprep.mubr.f32.mxu0 %v6352
        %6908 = vmatmul.mubr.f32.gmra.mrb[0].mxu0 %v6016
        %v6909 = vpop.f32.mrb[0].mxu0
        %v6910 = vadd.f32 %v6478, %v6909
        %v6911 = vpop.f32.mrb[0].mxu0
        %6912 = vmatprep.mubr.f32.mxu0 %v6353
        %6913 = vmatmul.mubr.f32.gmra.mrb[0].mxu0 %v6017
        %v6914 = vpop.f32.mrb[0].mxu0
        %v6915 = vadd.f32 %v6478, %v6914
        %v6916 = vpop.f32.mrb[0].mxu0
        %6917 = vmatprep.mubr.f32.mxu0 %v6354
        %6918 = vmatmul.mubr.f32.gmra.mrb[0].mxu0 %v6018
        %v6919 = vpop.f32.mrb[0].mxu0
        %v6920 = vadd.f32 %v6478, %v6919
        %v6921 = vpop.f32.mrb[0].mxu0
        %6922 = vmatprep.mubr.f32.mxu0 %v6355
        %6923 = vmatmul.mubr.f32.gmra.mrb[0].mxu0 %v6019
        %v6924 = vpop.f32.mrb[0].mxu0
        %v6925 = vadd.f32 %v6478, %v6924
        %v6926 = vpop.f32.mrb[0].mxu0
        %6927 = vmatprep.mubr.f32.mxu0 %v6356
        %6928 = vmatmul.mubr.f32.gmra.mrb[0].mxu0 %v6020
        %v6929 = vpop.f32.mrb[0].mxu0
        %v6930 = vadd.f32 %v6478, %v6929
        %v6931 = vpop.f32.mrb[0].mxu0
        %6932 = vmatprep.mubr.f32.mxu0 %v6357
        %6933 = vmatmul.mubr.f32.gmra.mrb[0].mxu0 %v6021
        %v6934 = vpop.f32.mrb[0].mxu0
        %v6935 = vadd.f32 %v6478, %v6934
        %v6936 = vpop.f32.mrb[0].mxu0
        %6937 = vmatprep.mubr.f32.mxu0 %v6358
        %6938 = vmatmul.mubr.f32.gmra.mrb[0].mxu0 %v6022
        %v6939 = vpop.f32.mrb[0].mxu0
        %v6940 = vadd.f32 %v6478, %v6939
        %v6941 = vpop.f32.mrb[0].mxu0
        %6942 = vmatprep.mubr.f32.mxu0 %v6359
        %6943 = vmatmul.mubr.f32.gmra.mrb[0].mxu0 %v6023
        %v6944 = vpop.f32.mrb[0].mxu0
        %v6945 = vadd.f32 %v6478, %v6944
        %v6946 = vpop.f32.mrb[0].mxu0
        %6947 = vmatprep.mubr.f32.mxu0 %v6360
        %6948 = vmatmul.mubr.f32.gmra.mrb[0].mxu0 %v6024
        %v6949 = vpop.f32.mrb[0].mxu0
        %v6950 = vadd.f32 %v6478, %v6949
        %v6951 = vpop.f32.mrb[0].mxu0
        %6952 = vmatprep.mubr.f32.mxu0 %v6361
        %6953 = vmatmul.mubr.f32.gmra.mrb[0].mxu0 %v6025
        %v6954 = vpop.f32.mrb[0].mxu0
        %v6955 = vadd.f32 %v6478, %v6954
        %v6956 = vpop.f32.mrb[0].mxu0
        %6957 = vmatprep.mubr.f32.mxu0 %v6362
        %6958 = vmatmul.mubr.f32.gmra.mrb[0].mxu0 %v6026
        %v6959 = vpop.f32.mrb[0].mxu0
        %v6960 = vadd.f32 %v6478, %v6959
        %v6961 = vpop.f32.mrb[0].mxu0
        %6962 = vmatprep.mubr.f32.mxu0 %v6363
        %6963 = vmatmul.mubr.f32.gmra.mrb[0].mxu0 %v6027
        %v6964 = vpop.f32.mrb[0].mxu0
        %v6965 = vadd.f32 %v6478, %v6964
        %v6966 = vpop.f32.mrb[0].mxu0
        %6967 = vmatprep.mubr.f32.mxu0 %v6364
        %6968 = vmatmul.mubr.f32.gmra.mrb[0].mxu0 %v6028
        %v6969 = vpop.f32.mrb[0].mxu0
        %v6970 = vadd.f32 %v6478, %v6969
        %v6971 = vpop.f32.mrb[0].mxu0
        %6972 = vmatprep.mubr.f32.mxu0 %v6365
        %6973 = vmatmul.mubr.f32.gmra.mrb[0].mxu0 %v6029
        %v6974 = vpop.f32.mrb[0].mxu0
        %v6975 = vadd.f32 %v6478, %v6974
        %v6976 = vpop.f32.mrb[0].mxu0
        %6977 = vmatprep.mubr.f32.mxu0 %v6366
        %6978 = vmatmul.mubr.f32.gmra.mrb[0].mxu0 %v6030
        %v6979 = vpop.f32.mrb[0].mxu0
        %v6980 = vadd.f32 %v6478, %v6979
        %v6981 = vpop.f32.mrb[0].mxu0
        %6982 = vmatprep.mubr.f32.mxu0 %v6367
        %6983 = vmatmul.mubr.f32.gmra.mrb[0].mxu0 %v6031
        %v6984 = vpop.f32.mrb[0].mxu0
        %v6985 = vadd.f32 %v6478, %v6984
        %v6986 = vpop.f32.mrb[0].mxu0
        %6987 = vmatprep.mubr.f32.mxu0 %v6368
        %6988 = vmatmul.mubr.f32.gmra.mrb[0].mxu0 %v6032
        %v6989 = vpop.f32.mrb[0].mxu0
        %v6990 = vadd.f32 %v6478, %v6989
        %v6991 = vpop.f32.mrb[0].mxu0
        %6992 = vmatprep.mubr.f32.mxu0 %v6369
        %6993 = vmatmul.mubr.f32.gmra.mrb[0].mxu0 %v6033
        %v6994 = vpop.f32.mrb[0].mxu0
        %v6995 = vadd.f32 %v6478, %v6994
        %v6996 = vpop.f32.mrb[0].mxu0
        %6997 = vmatprep.mubr.f32.mxu0 %v6370
        %6998 = vmatmul.mubr.f32.gmra.mrb[0].mxu0 %v6034
        %v6999 = vpop.f32.mrb[0].mxu0
        %v7000 = vadd.f32 %v6478, %v6999
        %v7001 = vpop.f32.mrb[0].mxu0
        %7002 = vmatprep.mubr.f32.mxu0 %v6371
        %7003 = vmatmul.mubr.f32.gmra.mrb[0].mxu0 %v6035
        %v7004 = vpop.f32.mrb[0].mxu0
        %v7005 = vadd.f32 %v6478, %v7004
        %v7006 = vpop.f32.mrb[0].mxu0
        %7007 = vmatprep.mubr.f32.mxu0 %v6372
        %7008 = vmatmul.mubr.f32.gmra.mrb[0].mxu0 %v6036
        %v7009 = vpop.f32.mrb[0].mxu0
        %v7010 = vadd.f32 %v6478, %v7009
        %v7011 = vpop.f32.mrb[0].mxu0
        %7012 = vmatprep.mubr.f32.mxu0 %v6373
        %7013 = vmatmul.mubr.f32.gmra.mrb[0].mxu0 %v6037
        %v7014 = vpop.f32.mrb[0].mxu0
        %v7015 = vadd.f32 %v6478, %v7014
        %v7016 = vpop.f32.mrb[0].mxu0
        %7017 = vmatprep.mubr.f32.mxu0 %v6374
        %7018 = vmatmul.mubr.f32.gmra.mrb[0].mxu0 %v6038
        %v7019 = vpop.f32.mrb[0].mxu0
        %v7020 = vadd.f32 %v6478, %v7019
        %v7021 = vpop.f32.mrb[0].mxu0
        %7022 = vmatprep.mubr.f32.mxu0 %v6375
        %7023 = vmatmul.mubr.f32.gmra.mrb[0].mxu0 %v6039
        %v7024 = vpop.f32.mrb[0].mxu0
        %v7025 = vadd.f32 %v6478, %v7024
        %v7026 = vpop.f32.mrb[0].mxu0
        %7027 = vmatprep.mubr.f32.mxu0 %v6376
        %7028 = vmatmul.mubr.f32.gmra.mrb[0].mxu0 %v6040
        %v7029 = vpop.f32.mrb[0].mxu0
        %v7030 = vadd.f32 %v6478, %v7029
        %v7031 = vpop.f32.mrb[0].mxu0
        %7032 = vmatprep.mubr.f32.mxu0 %v6377
        %7033 = vmatmul.mubr.f32.gmra.mrb[0].mxu0 %v6041
        %v7034 = vpop.f32.mrb[0].mxu0
        %v7035 = vadd.f32 %v6478, %v7034
        %v7036 = vpop.f32.mrb[0].mxu0
        %7037 = vmatprep.mubr.f32.mxu0 %v6378
        %7038 = vmatmul.mubr.f32.gmra.mrb[0].mxu0 %v6042
        %v7039 = vpop.f32.mrb[0].mxu0
        %v7040 = vadd.f32 %v6478, %v7039
        %v7041 = vpop.f32.mrb[0].mxu0
        %7042 = vmatprep.mubr.f32.mxu0 %v6379
        %7043 = vmatmul.mubr.f32.gmra.mrb[0].mxu0 %v6043
        %v7044 = vpop.f32.mrb[0].mxu0
        %v7045 = vadd.f32 %v6478, %v7044
        %v7046 = vpop.f32.mrb[0].mxu0
        %7047 = vmatprep.mubr.f32.mxu0 %v6380
        %7048 = vmatmul.mubr.f32.gmra.mrb[0].mxu0 %v6044
        %v7049 = vpop.f32.mrb[0].mxu0
        %v7050 = vadd.f32 %v6478, %v7049
        %v7051 = vpop.f32.mrb[0].mxu0
        %7052 = vmatprep.mubr.f32.mxu0 %v6381
        %7053 = vmatmul.mubr.f32.gmra.mrb[0].mxu0 %v6045
        %v7054 = vpop.f32.mrb[0].mxu0
        %v7055 = vadd.f32 %v6478, %v7054
        %v7056 = vpop.f32.mrb[0].mxu0
        %7057 = vmatprep.mubr.f32.mxu0 %v6382
        %7058 = vmatmul.mubr.f32.gmra.mrb[0].mxu0 %v6046
        %v7059 = vpop.f32.mrb[0].mxu0
        %v7060 = vadd.f32 %v6478, %v7059
        %v7061 = vpop.f32.mrb[0].mxu0
        %7062 = vmatprep.mubr.f32.mxu0 %v6383
        %7063 = vmatmul.mubr.f32.gmra.mrb[0].mxu0 %v6047
        %v7064 = vpop.f32.mrb[0].mxu0
        %v7065 = vadd.f32 %v6478, %v7064
        %v7066 = vpop.f32.mrb[0].mxu0
        %7067 = vmatprep.mubr.f32.mxu0 %v6384
        %7068 = vmatmul.mubr.f32.gmra.mrb[0].mxu0 %v6048
        %v7069 = vpop.f32.mrb[0].mxu0
        %v7070 = vadd.f32 %v6478, %v7069
        %v7071 = vpop.f32.mrb[0].mxu0
        %7072 = vmatprep.mubr.f32.mxu0 %v6385
        %7073 = vmatmul.mubr.f32.gmra.mrb[0].mxu0 %v6049
        %v7074 = vpop.f32.mrb[0].mxu0
        %v7075 = vadd.f32 %v6478, %v7074
        %v7076 = vpop.f32.mrb[0].mxu0
        %7077 = vmatprep.mubr.f32.mxu0 %v6386
        %7078 = vmatmul.mubr.f32.gmra.mrb[0].mxu0 %v6050
        %v7079 = vpop.f32.mrb[0].mxu0
        %v7080 = vadd.f32 %v6478, %v7079
        %v7081 = vpop.f32.mrb[0].mxu0
        %7082 = vmatprep.mubr.f32.mxu0 %v6387
        %7083 = vmatmul.mubr.f32.gmra.mrb[0].mxu0 %v6051
        %v7084 = vpop.f32.mrb[0].mxu0
        %v7085 = vadd.f32 %v6478, %v7084
        %v7086 = vpop.f32.mrb[0].mxu0
        %7087 = vmatprep.mubr.f32.mxu0 %v6388
        %7088 = vmatmul.mubr.f32.gmra.mrb[0].mxu0 %v6052
        %v7089 = vpop.f32.mrb[0].mxu0
        %v7090 = vadd.f32 %v6478, %v7089
        %v7091 = vpop.f32.mrb[0].mxu0
        %7092 = vmatprep.mubr.f32.mxu0 %v6389
        %7093 = vmatmul.mubr.f32.gmra.mrb[0].mxu0 %v6053
        %v7094 = vpop.f32.mrb[0].mxu0
        %v7095 = vadd.f32 %v6478, %v7094
        %v7096 = vpop.f32.mrb[0].mxu0
        %7097 = vmatprep.mubr.f32.mxu0 %v6390
        %7098 = vmatmul.mubr.f32.gmra.mrb[0].mxu0 %v6054
        %v7099 = vpop.f32.mrb[0].mxu0
        %v7100 = vadd.f32 %v6478, %v7099
        %v7101 = vpop.f32.mrb[0].mxu0
        %7102 = vmatprep.mubr.f32.mxu0 %v6391
        %7103 = vmatmul.mubr.f32.gmra.mrb[0].mxu0 %v6055
        %v7104 = vpop.f32.mrb[0].mxu0
        %v7105 = vadd.f32 %v6478, %v7104
        %v7106 = vpop.f32.mrb[0].mxu0
        %7107 = vmatprep.mubr.f32.mxu0 %v6392
        %7108 = vmatmul.mubr.f32.gmra.mrb[0].mxu0 %v6056
        %v7109 = vpop.f32.mrb[0].mxu0
        %v7110 = vadd.f32 %v6478, %v7109
        %v7111 = vpop.f32.mrb[0].mxu0
        %7112 = vmatprep.mubr.f32.mxu0 %v6393
        %7113 = vmatmul.mubr.f32.gmra.mrb[0].mxu0 %v6057
        %v7114 = vpop.f32.mrb[0].mxu0
        %v7115 = vadd.f32 %v6478, %v7114
        %v7116 = vpop.f32.mrb[0].mxu0
        %7117 = vmatprep.mubr.f32.mxu0 %v6394
        %7118 = vmatmul.mubr.f32.gmra.mrb[0].mxu0 %v6058
        %v7119 = vpop.f32.mrb[0].mxu0
        %v7120 = vadd.f32 %v6478, %v7119
        %v7121 = vpop.f32.mrb[0].mxu0
        %7122 = vmatprep.mubr.f32.mxu0 %v6395
        %7123 = vmatmul.mubr.f32.gmra.mrb[0].mxu0 %v6059
        %v7124 = vpop.f32.mrb[0].mxu0
        %v7125 = vadd.f32 %v6478, %v7124
        %v7126 = vpop.f32.mrb[0].mxu0
        %7127 = vmatprep.mubr.f32.mxu0 %v6396
        %7128 = vmatmul.mubr.f32.gmra.mrb[0].mxu0 %v6060
        %v7129 = vpop.f32.mrb[0].mxu0
        %v7130 = vadd.f32 %v6478, %v7129
        %v7131 = vpop.f32.mrb[0].mxu0
        %7132 = vmatprep.mubr.f32.mxu0 %v6397
        %7133 = vmatmul.mubr.f32.gmra.mrb[0].mxu0 %v6061
        %v7134 = vpop.f32.mrb[0].mxu0
        %v7135 = vadd.f32 %v6478, %v7134
        %v7136 = vpop.f32.mrb[0].mxu0
        %7137 = vmatprep.mubr.f32.mxu0 %v6398
        %7138 = vmatmul.mubr.f32.gmra.mrb[0].mxu0 %v6062
        %v7139 = vpop.f32.mrb[0].mxu0
        %v7140 = vadd.f32 %v6478, %v7139
        %v7141 = vpop.f32.mrb[0].mxu0
        %7142 = vmatprep.mubr.f32.mxu0 %v6399
        %7143 = vmatmul.mubr.f32.gmra.mrb[0].mxu0 %v6063
        %v7144 = vpop.f32.mrb[0].mxu0
        %v7145 = vadd.f32 %v6478, %v7144
        %v7146 = vpop.f32.mrb[0].mxu0
        %7147 = vmatprep.mubr.f32.mxu0 %v6400
        %7148 = vmatmul.mubr.f32.gmra.mrb[0].mxu0 %v6064
        %v7149 = vpop.f32.mrb[0].mxu0
        %v7150 = vadd.f32 %v6478, %v7149
        %v7151 = vpop.f32.mrb[0].mxu0
        %7152 = vmatprep.mubr.f32.mxu0 %v6401
        %7153 = vmatmul.mubr.f32.gmra.mrb[0].mxu0 %v6065
        %v7154 = vpop.f32.mrb[0].mxu0
        %v7155 = vadd.f32 %v6478, %v7154
        %v7156 = vpop.f32.mrb[0].mxu0
        %7157 = vmatprep.mubr.f32.mxu0 %v6402
        %7158 = vmatmul.mubr.f32.gmra.mrb[0].mxu0 %v6066
        %v7159 = vpop.f32.mrb[0].mxu0
        %v7160 = vadd.f32 %v6478, %v7159
        %v7161 = vpop.f32.mrb[0].mxu0
        %7162 = vmatprep.mubr.f32.mxu0 %v6403
        %7163 = vmatmul.mubr.f32.gmra.mrb[0].mxu0 %v6067
        %v7164 = vpop.f32.mrb[0].mxu0
        %v7165 = vadd.f32 %v6478, %v7164
        %v7166 = vpop.f32.mrb[0].mxu0
        %7167 = vmatprep.mubr.f32.mxu0 %v6404
        %7168 = vmatmul.mubr.f32.gmra.mrb[0].mxu0 %v6068
        %v7169 = vpop.f32.mrb[0].mxu0
        %v7170 = vadd.f32 %v6478, %v7169
        %v7171 = vpop.f32.mrb[0].mxu0
        %7172 = vmatprep.mubr.f32.mxu0 %v6405
        %7173 = vmatmul.mubr.f32.gmra.mrb[0].mxu0 %v6069
        %v7174 = vpop.f32.mrb[0].mxu0
        %v7175 = vadd.f32 %v6478, %v7174
        %v7176 = vpop.f32.mrb[0].mxu0
        %7177 = vmatprep.mubr.f32.mxu0 %v6406
        %7178 = vmatmul.mubr.f32.gmra.mrb[0].mxu0 %v6070
        %v7179 = vpop.f32.mrb[0].mxu0
        %v7180 = vadd.f32 %v6478, %v7179
        %v7181 = vpop.f32.mrb[0].mxu0
        %7182 = vmatprep.mubr.f32.mxu0 %v6407
        %7183 = vmatmul.mubr.f32.gmra.mrb[0].mxu0 %v6071
        %v7184 = vpop.f32.mrb[0].mxu0
        %v7185 = vadd.f32 %v6478, %v7184
        %v7186 = vpop.f32.mrb[0].mxu0
        %7187 = vmatprep.mubr.f32.mxu0 %v6408
        %7188 = vmatmul.mubr.f32.gmra.mrb[0].mxu0 %v6072
        %v7189 = vpop.f32.mrb[0].mxu0
        %v7190 = vadd.f32 %v6478, %v7189
        %v7191 = vpop.f32.mrb[0].mxu0
        %7192 = vmatprep.mubr.f32.mxu0 %v6409
        %7193 = vmatmul.mubr.f32.gmra.mrb[0].mxu0 %v6073
        %v7194 = vpop.f32.mrb[0].mxu0
        %v7195 = vadd.f32 %v6478, %v7194
        %v7196 = vpop.f32.mrb[0].mxu0
        %7197 = vmatprep.mubr.f32.mxu0 %v6410
        %7198 = vmatmul.mubr.f32.gmra.mrb[0].mxu0 %v6074
        %v7199 = vpop.f32.mrb[0].mxu0
        %v7200 = vadd.f32 %v6478, %v7199
        %v7201 = vpop.f32.mrb[0].mxu0
        %7202 = vmatprep.mubr.f32.mxu0 %v6411
        %7203 = vmatmul.mubr.f32.gmra.mrb[0].mxu0 %v6075
        %v7204 = vpop.f32.mrb[0].mxu0
        %v7205 = vadd.f32 %v6478, %v7204
        %v7206 = vpop.f32.mrb[0].mxu0
        %7207 = vmatprep.mubr.f32.mxu0 %v6412
        %7208 = vmatmul.mubr.f32.gmra.mrb[0].mxu0 %v6076
        %v7209 = vpop.f32.mrb[0].mxu0
        %v7210 = vadd.f32 %v6478, %v7209
        %v7211 = vpop.f32.mrb[0].mxu0
        %7212 = vmatprep.mubr.f32.mxu0 %v6413
        %7213 = vmatmul.mubr.f32.gmra.mrb[0].mxu0 %v6077
        %v7214 = vpop.f32.mrb[0].mxu0
        %v7215 = vadd.f32 %v6478, %v7214
        %v7216 = vpop.f32.mrb[0].mxu0
        %7217 = vmatprep.mubr.f32.mxu0 %v6414
        %7218 = vmatmul.mubr.f32.gmra.mrb[0].mxu0 %v6078
        %v7219 = vpop.f32.mrb[0].mxu0
        %v7220 = vadd.f32 %v6478, %v7219
        %v7221 = vpop.f32.mrb[0].mxu0
        %7222 = vmatprep.mubr.f32.mxu0 %v6415
        %7223 = vmatmul.mubr.f32.gmra.mrb[0].mxu0 %v6079
        %v7224 = vpop.f32.mrb[0].mxu0
        %v7225 = vadd.f32 %v6478, %v7224
        %v7226 = vpop.f32.mrb[0].mxu0
        %7227 = vmatprep.mubr.f32.mxu0 %v6416
        %7228 = vmatmul.mubr.f32.gmra.mrb[0].mxu0 %v6080
        %v7229 = vpop.f32.mrb[0].mxu0
        %v7230 = vadd.f32 %v6478, %v7229
        %v7231 = vpop.f32.mrb[0].mxu0
        %7232 = vmatprep.mubr.f32.mxu0 %v6417
        %7233 = vmatmul.mubr.f32.gmra.mrb[0].mxu0 %v6081
        %v7234 = vpop.f32.mrb[0].mxu0
        %v7235 = vadd.f32 %v6478, %v7234
        %v7236 = vpop.f32.mrb[0].mxu0
        %7237 = vmatprep.mubr.f32.mxu0 %v6418
        %7238 = vmatmul.mubr.f32.gmra.mrb[0].mxu0 %v6082
        %v7239 = vpop.f32.mrb[0].mxu0
        %v7240 = vadd.f32 %v6478, %v7239
        %v7241 = vpop.f32.mrb[0].mxu0
        %7242 = vmatprep.mubr.f32.mxu0 %v6419
        %7243 = vmatmul.mubr.f32.gmra.mrb[0].mxu0 %v6083
        %v7244 = vpop.f32.mrb[0].mxu0
        %v7245 = vadd.f32 %v6478, %v7244
        %v7246 = vpop.f32.mrb[0].mxu0
        %7247 = vmatprep.mubr.f32.mxu0 %v6420
        %7248 = vmatmul.mubr.f32.gmra.mrb[0].mxu0 %v6084
        %v7249 = vpop.f32.mrb[0].mxu0
        %v7250 = vadd.f32 %v6478, %v7249
        %v7251 = vpop.f32.mrb[0].mxu0
        %7252 = vmatprep.mubr.f32.mxu0 %v6421
        %7253 = vmatmul.mubr.f32.gmra.mrb[0].mxu0 %v6085
        %v7254 = vpop.f32.mrb[0].mxu0
        %v7255 = vadd.f32 %v6478, %v7254
        %v7256 = vpop.f32.mrb[0].mxu0
        %7257 = vmatprep.mubr.f32.mxu0 %v6422
        %7258 = vmatmul.mubr.f32.gmra.mrb[0].mxu0 %v6086
        %v7259 = vpop.f32.mrb[0].mxu0
        %v7260 = vadd.f32 %v6478, %v7259
        %v7261 = vpop.f32.mrb[0].mxu0
        %7262 = vmatprep.mubr.f32.mxu0 %v6423
        %7263 = vmatmul.mubr.f32.gmra.mrb[0].mxu0 %v6087
        %v7264 = vpop.f32.mrb[0].mxu0
        %v7265 = vadd.f32 %v6478, %v7264
        %v7266 = vpop.f32.mrb[0].mxu0
        %7267 = vmatprep.mubr.f32.mxu0 %v6424
        %7268 = vmatmul.mubr.f32.gmra.mrb[0].mxu0 %v6088
        %v7269 = vpop.f32.mrb[0].mxu0
        %v7270 = vadd.f32 %v6478, %v7269
        %v7271 = vpop.f32.mrb[0].mxu0
        %7272 = vmatprep.mubr.f32.mxu0 %v6425
        %7273 = vmatmul.mubr.f32.gmra.mrb[0].mxu0 %v6089
        %v7274 = vpop.f32.mrb[0].mxu0
        %v7275 = vadd.f32 %v6478, %v7274
        %v7276 = vpop.f32.mrb[0].mxu0
        %7277 = vmatprep.mubr.f32.mxu0 %v6426
        %7278 = vmatmul.mubr.f32.gmra.mrb[0].mxu0 %v6090
        %v7279 = vpop.f32.mrb[0].mxu0
        %v7280 = vadd.f32 %v6478, %v7279
        %v7281 = vpop.f32.mrb[0].mxu0
        %7282 = vmatprep.mubr.f32.mxu0 %v6427
        %7283 = vmatmul.mubr.f32.gmra.mrb[0].mxu0 %v6091
        %v7284 = vpop.f32.mrb[0].mxu0
        %v7285 = vadd.f32 %v6478, %v7284
        %v7286 = vpop.f32.mrb[0].mxu0
        %7287 = vmatprep.mubr.f32.mxu0 %v6428
        %7288 = vmatmul.mubr.f32.gmra.mrb[0].mxu0 %v6092
        %v7289 = vpop.f32.mrb[0].mxu0
        %v7290 = vadd.f32 %v6478, %v7289
        %v7291 = vpop.f32.mrb[0].mxu0
        %7292 = vmatprep.mubr.f32.mxu0 %v6429
        %7293 = vmatmul.mubr.f32.gmra.mrb[0].mxu0 %v6093
        %v7294 = vpop.f32.mrb[0].mxu0
        %v7295 = vadd.f32 %v6478, %v7294
        %v7296 = vpop.f32.mrb[0].mxu0
        %7297 = vmatprep.mubr.f32.mxu0 %v6430
        %7298 = vmatmul.mubr.f32.gmra.mrb[0].mxu0 %v6094
        %v7299 = vpop.f32.mrb[0].mxu0
        %v7300 = vadd.f32 %v6478, %v7299
        %v7301 = vpop.f32.mrb[0].mxu0
        %7302 = vmatprep.mubr.f32.mxu0 %v6431
        %7303 = vmatmul.mubr.f32.gmra.mrb[0].mxu0 %v6095
        %v7304 = vpop.f32.mrb[0].mxu0
        %v7305 = vadd.f32 %v6478, %v7304
        %v7306 = vpop.f32.mrb[0].mxu0
        %7307 = vmatprep.mubr.f32.mxu0 %v6432
        %7308 = vmatmul.mubr.f32.gmra.mrb[0].mxu0 %v6096
        %v7309 = vpop.f32.mrb[0].mxu0
        %v7310 = vadd.f32 %v6478, %v7309
        %v7311 = vpop.f32.mrb[0].mxu0
        %7312 = vmatprep.mubr.f32.mxu0 %v6433
        %7313 = vmatmul.mubr.f32.gmra.mrb[0].mxu0 %v6097
        %v7314 = vpop.f32.mrb[0].mxu0
        %v7315 = vadd.f32 %v6478, %v7314
        %v7316 = vpop.f32.mrb[0].mxu0
        %7317 = vmatprep.mubr.f32.mxu0 %v6434
        %7318 = vmatmul.mubr.f32.gmra.mrb[0].mxu0 %v6098
        %v7319 = vpop.f32.mrb[0].mxu0
        %v7320 = vadd.f32 %v6478, %v7319
        %v7321 = vpop.f32.mrb[0].mxu0
        %7322 = vmatprep.mubr.f32.mxu0 %v6435
        %7323 = vmatmul.mubr.f32.gmra.mrb[0].mxu0 %v6099
        %v7324 = vpop.f32.mrb[0].mxu0
        %v7325 = vadd.f32 %v6478, %v7324
        %v7326 = vpop.f32.mrb[0].mxu0
        %7327 = vmatprep.mubr.f32.mxu0 %v6436
        %7328 = vmatmul.mubr.f32.gmra.mrb[0].mxu0 %v6100
        %v7329 = vpop.f32.mrb[0].mxu0
        %v7330 = vadd.f32 %v6478, %v7329
        %v7331 = vpop.f32.mrb[0].mxu0
        %7332 = vdwg.mxu0
        %7333 = vmatprep.subr.mxu0 0.0
        %7334 = vmatpush1.msra.mxu0 %v6469
        %7335 = vmatprep.subr.mxu0 0.0
        %7336 = vmatpush1.msra.mxu0 %v6470
        %7337 = vmatprep.subr.mxu0 0.0
        %7338 = vmatpush1.msra.mxu0 %v6471
        %7339 = vmatprep.subr.mxu0 0.0
        %7340 = vmatpush1.msra.mxu0 %v6472
        %7341 = vmatprep.subr.mxu0 0.0
        %7342 = vmatpush1.msra.mxu0 0.0
        %7343 = vmatprep.subr.mxu0 0.0
        %7344 = vmatpush1.msra.mxu0 0.0
        %7345 = vmatprep.subr.mxu0 0.0
        %7346 = vmatpush1.msra.mxu0 0.0
        %7347 = vmatprep.subr.mxu0 0.0
        %7348 = vmatpush1.msra.mxu0 0.0
        %7349 = vmatprep.subr.mxu0 0.0
        %7350 = vmatpush1.msra.mxu0 0.0
        %7351 = vmatprep.subr.mxu0 0.0
        %7352 = vmatpush1.msra.mxu0 0.0
        %7353 = vmatprep.subr.mxu0 0.0
        %7354 = vmatpush1.msra.mxu0 0.0
        %7355 = vmatprep.subr.mxu0 0.0
        %7356 = vmatpush1.msra.mxu0 0.0
        %7357 = vmatprep.subr.mxu0 0.0
        %7358 = vmatpush1.msra.mxu0 0.0
        %7359 = vmatprep.subr.mxu0 0.0
        %7360 = vmatpush1.msra.mxu0 0.0
        %7361 = vmatprep.subr.mxu0 0.0
        %7362 = vmatpush1.msra.mxu0 0.0
        %7363 = vmatprep.subr.mxu0 0.0
        %7364 = vmatpush1.msra.mxu0 0.0
        %7365 = vmatprep.subr.mxu0 0.0
        %7366 = vmatpush1.msra.mxu0 0.0
        %7367 = vmatprep.subr.mxu0 0.0
        %7368 = vmatpush1.msra.mxu0 0.0
        %7369 = vmatprep.subr.mxu0 0.0
        %7370 = vmatpush1.msra.mxu0 0.0
        %7371 = vmatprep.subr.mxu0 0.0
        %7372 = vmatpush1.msra.mxu0 0.0
        %7373 = vmatprep.subr.mxu0 0.0
        %7374 = vmatpush1.msra.mxu0 0.0
        %7375 = vmatprep.subr.mxu0 0.0
        %7376 = vmatpush1.msra.mxu0 0.0
        %7377 = vmatprep.subr.mxu0 0.0
        %7378 = vmatpush1.msra.mxu0 0.0
        %7379 = vmatprep.subr.mxu0 0.0
        %7380 = vmatpush1.msra.mxu0 0.0
        %7381 = vmatprep.subr.mxu0 0.0
        %7382 = vmatpush1.msra.mxu0 0.0
        %7383 = vmatprep.subr.mxu0 0.0
        %7384 = vmatpush1.msra.mxu0 0.0
        %7385 = vmatprep.subr.mxu0 0.0
        %7386 = vmatpush1.msra.mxu0 0.0
        %7387 = vmatprep.subr.mxu0 0.0
        %7388 = vmatpush1.msra.mxu0 0.0
        %7389 = vmatprep.subr.mxu0 0.0
        %7390 = vmatpush1.msra.mxu0 0.0
        %7391 = vmatprep.subr.mxu0 0.0
        %7392 = vmatpush1.msra.mxu0 0.0
        %7393 = vmatprep.subr.mxu0 0.0
        %7394 = vmatpush1.msra.mxu0 0.0
        %7395 = vmatprep.subr.mxu0 0.0
        %7396 = vmatpush1.msra.mxu0 0.0
        %7397 = vmatprep.mubr.f32.mxu0 0.0
        %7398 = vmatmul.mubr.f32.gmra.mrb[0].mxu0 %v6480
        %v7399 = vpop.f32.mrb[0].mxu0
        %v7400 = vadd.f32 %v6775, %v7399
        %v7401 = vpop.f32.mrb[0].mxu0
        %7402 = vmatprep.mubr.f32.mxu0 0.0
        %7403 = vmatmul.mubr.f32.gmra.mrb[0].mxu0 %v6482
        %v7404 = vpop.f32.mrb[0].mxu0
        %v7405 = vadd.f32 %v6780, %v7404
        %v7406 = vpop.f32.mrb[0].mxu0
        %7407 = vmatprep.mubr.f32.mxu0 0.0
        %7408 = vmatmul.mubr.f32.gmra.mrb[0].mxu0 %v6484
        %v7409 = vpop.f32.mrb[0].mxu0
        %v7410 = vadd.f32 %v6785, %v7409
        %v7411 = vpop.f32.mrb[0].mxu0
        %7412 = vmatprep.mubr.f32.mxu0 0.0
        %7413 = vmatmul.mubr.f32.gmra.mrb[0].mxu0 %v6486
        %v7414 = vpop.f32.mrb[0].mxu0
        %v7415 = vadd.f32 %v6790, %v7414
        %v7416 = vpop.f32.mrb[0].mxu0
        %7417 = vmatprep.mubr.f32.mxu0 0.0
        %7418 = vmatmul.mubr.f32.gmra.mrb[0].mxu0 %v6488
        %v7419 = vpop.f32.mrb[0].mxu0
        %v7420 = vadd.f32 %v6795, %v7419
        %v7421 = vpop.f32.mrb[0].mxu0
        %7422 = vmatprep.mubr.f32.mxu0 0.0
        %7423 = vmatmul.mubr.f32.gmra.mrb[0].mxu0 %v6490
        %v7424 = vpop.f32.mrb[0].mxu0
        %v7425 = vadd.f32 %v6800, %v7424
        %v7426 = vpop.f32.mrb[0].mxu0
        %7427 = vmatprep.mubr.f32.mxu0 0.0
        %7428 = vmatmul.mubr.f32.gmra.mrb[0].mxu0 %v6492
        %v7429 = vpop.f32.mrb[0].mxu0
        %v7430 = vadd.f32 %v6805, %v7429
        %v7431 = vpop.f32.mrb[0].mxu0
        %7432 = vmatprep.mubr.f32.mxu0 0.0
        %7433 = vmatmul.mubr.f32.gmra.mrb[0].mxu0 %v6494
        %v7434 = vpop.f32.mrb[0].mxu0
        %v7435 = vadd.f32 %v6810, %v7434
        %v7436 = vpop.f32.mrb[0].mxu0
        %7437 = vmatprep.mubr.f32.mxu0 0.0
        %7438 = vmatmul.mubr.f32.gmra.mrb[0].mxu0 %v6496
        %v7439 = vpop.f32.mrb[0].mxu0
        %v7440 = vadd.f32 %v6815, %v7439
        %v7441 = vpop.f32.mrb[0].mxu0
        %7442 = vmatprep.mubr.f32.mxu0 0.0
        %7443 = vmatmul.mubr.f32.gmra.mrb[0].mxu0 %v6498
        %v7444 = vpop.f32.mrb[0].mxu0
        %v7445 = vadd.f32 %v6820, %v7444
        %v7446 = vpop.f32.mrb[0].mxu0
        %7447 = vmatprep.mubr.f32.mxu0 0.0
        %7448 = vmatmul.mubr.f32.gmra.mrb[0].mxu0 %v6500
        %v7449 = vpop.f32.mrb[0].mxu0
        %v7450 = vadd.f32 %v6825, %v7449
        %v7451 = vpop.f32.mrb[0].mxu0
        %7452 = vmatprep.mubr.f32.mxu0 0.0
        %7453 = vmatmul.mubr.f32.gmra.mrb[0].mxu0 %v6502
        %v7454 = vpop.f32.mrb[0].mxu0
        %v7455 = vadd.f32 %v6830, %v7454
        %v7456 = vpop.f32.mrb[0].mxu0
        %7457 = vmatprep.mubr.f32.mxu0 0.0
        %7458 = vmatmul.mubr.f32.gmra.mrb[0].mxu0 %v6504
        %v7459 = vpop.f32.mrb[0].mxu0
        %v7460 = vadd.f32 %v6835, %v7459
        %v7461 = vpop.f32.mrb[0].mxu0
        %7462 = vmatprep.mubr.f32.mxu0 0.0
        %7463 = vmatmul.mubr.f32.gmra.mrb[0].mxu0 %v6506
        %v7464 = vpop.f32.mrb[0].mxu0
        %v7465 = vadd.f32 %v6840, %v7464
        %v7466 = vpop.f32.mrb[0].mxu0
        %7467 = vmatprep.mubr.f32.mxu0 0.0
        %7468 = vmatmul.mubr.f32.gmra.mrb[0].mxu0 %v6508
        %v7469 = vpop.f32.mrb[0].mxu0
        %v7470 = vadd.f32 %v6845, %v7469
        %v7471 = vpop.f32.mrb[0].mxu0
        %7472 = vmatprep.mubr.f32.mxu0 0.0
        %7473 = vmatmul.mubr.f32.gmra.mrb[0].mxu0 %v6510
        %v7474 = vpop.f32.mrb[0].mxu0
        %v7475 = vadd.f32 %v6850, %v7474
        %v7476 = vpop.f32.mrb[0].mxu0
        %7477 = vmatprep.mubr.f32.mxu0 0.0
        %7478 = vmatmul.mubr.f32.gmra.mrb[0].mxu0 %v6512
        %v7479 = vpop.f32.mrb[0].mxu0
        %v7480 = vadd.f32 %v6855, %v7479
        %v7481 = vpop.f32.mrb[0].mxu0
        %7482 = vmatprep.mubr.f32.mxu0 0.0
        %7483 = vmatmul.mubr.f32.gmra.mrb[0].mxu0 %v6514
        %v7484 = vpop.f32.mrb[0].mxu0
        %v7485 = vadd.f32 %v6860, %v7484
        %v7486 = vpop.f32.mrb[0].mxu0
        %7487 = vmatprep.mubr.f32.mxu0 0.0
        %7488 = vmatmul.mubr.f32.gmra.mrb[0].mxu0 %v6516
        %v7489 = vpop.f32.mrb[0].mxu0
        %v7490 = vadd.f32 %v6865, %v7489
        %v7491 = vpop.f32.mrb[0].mxu0
        %7492 = vmatprep.mubr.f32.mxu0 0.0
        %7493 = vmatmul.mubr.f32.gmra.mrb[0].mxu0 %v6518
        %v7494 = vpop.f32.mrb[0].mxu0
        %v7495 = vadd.f32 %v6870, %v7494
        %v7496 = vpop.f32.mrb[0].mxu0
        %7497 = vmatprep.mubr.f32.mxu0 0.0
        %7498 = vmatmul.mubr.f32.gmra.mrb[0].mxu0 %v6520
        %v7499 = vpop.f32.mrb[0].mxu0
        %v7500 = vadd.f32 %v6875, %v7499
        %v7501 = vpop.f32.mrb[0].mxu0
        %7502 = vmatprep.mubr.f32.mxu0 0.0
        %7503 = vmatmul.mubr.f32.gmra.mrb[0].mxu0 %v6522
        %v7504 = vpop.f32.mrb[0].mxu0
        %v7505 = vadd.f32 %v6880, %v7504
        %v7506 = vpop.f32.mrb[0].mxu0
        %7507 = vmatprep.mubr.f32.mxu0 0.0
        %7508 = vmatmul.mubr.f32.gmra.mrb[0].mxu0 %v6524
        %v7509 = vpop.f32.mrb[0].mxu0
        %v7510 = vadd.f32 %v6885, %v7509
        %v7511 = vpop.f32.mrb[0].mxu0
        %7512 = vmatprep.mubr.f32.mxu0 0.0
        %7513 = vmatmul.mubr.f32.gmra.mrb[0].mxu0 %v6526
        %v7514 = vpop.f32.mrb[0].mxu0
        %v7515 = vadd.f32 %v6890, %v7514
        %v7516 = vpop.f32.mrb[0].mxu0
        %7517 = vmatprep.mubr.f32.mxu0 0.0
        %7518 = vmatmul.mubr.f32.gmra.mrb[0].mxu0 %v6528
        %v7519 = vpop.f32.mrb[0].mxu0
        %v7520 = vadd.f32 %v6895, %v7519
        %v7521 = vpop.f32.mrb[0].mxu0
        %7522 = vmatprep.mubr.f32.mxu0 0.0
        %7523 = vmatmul.mubr.f32.gmra.mrb[0].mxu0 %v6530
        %v7524 = vpop.f32.mrb[0].mxu0
        %v7525 = vadd.f32 %v6900, %v7524
        %v7526 = vpop.f32.mrb[0].mxu0
        %7527 = vmatprep.mubr.f32.mxu0 0.0
        %7528 = vmatmul.mubr.f32.gmra.mrb[0].mxu0 %v6532
        %v7529 = vpop.f32.mrb[0].mxu0
        %v7530 = vadd.f32 %v6905, %v7529
        %v7531 = vpop.f32.mrb[0].mxu0
        %7532 = vmatprep.mubr.f32.mxu0 0.0
        %7533 = vmatmul.mubr.f32.gmra.mrb[0].mxu0 %v6534
        %v7534 = vpop.f32.mrb[0].mxu0
        %v7535 = vadd.f32 %v6910, %v7534
        %v7536 = vpop.f32.mrb[0].mxu0
        %7537 = vmatprep.mubr.f32.mxu0 0.0
        %7538 = vmatmul.mubr.f32.gmra.mrb[0].mxu0 %v6536
        %v7539 = vpop.f32.mrb[0].mxu0
        %v7540 = vadd.f32 %v6915, %v7539
        %v7541 = vpop.f32.mrb[0].mxu0
        %7542 = vmatprep.mubr.f32.mxu0 0.0
        %7543 = vmatmul.mubr.f32.gmra.mrb[0].mxu0 %v6538
        %v7544 = vpop.f32.mrb[0].mxu0
        %v7545 = vadd.f32 %v6920, %v7544
        %v7546 = vpop.f32.mrb[0].mxu0
        %7547 = vmatprep.mubr.f32.mxu0 0.0
        %7548 = vmatmul.mubr.f32.gmra.mrb[0].mxu0 %v6540
        %v7549 = vpop.f32.mrb[0].mxu0
        %v7550 = vadd.f32 %v6925, %v7549
        %v7551 = vpop.f32.mrb[0].mxu0
        %7552 = vmatprep.mubr.f32.mxu0 0.0
        %7553 = vmatmul.mubr.f32.gmra.mrb[0].mxu0 %v6542
        %v7554 = vpop.f32.mrb[0].mxu0
        %v7555 = vadd.f32 %v6930, %v7554
        %v7556 = vpop.f32.mrb[0].mxu0
        %7557 = vmatprep.mubr.f32.mxu0 0.0
        %7558 = vmatmul.mubr.f32.gmra.mrb[0].mxu0 %v6544
        %v7559 = vpop.f32.mrb[0].mxu0
        %v7560 = vadd.f32 %v6935, %v7559
        %v7561 = vpop.f32.mrb[0].mxu0
        %7562 = vmatprep.mubr.f32.mxu0 0.0
        %7563 = vmatmul.mubr.f32.gmra.mrb[0].mxu0 %v6546
        %v7564 = vpop.f32.mrb[0].mxu0
        %v7565 = vadd.f32 %v6940, %v7564
        %v7566 = vpop.f32.mrb[0].mxu0
        %7567 = vmatprep.mubr.f32.mxu0 0.0
        %7568 = vmatmul.mubr.f32.gmra.mrb[0].mxu0 %v6548
        %v7569 = vpop.f32.mrb[0].mxu0
        %v7570 = vadd.f32 %v6945, %v7569
        %v7571 = vpop.f32.mrb[0].mxu0
        %7572 = vmatprep.mubr.f32.mxu0 0.0
        %7573 = vmatmul.mubr.f32.gmra.mrb[0].mxu0 %v6550
        %v7574 = vpop.f32.mrb[0].mxu0
        %v7575 = vadd.f32 %v6950, %v7574
        %v7576 = vpop.f32.mrb[0].mxu0
        %7577 = vmatprep.mubr.f32.mxu0 0.0
        %7578 = vmatmul.mubr.f32.gmra.mrb[0].mxu0 %v6552
        %v7579 = vpop.f32.mrb[0].mxu0
        %v7580 = vadd.f32 %v6955, %v7579
        %v7581 = vpop.f32.mrb[0].mxu0
        %7582 = vmatprep.mubr.f32.mxu0 0.0
        %7583 = vmatmul.mubr.f32.gmra.mrb[0].mxu0 %v6554
        %v7584 = vpop.f32.mrb[0].mxu0
        %v7585 = vadd.f32 %v6960, %v7584
        %v7586 = vpop.f32.mrb[0].mxu0
        %7587 = vmatprep.mubr.f32.mxu0 0.0
        %7588 = vmatmul.mubr.f32.gmra.mrb[0].mxu0 %v6556
        %v7589 = vpop.f32.mrb[0].mxu0
        %v7590 = vadd.f32 %v6965, %v7589
        %v7591 = vpop.f32.mrb[0].mxu0
        %7592 = vmatprep.mubr.f32.mxu0 0.0
        %7593 = vmatmul.mubr.f32.gmra.mrb[0].mxu0 %v6558
        %v7594 = vpop.f32.mrb[0].mxu0
        %v7595 = vadd.f32 %v6970, %v7594
        %v7596 = vpop.f32.mrb[0].mxu0
        %7597 = vmatprep.mubr.f32.mxu0 0.0
        %7598 = vmatmul.mubr.f32.gmra.mrb[0].mxu0 %v6560
        %v7599 = vpop.f32.mrb[0].mxu0
        %v7600 = vadd.f32 %v6975, %v7599
        %v7601 = vpop.f32.mrb[0].mxu0
        %7602 = vmatprep.mubr.f32.mxu0 0.0
        %7603 = vmatmul.mubr.f32.gmra.mrb[0].mxu0 %v6562
        %v7604 = vpop.f32.mrb[0].mxu0
        %v7605 = vadd.f32 %v6980, %v7604
        %v7606 = vpop.f32.mrb[0].mxu0
        %7607 = vmatprep.mubr.f32.mxu0 0.0
        %7608 = vmatmul.mubr.f32.gmra.mrb[0].mxu0 %v6564
        %v7609 = vpop.f32.mrb[0].mxu0
        %v7610 = vadd.f32 %v6985, %v7609
        %v7611 = vpop.f32.mrb[0].mxu0
        %7612 = vmatprep.mubr.f32.mxu0 0.0
        %7613 = vmatmul.mubr.f32.gmra.mrb[0].mxu0 %v6566
        %v7614 = vpop.f32.mrb[0].mxu0
        %v7615 = vadd.f32 %v6990, %v7614
        %v7616 = vpop.f32.mrb[0].mxu0
        %7617 = vmatprep.mubr.f32.mxu0 0.0
        %7618 = vmatmul.mubr.f32.gmra.mrb[0].mxu0 %v6568
        %v7619 = vpop.f32.mrb[0].mxu0
        %v7620 = vadd.f32 %v6995, %v7619
        %v7621 = vpop.f32.mrb[0].mxu0
        %7622 = vmatprep.mubr.f32.mxu0 0.0
        %7623 = vmatmul.mubr.f32.gmra.mrb[0].mxu0 %v6570
        %v7624 = vpop.f32.mrb[0].mxu0
        %v7625 = vadd.f32 %v7000, %v7624
        %v7626 = vpop.f32.mrb[0].mxu0
        %7627 = vmatprep.mubr.f32.mxu0 0.0
        %7628 = vmatmul.mubr.f32.gmra.mrb[0].mxu0 %v6572
        %v7629 = vpop.f32.mrb[0].mxu0
        %v7630 = vadd.f32 %v7005, %v7629
        %v7631 = vpop.f32.mrb[0].mxu0
        %7632 = vmatprep.mubr.f32.mxu0 0.0
        %7633 = vmatmul.mubr.f32.gmra.mrb[0].mxu0 %v6574
        %v7634 = vpop.f32.mrb[0].mxu0
        %v7635 = vadd.f32 %v7010, %v7634
        %v7636 = vpop.f32.mrb[0].mxu0
        %7637 = vmatprep.mubr.f32.mxu0 0.0
        %7638 = vmatmul.mubr.f32.gmra.mrb[0].mxu0 %v6576
        %v7639 = vpop.f32.mrb[0].mxu0
        %v7640 = vadd.f32 %v7015, %v7639
        %v7641 = vpop.f32.mrb[0].mxu0
        %7642 = vmatprep.mubr.f32.mxu0 0.0
        %7643 = vmatmul.mubr.f32.gmra.mrb[0].mxu0 %v6578
        %v7644 = vpop.f32.mrb[0].mxu0
        %v7645 = vadd.f32 %v7020, %v7644
        %v7646 = vpop.f32.mrb[0].mxu0
        %7647 = vmatprep.mubr.f32.mxu0 0.0
        %7648 = vmatmul.mubr.f32.gmra.mrb[0].mxu0 %v6580
        %v7649 = vpop.f32.mrb[0].mxu0
        %v7650 = vadd.f32 %v7025, %v7649
        %v7651 = vpop.f32.mrb[0].mxu0
        %7652 = vmatprep.mubr.f32.mxu0 0.0
        %7653 = vmatmul.mubr.f32.gmra.mrb[0].mxu0 %v6582
        %v7654 = vpop.f32.mrb[0].mxu0
        %v7655 = vadd.f32 %v7030, %v7654
        %v7656 = vpop.f32.mrb[0].mxu0
        %7657 = vmatprep.mubr.f32.mxu0 0.0
        %7658 = vmatmul.mubr.f32.gmra.mrb[0].mxu0 %v6584
        %v7659 = vpop.f32.mrb[0].mxu0
        %v7660 = vadd.f32 %v7035, %v7659
        %v7661 = vpop.f32.mrb[0].mxu0
        %7662 = vmatprep.mubr.f32.mxu0 0.0
        %7663 = vmatmul.mubr.f32.gmra.mrb[0].mxu0 %v6586
        %v7664 = vpop.f32.mrb[0].mxu0
        %v7665 = vadd.f32 %v7040, %v7664
        %v7666 = vpop.f32.mrb[0].mxu0
        %7667 = vmatprep.mubr.f32.mxu0 0.0
        %7668 = vmatmul.mubr.f32.gmra.mrb[0].mxu0 %v6588
        %v7669 = vpop.f32.mrb[0].mxu0
        %v7670 = vadd.f32 %v7045, %v7669
        %v7671 = vpop.f32.mrb[0].mxu0
        %7672 = vmatprep.mubr.f32.mxu0 0.0
        %7673 = vmatmul.mubr.f32.gmra.mrb[0].mxu0 %v6590
        %v7674 = vpop.f32.mrb[0].mxu0
        %v7675 = vadd.f32 %v7050, %v7674
        %v7676 = vpop.f32.mrb[0].mxu0
        %7677 = vmatprep.mubr.f32.mxu0 0.0
        %7678 = vmatmul.mubr.f32.gmra.mrb[0].mxu0 %v6592
        %v7679 = vpop.f32.mrb[0].mxu0
        %v7680 = vadd.f32 %v7055, %v7679
        %v7681 = vpop.f32.mrb[0].mxu0
        %7682 = vmatprep.mubr.f32.mxu0 0.0
        %7683 = vmatmul.mubr.f32.gmra.mrb[0].mxu0 %v6594
        %v7684 = vpop.f32.mrb[0].mxu0
        %v7685 = vadd.f32 %v7060, %v7684
        %v7686 = vpop.f32.mrb[0].mxu0
        %7687 = vmatprep.mubr.f32.mxu0 0.0
        %7688 = vmatmul.mubr.f32.gmra.mrb[0].mxu0 %v6596
        %v7689 = vpop.f32.mrb[0].mxu0
        %v7690 = vadd.f32 %v7065, %v7689
        %v7691 = vpop.f32.mrb[0].mxu0
        %7692 = vmatprep.mubr.f32.mxu0 0.0
        %7693 = vmatmul.mubr.f32.gmra.mrb[0].mxu0 %v6598
        %v7694 = vpop.f32.mrb[0].mxu0
        %v7695 = vadd.f32 %v7070, %v7694
        %v7696 = vpop.f32.mrb[0].mxu0
        %7697 = vmatprep.mubr.f32.mxu0 0.0
        %7698 = vmatmul.mubr.f32.gmra.mrb[0].mxu0 %v6600
        %v7699 = vpop.f32.mrb[0].mxu0
        %v7700 = vadd.f32 %v7075, %v7699
        %v7701 = vpop.f32.mrb[0].mxu0
        %7702 = vmatprep.mubr.f32.mxu0 0.0
        %7703 = vmatmul.mubr.f32.gmra.mrb[0].mxu0 %v6602
        %v7704 = vpop.f32.mrb[0].mxu0
        %v7705 = vadd.f32 %v7080, %v7704
        %v7706 = vpop.f32.mrb[0].mxu0
        %7707 = vmatprep.mubr.f32.mxu0 0.0
        %7708 = vmatmul.mubr.f32.gmra.mrb[0].mxu0 %v6604
        %v7709 = vpop.f32.mrb[0].mxu0
        %v7710 = vadd.f32 %v7085, %v7709
        %v7711 = vpop.f32.mrb[0].mxu0
        %7712 = vmatprep.mubr.f32.mxu0 0.0
        %7713 = vmatmul.mubr.f32.gmra.mrb[0].mxu0 %v6606
        %v7714 = vpop.f32.mrb[0].mxu0
        %v7715 = vadd.f32 %v7090, %v7714
        %v7716 = vpop.f32.mrb[0].mxu0
        %7717 = vmatprep.mubr.f32.mxu0 0.0
        %7718 = vmatmul.mubr.f32.gmra.mrb[0].mxu0 %v6608
        %v7719 = vpop.f32.mrb[0].mxu0
        %v7720 = vadd.f32 %v7095, %v7719
        %v7721 = vpop.f32.mrb[0].mxu0
        %7722 = vmatprep.mubr.f32.mxu0 0.0
        %7723 = vmatmul.mubr.f32.gmra.mrb[0].mxu0 %v6610
        %v7724 = vpop.f32.mrb[0].mxu0
        %v7725 = vadd.f32 %v7100, %v7724
        %v7726 = vpop.f32.mrb[0].mxu0
        %7727 = vmatprep.mubr.f32.mxu0 0.0
        %7728 = vmatmul.mubr.f32.gmra.mrb[0].mxu0 %v6612
        %v7729 = vpop.f32.mrb[0].mxu0
        %v7730 = vadd.f32 %v7105, %v7729
        %v7731 = vpop.f32.mrb[0].mxu0
        %7732 = vmatprep.mubr.f32.mxu0 0.0
        %7733 = vmatmul.mubr.f32.gmra.mrb[0].mxu0 %v6614
        %v7734 = vpop.f32.mrb[0].mxu0
        %v7735 = vadd.f32 %v7110, %v7734
        %v7736 = vpop.f32.mrb[0].mxu0
        %7737 = vmatprep.mubr.f32.mxu0 0.0
        %7738 = vmatmul.mubr.f32.gmra.mrb[0].mxu0 %v6616
        %v7739 = vpop.f32.mrb[0].mxu0
        %v7740 = vadd.f32 %v7115, %v7739
        %v7741 = vpop.f32.mrb[0].mxu0
        %7742 = vmatprep.mubr.f32.mxu0 0.0
        %7743 = vmatmul.mubr.f32.gmra.mrb[0].mxu0 %v6618
        %v7744 = vpop.f32.mrb[0].mxu0
        %v7745 = vadd.f32 %v7120, %v7744
        %v7746 = vpop.f32.mrb[0].mxu0
        %7747 = vmatprep.mubr.f32.mxu0 0.0
        %7748 = vmatmul.mubr.f32.gmra.mrb[0].mxu0 %v6620
        %v7749 = vpop.f32.mrb[0].mxu0
        %v7750 = vadd.f32 %v7125, %v7749
        %v7751 = vpop.f32.mrb[0].mxu0
        %7752 = vmatprep.mubr.f32.mxu0 0.0
        %7753 = vmatmul.mubr.f32.gmra.mrb[0].mxu0 %v6622
        %v7754 = vpop.f32.mrb[0].mxu0
        %v7755 = vadd.f32 %v7130, %v7754
        %v7756 = vpop.f32.mrb[0].mxu0
        %7757 = vmatprep.mubr.f32.mxu0 0.0
        %7758 = vmatmul.mubr.f32.gmra.mrb[0].mxu0 %v6624
        %v7759 = vpop.f32.mrb[0].mxu0
        %v7760 = vadd.f32 %v7135, %v7759
        %v7761 = vpop.f32.mrb[0].mxu0
        %7762 = vmatprep.mubr.f32.mxu0 0.0
        %7763 = vmatmul.mubr.f32.gmra.mrb[0].mxu0 %v6626
        %v7764 = vpop.f32.mrb[0].mxu0
        %v7765 = vadd.f32 %v7140, %v7764
        %v7766 = vpop.f32.mrb[0].mxu0
        %7767 = vmatprep.mubr.f32.mxu0 0.0
        %7768 = vmatmul.mubr.f32.gmra.mrb[0].mxu0 %v6628
        %v7769 = vpop.f32.mrb[0].mxu0
        %v7770 = vadd.f32 %v7145, %v7769
        %v7771 = vpop.f32.mrb[0].mxu0
        %7772 = vmatprep.mubr.f32.mxu0 0.0
        %7773 = vmatmul.mubr.f32.gmra.mrb[0].mxu0 %v6630
        %v7774 = vpop.f32.mrb[0].mxu0
        %v7775 = vadd.f32 %v7150, %v7774
        %v7776 = vpop.f32.mrb[0].mxu0
        %7777 = vmatprep.mubr.f32.mxu0 0.0
        %7778 = vmatmul.mubr.f32.gmra.mrb[0].mxu0 %v6632
        %v7779 = vpop.f32.mrb[0].mxu0
        %v7780 = vadd.f32 %v7155, %v7779
        %v7781 = vpop.f32.mrb[0].mxu0
        %7782 = vmatprep.mubr.f32.mxu0 0.0
        %7783 = vmatmul.mubr.f32.gmra.mrb[0].mxu0 %v6634
        %v7784 = vpop.f32.mrb[0].mxu0
        %v7785 = vadd.f32 %v7160, %v7784
        %v7786 = vpop.f32.mrb[0].mxu0
        %7787 = vmatprep.mubr.f32.mxu0 0.0
        %7788 = vmatmul.mubr.f32.gmra.mrb[0].mxu0 %v6636
        %v7789 = vpop.f32.mrb[0].mxu0
        %v7790 = vadd.f32 %v7165, %v7789
        %v7791 = vpop.f32.mrb[0].mxu0
        %7792 = vmatprep.mubr.f32.mxu0 0.0
        %7793 = vmatmul.mubr.f32.gmra.mrb[0].mxu0 %v6638
        %v7794 = vpop.f32.mrb[0].mxu0
        %v7795 = vadd.f32 %v7170, %v7794
        %v7796 = vpop.f32.mrb[0].mxu0
        %7797 = vmatprep.mubr.f32.mxu0 0.0
        %7798 = vmatmul.mubr.f32.gmra.mrb[0].mxu0 %v6640
        %v7799 = vpop.f32.mrb[0].mxu0
        %v7800 = vadd.f32 %v7175, %v7799
        %v7801 = vpop.f32.mrb[0].mxu0
        %7802 = vmatprep.mubr.f32.mxu0 0.0
        %7803 = vmatmul.mubr.f32.gmra.mrb[0].mxu0 %v6642
        %v7804 = vpop.f32.mrb[0].mxu0
        %v7805 = vadd.f32 %v7180, %v7804
        %v7806 = vpop.f32.mrb[0].mxu0
        %7807 = vmatprep.mubr.f32.mxu0 0.0
        %7808 = vmatmul.mubr.f32.gmra.mrb[0].mxu0 %v6644
        %v7809 = vpop.f32.mrb[0].mxu0
        %v7810 = vadd.f32 %v7185, %v7809
        %v7811 = vpop.f32.mrb[0].mxu0
        %7812 = vmatprep.mubr.f32.mxu0 0.0
        %7813 = vmatmul.mubr.f32.gmra.mrb[0].mxu0 %v6646
        %v7814 = vpop.f32.mrb[0].mxu0
        %v7815 = vadd.f32 %v7190, %v7814
        %v7816 = vpop.f32.mrb[0].mxu0
        %7817 = vmatprep.mubr.f32.mxu0 0.0
        %7818 = vmatmul.mubr.f32.gmra.mrb[0].mxu0 %v6648
        %v7819 = vpop.f32.mrb[0].mxu0
        %v7820 = vadd.f32 %v7195, %v7819
        %v7821 = vpop.f32.mrb[0].mxu0
        %7822 = vmatprep.mubr.f32.mxu0 0.0
        %7823 = vmatmul.mubr.f32.gmra.mrb[0].mxu0 %v6650
        %v7824 = vpop.f32.mrb[0].mxu0
        %v7825 = vadd.f32 %v7200, %v7824
        %v7826 = vpop.f32.mrb[0].mxu0
        %7827 = vmatprep.mubr.f32.mxu0 0.0
        %7828 = vmatmul.mubr.f32.gmra.mrb[0].mxu0 %v6652
        %v7829 = vpop.f32.mrb[0].mxu0
        %v7830 = vadd.f32 %v7205, %v7829
        %v7831 = vpop.f32.mrb[0].mxu0
        %7832 = vmatprep.mubr.f32.mxu0 0.0
        %7833 = vmatmul.mubr.f32.gmra.mrb[0].mxu0 %v6654
        %v7834 = vpop.f32.mrb[0].mxu0
        %v7835 = vadd.f32 %v7210, %v7834
        %v7836 = vpop.f32.mrb[0].mxu0
        %7837 = vmatprep.mubr.f32.mxu0 0.0
        %7838 = vmatmul.mubr.f32.gmra.mrb[0].mxu0 %v6656
        %v7839 = vpop.f32.mrb[0].mxu0
        %v7840 = vadd.f32 %v7215, %v7839
        %v7841 = vpop.f32.mrb[0].mxu0
        %7842 = vmatprep.mubr.f32.mxu0 0.0
        %7843 = vmatmul.mubr.f32.gmra.mrb[0].mxu0 %v6658
        %v7844 = vpop.f32.mrb[0].mxu0
        %v7845 = vadd.f32 %v7220, %v7844
        %v7846 = vpop.f32.mrb[0].mxu0
        %7847 = vmatprep.mubr.f32.mxu0 0.0
        %7848 = vmatmul.mubr.f32.gmra.mrb[0].mxu0 %v6660
        %v7849 = vpop.f32.mrb[0].mxu0
        %v7850 = vadd.f32 %v7225, %v7849
        %v7851 = vpop.f32.mrb[0].mxu0
        %7852 = vmatprep.mubr.f32.mxu0 0.0
        %7853 = vmatmul.mubr.f32.gmra.mrb[0].mxu0 %v6662
        %v7854 = vpop.f32.mrb[0].mxu0
        %v7855 = vadd.f32 %v7230, %v7854
        %v7856 = vpop.f32.mrb[0].mxu0
        %7857 = vmatprep.mubr.f32.mxu0 0.0
        %7858 = vmatmul.mubr.f32.gmra.mrb[0].mxu0 %v6664
        %v7859 = vpop.f32.mrb[0].mxu0
        %v7860 = vadd.f32 %v7235, %v7859
        %v7861 = vpop.f32.mrb[0].mxu0
        %7862 = vmatprep.mubr.f32.mxu0 0.0
        %7863 = vmatmul.mubr.f32.gmra.mrb[0].mxu0 %v6666
        %v7864 = vpop.f32.mrb[0].mxu0
        %v7865 = vadd.f32 %v7240, %v7864
        %v7866 = vpop.f32.mrb[0].mxu0
        %7867 = vmatprep.mubr.f32.mxu0 0.0
        %7868 = vmatmul.mubr.f32.gmra.mrb[0].mxu0 %v6668
        %v7869 = vpop.f32.mrb[0].mxu0
        %v7870 = vadd.f32 %v7245, %v7869
        %v7871 = vpop.f32.mrb[0].mxu0
        %7872 = vmatprep.mubr.f32.mxu0 0.0
        %7873 = vmatmul.mubr.f32.gmra.mrb[0].mxu0 %v6670
        %v7874 = vpop.f32.mrb[0].mxu0
        %v7875 = vadd.f32 %v7250, %v7874
        %v7876 = vpop.f32.mrb[0].mxu0
        %7877 = vmatprep.mubr.f32.mxu0 0.0
        %7878 = vmatmul.mubr.f32.gmra.mrb[0].mxu0 %v6672
        %v7879 = vpop.f32.mrb[0].mxu0
        %v7880 = vadd.f32 %v7255, %v7879
        %v7881 = vpop.f32.mrb[0].mxu0
        %7882 = vmatprep.mubr.f32.mxu0 0.0
        %7883 = vmatmul.mubr.f32.gmra.mrb[0].mxu0 %v6674
        %v7884 = vpop.f32.mrb[0].mxu0
        %v7885 = vadd.f32 %v7260, %v7884
        %v7886 = vpop.f32.mrb[0].mxu0
        %7887 = vmatprep.mubr.f32.mxu0 0.0
        %7888 = vmatmul.mubr.f32.gmra.mrb[0].mxu0 %v6676
        %v7889 = vpop.f32.mrb[0].mxu0
        %v7890 = vadd.f32 %v7265, %v7889
        %v7891 = vpop.f32.mrb[0].mxu0
        %7892 = vmatprep.mubr.f32.mxu0 0.0
        %7893 = vmatmul.mubr.f32.gmra.mrb[0].mxu0 %v6678
        %v7894 = vpop.f32.mrb[0].mxu0
        %v7895 = vadd.f32 %v7270, %v7894
        %v7896 = vpop.f32.mrb[0].mxu0
        %7897 = vmatprep.mubr.f32.mxu0 0.0
        %7898 = vmatmul.mubr.f32.gmra.mrb[0].mxu0 %v6680
        %v7899 = vpop.f32.mrb[0].mxu0
        %v7900 = vadd.f32 %v7275, %v7899
        %v7901 = vpop.f32.mrb[0].mxu0
        %7902 = vmatprep.mubr.f32.mxu0 0.0
        %7903 = vmatmul.mubr.f32.gmra.mrb[0].mxu0 %v6682
        %v7904 = vpop.f32.mrb[0].mxu0
        %v7905 = vadd.f32 %v7280, %v7904
        %v7906 = vpop.f32.mrb[0].mxu0
        %7907 = vmatprep.mubr.f32.mxu0 0.0
        %7908 = vmatmul.mubr.f32.gmra.mrb[0].mxu0 %v6684
        %v7909 = vpop.f32.mrb[0].mxu0
        %v7910 = vadd.f32 %v7285, %v7909
        %v7911 = vpop.f32.mrb[0].mxu0
        %7912 = vmatprep.mubr.f32.mxu0 0.0
        %7913 = vmatmul.mubr.f32.gmra.mrb[0].mxu0 %v6686
        %v7914 = vpop.f32.mrb[0].mxu0
        %v7915 = vadd.f32 %v7290, %v7914
        %v7916 = vpop.f32.mrb[0].mxu0
        %7917 = vmatprep.mubr.f32.mxu0 0.0
        %7918 = vmatmul.mubr.f32.gmra.mrb[0].mxu0 %v6688
        %v7919 = vpop.f32.mrb[0].mxu0
        %v7920 = vadd.f32 %v7295, %v7919
        %v7921 = vpop.f32.mrb[0].mxu0
        %7922 = vmatprep.mubr.f32.mxu0 0.0
        %7923 = vmatmul.mubr.f32.gmra.mrb[0].mxu0 %v6690
        %v7924 = vpop.f32.mrb[0].mxu0
        %v7925 = vadd.f32 %v7300, %v7924
        %v7926 = vpop.f32.mrb[0].mxu0
        %7927 = vmatprep.mubr.f32.mxu0 0.0
        %7928 = vmatmul.mubr.f32.gmra.mrb[0].mxu0 %v6692
        %v7929 = vpop.f32.mrb[0].mxu0
        %v7930 = vadd.f32 %v7305, %v7929
        %v7931 = vpop.f32.mrb[0].mxu0
        %7932 = vmatprep.mubr.f32.mxu0 0.0
        %7933 = vmatmul.mubr.f32.gmra.mrb[0].mxu0 %v6694
        %v7934 = vpop.f32.mrb[0].mxu0
        %v7935 = vadd.f32 %v7310, %v7934
        %v7936 = vpop.f32.mrb[0].mxu0
        %7937 = vmatprep.mubr.f32.mxu0 0.0
        %7938 = vmatmul.mubr.f32.gmra.mrb[0].mxu0 %v6697
        %v7939 = vpop.f32.mrb[0].mxu0
        %v7940 = vadd.f32 %v7315, %v7939
        %v7941 = vpop.f32.mrb[0].mxu0
        %7942 = vmatprep.mubr.f32.mxu0 0.0
        %7943 = vmatmul.mubr.f32.gmra.mrb[0].mxu0 %v6700
        %v7944 = vpop.f32.mrb[0].mxu0
        %v7945 = vadd.f32 %v7320, %v7944
        %v7946 = vpop.f32.mrb[0].mxu0
        %7947 = vmatprep.mubr.f32.mxu0 0.0
        %7948 = vmatmul.mubr.f32.gmra.mrb[0].mxu0 %v6703
        %v7949 = vpop.f32.mrb[0].mxu0
        %v7950 = vadd.f32 %v7325, %v7949
        %v7951 = vpop.f32.mrb[0].mxu0
        %7952 = vmatprep.mubr.f32.mxu0 0.0
        %7953 = vmatmul.mubr.f32.gmra.mrb[0].mxu0 %v6706
        %v7954 = vpop.f32.mrb[0].mxu0
        %v7955 = vadd.f32 %v7330, %v7954
        %v7956 = vpop.f32.mrb[0].mxu0
        %7957 = vdwg.mxu0
        %v7958 = vmax.f32 %v7400, 0.0
        %v7959 = vmax.f32 %v7405, 0.0
        %v7960 = vmax.f32 %v7410, 0.0
        %v7961 = vmax.f32 %v7415, 0.0
        %v7962 = vmax.f32 %v7420, 0.0
        %v7963 = vmax.f32 %v7425, 0.0
        %v7964 = vmax.f32 %v7430, 0.0
        %v7965 = vmax.f32 %v7435, 0.0
        %v7966 = vmax.f32 %v7440, 0.0
        %v7967 = vmax.f32 %v7445, 0.0
        %v7968 = vmax.f32 %v7450, 0.0
        %v7969 = vmax.f32 %v7455, 0.0
        %v7970 = vmax.f32 %v7460, 0.0
        %v7971 = vmax.f32 %v7465, 0.0
        %v7972 = vmax.f32 %v7470, 0.0
        %v7973 = vmax.f32 %v7475, 0.0
        %v7974 = vmax.f32 %v7480, 0.0
        %v7975 = vmax.f32 %v7485, 0.0
        %v7976 = vmax.f32 %v7490, 0.0
        %v7977 = vmax.f32 %v7495, 0.0
        %v7978 = vmax.f32 %v7500, 0.0
        %v7979 = vmax.f32 %v7505, 0.0
        %v7980 = vmax.f32 %v7510, 0.0
        %v7981 = vmax.f32 %v7515, 0.0
        %v7982 = vmax.f32 %v7520, 0.0
        %v7983 = vmax.f32 %v7525, 0.0
        %v7984 = vmax.f32 %v7530, 0.0
        %v7985 = vmax.f32 %v7535, 0.0
        %v7986 = vmax.f32 %v7540, 0.0
        %v7987 = vmax.f32 %v7545, 0.0
        %v7988 = vmax.f32 %v7550, 0.0
        %v7989 = vmax.f32 %v7555, 0.0
        %v7990 = vmax.f32 %v7560, 0.0
        %v7991 = vmax.f32 %v7565, 0.0
        %v7992 = vmax.f32 %v7570, 0.0
        %v7993 = vmax.f32 %v7575, 0.0
        %v7994 = vmax.f32 %v7580, 0.0
        %v7995 = vmax.f32 %v7585, 0.0
        %v7996 = vmax.f32 %v7590, 0.0
        %v7997 = vmax.f32 %v7595, 0.0
        %v7998 = vmax.f32 %v7600, 0.0
        %v7999 = vmax.f32 %v7605, 0.0
        %v8000 = vmax.f32 %v7610, 0.0
        %v8001 = vmax.f32 %v7615, 0.0
        %v8002 = vmax.f32 %v7620, 0.0
        %v8003 = vmax.f32 %v7625, 0.0
        %v8004 = vmax.f32 %v7630, 0.0
        %v8005 = vmax.f32 %v7635, 0.0
        %v8006 = vmax.f32 %v7640, 0.0
        %v8007 = vmax.f32 %v7645, 0.0
        %v8008 = vmax.f32 %v7650, 0.0
        %v8009 = vmax.f32 %v7655, 0.0
        %v8010 = vmax.f32 %v7660, 0.0
        %v8011 = vmax.f32 %v7665, 0.0
        %v8012 = vmax.f32 %v7670, 0.0
        %v8013 = vmax.f32 %v7675, 0.0
        %v8014 = vmax.f32 %v7680, 0.0
        %v8015 = vmax.f32 %v7685, 0.0
        %v8016 = vmax.f32 %v7690, 0.0
        %v8017 = vmax.f32 %v7695, 0.0
        %v8018 = vmax.f32 %v7700, 0.0
        %v8019 = vmax.f32 %v7705, 0.0
        %v8020 = vmax.f32 %v7710, 0.0
        %v8021 = vmax.f32 %v7715, 0.0
        %v8022 = vmax.f32 %v7720, 0.0
        %v8023 = vmax.f32 %v7725, 0.0
        %v8024 = vmax.f32 %v7730, 0.0
        %v8025 = vmax.f32 %v7735, 0.0
        %v8026 = vmax.f32 %v7740, 0.0
        %v8027 = vmax.f32 %v7745, 0.0
        %v8028 = vmax.f32 %v7750, 0.0
        %v8029 = vmax.f32 %v7755, 0.0
        %v8030 = vmax.f32 %v7760, 0.0
        %v8031 = vmax.f32 %v7765, 0.0
        %v8032 = vmax.f32 %v7770, 0.0
        %v8033 = vmax.f32 %v7775, 0.0
        %v8034 = vmax.f32 %v7780, 0.0
        %v8035 = vmax.f32 %v7785, 0.0
        %v8036 = vmax.f32 %v7790, 0.0
        %v8037 = vmax.f32 %v7795, 0.0
        %v8038 = vmax.f32 %v7800, 0.0
        %v8039 = vmax.f32 %v7805, 0.0
        %v8040 = vmax.f32 %v7810, 0.0
        %v8041 = vmax.f32 %v7815, 0.0
        %v8042 = vmax.f32 %v7820, 0.0
        %v8043 = vmax.f32 %v7825, 0.0
        %v8044 = vmax.f32 %v7830, 0.0
        %v8045 = vmax.f32 %v7835, 0.0
        %v8046 = vmax.f32 %v7840, 0.0
        %v8047 = vmax.f32 %v7845, 0.0
        %v8048 = vmax.f32 %v7850, 0.0
        %v8049 = vmax.f32 %v7855, 0.0
        %v8050 = vmax.f32 %v7860, 0.0
        %v8051 = vmax.f32 %v7865, 0.0
        %v8052 = vmax.f32 %v7870, 0.0
        %v8053 = vmax.f32 %v7875, 0.0
        %v8054 = vmax.f32 %v7880, 0.0
        %v8055 = vmax.f32 %v7885, 0.0
        %v8056 = vmax.f32 %v7890, 0.0
        %v8057 = vmax.f32 %v7895, 0.0
        %v8058 = vmax.f32 %v7900, 0.0
        %v8059 = vmax.f32 %v7905, 0.0
        %v8060 = vmax.f32 %v7910, 0.0
        %v8061 = vmax.f32 %v7915, 0.0
        %v8062 = vmax.f32 %v7920, 0.0
        %v8063 = vmax.f32 %v7925, 0.0
        %v8064 = vmax.f32 %v7930, 0.0
        %v8065 = vmax.f32 %v7935, 0.0
        %v8066 = vmax.f32 %v7940, 0.0
        %v8067 = vmax.f32 %v7945, 0.0
        %v8068 = vmax.f32 %v7950, 0.0
        %v8069 = vmax.f32 %v7955, 0.0
        %8070 = vst.msk [vmem:[#allocation3] sm:$0xff] %vm5875, %v7958
        %8071 = vst.msk [vmem:[#allocation3 + $0x8] sm:$0xff] %vm5875, %v7959
        %8072 = vst.msk [vmem:[#allocation3 + $0x10] sm:$0xff] %vm5875, %v7960
        %8073 = vst.msk [vmem:[#allocation3 + $0x18] sm:$0xff] %vm5875, %v7961
        %8074 = vst.msk [vmem:[#allocation3 + $0x20] sm:$0xff] %vm5875, %v7962
        %8075 = vst.msk [vmem:[#allocation3 + $0x28] sm:$0xff] %vm5875, %v7963
        %8076 = vst.msk [vmem:[#allocation3 + $0x30] sm:$0xff] %vm5875, %v7964
        %8077 = vst.msk [vmem:[#allocation3 + $0x38] sm:$0xff] %vm5875, %v7965
        %8078 = vst.msk [vmem:[#allocation3 + $0x40] sm:$0xff] %vm5875, %v7966
        %8079 = vst.msk [vmem:[#allocation3 + $0x48] sm:$0xff] %vm5875, %v7967
        %8080 = vst.msk [vmem:[#allocation3 + $0x50] sm:$0xff] %vm5875, %v7968
        %8081 = vst.msk [vmem:[#allocation3 + $0x58] sm:$0xff] %vm5875, %v7969
        %8082 = vst.msk [vmem:[#allocation3 + $0x60] sm:$0xff] %vm5875, %v7970
        %8083 = vst.msk [vmem:[#allocation3 + $0x68] sm:$0xff] %vm5875, %v7971
        %8084 = vst.msk [vmem:[#allocation3 + $0x70] sm:$0xff] %vm5875, %v7972
        %8085 = vst.msk [vmem:[#allocation3 + $0x78] sm:$0xff] %vm5875, %v7973
        %8086 = vst.msk [vmem:[#allocation3 + $0x80] sm:$0xff] %vm5875, %v7974
        %8087 = vst.msk [vmem:[#allocation3 + $0x88] sm:$0xff] %vm5875, %v7975
        %8088 = vst.msk [vmem:[#allocation3 + $0x90] sm:$0xff] %vm5875, %v7976
        %8089 = vst.msk [vmem:[#allocation3 + $0x98] sm:$0xff] %vm5875, %v7977
        %8090 = vst.msk [vmem:[#allocation3 + $0xa0] sm:$0xff] %vm5875, %v7978
        %8091 = vst.msk [vmem:[#allocation3 + $0xa8] sm:$0xff] %vm5875, %v7979
        %8092 = vst.msk [vmem:[#allocation3 + $0xb0] sm:$0xff] %vm5875, %v7980
        %8093 = vst.msk [vmem:[#allocation3 + $0xb8] sm:$0xff] %vm5875, %v7981
        %8094 = vst.msk [vmem:[#allocation3 + $0xc0] sm:$0xff] %vm5875, %v7982
        %8095 = vst.msk [vmem:[#allocation3 + $0xc8] sm:$0xff] %vm5875, %v7983
        %8096 = vst.msk [vmem:[#allocation3 + $0xd0] sm:$0xff] %vm5875, %v7984
        %8097 = vst.msk [vmem:[#allocation3 + $0xd8] sm:$0xff] %vm5875, %v7985
        %8098 = vst.msk [vmem:[#allocation3 + $0xe0] sm:$0xff] %vm5875, %v7986
        %8099 = vst.msk [vmem:[#allocation3 + $0xe8] sm:$0xff] %vm5875, %v7987
        %8100 = vst.msk [vmem:[#allocation3 + $0xf0] sm:$0xff] %vm5875, %v7988
        %8101 = vst.msk [vmem:[#allocation3 + $0xf8] sm:$0xff] %vm5875, %v7989
        %8102 = vst.msk [vmem:[#allocation3 + $0x100] sm:$0xff] %vm5875, %v7990
        %8103 = vst.msk [vmem:[#allocation3 + $0x108] sm:$0xff] %vm5875, %v7991
        %8104 = vst.msk [vmem:[#allocation3 + $0x110] sm:$0xff] %vm5875, %v7992
        %8105 = vst.msk [vmem:[#allocation3 + $0x118] sm:$0xff] %vm5875, %v7993
        %8106 = vst.msk [vmem:[#allocation3 + $0x120] sm:$0xff] %vm5875, %v7994
        %8107 = vst.msk [vmem:[#allocation3 + $0x128] sm:$0xff] %vm5875, %v7995
        %8108 = vst.msk [vmem:[#allocation3 + $0x130] sm:$0xff] %vm5875, %v7996
        %8109 = vst.msk [vmem:[#allocation3 + $0x138] sm:$0xff] %vm5875, %v7997
        %8110 = vst.msk [vmem:[#allocation3 + $0x140] sm:$0xff] %vm5875, %v7998
        %8111 = vst.msk [vmem:[#allocation3 + $0x148] sm:$0xff] %vm5875, %v7999
        %8112 = vst.msk [vmem:[#allocation3 + $0x150] sm:$0xff] %vm5875, %v8000
        %8113 = vst.msk [vmem:[#allocation3 + $0x158] sm:$0xff] %vm5875, %v8001
        %8114 = vst.msk [vmem:[#allocation3 + $0x160] sm:$0xff] %vm5875, %v8002
        %8115 = vst.msk [vmem:[#allocation3 + $0x168] sm:$0xff] %vm5875, %v8003
        %8116 = vst.msk [vmem:[#allocation3 + $0x170] sm:$0xff] %vm5875, %v8004
        %8117 = vst.msk [vmem:[#allocation3 + $0x178] sm:$0xff] %vm5875, %v8005
        %8118 = vst.msk [vmem:[#allocation3 + $0x180] sm:$0xff] %vm5875, %v8006
        %8119 = vst.msk [vmem:[#allocation3 + $0x188] sm:$0xff] %vm5875, %v8007
        %8120 = vst.msk [vmem:[#allocation3 + $0x190] sm:$0xff] %vm5875, %v8008
        %8121 = vst.msk [vmem:[#allocation3 + $0x198] sm:$0xff] %vm5875, %v8009
        %8122 = vst.msk [vmem:[#allocation3 + $0x1a0] sm:$0xff] %vm5875, %v8010
        %8123 = vst.msk [vmem:[#allocation3 + $0x1a8] sm:$0xff] %vm5875, %v8011
        %8124 = vst.msk [vmem:[#allocation3 + $0x1b0] sm:$0xff] %vm5875, %v8012
        %8125 = vst.msk [vmem:[#allocation3 + $0x1b8] sm:$0xff] %vm5875, %v8013
        %8126 = vst.msk [vmem:[#allocation3 + $0x1c0] sm:$0xff] %vm5875, %v8014
        %8127 = vst.msk [vmem:[#allocation3 + $0x1c8] sm:$0xff] %vm5875, %v8015
        %8128 = vst.msk [vmem:[#allocation3 + $0x1d0] sm:$0xff] %vm5875, %v8016
        %8129 = vst.msk [vmem:[#allocation3 + $0x1d8] sm:$0xff] %vm5875, %v8017
        %8130 = vst.msk [vmem:[#allocation3 + $0x1e0] sm:$0xff] %vm5875, %v8018
        %8131 = vst.msk [vmem:[#allocation3 + $0x1e8] sm:$0xff] %vm5875, %v8019
        %8132 = vst.msk [vmem:[#allocation3 + $0x1f0] sm:$0xff] %vm5875, %v8020
        %8133 = vst.msk [vmem:[#allocation3 + $0x1f8] sm:$0xff] %vm5875, %v8021
        %8134 = vst.msk [vmem:[#allocation3 + $0x200] sm:$0xff] %vm5875, %v8022
        %8135 = vst.msk [vmem:[#allocation3 + $0x208] sm:$0xff] %vm5875, %v8023
        %8136 = vst.msk [vmem:[#allocation3 + $0x210] sm:$0xff] %vm5875, %v8024
        %8137 = vst.msk [vmem:[#allocation3 + $0x218] sm:$0xff] %vm5875, %v8025
        %8138 = vst.msk [vmem:[#allocation3 + $0x220] sm:$0xff] %vm5875, %v8026
        %8139 = vst.msk [vmem:[#allocation3 + $0x228] sm:$0xff] %vm5875, %v8027
        %8140 = vst.msk [vmem:[#allocation3 + $0x230] sm:$0xff] %vm5875, %v8028
        %8141 = vst.msk [vmem:[#allocation3 + $0x238] sm:$0xff] %vm5875, %v8029
        %8142 = vst.msk [vmem:[#allocation3 + $0x240] sm:$0xff] %vm5875, %v8030
        %8143 = vst.msk [vmem:[#allocation3 + $0x248] sm:$0xff] %vm5875, %v8031
        %8144 = vst.msk [vmem:[#allocation3 + $0x250] sm:$0xff] %vm5875, %v8032
        %8145 = vst.msk [vmem:[#allocation3 + $0x258] sm:$0xff] %vm5875, %v8033
        %8146 = vst.msk [vmem:[#allocation3 + $0x260] sm:$0xff] %vm5875, %v8034
        %8147 = vst.msk [vmem:[#allocation3 + $0x268] sm:$0xff] %vm5875, %v8035
        %8148 = vst.msk [vmem:[#allocation3 + $0x270] sm:$0xff] %vm5875, %v8036
        %8149 = vst.msk [vmem:[#allocation3 + $0x278] sm:$0xff] %vm5875, %v8037
        %8150 = vst.msk [vmem:[#allocation3 + $0x280] sm:$0xff] %vm5875, %v8038
        %8151 = vst.msk [vmem:[#allocation3 + $0x288] sm:$0xff] %vm5875, %v8039
        %8152 = vst.msk [vmem:[#allocation3 + $0x290] sm:$0xff] %vm5875, %v8040
        %8153 = vst.msk [vmem:[#allocation3 + $0x298] sm:$0xff] %vm5875, %v8041
        %8154 = vst.msk [vmem:[#allocation3 + $0x2a0] sm:$0xff] %vm5875, %v8042
        %8155 = vst.msk [vmem:[#allocation3 + $0x2a8] sm:$0xff] %vm5875, %v8043
        %8156 = vst.msk [vmem:[#allocation3 + $0x2b0] sm:$0xff] %vm5875, %v8044
        %8157 = vst.msk [vmem:[#allocation3 + $0x2b8] sm:$0xff] %vm5875, %v8045
        %8158 = vst.msk [vmem:[#allocation3 + $0x2c0] sm:$0xff] %vm5875, %v8046
        %8159 = vst.msk [vmem:[#allocation3 + $0x2c8] sm:$0xff] %vm5875, %v8047
        %8160 = vst.msk [vmem:[#allocation3 + $0x2d0] sm:$0xff] %vm5875, %v8048
        %8161 = vst.msk [vmem:[#allocation3 + $0x2d8] sm:$0xff] %vm5875, %v8049
        %8162 = vst.msk [vmem:[#allocation3 + $0x2e0] sm:$0xff] %vm5875, %v8050
        %8163 = vst.msk [vmem:[#allocation3 + $0x2e8] sm:$0xff] %vm5875, %v8051
        %8164 = vst.msk [vmem:[#allocation3 + $0x2f0] sm:$0xff] %vm5875, %v8052
        %8165 = vst.msk [vmem:[#allocation3 + $0x2f8] sm:$0xff] %vm5875, %v8053
        %8166 = vst.msk [vmem:[#allocation3 + $0x300] sm:$0xff] %vm5875, %v8054
        %8167 = vst.msk [vmem:[#allocation3 + $0x308] sm:$0xff] %vm5875, %v8055
        %8168 = vst.msk [vmem:[#allocation3 + $0x310] sm:$0xff] %vm5875, %v8056
        %8169 = vst.msk [vmem:[#allocation3 + $0x318] sm:$0xff] %vm5875, %v8057
        %8170 = vst.msk [vmem:[#allocation3 + $0x320] sm:$0xff] %vm5875, %v8058
        %8171 = vst.msk [vmem:[#allocation3 + $0x328] sm:$0xff] %vm5875, %v8059
        %8172 = vst.msk [vmem:[#allocation3 + $0x330] sm:$0xff] %vm5875, %v8060
        %8173 = vst.msk [vmem:[#allocation3 + $0x338] sm:$0xff] %vm5875, %v8061
        %8174 = vst.msk [vmem:[#allocation3 + $0x340] sm:$0xff] %vm5875, %v8062
        %8175 = vst.msk [vmem:[#allocation3 + $0x348] sm:$0xff] %vm5875, %v8063
        %8176 = vst.msk [vmem:[#allocation3 + $0x350] sm:$0xff] %vm5875, %v8064
        %8177 = vst.msk [vmem:[#allocation3 + $0x358] sm:$0xff] %vm5875, %v8065
        %8178 = vst.msk [vmem:[#allocation3 + $0x360] sm:$0xff] %vm5875, %v8066
        %8179 = vst.msk [vmem:[#allocation3 + $0x368] sm:$0xff] %vm5875, %v8067
        %8180 = vst.msk [vmem:[#allocation3 + $0x370] sm:$0xff] %vm5875, %v8068
        %8181 = vst.msk [vmem:[#allocation3 + $0x378] sm:$0xff] %vm5875, %v8069
        %8182 = vst.msk [vmem:[#allocation3 + $0x380] sm:$0xff] %vm5875, 0.0
        %v8183 = vld [vmem:[#allocation3] sm:$0xff]
        %v8184 = vld [vmem:[#allocation3 + $0x8] sm:$0xff]
        %v8185 = vld [vmem:[#allocation3 + $0x10] sm:$0xff]
        %v8186 = vld [vmem:[#allocation3 + $0x18] sm:$0xff]
        %v8187 = vld [vmem:[#allocation3 + $0x20] sm:$0xff]
        %v8188 = vld [vmem:[#allocation3 + $0x28] sm:$0xff]
        %v8189 = vld [vmem:[#allocation3 + $0x30] sm:$0xff]
        %v8190 = vld [vmem:[#allocation3 + $0x38] sm:$0xff]
        %v8191 = vld [vmem:[#allocation3 + $0x40] sm:$0xff]
        %v8192 = vld [vmem:[#allocation3 + $0x48] sm:$0xff]
        %v8193 = vld [vmem:[#allocation3 + $0x50] sm:$0xff]
        %v8194 = vld [vmem:[#allocation3 + $0x58] sm:$0xff]
        %v8195 = vld [vmem:[#allocation3 + $0x60] sm:$0xff]
        %v8196 = vld [vmem:[#allocation3 + $0x68] sm:$0xff]
        %v8197 = vld [vmem:[#allocation3 + $0x70] sm:$0xff]
        %v8198 = vld [vmem:[#allocation3 + $0x78] sm:$0xff]
        %v8199 = vld [vmem:[#allocation3 + $0x80] sm:$0xff]
        %v8200 = vld [vmem:[#allocation3 + $0x88] sm:$0xff]
        %v8201 = vld [vmem:[#allocation3 + $0x90] sm:$0xff]
        %v8202 = vld [vmem:[#allocation3 + $0x98] sm:$0xff]
        %v8203 = vld [vmem:[#allocation3 + $0xa0] sm:$0xff]
        %v8204 = vld [vmem:[#allocation3 + $0xa8] sm:$0xff]
        %v8205 = vld [vmem:[#allocation3 + $0xb0] sm:$0xff]
        %v8206 = vld [vmem:[#allocation3 + $0xb8] sm:$0xff]
        %v8207 = vld [vmem:[#allocation3 + $0xc0] sm:$0xff]
        %v8208 = vld [vmem:[#allocation3 + $0xc8] sm:$0xff]
        %v8209 = vld [vmem:[#allocation3 + $0xd0] sm:$0xff]
        %v8210 = vld [vmem:[#allocation3 + $0xd8] sm:$0xff]
        %v8211 = vld [vmem:[#allocation3 + $0xe0] sm:$0xff]
        %v8212 = vld [vmem:[#allocation3 + $0xe8] sm:$0xff]
        %v8213 = vld [vmem:[#allocation3 + $0xf0] sm:$0xff]
        %v8214 = vld [vmem:[#allocation3 + $0xf8] sm:$0xff]
        %v8215 = vld [vmem:[#allocation3 + $0x100] sm:$0xff]
        %v8216 = vld [vmem:[#allocation3 + $0x108] sm:$0xff]
        %v8217 = vld [vmem:[#allocation3 + $0x110] sm:$0xff]
        %v8218 = vld [vmem:[#allocation3 + $0x118] sm:$0xff]
        %v8219 = vld [vmem:[#allocation3 + $0x120] sm:$0xff]
        %v8220 = vld [vmem:[#allocation3 + $0x128] sm:$0xff]
        %v8221 = vld [vmem:[#allocation3 + $0x130] sm:$0xff]
        %v8222 = vld [vmem:[#allocation3 + $0x138] sm:$0xff]
        %v8223 = vld [vmem:[#allocation3 + $0x140] sm:$0xff]
        %v8224 = vld [vmem:[#allocation3 + $0x148] sm:$0xff]
        %v8225 = vld [vmem:[#allocation3 + $0x150] sm:$0xff]
        %v8226 = vld [vmem:[#allocation3 + $0x158] sm:$0xff]
        %v8227 = vld [vmem:[#allocation3 + $0x160] sm:$0xff]
        %v8228 = vld [vmem:[#allocation3 + $0x168] sm:$0xff]
        %v8229 = vld [vmem:[#allocation3 + $0x170] sm:$0xff]
        %v8230 = vld [vmem:[#allocation3 + $0x178] sm:$0xff]
        %v8231 = vld [vmem:[#allocation3 + $0x180] sm:$0xff]
        %v8232 = vld [vmem:[#allocation3 + $0x188] sm:$0xff]
        %v8233 = vld [vmem:[#allocation3 + $0x190] sm:$0xff]
        %v8234 = vld [vmem:[#allocation3 + $0x198] sm:$0xff]
        %v8235 = vld [vmem:[#allocation3 + $0x1a0] sm:$0xff]
        %v8236 = vld [vmem:[#allocation3 + $0x1a8] sm:$0xff]
        %v8237 = vld [vmem:[#allocation3 + $0x1b0] sm:$0xff]
        %v8238 = vld [vmem:[#allocation3 + $0x1b8] sm:$0xff]
        %v8239 = vld [vmem:[#allocation3 + $0x1c0] sm:$0xff]
        %v8240 = vld [vmem:[#allocation3 + $0x1c8] sm:$0xff]
        %v8241 = vld [vmem:[#allocation3 + $0x1d0] sm:$0xff]
        %v8242 = vld [vmem:[#allocation3 + $0x1d8] sm:$0xff]
        %v8243 = vld [vmem:[#allocation3 + $0x1e0] sm:$0xff]
        %v8244 = vld [vmem:[#allocation3 + $0x1e8] sm:$0xff]
        %v8245 = vld [vmem:[#allocation3 + $0x1f0] sm:$0xff]
        %v8246 = vld [vmem:[#allocation3 + $0x1f8] sm:$0xff]
        %v8247 = vld [vmem:[#allocation3 + $0x200] sm:$0xff]
        %v8248 = vld [vmem:[#allocation3 + $0x208] sm:$0xff]
        %v8249 = vld [vmem:[#allocation3 + $0x210] sm:$0xff]
        %v8250 = vld [vmem:[#allocation3 + $0x218] sm:$0xff]
        %v8251 = vld [vmem:[#allocation3 + $0x220] sm:$0xff]
        %v8252 = vld [vmem:[#allocation3 + $0x228] sm:$0xff]
        %v8253 = vld [vmem:[#allocation3 + $0x230] sm:$0xff]
        %v8254 = vld [vmem:[#allocation3 + $0x238] sm:$0xff]
        %v8255 = vld [vmem:[#allocation3 + $0x240] sm:$0xff]
        %v8256 = vld [vmem:[#allocation3 + $0x248] sm:$0xff]
        %v8257 = vld [vmem:[#allocation3 + $0x250] sm:$0xff]
        %v8258 = vld [vmem:[#allocation3 + $0x258] sm:$0xff]
        %v8259 = vld [vmem:[#allocation3 + $0x260] sm:$0xff]
        %v8260 = vld [vmem:[#allocation3 + $0x268] sm:$0xff]
        %v8261 = vld [vmem:[#allocation3 + $0x270] sm:$0xff]
        %v8262 = vld [vmem:[#allocation3 + $0x278] sm:$0xff]
        %v8263 = vld [vmem:[#allocation3 + $0x280] sm:$0xff]
        %v8264 = vld [vmem:[#allocation3 + $0x288] sm:$0xff]
        %v8265 = vld [vmem:[#allocation3 + $0x290] sm:$0xff]
        %v8266 = vld [vmem:[#allocation3 + $0x298] sm:$0xff]
        %v8267 = vld [vmem:[#allocation3 + $0x2a0] sm:$0xff]
        %v8268 = vld [vmem:[#allocation3 + $0x2a8] sm:$0xff]
        %v8269 = vld [vmem:[#allocation3 + $0x2b0] sm:$0xff]
        %v8270 = vld [vmem:[#allocation3 + $0x2b8] sm:$0xff]
        %v8271 = vld [vmem:[#allocation3 + $0x2c0] sm:$0xff]
        %v8272 = vld [vmem:[#allocation3 + $0x2c8] sm:$0xff]
        %v8273 = vld [vmem:[#allocation3 + $0x2d0] sm:$0xff]
        %v8274 = vld [vmem:[#allocation3 + $0x2d8] sm:$0xff]
        %v8275 = vld [vmem:[#allocation3 + $0x2e0] sm:$0xff]
        %v8276 = vld [vmem:[#allocation3 + $0x2e8] sm:$0xff]
        %v8277 = vld [vmem:[#allocation3 + $0x2f0] sm:$0xff]
        %v8278 = vld [vmem:[#allocation3 + $0x2f8] sm:$0xff]
        %v8279 = vld [vmem:[#allocation3 + $0x300] sm:$0xff]
        %v8280 = vld [vmem:[#allocation3 + $0x308] sm:$0xff]
        %v8281 = vld [vmem:[#allocation3 + $0x310] sm:$0xff]
        %v8282 = vld [vmem:[#allocation3 + $0x318] sm:$0xff]
        %v8283 = vld [vmem:[#allocation3 + $0x320] sm:$0xff]
        %v8284 = vld [vmem:[#allocation3 + $0x328] sm:$0xff]
        %v8285 = vld [vmem:[#allocation3 + $0x330] sm:$0xff]
        %v8286 = vld [vmem:[#allocation3 + $0x338] sm:$0xff]
        %v8287 = vld [vmem:[#allocation3 + $0x340] sm:$0xff]
        %v8288 = vld [vmem:[#allocation3 + $0x348] sm:$0xff]
        %v8289 = vld [vmem:[#allocation3 + $0x350] sm:$0xff]
        %v8290 = vld [vmem:[#allocation3 + $0x358] sm:$0xff]
        %v8291 = vld [vmem:[#allocation3 + $0x1] sm:$0xff]
        %v8292 = vld [vmem:[#allocation3 + $0x9] sm:$0xff]
        %v8293 = vld [vmem:[#allocation3 + $0x11] sm:$0xff]
        %v8294 = vld [vmem:[#allocation3 + $0x19] sm:$0xff]
        %v8295 = vld [vmem:[#allocation3 + $0x21] sm:$0xff]
        %v8296 = vld [vmem:[#allocation3 + $0x29] sm:$0xff]
        %v8297 = vld [vmem:[#allocation3 + $0x31] sm:$0xff]
        %v8298 = vld [vmem:[#allocation3 + $0x39] sm:$0xff]
        %v8299 = vld [vmem:[#allocation3 + $0x41] sm:$0xff]
        %v8300 = vld [vmem:[#allocation3 + $0x49] sm:$0xff]
        %v8301 = vld [vmem:[#allocation3 + $0x51] sm:$0xff]
        %v8302 = vld [vmem:[#allocation3 + $0x59] sm:$0xff]
        %v8303 = vld [vmem:[#allocation3 + $0x61] sm:$0xff]
        %v8304 = vld [vmem:[#allocation3 + $0x69] sm:$0xff]
        %v8305 = vld [vmem:[#allocation3 + $0x71] sm:$0xff]
        %v8306 = vld [vmem:[#allocation3 + $0x79] sm:$0xff]
        %v8307 = vld [vmem:[#allocation3 + $0x81] sm:$0xff]
        %v8308 = vld [vmem:[#allocation3 + $0x89] sm:$0xff]
        %v8309 = vld [vmem:[#allocation3 + $0x91] sm:$0xff]
        %v8310 = vld [vmem:[#allocation3 + $0x99] sm:$0xff]
        %v8311 = vld [vmem:[#allocation3 + $0xa1] sm:$0xff]
        %v8312 = vld [vmem:[#allocation3 + $0xa9] sm:$0xff]
        %v8313 = vld [vmem:[#allocation3 + $0xb1] sm:$0xff]
        %v8314 = vld [vmem:[#allocation3 + $0xb9] sm:$0xff]
        %v8315 = vld [vmem:[#allocation3 + $0xc1] sm:$0xff]
        %v8316 = vld [vmem:[#allocation3 + $0xc9] sm:$0xff]
        %v8317 = vld [vmem:[#allocation3 + $0xd1] sm:$0xff]
        %v8318 = vld [vmem:[#allocation3 + $0xd9] sm:$0xff]
        %v8319 = vld [vmem:[#allocation3 + $0xe1] sm:$0xff]
        %v8320 = vld [vmem:[#allocation3 + $0xe9] sm:$0xff]
        %v8321 = vld [vmem:[#allocation3 + $0xf1] sm:$0xff]
        %v8322 = vld [vmem:[#allocation3 + $0xf9] sm:$0xff]
        %v8323 = vld [vmem:[#allocation3 + $0x101] sm:$0xff]
        %v8324 = vld [vmem:[#allocation3 + $0x109] sm:$0xff]
        %v8325 = vld [vmem:[#allocation3 + $0x111] sm:$0xff]
        %v8326 = vld [vmem:[#allocation3 + $0x119] sm:$0xff]
        %v8327 = vld [vmem:[#allocation3 + $0x121] sm:$0xff]
        %v8328 = vld [vmem:[#allocation3 + $0x129] sm:$0xff]
        %v8329 = vld [vmem:[#allocation3 + $0x131] sm:$0xff]
        %v8330 = vld [vmem:[#allocation3 + $0x139] sm:$0xff]
        %v8331 = vld [vmem:[#allocation3 + $0x141] sm:$0xff]
        %v8332 = vld [vmem:[#allocation3 + $0x149] sm:$0xff]
        %v8333 = vld [vmem:[#allocation3 + $0x151] sm:$0xff]
        %v8334 = vld [vmem:[#allocation3 + $0x159] sm:$0xff]
        %v8335 = vld [vmem:[#allocation3 + $0x161] sm:$0xff]
        %v8336 = vld [vmem:[#allocation3 + $0x169] sm:$0xff]
        %v8337 = vld [vmem:[#allocation3 + $0x171] sm:$0xff]
        %v8338 = vld [vmem:[#allocation3 + $0x179] sm:$0xff]
        %v8339 = vld [vmem:[#allocation3 + $0x181] sm:$0xff]
        %v8340 = vld [vmem:[#allocation3 + $0x189] sm:$0xff]
        %v8341 = vld [vmem:[#allocation3 + $0x191] sm:$0xff]
        %v8342 = vld [vmem:[#allocation3 + $0x199] sm:$0xff]
        %v8343 = vld [vmem:[#allocation3 + $0x1a1] sm:$0xff]
        %v8344 = vld [vmem:[#allocation3 + $0x1a9] sm:$0xff]
        %v8345 = vld [vmem:[#allocation3 + $0x1b1] sm:$0xff]
        %v8346 = vld [vmem:[#allocation3 + $0x1b9] sm:$0xff]
        %v8347 = vld [vmem:[#allocation3 + $0x1c1] sm:$0xff]
        %v8348 = vld [vmem:[#allocation3 + $0x1c9] sm:$0xff]
        %v8349 = vld [vmem:[#allocation3 + $0x1d1] sm:$0xff]
        %v8350 = vld [vmem:[#allocation3 + $0x1d9] sm:$0xff]
        %v8351 = vld [vmem:[#allocation3 + $0x1e1] sm:$0xff]
        %v8352 = vld [vmem:[#allocation3 + $0x1e9] sm:$0xff]
        %v8353 = vld [vmem:[#allocation3 + $0x1f1] sm:$0xff]
        %v8354 = vld [vmem:[#allocation3 + $0x1f9] sm:$0xff]
        %v8355 = vld [vmem:[#allocation3 + $0x201] sm:$0xff]
        %v8356 = vld [vmem:[#allocation3 + $0x209] sm:$0xff]
        %v8357 = vld [vmem:[#allocation3 + $0x211] sm:$0xff]
        %v8358 = vld [vmem:[#allocation3 + $0x219] sm:$0xff]
        %v8359 = vld [vmem:[#allocation3 + $0x221] sm:$0xff]
        %v8360 = vld [vmem:[#allocation3 + $0x229] sm:$0xff]
        %v8361 = vld [vmem:[#allocation3 + $0x231] sm:$0xff]
        %v8362 = vld [vmem:[#allocation3 + $0x239] sm:$0xff]
        %v8363 = vld [vmem:[#allocation3 + $0x241] sm:$0xff]
        %v8364 = vld [vmem:[#allocation3 + $0x249] sm:$0xff]
        %v8365 = vld [vmem:[#allocation3 + $0x251] sm:$0xff]
        %v8366 = vld [vmem:[#allocation3 + $0x259] sm:$0xff]
        %v8367 = vld [vmem:[#allocation3 + $0x261] sm:$0xff]
        %v8368 = vld [vmem:[#allocation3 + $0x269] sm:$0xff]
        %v8369 = vld [vmem:[#allocation3 + $0x271] sm:$0xff]
        %v8370 = vld [vmem:[#allocation3 + $0x279] sm:$0xff]
        %v8371 = vld [vmem:[#allocation3 + $0x281] sm:$0xff]
        %v8372 = vld [vmem:[#allocation3 + $0x289] sm:$0xff]
        %v8373 = vld [vmem:[#allocation3 + $0x291] sm:$0xff]
        %v8374 = vld [vmem:[#allocation3 + $0x299] sm:$0xff]
        %v8375 = vld [vmem:[#allocation3 + $0x2a1] sm:$0xff]
        %v8376 = vld [vmem:[#allocation3 + $0x2a9] sm:$0xff]
        %v8377 = vld [vmem:[#allocation3 + $0x2b1] sm:$0xff]
        %v8378 = vld [vmem:[#allocation3 + $0x2b9] sm:$0xff]
        %v8379 = vld [vmem:[#allocation3 + $0x2c1] sm:$0xff]
        %v8380 = vld [vmem:[#allocation3 + $0x2c9] sm:$0xff]
        %v8381 = vld [vmem:[#allocation3 + $0x2d1] sm:$0xff]
        %v8382 = vld [vmem:[#allocation3 + $0x2d9] sm:$0xff]
        %v8383 = vld [vmem:[#allocation3 + $0x2e1] sm:$0xff]
        %v8384 = vld [vmem:[#allocation3 + $0x2e9] sm:$0xff]
        %v8385 = vld [vmem:[#allocation3 + $0x2f1] sm:$0xff]
        %v8386 = vld [vmem:[#allocation3 + $0x2f9] sm:$0xff]
        %v8387 = vld [vmem:[#allocation3 + $0x301] sm:$0xff]
        %v8388 = vld [vmem:[#allocation3 + $0x309] sm:$0xff]
        %v8389 = vld [vmem:[#allocation3 + $0x311] sm:$0xff]
        %v8390 = vld [vmem:[#allocation3 + $0x319] sm:$0xff]
        %v8391 = vld [vmem:[#allocation3 + $0x321] sm:$0xff]
        %v8392 = vld [vmem:[#allocation3 + $0x329] sm:$0xff]
        %v8393 = vld [vmem:[#allocation3 + $0x331] sm:$0xff]
        %v8394 = vld [vmem:[#allocation3 + $0x339] sm:$0xff]
        %v8395 = vld [vmem:[#allocation3 + $0x341] sm:$0xff]
        %v8396 = vld [vmem:[#allocation3 + $0x349] sm:$0xff]
        %v8397 = vld [vmem:[#allocation3 + $0x351] sm:$0xff]
        %v8398 = vld [vmem:[#allocation3 + $0x359] sm:$0xff]
        %v8399 = vmax.f32 %v8183, %v8291
        %v8400 = vmax.f32 %v8184, %v8292
        %v8401 = vmax.f32 %v8185, %v8293
        %v8402 = vmax.f32 %v8186, %v8294
        %v8403 = vmax.f32 %v8187, %v8295
        %v8404 = vmax.f32 %v8188, %v8296
        %v8405 = vmax.f32 %v8189, %v8297
        %v8406 = vmax.f32 %v8190, %v8298
        %v8407 = vmax.f32 %v8191, %v8299
        %v8408 = vmax.f32 %v8192, %v8300
        %v8409 = vmax.f32 %v8193, %v8301
        %v8410 = vmax.f32 %v8194, %v8302
        %v8411 = vmax.f32 %v8195, %v8303
        %v8412 = vmax.f32 %v8196, %v8304
        %v8413 = vmax.f32 %v8197, %v8305
        %v8414 = vmax.f32 %v8198, %v8306
        %v8415 = vmax.f32 %v8199, %v8307
        %v8416 = vmax.f32 %v8200, %v8308
        %v8417 = vmax.f32 %v8201, %v8309
        %v8418 = vmax.f32 %v8202, %v8310
        %v8419 = vmax.f32 %v8203, %v8311
        %v8420 = vmax.f32 %v8204, %v8312
        %v8421 = vmax.f32 %v8205, %v8313
        %v8422 = vmax.f32 %v8206, %v8314
        %v8423 = vmax.f32 %v8207, %v8315
        %v8424 = vmax.f32 %v8208, %v8316
        %v8425 = vmax.f32 %v8209, %v8317
        %v8426 = vmax.f32 %v8210, %v8318
        %v8427 = vmax.f32 %v8211, %v8319
        %v8428 = vmax.f32 %v8212, %v8320
        %v8429 = vmax.f32 %v8213, %v8321
        %v8430 = vmax.f32 %v8214, %v8322
        %v8431 = vmax.f32 %v8215, %v8323
        %v8432 = vmax.f32 %v8216, %v8324
        %v8433 = vmax.f32 %v8217, %v8325
        %v8434 = vmax.f32 %v8218, %v8326
        %v8435 = vmax.f32 %v8219, %v8327
        %v8436 = vmax.f32 %v8220, %v8328
        %v8437 = vmax.f32 %v8221, %v8329
        %v8438 = vmax.f32 %v8222, %v8330
        %v8439 = vmax.f32 %v8223, %v8331
        %v8440 = vmax.f32 %v8224, %v8332
        %v8441 = vmax.f32 %v8225, %v8333
        %v8442 = vmax.f32 %v8226, %v8334
        %v8443 = vmax.f32 %v8227, %v8335
        %v8444 = vmax.f32 %v8228, %v8336
        %v8445 = vmax.f32 %v8229, %v8337
        %v8446 = vmax.f32 %v8230, %v8338
        %v8447 = vmax.f32 %v8231, %v8339
        %v8448 = vmax.f32 %v8232, %v8340
        %v8449 = vmax.f32 %v8233, %v8341
        %v8450 = vmax.f32 %v8234, %v8342
        %v8451 = vmax.f32 %v8235, %v8343
        %v8452 = vmax.f32 %v8236, %v8344
        %v8453 = vmax.f32 %v8237, %v8345
        %v8454 = vmax.f32 %v8238, %v8346
        %v8455 = vmax.f32 %v8239, %v8347
        %v8456 = vmax.f32 %v8240, %v8348
        %v8457 = vmax.f32 %v8241, %v8349
        %v8458 = vmax.f32 %v8242, %v8350
        %v8459 = vmax.f32 %v8243, %v8351
        %v8460 = vmax.f32 %v8244, %v8352
        %v8461 = vmax.f32 %v8245, %v8353
        %v8462 = vmax.f32 %v8246, %v8354
        %v8463 = vmax.f32 %v8247, %v8355
        %v8464 = vmax.f32 %v8248, %v8356
        %v8465 = vmax.f32 %v8249, %v8357
        %v8466 = vmax.f32 %v8250, %v8358
        %v8467 = vmax.f32 %v8251, %v8359
        %v8468 = vmax.f32 %v8252, %v8360
        %v8469 = vmax.f32 %v8253, %v8361
        %v8470 = vmax.f32 %v8254, %v8362
        %v8471 = vmax.f32 %v8255, %v8363
        %v8472 = vmax.f32 %v8256, %v8364
        %v8473 = vmax.f32 %v8257, %v8365
        %v8474 = vmax.f32 %v8258, %v8366
        %v8475 = vmax.f32 %v8259, %v8367
        %v8476 = vmax.f32 %v8260, %v8368
        %v8477 = vmax.f32 %v8261, %v8369
        %v8478 = vmax.f32 %v8262, %v8370
        %v8479 = vmax.f32 %v8263, %v8371
        %v8480 = vmax.f32 %v8264, %v8372
        %v8481 = vmax.f32 %v8265, %v8373
        %v8482 = vmax.f32 %v8266, %v8374
        %v8483 = vmax.f32 %v8267, %v8375
        %v8484 = vmax.f32 %v8268, %v8376
        %v8485 = vmax.f32 %v8269, %v8377
        %v8486 = vmax.f32 %v8270, %v8378
        %v8487 = vmax.f32 %v8271, %v8379
        %v8488 = vmax.f32 %v8272, %v8380
        %v8489 = vmax.f32 %v8273, %v8381
        %v8490 = vmax.f32 %v8274, %v8382
        %v8491 = vmax.f32 %v8275, %v8383
        %v8492 = vmax.f32 %v8276, %v8384
        %v8493 = vmax.f32 %v8277, %v8385
        %v8494 = vmax.f32 %v8278, %v8386
        %v8495 = vmax.f32 %v8279, %v8387
        %v8496 = vmax.f32 %v8280, %v8388
        %v8497 = vmax.f32 %v8281, %v8389
        %v8498 = vmax.f32 %v8282, %v8390
        %v8499 = vmax.f32 %v8283, %v8391
        %v8500 = vmax.f32 %v8284, %v8392
        %v8501 = vmax.f32 %v8285, %v8393
        %v8502 = vmax.f32 %v8286, %v8394
        %v8503 = vmax.f32 %v8287, %v8395
        %v8504 = vmax.f32 %v8288, %v8396
        %v8505 = vmax.f32 %v8289, %v8397
        %v8506 = vmax.f32 %v8290, %v8398
        %v8507 = vld [vmem:[#allocation3 + $0x360] sm:$0xff]
        %v8508 = vld [vmem:[#allocation3 + $0x368] sm:$0xff]
        %v8509 = vld [vmem:[#allocation3 + $0x370] sm:$0xff]
        %v8510 = vld [vmem:[#allocation3 + $0x378] sm:$0xff]
        %v8511 = vld [vmem:[#allocation3 + $0x361] sm:$0xff]
        %v8512 = vld [vmem:[#allocation3 + $0x369] sm:$0xff]
        %v8513 = vld [vmem:[#allocation3 + $0x371] sm:$0xff]
        %v8514 = vld [vmem:[#allocation3 + $0x379] sm:$0xff]
        %v8515 = vmax.f32 %v8507, %v8511
        %v8516 = vmax.f32 %v8508, %v8512
        %v8517 = vmax.f32 %v8509, %v8513
        %v8518 = vmax.f32 %v8510, %v8514
        %v8519 = vmax.f32 %v8399, %v8403
        %v8520 = vmax.f32 %v8400, %v8404
        %v8521 = vmax.f32 %v8401, %v8405
        %v8522 = vmax.f32 %v8402, %v8406
        %v8523 = vmax.f32 %v8403, %v8407
        %v8524 = vmax.f32 %v8404, %v8408
        %v8525 = vmax.f32 %v8405, %v8409
        %v8526 = vmax.f32 %v8406, %v8410
        %v8527 = vmax.f32 %v8407, %v8411
        %v8528 = vmax.f32 %v8408, %v8412
        %v8529 = vmax.f32 %v8409, %v8413
        %v8530 = vmax.f32 %v8410, %v8414
        %v8531 = vmax.f32 %v8411, %v8415
        %v8532 = vmax.f32 %v8412, %v8416
        %v8533 = vmax.f32 %v8413, %v8417
        %v8534 = vmax.f32 %v8414, %v8418
        %v8535 = vmax.f32 %v8415, %v8419
        %v8536 = vmax.f32 %v8416, %v8420
        %v8537 = vmax.f32 %v8417, %v8421
        %v8538 = vmax.f32 %v8418, %v8422
        %v8539 = vmax.f32 %v8419, %v8423
        %v8540 = vmax.f32 %v8420, %v8424
        %v8541 = vmax.f32 %v8421, %v8425
        %v8542 = vmax.f32 %v8422, %v8426
        %v8543 = vmax.f32 %v8423, %v8427
        %v8544 = vmax.f32 %v8424, %v8428
        %v8545 = vmax.f32 %v8425, %v8429
        %v8546 = vmax.f32 %v8426, %v8430
        %v8547 = vmax.f32 %v8427, %v8431
        %v8548 = vmax.f32 %v8428, %v8432
        %v8549 = vmax.f32 %v8429, %v8433
        %v8550 = vmax.f32 %v8430, %v8434
        %v8551 = vmax.f32 %v8431, %v8435
        %v8552 = vmax.f32 %v8432, %v8436
        %v8553 = vmax.f32 %v8433, %v8437
        %v8554 = vmax.f32 %v8434, %v8438
        %v8555 = vmax.f32 %v8435, %v8439
        %v8556 = vmax.f32 %v8436, %v8440
        %v8557 = vmax.f32 %v8437, %v8441
        %v8558 = vmax.f32 %v8438, %v8442
        %v8559 = vmax.f32 %v8439, %v8443
        %v8560 = vmax.f32 %v8440, %v8444
        %v8561 = vmax.f32 %v8441, %v8445
        %v8562 = vmax.f32 %v8442, %v8446
        %v8563 = vmax.f32 %v8443, %v8447
        %v8564 = vmax.f32 %v8444, %v8448
        %v8565 = vmax.f32 %v8445, %v8449
        %v8566 = vmax.f32 %v8446, %v8450
        %v8567 = vmax.f32 %v8447, %v8451
        %v8568 = vmax.f32 %v8448, %v8452
        %v8569 = vmax.f32 %v8449, %v8453
        %v8570 = vmax.f32 %v8450, %v8454
        %v8571 = vmax.f32 %v8451, %v8455
        %v8572 = vmax.f32 %v8452, %v8456
        %v8573 = vmax.f32 %v8453, %v8457
        %v8574 = vmax.f32 %v8454, %v8458
        %v8575 = vmax.f32 %v8455, %v8459
        %v8576 = vmax.f32 %v8456, %v8460
        %v8577 = vmax.f32 %v8457, %v8461
        %v8578 = vmax.f32 %v8458, %v8462
        %v8579 = vmax.f32 %v8459, %v8463
        %v8580 = vmax.f32 %v8460, %v8464
        %v8581 = vmax.f32 %v8461, %v8465
        %v8582 = vmax.f32 %v8462, %v8466
        %v8583 = vmax.f32 %v8463, %v8467
        %v8584 = vmax.f32 %v8464, %v8468
        %v8585 = vmax.f32 %v8465, %v8469
        %v8586 = vmax.f32 %v8466, %v8470
        %v8587 = vmax.f32 %v8467, %v8471
        %v8588 = vmax.f32 %v8468, %v8472
        %v8589 = vmax.f32 %v8469, %v8473
        %v8590 = vmax.f32 %v8470, %v8474
        %v8591 = vmax.f32 %v8471, %v8475
        %v8592 = vmax.f32 %v8472, %v8476
        %v8593 = vmax.f32 %v8473, %v8477
        %v8594 = vmax.f32 %v8474, %v8478
        %v8595 = vmax.f32 %v8475, %v8479
        %v8596 = vmax.f32 %v8476, %v8480
        %v8597 = vmax.f32 %v8477, %v8481
        %v8598 = vmax.f32 %v8478, %v8482
        %v8599 = vmax.f32 %v8479, %v8483
        %v8600 = vmax.f32 %v8480, %v8484
        %v8601 = vmax.f32 %v8481, %v8485
        %v8602 = vmax.f32 %v8482, %v8486
        %v8603 = vmax.f32 %v8483, %v8487
        %v8604 = vmax.f32 %v8484, %v8488
        %v8605 = vmax.f32 %v8485, %v8489
        %v8606 = vmax.f32 %v8486, %v8490
        %v8607 = vmax.f32 %v8487, %v8491
        %v8608 = vmax.f32 %v8488, %v8492
        %v8609 = vmax.f32 %v8489, %v8493
        %v8610 = vmax.f32 %v8490, %v8494
        %v8611 = vmax.f32 %v8491, %v8495
        %v8612 = vmax.f32 %v8492, %v8496
        %v8613 = vmax.f32 %v8493, %v8497
        %v8614 = vmax.f32 %v8494, %v8498
        %v8615 = vmax.f32 %v8495, %v8499
        %v8616 = vmax.f32 %v8496, %v8500
        %v8617 = vmax.f32 %v8497, %v8501
        %v8618 = vmax.f32 %v8498, %v8502
        %v8619 = vmax.f32 %v8499, %v8503
        %v8620 = vmax.f32 %v8500, %v8504
        %v8621 = vmax.f32 %v8501, %v8505
        %v8622 = vmax.f32 %v8502, %v8506
        %v8623 = vmax.f32 %v8503, %v8515
        %v8624 = vmax.f32 %v8504, %v8516
        %v8625 = vmax.f32 %v8505, %v8517
        %v8626 = vmax.f32 %v8506, %v8518
        %v8627 = vld [vmem:[%s5] sm:$0xff]
        %v8628 = vld [vmem:[%s5 + $0x8] sm:$0xff]
        %v8629 = vld [vmem:[%s5 + $0x10] sm:$0xff]
        %v8630 = vld [vmem:[%s5 + $0x18] sm:$0xff]
        %v8631 = vld [vmem:[%s5 + $0x20] sm:$0xff]
        %v8632 = vld [vmem:[%s5 + $0x28] sm:$0xff]
        %v8633 = vld [vmem:[%s5 + $0x30] sm:$0xff]
        %v8634 = vld [vmem:[%s5 + $0x38] sm:$0xff]
        %v8635 = vld [vmem:[%s5 + $0x40] sm:$0xff]
        %v8636 = vld [vmem:[%s5 + $0x48] sm:$0xff]
        %v8637 = vld [vmem:[%s5 + $0x50] sm:$0xff]
        %v8638 = vld [vmem:[%s5 + $0x58] sm:$0xff]
        %v8639 = vld [vmem:[%s5 + $0x60] sm:$0xff]
        %v8640 = vld [vmem:[%s5 + $0x68] sm:$0xff]
        %v8641 = vld [vmem:[%s5 + $0x70] sm:$0xff]
        %v8642 = vld [vmem:[%s5 + $0x78] sm:$0xff]
        %v8643 = vld [vmem:[%s5 + $0x80] sm:$0xff]
        %v8644 = vld [vmem:[%s5 + $0x88] sm:$0xff]
        %v8645 = vld [vmem:[%s5 + $0x90] sm:$0xff]
        %v8646 = vld [vmem:[%s5 + $0x98] sm:$0xff]
        %v8647 = vld [vmem:[%s5 + $0xa0] sm:$0xff]
        %v8648 = vld [vmem:[%s5 + $0xa8] sm:$0xff]
        %v8649 = vld [vmem:[%s5 + $0xb0] sm:$0xff]
        %v8650 = vld [vmem:[%s5 + $0xb8] sm:$0xff]
        %v8651 = vld [vmem:[%s5 + $0xc0] sm:$0xff]
        %v8652 = vld [vmem:[%s5 + $0xc8] sm:$0xff]
        %v8653 = vld [vmem:[%s5 + $0xd0] sm:$0xff]
        %v8654 = vld [vmem:[%s5 + $0xd8] sm:$0xff]
        %v8655 = vld [vmem:[%s5 + $0xe0] sm:$0xff]
        %v8656 = vld [vmem:[%s5 + $0xe8] sm:$0xff]
        %v8657 = vld [vmem:[%s5 + $0xf0] sm:$0xff]
        %v8658 = vld [vmem:[%s5 + $0xf8] sm:$0xff]
        %v8659 = vld [vmem:[%s5 + $0x100] sm:$0xff]
        %v8660 = vld [vmem:[%s5 + $0x108] sm:$0xff]
        %v8661 = vld [vmem:[%s5 + $0x110] sm:$0xff]
        %v8662 = vld [vmem:[%s5 + $0x118] sm:$0xff]
        %v8663 = vld [vmem:[%s5 + $0x120] sm:$0xff]
        %v8664 = vld [vmem:[%s5 + $0x128] sm:$0xff]
        %v8665 = vld [vmem:[%s5 + $0x130] sm:$0xff]
        %v8666 = vld [vmem:[%s5 + $0x138] sm:$0xff]
        %v8667 = vld [vmem:[%s5 + $0x140] sm:$0xff]
        %v8668 = vld [vmem:[%s5 + $0x148] sm:$0xff]
        %v8669 = vld [vmem:[%s5 + $0x150] sm:$0xff]
        %v8670 = vld [vmem:[%s5 + $0x158] sm:$0xff]
        %v8671 = vld [vmem:[%s5 + $0x160] sm:$0xff]
        %v8672 = vld [vmem:[%s5 + $0x168] sm:$0xff]
        %v8673 = vld [vmem:[%s5 + $0x170] sm:$0xff]
        %v8674 = vld [vmem:[%s5 + $0x178] sm:$0xff]
        %v8675 = vld [vmem:[%s5 + $0x180] sm:$0xff]
        %v8676 = vld [vmem:[%s5 + $0x188] sm:$0xff]
        %v8677 = vld [vmem:[%s5 + $0x190] sm:$0xff]
        %v8678 = vld [vmem:[%s5 + $0x198] sm:$0xff]
        %v8679 = vld [vmem:[%s5 + $0x1a0] sm:$0xff]
        %v8680 = vld [vmem:[%s5 + $0x1a8] sm:$0xff]
        %v8681 = vld [vmem:[%s5 + $0x1b0] sm:$0xff]
        %v8682 = vld [vmem:[%s5 + $0x1b8] sm:$0xff]
        %v8683 = vld [vmem:[%s5 + $0x1c0] sm:$0xff]
        %v8684 = vld [vmem:[%s5 + $0x1c8] sm:$0xff]
        %v8685 = vld [vmem:[%s5 + $0x1d0] sm:$0xff]
        %v8686 = vld [vmem:[%s5 + $0x1d8] sm:$0xff]
        %v8687 = vld [vmem:[%s5 + $0x1e0] sm:$0xff]
        %v8688 = vld [vmem:[%s5 + $0x1e8] sm:$0xff]
        %v8689 = vld [vmem:[%s5 + $0x1f0] sm:$0xff]
        %v8690 = vld [vmem:[%s5 + $0x1f8] sm:$0xff]
        %v8691 = vld [vmem:[%s5 + $0x200] sm:$0xff]
        %v8692 = vld [vmem:[%s5 + $0x208] sm:$0xff]
        %v8693 = vld [vmem:[%s5 + $0x210] sm:$0xff]
        %v8694 = vld [vmem:[%s5 + $0x218] sm:$0xff]
        %v8695 = vld [vmem:[%s5 + $0x220] sm:$0xff]
        %v8696 = vld [vmem:[%s5 + $0x228] sm:$0xff]
        %v8697 = vld [vmem:[%s5 + $0x230] sm:$0xff]
        %v8698 = vld [vmem:[%s5 + $0x238] sm:$0xff]
        %v8699 = vld [vmem:[%s5 + $0x240] sm:$0xff]
        %v8700 = vld [vmem:[%s5 + $0x248] sm:$0xff]
        %v8701 = vld [vmem:[%s5 + $0x250] sm:$0xff]
        %v8702 = vld [vmem:[%s5 + $0x258] sm:$0xff]
        %v8703 = vld [vmem:[%s5 + $0x260] sm:$0xff]
        %v8704 = vld [vmem:[%s5 + $0x268] sm:$0xff]
        %v8705 = vld [vmem:[%s5 + $0x270] sm:$0xff]
        %v8706 = vld [vmem:[%s5 + $0x278] sm:$0xff]
        %v8707 = vld [vmem:[%s5 + $0x280] sm:$0xff]
        %v8708 = vld [vmem:[%s5 + $0x288] sm:$0xff]
        %v8709 = vld [vmem:[%s5 + $0x290] sm:$0xff]
        %v8710 = vld [vmem:[%s5 + $0x298] sm:$0xff]
        %v8711 = vld [vmem:[%s5 + $0x2a0] sm:$0xff]
        %v8712 = vld [vmem:[%s5 + $0x2a8] sm:$0xff]
        %v8713 = vld [vmem:[%s5 + $0x2b0] sm:$0xff]
        %v8714 = vld [vmem:[%s5 + $0x2b8] sm:$0xff]
        %v8715 = vld [vmem:[%s5 + $0x2c0] sm:$0xff]
        %v8716 = vld [vmem:[%s5 + $0x2c8] sm:$0xff]
        %v8717 = vld [vmem:[%s5 + $0x2d0] sm:$0xff]
        %v8718 = vld [vmem:[%s5 + $0x2d8] sm:$0xff]
        %v8719 = vld [vmem:[%s5 + $0x2e0] sm:$0xff]
        %v8720 = vld [vmem:[%s5 + $0x2e8] sm:$0xff]
        %v8721 = vld [vmem:[%s5 + $0x2f0] sm:$0xff]
        %v8722 = vld [vmem:[%s5 + $0x2f8] sm:$0xff]
        %v8723 = vld [vmem:[%s5 + $0x300] sm:$0xff]
        %v8724 = vld [vmem:[%s5 + $0x308] sm:$0xff]
        %v8725 = vld [vmem:[%s5 + $0x310] sm:$0xff]
        %v8726 = vld [vmem:[%s5 + $0x318] sm:$0xff]
        %v8727 = vld [vmem:[%s5 + $0x320] sm:$0xff]
        %v8728 = vld [vmem:[%s5 + $0x328] sm:$0xff]
        %v8729 = vld [vmem:[%s5 + $0x330] sm:$0xff]
        %v8730 = vld [vmem:[%s5 + $0x338] sm:$0xff]
        %v8731 = vld [vmem:[%s5 + $0x340] sm:$0xff]
        %v8732 = vld [vmem:[%s5 + $0x348] sm:$0xff]
        %v8733 = vld [vmem:[%s5 + $0x350] sm:$0xff]
        %v8734 = vld [vmem:[%s5 + $0x358] sm:$0xff]
        %v8735 = vld [vmem:[%s5 + $0x360] sm:$0xff]
        %v8736 = vld [vmem:[%s5 + $0x368] sm:$0xff]
        %v8737 = vld [vmem:[%s5 + $0x370] sm:$0xff]
        %v8738 = vld [vmem:[%s5 + $0x378] sm:$0xff]
        %v8739 = vld [vmem:[%s5 + $0x380] sm:$0xff]
        %v8740 = vld [vmem:[%s5 + $0x388] sm:$0xff]
        %v8741 = vld [vmem:[%s5 + $0x390] sm:$0xff]
        %v8742 = vld [vmem:[%s5 + $0x398] sm:$0xff]
        %v8743 = vld [vmem:[%s5 + $0x3a0] sm:$0xff]
        %v8744 = vld [vmem:[%s5 + $0x3a8] sm:$0xff]
        %v8745 = vld [vmem:[%s5 + $0x3b0] sm:$0xff]
        %v8746 = vld [vmem:[%s5 + $0x3b8] sm:$0xff]
        %v8747 = vld [vmem:[%s5 + $0x3c0] sm:$0xff]
        %v8748 = vld [vmem:[%s5 + $0x3c8] sm:$0xff]
        %v8749 = vld [vmem:[%s5 + $0x3d0] sm:$0xff]
        %v8750 = vld [vmem:[%s5 + $0x3d8] sm:$0xff]
        %v8751 = vld [vmem:[%s5 + $0x3e0] sm:$0xff]
        %v8752 = vld [vmem:[%s5 + $0x3e8] sm:$0xff]
        %v8753 = vld [vmem:[%s5 + $0x3f0] sm:$0xff]
        %v8754 = vld [vmem:[%s5 + $0x3f8] sm:$0xff]
        %v8755 = vld [vmem:[%s5 + $0x400] sm:$0xff]
        %v8756 = vld [vmem:[%s5 + $0x408] sm:$0xff]
        %v8757 = vld [vmem:[%s5 + $0x410] sm:$0xff]
        %v8758 = vld [vmem:[%s5 + $0x418] sm:$0xff]
        %v8759 = vld [vmem:[%s5 + $0x420] sm:$0xff]
        %v8760 = vld [vmem:[%s5 + $0x428] sm:$0xff]
        %v8761 = vld [vmem:[%s5 + $0x430] sm:$0xff]
        %v8762 = vld [vmem:[%s5 + $0x438] sm:$0xff]
        %v8763 = vld [vmem:[%s5 + $0x440] sm:$0xff]
        %v8764 = vld [vmem:[%s5 + $0x448] sm:$0xff]
        %v8765 = vld [vmem:[%s5 + $0x450] sm:$0xff]
        %v8766 = vld [vmem:[%s5 + $0x458] sm:$0xff]
        %v8767 = vld [vmem:[%s5 + $0x460] sm:$0xff]
        %v8768 = vld [vmem:[%s5 + $0x468] sm:$0xff]
        %v8769 = vld [vmem:[%s5 + $0x470] sm:$0xff]
        %v8770 = vld [vmem:[%s5 + $0x478] sm:$0xff]
        %v8771 = vld [vmem:[%s5 + $0x480] sm:$0xff]
        %v8772 = vld [vmem:[%s5 + $0x488] sm:$0xff]
        %v8773 = vld [vmem:[%s5 + $0x490] sm:$0xff]
        %v8774 = vld [vmem:[%s5 + $0x498] sm:$0xff]
        %v8775 = vld [vmem:[%s5 + $0x4a0] sm:$0xff]
        %v8776 = vld [vmem:[%s5 + $0x4a8] sm:$0xff]
        %v8777 = vld [vmem:[%s5 + $0x4b0] sm:$0xff]
        %v8778 = vld [vmem:[%s5 + $0x4b8] sm:$0xff]
        %v8779 = vld [vmem:[%s5 + $0x4c0] sm:$0xff]
        %v8780 = vld [vmem:[%s5 + $0x4c8] sm:$0xff]
        %v8781 = vld [vmem:[%s5 + $0x4d0] sm:$0xff]
        %v8782 = vld [vmem:[%s5 + $0x4d8] sm:$0xff]
        %v8783 = vld [vmem:[%s5 + $0x4e0] sm:$0xff]
        %v8784 = vld [vmem:[%s5 + $0x4e8] sm:$0xff]
        %v8785 = vld [vmem:[%s5 + $0x4f0] sm:$0xff]
        %v8786 = vld [vmem:[%s5 + $0x4f8] sm:$0xff]
        %v8787 = vld [vmem:[%s5 + $0x500] sm:$0xff]
        %v8788 = vld [vmem:[%s5 + $0x508] sm:$0xff]
        %v8789 = vld [vmem:[%s5 + $0x510] sm:$0xff]
        %v8790 = vld [vmem:[%s5 + $0x518] sm:$0xff]
        %v8791 = vld [vmem:[%s5 + $0x520] sm:$0xff]
        %v8792 = vld [vmem:[%s5 + $0x528] sm:$0xff]
        %v8793 = vld [vmem:[%s5 + $0x530] sm:$0xff]
        %v8794 = vld [vmem:[%s5 + $0x538] sm:$0xff]
        %v8795 = vld [vmem:[%s5 + $0x540] sm:$0xf]
        %v8796 = vld [vmem:[%s5 + $0x548] sm:$0xf]
        %v8797 = vld [vmem:[%s5 + $0x550] sm:$0xf]
        %v8798 = vld [vmem:[%s5 + $0x558] sm:$0xf]
        %v8799 = vld [vmem:[%s5 + $0x560] sm:$0xf]
        %v8800 = vld [vmem:[%s5 + $0x568] sm:$0xf]
        %v8801 = vld [vmem:[%s5 + $0x570] sm:$0xf]
        %v8803 = vsel %vm5988, %v8633, 0
        %v8806 = vsel %vm5988, %v8640, 0
        %v8809 = vsel %vm5988, %v8647, 0
        %v8812 = vsel %vm5988, %v8654, 0
        %v8815 = vsel %vm5988, %v8661, 0
        %v8818 = vsel %vm5988, %v8668, 0
        %v8821 = vsel %vm5988, %v8675, 0
        %v8824 = vsel %vm5988, %v8682, 0
        %v8827 = vsel %vm5988, %v8689, 0
        %v8830 = vsel %vm5988, %v8696, 0
        %v8833 = vsel %vm5988, %v8703, 0
        %v8836 = vsel %vm5988, %v8710, 0
        %v8839 = vsel %vm5988, %v8717, 0
        %v8842 = vsel %vm5988, %v8724, 0
        %v8845 = vsel %vm5988, %v8731, 0
        %v8848 = vsel %vm5988, %v8738, 0
        %v8851 = vsel %vm5988, %v8745, 0
        %v8854 = vsel %vm5988, %v8752, 0
        %v8857 = vsel %vm5988, %v8759, 0
        %v8860 = vsel %vm5988, %v8766, 0
        %v8863 = vsel %vm5988, %v8773, 0
        %v8866 = vsel %vm5988, %v8780, 0
        %v8869 = vsel %vm5988, %v8787, 0
        %v8872 = vsel %vm5988, %v8794, 0
        %v8875 = vsel %vm5988, %v8801, 0
        %8877 = vmatprep.subr.mxu0 0.0
        %8878 = vmatpush1.msra.mxu0 %v8519
        %8879 = vmatprep.subr.mxu0 0.0
        %8880 = vmatpush1.msra.mxu0 %v8520
        %8881 = vmatprep.subr.mxu0 0.0
        %8882 = vmatpush1.msra.mxu0 %v8521
        %8883 = vmatprep.subr.mxu0 0.0
        %8884 = vmatpush1.msra.mxu0 %v8522
        %8885 = vmatprep.subr.mxu0 0.0
        %8886 = vmatpush1.msra.mxu0 %v8523
        %8887 = vmatprep.subr.mxu0 0.0
        %8888 = vmatpush1.msra.mxu0 %v8524
        %8889 = vmatprep.subr.mxu0 0.0
        %8890 = vmatpush1.msra.mxu0 %v8525
        %8891 = vmatprep.subr.mxu0 0.0
        %8892 = vmatpush1.msra.mxu0 %v8526
        %8893 = vmatprep.subr.mxu0 0.0
        %8894 = vmatpush1.msra.mxu0 %v8527
        %8895 = vmatprep.subr.mxu0 0.0
        %8896 = vmatpush1.msra.mxu0 %v8528
        %8897 = vmatprep.subr.mxu0 0.0
        %8898 = vmatpush1.msra.mxu0 %v8529
        %8899 = vmatprep.subr.mxu0 0.0
        %8900 = vmatpush1.msra.mxu0 %v8530
        %8901 = vmatprep.subr.mxu0 0.0
        %8902 = vmatpush1.msra.mxu0 %v8531
        %8903 = vmatprep.subr.mxu0 0.0
        %8904 = vmatpush1.msra.mxu0 %v8532
        %8905 = vmatprep.subr.mxu0 0.0
        %8906 = vmatpush1.msra.mxu0 %v8533
        %8907 = vmatprep.subr.mxu0 0.0
        %8908 = vmatpush1.msra.mxu0 %v8534
        %8909 = vmatprep.subr.mxu0 0.0
        %8910 = vmatpush1.msra.mxu0 %v8535
        %8911 = vmatprep.subr.mxu0 0.0
        %8912 = vmatpush1.msra.mxu0 %v8536
        %8913 = vmatprep.subr.mxu0 0.0
        %8914 = vmatpush1.msra.mxu0 %v8537
        %8915 = vmatprep.subr.mxu0 0.0
        %8916 = vmatpush1.msra.mxu0 %v8538
        %8917 = vmatprep.subr.mxu0 0.0
        %8918 = vmatpush1.msra.mxu0 %v8539
        %8919 = vmatprep.subr.mxu0 0.0
        %8920 = vmatpush1.msra.mxu0 %v8540
        %8921 = vmatprep.subr.mxu0 0.0
        %8922 = vmatpush1.msra.mxu0 %v8541
        %8923 = vmatprep.subr.mxu0 0.0
        %8924 = vmatpush1.msra.mxu0 %v8542
        %8925 = vmatprep.subr.mxu0 0.0
        %8926 = vmatpush1.msra.mxu0 %v8543
        %8927 = vmatprep.subr.mxu0 0.0
        %8928 = vmatpush1.msra.mxu0 %v8544
        %8929 = vmatprep.subr.mxu0 0.0
        %8930 = vmatpush1.msra.mxu0 %v8545
        %8931 = vmatprep.subr.mxu0 0.0
        %8932 = vmatpush1.msra.mxu0 %v8546
        %8933 = vmatprep.subr.mxu0 0.0
        %8934 = vmatpush1.msra.mxu0 %v8547
        %8935 = vmatprep.subr.mxu0 0.0
        %8936 = vmatpush1.msra.mxu0 %v8548
        %8937 = vmatprep.subr.mxu0 0.0
        %8938 = vmatpush1.msra.mxu0 %v8549
        %8939 = vmatprep.subr.mxu0 0.0
        %8940 = vmatpush1.msra.mxu0 %v8550
        %8941 = vmatprep.mubr.f32.mxu0 %v8628
        %8942 = vmatmul.mubr.f32.gmra.mrb[0].mxu0 %v8627
        %v8943 = vpop.f32.mrb[0].mxu0
        %v8944 = vadd.f32 0.0, %v8943
        %v8945 = vpop.f32.mrb[0].mxu0
        %8946 = vmatprep.mubr.f32.mxu0 %v8635
        %8947 = vmatmul.mubr.f32.gmra.mrb[0].mxu0 %v8634
        %v8948 = vpop.f32.mrb[0].mxu0
        %v8949 = vadd.f32 0.0, %v8948
        %v8950 = vpop.f32.mrb[0].mxu0
        %8951 = vmatprep.mubr.f32.mxu0 %v8642
        %8952 = vmatmul.mubr.f32.gmra.mrb[0].mxu0 %v8641
        %v8953 = vpop.f32.mrb[0].mxu0
        %v8954 = vadd.f32 0.0, %v8953
        %v8955 = vpop.f32.mrb[0].mxu0
        %8956 = vmatprep.mubr.f32.mxu0 %v8649
        %8957 = vmatmul.mubr.f32.gmra.mrb[0].mxu0 %v8648
        %v8958 = vpop.f32.mrb[0].mxu0
        %v8959 = vadd.f32 0.0, %v8958
        %v8960 = vpop.f32.mrb[0].mxu0
        %8961 = vmatprep.mubr.f32.mxu0 %v8656
        %8962 = vmatmul.mubr.f32.gmra.mrb[0].mxu0 %v8655
        %v8963 = vpop.f32.mrb[0].mxu0
        %v8964 = vadd.f32 0.0, %v8963
        %v8965 = vpop.f32.mrb[0].mxu0
        %8966 = vmatprep.mubr.f32.mxu0 %v8663
        %8967 = vmatmul.mubr.f32.gmra.mrb[0].mxu0 %v8662
        %v8968 = vpop.f32.mrb[0].mxu0
        %v8969 = vadd.f32 0.0, %v8968
        %v8970 = vpop.f32.mrb[0].mxu0
        %8971 = vmatprep.mubr.f32.mxu0 %v8670
        %8972 = vmatmul.mubr.f32.gmra.mrb[0].mxu0 %v8669
        %v8973 = vpop.f32.mrb[0].mxu0
        %v8974 = vadd.f32 0.0, %v8973
        %v8975 = vpop.f32.mrb[0].mxu0
        %8976 = vmatprep.mubr.f32.mxu0 %v8677
        %8977 = vmatmul.mubr.f32.gmra.mrb[0].mxu0 %v8676
        %v8978 = vpop.f32.mrb[0].mxu0
        %v8979 = vadd.f32 0.0, %v8978
        %v8980 = vpop.f32.mrb[0].mxu0
        %8981 = vmatprep.mubr.f32.mxu0 %v8684
        %8982 = vmatmul.mubr.f32.gmra.mrb[0].mxu0 %v8683
        %v8983 = vpop.f32.mrb[0].mxu0
        %v8984 = vadd.f32 0.0, %v8983
        %v8985 = vpop.f32.mrb[0].mxu0
        %8986 = vmatprep.mubr.f32.mxu0 %v8691
        %8987 = vmatmul.mubr.f32.gmra.mrb[0].mxu0 %v8690
        %v8988 = vpop.f32.mrb[0].mxu0
        %v8989 = vadd.f32 0.0, %v8988
        %v8990 = vpop.f32.mrb[0].mxu0
        %8991 = vmatprep.mubr.f32.mxu0 %v8698
        %8992 = vmatmul.mubr.f32.gmra.mrb[0].mxu0 %v8697
        %v8993 = vpop.f32.mrb[0].mxu0
        %v8994 = vadd.f32 0.0, %v8993
        %v8995 = vpop.f32.mrb[0].mxu0
        %8996 = vmatprep.mubr.f32.mxu0 %v8705
        %8997 = vmatmul.mubr.f32.gmra.mrb[0].mxu0 %v8704
        %v8998 = vpop.f32.mrb[0].mxu0
        %v8999 = vadd.f32 0.0, %v8998
        %v9000 = vpop.f32.mrb[0].mxu0
        %9001 = vmatprep.mubr.f32.mxu0 %v8712
        %9002 = vmatmul.mubr.f32.gmra.mrb[0].mxu0 %v8711
        %v9003 = vpop.f32.mrb[0].mxu0
        %v9004 = vadd.f32 0.0, %v9003
        %v9005 = vpop.f32.mrb[0].mxu0
        %9006 = vmatprep.mubr.f32.mxu0 %v8719
        %9007 = vmatmul.mubr.f32.gmra.mrb[0].mxu0 %v8718
        %v9008 = vpop.f32.mrb[0].mxu0
        %v9009 = vadd.f32 0.0, %v9008
        %v9010 = vpop.f32.mrb[0].mxu0
        %9011 = vmatprep.mubr.f32.mxu0 %v8726
        %9012 = vmatmul.mubr.f32.gmra.mrb[0].mxu0 %v8725
        %v9013 = vpop.f32.mrb[0].mxu0
        %v9014 = vadd.f32 0.0, %v9013
        %v9015 = vpop.f32.mrb[0].mxu0
        %9016 = vmatprep.mubr.f32.mxu0 %v8733
        %9017 = vmatmul.mubr.f32.gmra.mrb[0].mxu0 %v8732
        %v9018 = vpop.f32.mrb[0].mxu0
        %v9019 = vadd.f32 0.0, %v9018
        %v9020 = vpop.f32.mrb[0].mxu0
        %9021 = vmatprep.mubr.f32.mxu0 %v8740
        %9022 = vmatmul.mubr.f32.gmra.mrb[0].mxu0 %v8739
        %v9023 = vpop.f32.mrb[0].mxu0
        %v9024 = vadd.f32 0.0, %v9023
        %v9025 = vpop.f32.mrb[0].mxu0
        %9026 = vmatprep.mubr.f32.mxu0 %v8747
        %9027 = vmatmul.mubr.f32.gmra.mrb[0].mxu0 %v8746
        %v9028 = vpop.f32.mrb[0].mxu0
        %v9029 = vadd.f32 0.0, %v9028
        %v9030 = vpop.f32.mrb[0].mxu0
        %9031 = vmatprep.mubr.f32.mxu0 %v8754
        %9032 = vmatmul.mubr.f32.gmra.mrb[0].mxu0 %v8753
        %v9033 = vpop.f32.mrb[0].mxu0
        %v9034 = vadd.f32 0.0, %v9033
        %v9035 = vpop.f32.mrb[0].mxu0
        %9036 = vmatprep.mubr.f32.mxu0 %v8761
        %9037 = vmatmul.mubr.f32.gmra.mrb[0].mxu0 %v8760
        %v9038 = vpop.f32.mrb[0].mxu0
        %v9039 = vadd.f32 0.0, %v9038
        %v9040 = vpop.f32.mrb[0].mxu0
        %9041 = vmatprep.mubr.f32.mxu0 %v8768
        %9042 = vmatmul.mubr.f32.gmra.mrb[0].mxu0 %v8767
        %v9043 = vpop.f32.mrb[0].mxu0
        %v9044 = vadd.f32 0.0, %v9043
        %v9045 = vpop.f32.mrb[0].mxu0
        %9046 = vmatprep.mubr.f32.mxu0 %v8775
        %9047 = vmatmul.mubr.f32.gmra.mrb[0].mxu0 %v8774
        %v9048 = vpop.f32.mrb[0].mxu0
        %v9049 = vadd.f32 0.0, %v9048
        %v9050 = vpop.f32.mrb[0].mxu0
        %9051 = vmatprep.mubr.f32.mxu0 %v8782
        %9052 = vmatmul.mubr.f32.gmra.mrb[0].mxu0 %v8781
        %v9053 = vpop.f32.mrb[0].mxu0
        %v9054 = vadd.f32 0.0, %v9053
        %v9055 = vpop.f32.mrb[0].mxu0
        %9056 = vmatprep.mubr.f32.mxu0 %v8789
        %9057 = vmatmul.mubr.f32.gmra.mrb[0].mxu0 %v8788
        %v9058 = vpop.f32.mrb[0].mxu0
        %v9059 = vadd.f32 0.0, %v9058
        %v9060 = vpop.f32.mrb[0].mxu0
        %9061 = vmatprep.mubr.f32.mxu0 %v8796
        %9062 = vmatmul.mubr.f32.gmra.mrb[0].mxu0 %v8795
        %v9063 = vpop.f32.mrb[0].mxu0
        %v9064 = vadd.f32 0.0, %v9063
        %v9065 = vpop.f32.mrb[0].mxu0
        %9066 = vdwg.mxu0
        %9067 = vmatprep.subr.mxu0 0.0
        %9068 = vmatpush1.msra.mxu0 %v8551
        %9069 = vmatprep.subr.mxu0 0.0
        %9070 = vmatpush1.msra.mxu0 %v8552
        %9071 = vmatprep.subr.mxu0 0.0
        %9072 = vmatpush1.msra.mxu0 %v8553
        %9073 = vmatprep.subr.mxu0 0.0
        %9074 = vmatpush1.msra.mxu0 %v8554
        %9075 = vmatprep.subr.mxu0 0.0
        %9076 = vmatpush1.msra.mxu0 %v8555
        %9077 = vmatprep.subr.mxu0 0.0
        %9078 = vmatpush1.msra.mxu0 %v8556
        %9079 = vmatprep.subr.mxu0 0.0
        %9080 = vmatpush1.msra.mxu0 %v8557
        %9081 = vmatprep.subr.mxu0 0.0
        %9082 = vmatpush1.msra.mxu0 %v8558
        %9083 = vmatprep.subr.mxu0 0.0
        %9084 = vmatpush1.msra.mxu0 %v8559
        %9085 = vmatprep.subr.mxu0 0.0
        %9086 = vmatpush1.msra.mxu0 %v8560
        %9087 = vmatprep.subr.mxu0 0.0
        %9088 = vmatpush1.msra.mxu0 %v8561
        %9089 = vmatprep.subr.mxu0 0.0
        %9090 = vmatpush1.msra.mxu0 %v8562
        %9091 = vmatprep.subr.mxu0 0.0
        %9092 = vmatpush1.msra.mxu0 %v8563
        %9093 = vmatprep.subr.mxu0 0.0
        %9094 = vmatpush1.msra.mxu0 %v8564
        %9095 = vmatprep.subr.mxu0 0.0
        %9096 = vmatpush1.msra.mxu0 %v8565
        %9097 = vmatprep.subr.mxu0 0.0
        %9098 = vmatpush1.msra.mxu0 %v8566
        %9099 = vmatprep.subr.mxu0 0.0
        %9100 = vmatpush1.msra.mxu0 %v8567
        %9101 = vmatprep.subr.mxu0 0.0
        %9102 = vmatpush1.msra.mxu0 %v8568
        %9103 = vmatprep.subr.mxu0 0.0
        %9104 = vmatpush1.msra.mxu0 %v8569
        %9105 = vmatprep.subr.mxu0 0.0
        %9106 = vmatpush1.msra.mxu0 %v8570
        %9107 = vmatprep.subr.mxu0 0.0
        %9108 = vmatpush1.msra.mxu0 %v8571
        %9109 = vmatprep.subr.mxu0 0.0
        %9110 = vmatpush1.msra.mxu0 %v8572
        %9111 = vmatprep.subr.mxu0 0.0
        %9112 = vmatpush1.msra.mxu0 %v8573
        %9113 = vmatprep.subr.mxu0 0.0
        %9114 = vmatpush1.msra.mxu0 %v8574
        %9115 = vmatprep.subr.mxu0 0.0
        %9116 = vmatpush1.msra.mxu0 %v8575
        %9117 = vmatprep.subr.mxu0 0.0
        %9118 = vmatpush1.msra.mxu0 %v8576
        %9119 = vmatprep.subr.mxu0 0.0
        %9120 = vmatpush1.msra.mxu0 %v8577
        %9121 = vmatprep.subr.mxu0 0.0
        %9122 = vmatpush1.msra.mxu0 %v8578
        %9123 = vmatprep.subr.mxu0 0.0
        %9124 = vmatpush1.msra.mxu0 %v8579
        %9125 = vmatprep.subr.mxu0 0.0
        %9126 = vmatpush1.msra.mxu0 %v8580
        %9127 = vmatprep.subr.mxu0 0.0
        %9128 = vmatpush1.msra.mxu0 %v8581
        %9129 = vmatprep.subr.mxu0 0.0
        %9130 = vmatpush1.msra.mxu0 %v8582
        %9131 = vmatprep.mubr.f32.mxu0 %v8630
        %9132 = vmatmul.mubr.f32.gmra.mrb[0].mxu0 %v8629
        %v9133 = vpop.f32.mrb[0].mxu0
        %v9134 = vadd.f32 %v8944, %v9133
        %v9135 = vpop.f32.mrb[0].mxu0
        %9136 = vmatprep.mubr.f32.mxu0 %v8637
        %9137 = vmatmul.mubr.f32.gmra.mrb[0].mxu0 %v8636
        %v9138 = vpop.f32.mrb[0].mxu0
        %v9139 = vadd.f32 %v8949, %v9138
        %v9140 = vpop.f32.mrb[0].mxu0
        %9141 = vmatprep.mubr.f32.mxu0 %v8644
        %9142 = vmatmul.mubr.f32.gmra.mrb[0].mxu0 %v8643
        %v9143 = vpop.f32.mrb[0].mxu0
        %v9144 = vadd.f32 %v8954, %v9143
        %v9145 = vpop.f32.mrb[0].mxu0
        %9146 = vmatprep.mubr.f32.mxu0 %v8651
        %9147 = vmatmul.mubr.f32.gmra.mrb[0].mxu0 %v8650
        %v9148 = vpop.f32.mrb[0].mxu0
        %v9149 = vadd.f32 %v8959, %v9148
        %v9150 = vpop.f32.mrb[0].mxu0
        %9151 = vmatprep.mubr.f32.mxu0 %v8658
        %9152 = vmatmul.mubr.f32.gmra.mrb[0].mxu0 %v8657
        %v9153 = vpop.f32.mrb[0].mxu0
        %v9154 = vadd.f32 %v8964, %v9153
        %v9155 = vpop.f32.mrb[0].mxu0
        %9156 = vmatprep.mubr.f32.mxu0 %v8665
        %9157 = vmatmul.mubr.f32.gmra.mrb[0].mxu0 %v8664
        %v9158 = vpop.f32.mrb[0].mxu0
        %v9159 = vadd.f32 %v8969, %v9158
        %v9160 = vpop.f32.mrb[0].mxu0
        %9161 = vmatprep.mubr.f32.mxu0 %v8672
        %9162 = vmatmul.mubr.f32.gmra.mrb[0].mxu0 %v8671
        %v9163 = vpop.f32.mrb[0].mxu0
        %v9164 = vadd.f32 %v8974, %v9163
        %v9165 = vpop.f32.mrb[0].mxu0
        %9166 = vmatprep.mubr.f32.mxu0 %v8679
        %9167 = vmatmul.mubr.f32.gmra.mrb[0].mxu0 %v8678
        %v9168 = vpop.f32.mrb[0].mxu0
        %v9169 = vadd.f32 %v8979, %v9168
        %v9170 = vpop.f32.mrb[0].mxu0
        %9171 = vmatprep.mubr.f32.mxu0 %v8686
        %9172 = vmatmul.mubr.f32.gmra.mrb[0].mxu0 %v8685
        %v9173 = vpop.f32.mrb[0].mxu0
        %v9174 = vadd.f32 %v8984, %v9173
        %v9175 = vpop.f32.mrb[0].mxu0
        %9176 = vmatprep.mubr.f32.mxu0 %v8693
        %9177 = vmatmul.mubr.f32.gmra.mrb[0].mxu0 %v8692
        %v9178 = vpop.f32.mrb[0].mxu0
        %v9179 = vadd.f32 %v8989, %v9178
        %v9180 = vpop.f32.mrb[0].mxu0
        %9181 = vmatprep.mubr.f32.mxu0 %v8700
        %9182 = vmatmul.mubr.f32.gmra.mrb[0].mxu0 %v8699
        %v9183 = vpop.f32.mrb[0].mxu0
        %v9184 = vadd.f32 %v8994, %v9183
        %v9185 = vpop.f32.mrb[0].mxu0
        %9186 = vmatprep.mubr.f32.mxu0 %v8707
        %9187 = vmatmul.mubr.f32.gmra.mrb[0].mxu0 %v8706
        %v9188 = vpop.f32.mrb[0].mxu0
        %v9189 = vadd.f32 %v8999, %v9188
        %v9190 = vpop.f32.mrb[0].mxu0
        %9191 = vmatprep.mubr.f32.mxu0 %v8714
        %9192 = vmatmul.mubr.f32.gmra.mrb[0].mxu0 %v8713
        %v9193 = vpop.f32.mrb[0].mxu0
        %v9194 = vadd.f32 %v9004, %v9193
        %v9195 = vpop.f32.mrb[0].mxu0
        %9196 = vmatprep.mubr.f32.mxu0 %v8721
        %9197 = vmatmul.mubr.f32.gmra.mrb[0].mxu0 %v8720
        %v9198 = vpop.f32.mrb[0].mxu0
        %v9199 = vadd.f32 %v9009, %v9198
        %v9200 = vpop.f32.mrb[0].mxu0
        %9201 = vmatprep.mubr.f32.mxu0 %v8728
        %9202 = vmatmul.mubr.f32.gmra.mrb[0].mxu0 %v8727
        %v9203 = vpop.f32.mrb[0].mxu0
        %v9204 = vadd.f32 %v9014, %v9203
        %v9205 = vpop.f32.mrb[0].mxu0
        %9206 = vmatprep.mubr.f32.mxu0 %v8735
        %9207 = vmatmul.mubr.f32.gmra.mrb[0].mxu0 %v8734
        %v9208 = vpop.f32.mrb[0].mxu0
        %v9209 = vadd.f32 %v9019, %v9208
        %v9210 = vpop.f32.mrb[0].mxu0
        %9211 = vmatprep.mubr.f32.mxu0 %v8742
        %9212 = vmatmul.mubr.f32.gmra.mrb[0].mxu0 %v8741
        %v9213 = vpop.f32.mrb[0].mxu0
        %v9214 = vadd.f32 %v9024, %v9213
        %v9215 = vpop.f32.mrb[0].mxu0
        %9216 = vmatprep.mubr.f32.mxu0 %v8749
        %9217 = vmatmul.mubr.f32.gmra.mrb[0].mxu0 %v8748
        %v9218 = vpop.f32.mrb[0].mxu0
        %v9219 = vadd.f32 %v9029, %v9218
        %v9220 = vpop.f32.mrb[0].mxu0
        %9221 = vmatprep.mubr.f32.mxu0 %v8756
        %9222 = vmatmul.mubr.f32.gmra.mrb[0].mxu0 %v8755
        %v9223 = vpop.f32.mrb[0].mxu0
        %v9224 = vadd.f32 %v9034, %v9223
        %v9225 = vpop.f32.mrb[0].mxu0
        %9226 = vmatprep.mubr.f32.mxu0 %v8763
        %9227 = vmatmul.mubr.f32.gmra.mrb[0].mxu0 %v8762
        %v9228 = vpop.f32.mrb[0].mxu0
        %v9229 = vadd.f32 %v9039, %v9228
        %v9230 = vpop.f32.mrb[0].mxu0
        %9231 = vmatprep.mubr.f32.mxu0 %v8770
        %9232 = vmatmul.mubr.f32.gmra.mrb[0].mxu0 %v8769
        %v9233 = vpop.f32.mrb[0].mxu0
        %v9234 = vadd.f32 %v9044, %v9233
        %v9235 = vpop.f32.mrb[0].mxu0
        %9236 = vmatprep.mubr.f32.mxu0 %v8777
        %9237 = vmatmul.mubr.f32.gmra.mrb[0].mxu0 %v8776
        %v9238 = vpop.f32.mrb[0].mxu0
        %v9239 = vadd.f32 %v9049, %v9238
        %v9240 = vpop.f32.mrb[0].mxu0
        %9241 = vmatprep.mubr.f32.mxu0 %v8784
        %9242 = vmatmul.mubr.f32.gmra.mrb[0].mxu0 %v8783
        %v9243 = vpop.f32.mrb[0].mxu0
        %v9244 = vadd.f32 %v9054, %v9243
        %v9245 = vpop.f32.mrb[0].mxu0
        %9246 = vmatprep.mubr.f32.mxu0 %v8791
        %9247 = vmatmul.mubr.f32.gmra.mrb[0].mxu0 %v8790
        %v9248 = vpop.f32.mrb[0].mxu0
        %v9249 = vadd.f32 %v9059, %v9248
        %v9250 = vpop.f32.mrb[0].mxu0
        %9251 = vmatprep.mubr.f32.mxu0 %v8798
        %9252 = vmatmul.mubr.f32.gmra.mrb[0].mxu0 %v8797
        %v9253 = vpop.f32.mrb[0].mxu0
        %v9254 = vadd.f32 %v9064, %v9253
        %v9255 = vpop.f32.mrb[0].mxu0
        %9256 = vdwg.mxu0
        %9257 = vmatprep.subr.mxu0 0.0
        %9258 = vmatpush1.msra.mxu0 %v8583
        %9259 = vmatprep.subr.mxu0 0.0
        %9260 = vmatpush1.msra.mxu0 %v8584
        %9261 = vmatprep.subr.mxu0 0.0
        %9262 = vmatpush1.msra.mxu0 %v8585
        %9263 = vmatprep.subr.mxu0 0.0
        %9264 = vmatpush1.msra.mxu0 %v8586
        %9265 = vmatprep.subr.mxu0 0.0
        %9266 = vmatpush1.msra.mxu0 %v8587
        %9267 = vmatprep.subr.mxu0 0.0
        %9268 = vmatpush1.msra.mxu0 %v8588
        %9269 = vmatprep.subr.mxu0 0.0
        %9270 = vmatpush1.msra.mxu0 %v8589
        %9271 = vmatprep.subr.mxu0 0.0
        %9272 = vmatpush1.msra.mxu0 %v8590
        %9273 = vmatprep.subr.mxu0 0.0
        %9274 = vmatpush1.msra.mxu0 %v8591
        %9275 = vmatprep.subr.mxu0 0.0
        %9276 = vmatpush1.msra.mxu0 %v8592
        %9277 = vmatprep.subr.mxu0 0.0
        %9278 = vmatpush1.msra.mxu0 %v8593
        %9279 = vmatprep.subr.mxu0 0.0
        %9280 = vmatpush1.msra.mxu0 %v8594
        %9281 = vmatprep.subr.mxu0 0.0
        %9282 = vmatpush1.msra.mxu0 %v8595
        %9283 = vmatprep.subr.mxu0 0.0
        %9284 = vmatpush1.msra.mxu0 %v8596
        %9285 = vmatprep.subr.mxu0 0.0
        %9286 = vmatpush1.msra.mxu0 %v8597
        %9287 = vmatprep.subr.mxu0 0.0
        %9288 = vmatpush1.msra.mxu0 %v8598
        %9289 = vmatprep.subr.mxu0 0.0
        %9290 = vmatpush1.msra.mxu0 %v8599
        %9291 = vmatprep.subr.mxu0 0.0
        %9292 = vmatpush1.msra.mxu0 %v8600
        %9293 = vmatprep.subr.mxu0 0.0
        %9294 = vmatpush1.msra.mxu0 %v8601
        %9295 = vmatprep.subr.mxu0 0.0
        %9296 = vmatpush1.msra.mxu0 %v8602
        %9297 = vmatprep.subr.mxu0 0.0
        %9298 = vmatpush1.msra.mxu0 %v8603
        %9299 = vmatprep.subr.mxu0 0.0
        %9300 = vmatpush1.msra.mxu0 %v8604
        %9301 = vmatprep.subr.mxu0 0.0
        %9302 = vmatpush1.msra.mxu0 %v8605
        %9303 = vmatprep.subr.mxu0 0.0
        %9304 = vmatpush1.msra.mxu0 %v8606
        %9305 = vmatprep.subr.mxu0 0.0
        %9306 = vmatpush1.msra.mxu0 %v8607
        %9307 = vmatprep.subr.mxu0 0.0
        %9308 = vmatpush1.msra.mxu0 %v8608
        %9309 = vmatprep.subr.mxu0 0.0
        %9310 = vmatpush1.msra.mxu0 %v8609
        %9311 = vmatprep.subr.mxu0 0.0
        %9312 = vmatpush1.msra.mxu0 %v8610
        %9313 = vmatprep.subr.mxu0 0.0
        %9314 = vmatpush1.msra.mxu0 %v8611
        %9315 = vmatprep.subr.mxu0 0.0
        %9316 = vmatpush1.msra.mxu0 %v8612
        %9317 = vmatprep.subr.mxu0 0.0
        %9318 = vmatpush1.msra.mxu0 %v8613
        %9319 = vmatprep.subr.mxu0 0.0
        %9320 = vmatpush1.msra.mxu0 %v8614
        %9321 = vmatprep.mubr.f32.mxu0 %v8632
        %9322 = vmatmul.mubr.f32.gmra.mrb[0].mxu0 %v8631
        %v9323 = vpop.f32.mrb[0].mxu0
        %v9324 = vadd.f32 %v9134, %v9323
        %v9325 = vpop.f32.mrb[0].mxu0
        %9326 = vmatprep.mubr.f32.mxu0 %v8639
        %9327 = vmatmul.mubr.f32.gmra.mrb[0].mxu0 %v8638
        %v9328 = vpop.f32.mrb[0].mxu0
        %v9329 = vadd.f32 %v9139, %v9328
        %v9330 = vpop.f32.mrb[0].mxu0
        %9331 = vmatprep.mubr.f32.mxu0 %v8646
        %9332 = vmatmul.mubr.f32.gmra.mrb[0].mxu0 %v8645
        %v9333 = vpop.f32.mrb[0].mxu0
        %v9334 = vadd.f32 %v9144, %v9333
        %v9335 = vpop.f32.mrb[0].mxu0
        %9336 = vmatprep.mubr.f32.mxu0 %v8653
        %9337 = vmatmul.mubr.f32.gmra.mrb[0].mxu0 %v8652
        %v9338 = vpop.f32.mrb[0].mxu0
        %v9339 = vadd.f32 %v9149, %v9338
        %v9340 = vpop.f32.mrb[0].mxu0
        %9341 = vmatprep.mubr.f32.mxu0 %v8660
        %9342 = vmatmul.mubr.f32.gmra.mrb[0].mxu0 %v8659
        %v9343 = vpop.f32.mrb[0].mxu0
        %v9344 = vadd.f32 %v9154, %v9343
        %v9345 = vpop.f32.mrb[0].mxu0
        %9346 = vmatprep.mubr.f32.mxu0 %v8667
        %9347 = vmatmul.mubr.f32.gmra.mrb[0].mxu0 %v8666
        %v9348 = vpop.f32.mrb[0].mxu0
        %v9349 = vadd.f32 %v9159, %v9348
        %v9350 = vpop.f32.mrb[0].mxu0
        %9351 = vmatprep.mubr.f32.mxu0 %v8674
        %9352 = vmatmul.mubr.f32.gmra.mrb[0].mxu0 %v8673
        %v9353 = vpop.f32.mrb[0].mxu0
        %v9354 = vadd.f32 %v9164, %v9353
        %v9355 = vpop.f32.mrb[0].mxu0
        %9356 = vmatprep.mubr.f32.mxu0 %v8681
        %9357 = vmatmul.mubr.f32.gmra.mrb[0].mxu0 %v8680
        %v9358 = vpop.f32.mrb[0].mxu0
        %v9359 = vadd.f32 %v9169, %v9358
        %v9360 = vpop.f32.mrb[0].mxu0
        %9361 = vmatprep.mubr.f32.mxu0 %v8688
        %9362 = vmatmul.mubr.f32.gmra.mrb[0].mxu0 %v8687
        %v9363 = vpop.f32.mrb[0].mxu0
        %v9364 = vadd.f32 %v9174, %v9363
        %v9365 = vpop.f32.mrb[0].mxu0
        %9366 = vmatprep.mubr.f32.mxu0 %v8695
        %9367 = vmatmul.mubr.f32.gmra.mrb[0].mxu0 %v8694
        %v9368 = vpop.f32.mrb[0].mxu0
        %v9369 = vadd.f32 %v9179, %v9368
        %v9370 = vpop.f32.mrb[0].mxu0
        %9371 = vmatprep.mubr.f32.mxu0 %v8702
        %9372 = vmatmul.mubr.f32.gmra.mrb[0].mxu0 %v8701
        %v9373 = vpop.f32.mrb[0].mxu0
        %v9374 = vadd.f32 %v9184, %v9373
        %v9375 = vpop.f32.mrb[0].mxu0
        %9376 = vmatprep.mubr.f32.mxu0 %v8709
        %9377 = vmatmul.mubr.f32.gmra.mrb[0].mxu0 %v8708
        %v9378 = vpop.f32.mrb[0].mxu0
        %v9379 = vadd.f32 %v9189, %v9378
        %v9380 = vpop.f32.mrb[0].mxu0
        %9381 = vmatprep.mubr.f32.mxu0 %v8716
        %9382 = vmatmul.mubr.f32.gmra.mrb[0].mxu0 %v8715
        %v9383 = vpop.f32.mrb[0].mxu0
        %v9384 = vadd.f32 %v9194, %v9383
        %v9385 = vpop.f32.mrb[0].mxu0
        %9386 = vmatprep.mubr.f32.mxu0 %v8723
        %9387 = vmatmul.mubr.f32.gmra.mrb[0].mxu0 %v8722
        %v9388 = vpop.f32.mrb[0].mxu0
        %v9389 = vadd.f32 %v9199, %v9388
        %v9390 = vpop.f32.mrb[0].mxu0
        %9391 = vmatprep.mubr.f32.mxu0 %v8730
        %9392 = vmatmul.mubr.f32.gmra.mrb[0].mxu0 %v8729
        %v9393 = vpop.f32.mrb[0].mxu0
        %v9394 = vadd.f32 %v9204, %v9393
        %v9395 = vpop.f32.mrb[0].mxu0
        %9396 = vmatprep.mubr.f32.mxu0 %v8737
        %9397 = vmatmul.mubr.f32.gmra.mrb[0].mxu0 %v8736
        %v9398 = vpop.f32.mrb[0].mxu0
        %v9399 = vadd.f32 %v9209, %v9398
        %v9400 = vpop.f32.mrb[0].mxu0
        %9401 = vmatprep.mubr.f32.mxu0 %v8744
        %9402 = vmatmul.mubr.f32.gmra.mrb[0].mxu0 %v8743
        %v9403 = vpop.f32.mrb[0].mxu0
        %v9404 = vadd.f32 %v9214, %v9403
        %v9405 = vpop.f32.mrb[0].mxu0
        %9406 = vmatprep.mubr.f32.mxu0 %v8751
        %9407 = vmatmul.mubr.f32.gmra.mrb[0].mxu0 %v8750
        %v9408 = vpop.f32.mrb[0].mxu0
        %v9409 = vadd.f32 %v9219, %v9408
        %v9410 = vpop.f32.mrb[0].mxu0
        %9411 = vmatprep.mubr.f32.mxu0 %v8758
        %9412 = vmatmul.mubr.f32.gmra.mrb[0].mxu0 %v8757
        %v9413 = vpop.f32.mrb[0].mxu0
        %v9414 = vadd.f32 %v9224, %v9413
        %v9415 = vpop.f32.mrb[0].mxu0
        %9416 = vmatprep.mubr.f32.mxu0 %v8765
        %9417 = vmatmul.mubr.f32.gmra.mrb[0].mxu0 %v8764
        %v9418 = vpop.f32.mrb[0].mxu0
        %v9419 = vadd.f32 %v9229, %v9418
        %v9420 = vpop.f32.mrb[0].mxu0
        %9421 = vmatprep.mubr.f32.mxu0 %v8772
        %9422 = vmatmul.mubr.f32.gmra.mrb[0].mxu0 %v8771
        %v9423 = vpop.f32.mrb[0].mxu0
        %v9424 = vadd.f32 %v9234, %v9423
        %v9425 = vpop.f32.mrb[0].mxu0
        %9426 = vmatprep.mubr.f32.mxu0 %v8779
        %9427 = vmatmul.mubr.f32.gmra.mrb[0].mxu0 %v8778
        %v9428 = vpop.f32.mrb[0].mxu0
        %v9429 = vadd.f32 %v9239, %v9428
        %v9430 = vpop.f32.mrb[0].mxu0
        %9431 = vmatprep.mubr.f32.mxu0 %v8786
        %9432 = vmatmul.mubr.f32.gmra.mrb[0].mxu0 %v8785
        %v9433 = vpop.f32.mrb[0].mxu0
        %v9434 = vadd.f32 %v9244, %v9433
        %v9435 = vpop.f32.mrb[0].mxu0
        %9436 = vmatprep.mubr.f32.mxu0 %v8793
        %9437 = vmatmul.mubr.f32.gmra.mrb[0].mxu0 %v8792
        %v9438 = vpop.f32.mrb[0].mxu0
        %v9439 = vadd.f32 %v9249, %v9438
        %v9440 = vpop.f32.mrb[0].mxu0
        %9441 = vmatprep.mubr.f32.mxu0 %v8800
        %9442 = vmatmul.mubr.f32.gmra.mrb[0].mxu0 %v8799
        %v9443 = vpop.f32.mrb[0].mxu0
        %v9444 = vadd.f32 %v9254, %v9443
        %v9445 = vpop.f32.mrb[0].mxu0
        %9446 = vdwg.mxu0
        %9447 = vmatprep.subr.mxu0 0.0
        %9448 = vmatpush1.msra.mxu0 %v8615
        %9449 = vmatprep.subr.mxu0 0.0
        %9450 = vmatpush1.msra.mxu0 %v8616
        %9451 = vmatprep.subr.mxu0 0.0
        %9452 = vmatpush1.msra.mxu0 %v8617
        %9453 = vmatprep.subr.mxu0 0.0
        %9454 = vmatpush1.msra.mxu0 %v8618
        %9455 = vmatprep.subr.mxu0 0.0
        %9456 = vmatpush1.msra.mxu0 %v8619
        %9457 = vmatprep.subr.mxu0 0.0
        %9458 = vmatpush1.msra.mxu0 %v8620
        %9459 = vmatprep.subr.mxu0 0.0
        %9460 = vmatpush1.msra.mxu0 %v8621
        %9461 = vmatprep.subr.mxu0 0.0
        %9462 = vmatpush1.msra.mxu0 %v8622
        %9463 = vmatprep.subr.mxu0 0.0
        %9464 = vmatpush1.msra.mxu0 %v8623
        %9465 = vmatprep.subr.mxu0 0.0
        %9466 = vmatpush1.msra.mxu0 %v8624
        %9467 = vmatprep.subr.mxu0 0.0
        %9468 = vmatpush1.msra.mxu0 %v8625
        %9469 = vmatprep.subr.mxu0 0.0
        %9470 = vmatpush1.msra.mxu0 %v8626
        %9471 = vmatprep.subr.mxu0 0.0
        %9472 = vmatpush1.msra.mxu0 0.0
        %9473 = vmatprep.subr.mxu0 0.0
        %9474 = vmatpush1.msra.mxu0 0.0
        %9475 = vmatprep.subr.mxu0 0.0
        %9476 = vmatpush1.msra.mxu0 0.0
        %9477 = vmatprep.subr.mxu0 0.0
        %9478 = vmatpush1.msra.mxu0 0.0
        %9479 = vmatprep.subr.mxu0 0.0
        %9480 = vmatpush1.msra.mxu0 0.0
        %9481 = vmatprep.subr.mxu0 0.0
        %9482 = vmatpush1.msra.mxu0 0.0
        %9483 = vmatprep.subr.mxu0 0.0
        %9484 = vmatpush1.msra.mxu0 0.0
        %9485 = vmatprep.subr.mxu0 0.0
        %9486 = vmatpush1.msra.mxu0 0.0
        %9487 = vmatprep.subr.mxu0 0.0
        %9488 = vmatpush1.msra.mxu0 0.0
        %9489 = vmatprep.subr.mxu0 0.0
        %9490 = vmatpush1.msra.mxu0 0.0
        %9491 = vmatprep.subr.mxu0 0.0
        %9492 = vmatpush1.msra.mxu0 0.0
        %9493 = vmatprep.subr.mxu0 0.0
        %9494 = vmatpush1.msra.mxu0 0.0
        %9495 = vmatprep.subr.mxu0 0.0
        %9496 = vmatpush1.msra.mxu0 0.0
        %9497 = vmatprep.subr.mxu0 0.0
        %9498 = vmatpush1.msra.mxu0 0.0
        %9499 = vmatprep.subr.mxu0 0.0
        %9500 = vmatpush1.msra.mxu0 0.0
        %9501 = vmatprep.subr.mxu0 0.0
        %9502 = vmatpush1.msra.mxu0 0.0
        %9503 = vmatprep.subr.mxu0 0.0
        %9504 = vmatpush1.msra.mxu0 0.0
        %9505 = vmatprep.subr.mxu0 0.0
        %9506 = vmatpush1.msra.mxu0 0.0
        %9507 = vmatprep.subr.mxu0 0.0
        %9508 = vmatpush1.msra.mxu0 0.0
        %9509 = vmatprep.subr.mxu0 0.0
        %9510 = vmatpush1.msra.mxu0 0.0
        %9511 = vmatprep.mubr.f32.mxu0 0.0
        %9512 = vmatmul.mubr.f32.gmra.mrb[0].mxu0 %v8803
        %v9513 = vpop.f32.mrb[0].mxu0
        %v9514 = vadd.f32 %v9324, %v9513
        %v9515 = vpop.f32.mrb[0].mxu0
        %9516 = vmatprep.mubr.f32.mxu0 0.0
        %9517 = vmatmul.mubr.f32.gmra.mrb[0].mxu0 %v8806
        %v9518 = vpop.f32.mrb[0].mxu0
        %v9519 = vadd.f32 %v9329, %v9518
        %v9520 = vpop.f32.mrb[0].mxu0
        %9521 = vmatprep.mubr.f32.mxu0 0.0
        %9522 = vmatmul.mubr.f32.gmra.mrb[0].mxu0 %v8809
        %v9523 = vpop.f32.mrb[0].mxu0
        %v9524 = vadd.f32 %v9334, %v9523
        %v9525 = vpop.f32.mrb[0].mxu0
        %9526 = vmatprep.mubr.f32.mxu0 0.0
        %9527 = vmatmul.mubr.f32.gmra.mrb[0].mxu0 %v8812
        %v9528 = vpop.f32.mrb[0].mxu0
        %v9529 = vadd.f32 %v9339, %v9528
        %v9530 = vpop.f32.mrb[0].mxu0
        %9531 = vmatprep.mubr.f32.mxu0 0.0
        %9532 = vmatmul.mubr.f32.gmra.mrb[0].mxu0 %v8815
        %v9533 = vpop.f32.mrb[0].mxu0
        %v9534 = vadd.f32 %v9344, %v9533
        %v9535 = vpop.f32.mrb[0].mxu0
        %9536 = vmatprep.mubr.f32.mxu0 0.0
        %9537 = vmatmul.mubr.f32.gmra.mrb[0].mxu0 %v8818
        %v9538 = vpop.f32.mrb[0].mxu0
        %v9539 = vadd.f32 %v9349, %v9538
        %v9540 = vpop.f32.mrb[0].mxu0
        %9541 = vmatprep.mubr.f32.mxu0 0.0
        %9542 = vmatmul.mubr.f32.gmra.mrb[0].mxu0 %v8821
        %v9543 = vpop.f32.mrb[0].mxu0
        %v9544 = vadd.f32 %v9354, %v9543
        %v9545 = vpop.f32.mrb[0].mxu0
        %9546 = vmatprep.mubr.f32.mxu0 0.0
        %9547 = vmatmul.mubr.f32.gmra.mrb[0].mxu0 %v8824
        %v9548 = vpop.f32.mrb[0].mxu0
        %v9549 = vadd.f32 %v9359, %v9548
        %v9550 = vpop.f32.mrb[0].mxu0
        %9551 = vmatprep.mubr.f32.mxu0 0.0
        %9552 = vmatmul.mubr.f32.gmra.mrb[0].mxu0 %v8827
        %v9553 = vpop.f32.mrb[0].mxu0
        %v9554 = vadd.f32 %v9364, %v9553
        %v9555 = vpop.f32.mrb[0].mxu0
        %9556 = vmatprep.mubr.f32.mxu0 0.0
        %9557 = vmatmul.mubr.f32.gmra.mrb[0].mxu0 %v8830
        %v9558 = vpop.f32.mrb[0].mxu0
        %v9559 = vadd.f32 %v9369, %v9558
        %v9560 = vpop.f32.mrb[0].mxu0
        %9561 = vmatprep.mubr.f32.mxu0 0.0
        %9562 = vmatmul.mubr.f32.gmra.mrb[0].mxu0 %v8833
        %v9563 = vpop.f32.mrb[0].mxu0
        %v9564 = vadd.f32 %v9374, %v9563
        %v9565 = vpop.f32.mrb[0].mxu0
        %9566 = vmatprep.mubr.f32.mxu0 0.0
        %9567 = vmatmul.mubr.f32.gmra.mrb[0].mxu0 %v8836
        %v9568 = vpop.f32.mrb[0].mxu0
        %v9569 = vadd.f32 %v9379, %v9568
        %v9570 = vpop.f32.mrb[0].mxu0
        %9571 = vmatprep.mubr.f32.mxu0 0.0
        %9572 = vmatmul.mubr.f32.gmra.mrb[0].mxu0 %v8839
        %v9573 = vpop.f32.mrb[0].mxu0
        %v9574 = vadd.f32 %v9384, %v9573
        %v9575 = vpop.f32.mrb[0].mxu0
        %9576 = vmatprep.mubr.f32.mxu0 0.0
        %9577 = vmatmul.mubr.f32.gmra.mrb[0].mxu0 %v8842
        %v9578 = vpop.f32.mrb[0].mxu0
        %v9579 = vadd.f32 %v9389, %v9578
        %v9580 = vpop.f32.mrb[0].mxu0
        %9581 = vmatprep.mubr.f32.mxu0 0.0
        %9582 = vmatmul.mubr.f32.gmra.mrb[0].mxu0 %v8845
        %v9583 = vpop.f32.mrb[0].mxu0
        %v9584 = vadd.f32 %v9394, %v9583
        %v9585 = vpop.f32.mrb[0].mxu0
        %9586 = vmatprep.mubr.f32.mxu0 0.0
        %9587 = vmatmul.mubr.f32.gmra.mrb[0].mxu0 %v8848
        %v9588 = vpop.f32.mrb[0].mxu0
        %v9589 = vadd.f32 %v9399, %v9588
        %v9590 = vpop.f32.mrb[0].mxu0
        %9591 = vmatprep.mubr.f32.mxu0 0.0
        %9592 = vmatmul.mubr.f32.gmra.mrb[0].mxu0 %v8851
        %v9593 = vpop.f32.mrb[0].mxu0
        %v9594 = vadd.f32 %v9404, %v9593
        %v9595 = vpop.f32.mrb[0].mxu0
        %9596 = vmatprep.mubr.f32.mxu0 0.0
        %9597 = vmatmul.mubr.f32.gmra.mrb[0].mxu0 %v8854
        %v9598 = vpop.f32.mrb[0].mxu0
        %v9599 = vadd.f32 %v9409, %v9598
        %v9600 = vpop.f32.mrb[0].mxu0
        %9601 = vmatprep.mubr.f32.mxu0 0.0
        %9602 = vmatmul.mubr.f32.gmra.mrb[0].mxu0 %v8857
        %v9603 = vpop.f32.mrb[0].mxu0
        %v9604 = vadd.f32 %v9414, %v9603
        %v9605 = vpop.f32.mrb[0].mxu0
        %9606 = vmatprep.mubr.f32.mxu0 0.0
        %9607 = vmatmul.mubr.f32.gmra.mrb[0].mxu0 %v8860
        %v9608 = vpop.f32.mrb[0].mxu0
        %v9609 = vadd.f32 %v9419, %v9608
        %v9610 = vpop.f32.mrb[0].mxu0
        %9611 = vmatprep.mubr.f32.mxu0 0.0
        %9612 = vmatmul.mubr.f32.gmra.mrb[0].mxu0 %v8863
        %v9613 = vpop.f32.mrb[0].mxu0
        %v9614 = vadd.f32 %v9424, %v9613
        %v9615 = vpop.f32.mrb[0].mxu0
        %9616 = vmatprep.mubr.f32.mxu0 0.0
        %9617 = vmatmul.mubr.f32.gmra.mrb[0].mxu0 %v8866
        %v9618 = vpop.f32.mrb[0].mxu0
        %v9619 = vadd.f32 %v9429, %v9618
        %v9620 = vpop.f32.mrb[0].mxu0
        %9621 = vmatprep.mubr.f32.mxu0 0.0
        %9622 = vmatmul.mubr.f32.gmra.mrb[0].mxu0 %v8869
        %v9623 = vpop.f32.mrb[0].mxu0
        %v9624 = vadd.f32 %v9434, %v9623
        %v9625 = vpop.f32.mrb[0].mxu0
        %9626 = vmatprep.mubr.f32.mxu0 0.0
        %9627 = vmatmul.mubr.f32.gmra.mrb[0].mxu0 %v8872
        %v9628 = vpop.f32.mrb[0].mxu0
        %v9629 = vadd.f32 %v9439, %v9628
        %v9630 = vpop.f32.mrb[0].mxu0
        %9631 = vmatprep.mubr.f32.mxu0 0.0
        %9632 = vmatmul.mubr.f32.gmra.mrb[0].mxu0 %v8875
        %v9633 = vpop.f32.mrb[0].mxu0
        %v9634 = vadd.f32 %v9444, %v9633
        %v9635 = vpop.f32.mrb[0].mxu0
        %9636 = vdwg.mxu0
        %9637 = vst.msk [vmem:[%s291] sm:$0xff] %vm5875, %v9514
        %9638 = vst.msk [vmem:[%s291 + $0x8] sm:$0xff] %vm5875, %v9519
        %9639 = vst.msk [vmem:[%s291 + $0x10] sm:$0xff] %vm5875, %v9524
        %9640 = vst.msk [vmem:[%s291 + $0x18] sm:$0xff] %vm5875, %v9529
        %9641 = vst.msk [vmem:[%s291 + $0x20] sm:$0xff] %vm5875, %v9534
        %9642 = vst.msk [vmem:[%s291 + $0x28] sm:$0xff] %vm5875, %v9539
        %9643 = vst.msk [vmem:[%s291 + $0x30] sm:$0xff] %vm5875, %v9544
        %9644 = vst.msk [vmem:[%s291 + $0x38] sm:$0xff] %vm5875, %v9549
        %9645 = vst.msk [vmem:[%s291 + $0x40] sm:$0xff] %vm5875, %v9554
        %9646 = vst.msk [vmem:[%s291 + $0x48] sm:$0xff] %vm5875, %v9559
        %9647 = vst.msk [vmem:[%s291 + $0x50] sm:$0xff] %vm5875, %v9564
        %9648 = vst.msk [vmem:[%s291 + $0x58] sm:$0xff] %vm5875, %v9569
        %9649 = vst.msk [vmem:[%s291 + $0x60] sm:$0xff] %vm5875, %v9574
        %9650 = vst.msk [vmem:[%s291 + $0x68] sm:$0xff] %vm5875, %v9579
        %9651 = vst.msk [vmem:[%s291 + $0x70] sm:$0xff] %vm5875, %v9584
        %9652 = vst.msk [vmem:[%s291 + $0x78] sm:$0xff] %vm5875, %v9589
        %9653 = vst.msk [vmem:[%s291 + $0x80] sm:$0xff] %vm5875, %v9594
        %9654 = vst.msk [vmem:[%s291 + $0x88] sm:$0xff] %vm5875, %v9599
        %9655 = vst.msk [vmem:[%s291 + $0x90] sm:$0xff] %vm5875, %v9604
        %9656 = vst.msk [vmem:[%s291 + $0x98] sm:$0xff] %vm5875, %v9609
        %9657 = vst.msk [vmem:[%s291 + $0xa0] sm:$0xff] %vm5875, %v9614
        %9658 = vst.msk [vmem:[%s291 + $0xa8] sm:$0xff] %vm5875, %v9619
        %9659 = vst.msk [vmem:[%s291 + $0xb0] sm:$0xff] %vm5875, %v9624
        %9660 = vst.msk [vmem:[%s291 + $0xb8] sm:$0xff] %vm5875, %v9629
        %vm9661 = vcmask 519168
        %9662 = vst.msk [vmem:[%s291 + $0xc0] sm:$0xf] %vm9661, %v9634
        %p9663 = scmp.lt.s32.totalorder %s19, 1
        %s9664 = scalar_select %p9663, %s19, 1
        %s9665 = smul.addr %s9664, 25
        %s9666 = smul.addr %s9665, 8
        %s9667 = scalar_lea.vmem %s6, %s9666
        // Predicated region
        $region57: #{mnist_model_forward.2} parent=43 // pred_check
          %p9668 = pneg %p168
        $region58: #{mnist_model_forward.2} parent=43 // pred_check_branch
          %9670 = sbr.rel (%p9668) target = $region60
        $region59: #{mnist_model_forward.2} parent=43 // pred_region
          _
        $region60: #{mnist_model_forward.2} parent=43 // pred_fallthru
          _
      $region44: #{mnist_model_forward.2} parent=5 // pred_fallthru
        _
      %p9671 = scmp.le.s32.totalorder 2, %s14
      // Predicated region
      $region61: #{mnist_model_forward.2} parent=5 // pred_check
        %p9672 = pneg %p9671
      $region62: #{mnist_model_forward.2} parent=5 // pred_check_branch
        %9674 = sbr.rel (%p9672) target = $region64
      $region63: #{mnist_model_forward.2} parent=5 // pred_region
        %s9675 = ssub.s32 %s14, 2
        // Predicated region
        $region65: #{mnist_model_forward.2} parent=63 // pred_check
          %p9676 = pneg %p174
        $region66: #{mnist_model_forward.2} parent=63 // pred_check_branch
          %9678 = sbr.rel (%p9676) target = $region68
        $region67: #{mnist_model_forward.2} parent=63 // pred_region
          %p9679 = scmp.lt.s32.totalorder %s20, 1
          %s9680 = scalar_select %p9679, %s20, 1
          %s9681 = smul.addr %s9680, 25
          %s9682 = smul.addr %s9681, 8
          %s9683 = scalar_lea.vmem %s6, %s9682
        $region68: #{mnist_model_forward.2} parent=63 // pred_fallthru
          _
      $region64: #{mnist_model_forward.2} parent=5 // pred_fallthru
        _
    $region6: #{mnist_model_forward.2} parent=1 // loop_footer
      %s18 = sadd.s32 1, %s14
    $region7: #{mnist_model_forward.2} parent=1 // loop_footer_branch
      %13 = sbr.rel target = $region3
    $region8: #{mnist_model_forward.2} parent=1 // loop_exit
      _
    %9684 = vsyncpa [#allocation5], 1
    %s9685 = scalar_lea.sflag [#allocation5], 1
    %9686 = vsyncpa %s9685, 1
    %9687 = vsyncpa [#allocation7], 1

</llo_original>
